<compile_context>
chip_gen: v7x
topology: tpu7x:2x2x1
jax: 0.10.0
libtpu: 0.0.40
codegen_flags: <defaults>
</compile_context>

<pallas_src>
import functools

import jax
import jax.numpy as jnp
import numpy as np
from jax.experimental import pallas as pl
from jax.experimental.pallas import tpu as pltpu

EPS = 1e-5


# ----------------------------------------------------------------------------
# Fused generator kernel: one pallas_call for the whole forward pass.
# Activation layout inside the kernel:  A[b*H + y, x*C + c]   (2-D, lane dense)
# ----------------------------------------------------------------------------
def _fused_generator_kernel(names, B, ch, bw, compute_dtype, *refs):
    z_ref = refs[0]
    out_ref = refs[-1]
    d = dict(zip(names, refs[1:-1]))

    def mm(a, b):
        # MXU matmul; operands optionally cast to bf16 (v6e/v7x), f32 accumulate.
        return jnp.dot(a.astype(compute_dtype), b.astype(compute_dtype),
                       preferred_element_type=jnp.float32)

    def bn_relu(a, g_ref, b_ref, W, n):
        # Single-pass batch-norm (batch stats, biased variance) + ReLU, in f32.
        # Per-channel stats are gathered from the (rows, W*C) layout with a
        # tiny 0/1 matrix G (W*C, C); scale/shift tiled back with Gt = G.T.
        g_mat = d[f"G{W}"][...]
        gt_mat = d[f"Gt{W}"][...]
        colsum = jnp.sum(a, axis=0, keepdims=True)                       # (1, W*C)
        colsq = jnp.sum(a * a, axis=0, keepdims=True)                    # (1, W*C)
        s = jnp.dot(colsum, g_mat, preferred_element_type=jnp.float32)   # (1, C)
        sq = jnp.dot(colsq, g_mat, preferred_element_type=jnp.float32)   # (1, C)
        inv_n = 1.0 / float(n)
        mean = s * inv_n
        var = sq * inv_n - mean * mean
        scale = g_ref[...] * jax.lax.rsqrt(var + EPS)                    # (1, C)
        shift = b_ref[...] - mean * scale                                # (1, C)
        scale_col = jnp.dot(scale, gt_mat, preferred_element_type=jnp.float32)
        shift_col = jnp.dot(shift, gt_mat, preferred_element_type=jnp.float32)
        return jnp.maximum(a * scale_col + shift_col, 0.0)

    def conv3(a, l_ref, r_ref, b_ref):
        # 3x3 SAME conv (optionally fused with 2x nearest upsampling):
        #     out = sum_dy  L[dy] @ a @ R[dy]  + bias_row
        acc = mm(l_ref[0], mm(a, r_ref[0]))
        for t in (1, 2):
            acc = acc + mm(l_ref[t], mm(a, r_ref[t]))
        return acc + b_ref[...]

    # ---- l1: latent -> (B*bw, bw*ch), emitted directly in the 2-D layout ----
    z = z_ref[...]
    h = d["l1_bias"][...]
    for y in range(bw):
        h = h + mm(d["l1_r"][y], mm(z, d["l1_w"][y]))

    # ---- GenBlocks: BN-ReLU-up-conv3 - BN-ReLU-conv3  +  (up-1x1 shortcut) ----
    H = bw
    for blk in ("block2", "block3", "block4"):
        W, H2 = H, 2 * H
        r = bn_relu(h, d[f"{blk}_g1"], d[f"{blk}_b1"], W, B * H * W)
        r = conv3(r, d[f"{blk}_c1_l"], d[f"{blk}_c1_r"], d[f"{blk}_c1_b"])
        r = bn_relu(r, d[f"{blk}_g2"], d[f"{blk}_b2"], H2, B * H2 * H2)
        r = conv3(r, d[f"{blk}_c2_l"], d[f"{blk}_c2_r"], d[f"{blk}_c2_b"])
        sc = mm(d[f"{blk}_sc_l"][...], mm(h, d[f"{blk}_sc_r"][...])) \
            + d[f"{blk}_sc_b"][...]
        h = r + sc
        H = H2

    # ---- b5 -> ReLU -> c5 -> sigmoid ----
    h = bn_relu(h, d["g5"], d["b5"], H, B * H * H)
    h = conv3(h, d["c5_l"], d["c5_r"], d["c5_b"])
    out_ref[...] = jax.nn.sigmoid(h)


# ----------------------------------------------------------------------------
# Host-side construction of the constant operator matrices (one-time parameter
# preparation; plain numpy).
# ----------------------------------------------------------------------------
def _shift_matrix(B, H, s):
    """(B*H, B*H): output row (b, y) <- input row (b, y+s), zero if OOB."""
    S = np.zeros((B * H, B * H), np.float32)
    for b in range(B):
        for y in range(H):
            ys = y + s
            if 0 <= ys < H:
                S[b * H + y, b * H + ys] = 1.0
    return S


def _dup_rows(B, H):
    """(B*2H, B*H): 2x nearest-neighbour row duplication per image."""
    D = np.zeros((B * 2 * H, B * H), np.float32)
    for b in range(B):
        for yy in range(2 * H):
            D[b * 2 * H + yy, b * H + yy // 2] = 1.0
    return D


def _dup_cols(W, C):
    """(W*C, 2W*C): 2x nearest-neighbour column duplication (channel-interleaved)."""
    E = np.zeros((W * C, 2 * W * C), np.float32)
    for x in range(W):
        for xx in (2 * x, 2 * x + 1):
            for c in range(C):
                E[x * C + c, xx * C + c] = 1.0
    return E


def _band(w_dy, W):
    """Banded dx/channel weight matrix (W*Cin, W*Cout) for one conv row-tap.

    w_dy: (3, Cin, Cout) for dx = 0, 1, 2 (SAME zero padding along x)."""
    _, Cin, Cout = w_dy.shape
    M = np.zeros((W * Cin, W * Cout), np.float32)
    for x in range(W):
        for dx in range(3):
            xi = x + dx - 1
            if 0 <= xi < W:
                M[xi * Cin:(xi + 1) * Cin, x * Cout:(x + 1) * Cout] = w_dy[dx]
    return M


def _block_diag(w, W):
    """(W*Cin, W*Cout) block-diagonal matrix implementing a 1x1 conv."""
    Cin, Cout = w.shape
    M = np.zeros((W * Cin, W * Cout), np.float32)
    for x in range(W):
        M[x * Cin:(x + 1) * Cin, x * Cout:(x + 1) * Cout] = w
    return M


def _gather_mats(W, C):
    """G (W*C, C) sums the W columns of each channel; Gt tiles (1,C)->(1,W*C)."""
    G = np.zeros((W * C, C), np.float32)
    for x in range(W):
        for c in range(C):
            G[x * C + c, c] = 1.0
    return G, np.ascontiguousarray(G.T)


def _bias_row(bias, W):
    return np.tile(np.asarray(bias, np.float32).reshape(1, -1), (1, W))


def prepare_inputs(params, B, ch, bw):
    """Fold weights + upsample/pad/im2col structure into constant matmul
    operands consumed by the fused kernel.  Returns (names, arrays)."""
    items = []

    def add(name, arr):
        items.append((name, jnp.asarray(np.asarray(arr, np.float32))))

    # l1: PyTorch column order is .view(-1, ch, bw, bw) = (c, y, x); re-pack
    # per output row y so the kernel emits the (b*bw+y, x*ch+c) layout directly.
    wl = np.asarray(params["l1_w"], np.float32)                    # (latent, bw*bw*ch)
    latent = wl.shape[0]
    wl = wl.reshape(latent, ch, bw, bw)                            # (l, c, y, x)
    add("l1_w", np.transpose(wl, (2, 0, 3, 1)).reshape(bw, latent, bw * ch))
    R = np.zeros((bw, B * bw, B), np.float32)
    for y in range(bw):
        for b in range(B):
            R[y, b * bw + y, b] = 1.0
    add("l1_r", R)
    bl = np.asarray(params["l1_b"], np.float32).reshape(ch, bw, bw)
    add("l1_bias", np.tile(np.transpose(bl, (1, 2, 0)).reshape(bw, bw * ch), (B, 1)))

    # Batch-norm channel gather / tile matrices, one pair per resolution.
    for W in sorted({bw, 2 * bw, 4 * bw, 8 * bw}):
        G, Gt = _gather_mats(W, ch)
        add(f"G{W}", G)
        add(f"Gt{W}", Gt)

    # GenBlocks.
    H = bw
    for blk in ("block2", "block3", "block4"):
        p = params[blk]
        W, H2, W2 = H, 2 * H, 2 * H
        add(f"{blk}_g1", p["b1_g"])
        add(f"{blk}_b1", p["b1_b"])
        # c1 = conv3x3 after 2x upsample: fold shift+row-dup (left) and
        # col-dup+banded-dx (right) into per-dy operator pairs.
        w1 = np.asarray(p["c1_w"], np.float32)                     # (3,3,Cin,Chid)
        Dr = _dup_rows(B, H)
        Ec = _dup_cols(W, ch)
        add(f"{blk}_c1_l", np.stack([_shift_matrix(B, H2, dy - 1) @ Dr
                                     for dy in range(3)]))
        add(f"{blk}_c1_r", np.stack([Ec @ _band(w1[dy], W2) for dy in range(3)]))
        add(f"{blk}_c1_b", _bias_row(p["c1_b"], W2))
        add(f"{blk}_g2", p["b2_g"])
        add(f"{blk}_b2", p["b2_b"])
        # c2 = plain conv3x3 at the upsampled resolution.
        w2 = np.asarray(p["c2_w"], np.float32)
        add(f"{blk}_c2_l", np.stack([_shift_matrix(B, H2, dy - 1)
                                     for dy in range(3)]))
        add(f"{blk}_c2_r", np.stack([_band(w2[dy], W2) for dy in range(3)]))
        add(f"{blk}_c2_b", _bias_row(p["c2_b"], W2))
        # shortcut = 1x1 conv after 2x upsample (learnable because upsample=True).
        add(f"{blk}_sc_l", Dr)
        add(f"{blk}_sc_r", Ec @ _block_diag(np.asarray(p["csc_w"], np.float32), W2))
        add(f"{blk}_sc_b", _bias_row(p["csc_b"], W2))
        H = H2

    # Final BN + c5 (3x3 conv, Cout=3).
    add("g5", params["b5_g"])
    add("b5", params["b5_b"])
    w5 = np.asarray(params["c5_w"], np.float32)
    add("c5_l", np.stack([_shift_matrix(B, H, dy - 1) for dy in range(3)]))
    add("c5_r", np.stack([_band(w5[dy], H) for dy in range(3)]))
    add("c5_b", _bias_row(params["c5_b"], H))

    names = tuple(n for n, _ in items)
    arrays = [a for _, a in items]
    return names, arrays


# ----------------------------------------------------------------------------
# Public wrapper: single fused pallas_call.
# ----------------------------------------------------------------------------
def generator_forward(z, names, const_inputs, B, ch, bw,
                      compute_dtype=jnp.bfloat16):
    """Whole generator as one fused Pallas kernel.  Returns NCHW (B,3,bw*8,bw*8)."""
    Hf = bw * 8                                   # 3 blocks of 2x upsampling
    kernel = functools.partial(_fused_generator_kernel, names, B, ch, bw,
                               compute_dtype)
    n_in = 1 + len(const_inputs)
    y2d = pl.pallas_call(
        kernel,
        out_shape=jax.ShapeDtypeStruct((B * Hf, Hf * 3), jnp.float32),
        in_specs=[pl.BlockSpec(memory_space=pltpu.MemorySpace.VMEM)] * n_in,
        out_specs=pl.BlockSpec(memory_space=pltpu.MemorySpace.VMEM),
        # NOTE: no grid — the whole net (<3 MB weights + activations) lives in
        # VMEM.  A v7x dual-TensorCore split is skipped on purpose: BatchNorm
        # needs global batch statistics (would require cross-core reduction).
    )(z, *const_inputs)
    # Layout plumbing only: (b*H+y, x*3+c) -> NCHW.  24 KB, negligible.
    return y2d.reshape(B, Hf, Hf, 3).transpose(0, 3, 1, 2)


# ----------------------------------------------------------------------------
# Parameter init (deterministic, synthetic), module-like representation.
# Conv weights are HWIO = (kh, kw, Cin, Cout); linear is (latent, out).
# ----------------------------------------------------------------------------
def init_genblock(key, cin, cout):
    hidden = cout  # hidden_channels defaults to out_channels
    ks = jax.random.split(key, 6)
    return {
        "b1_g": jnp.ones((1, cin), jnp.float32),
        "b1_b": jnp.zeros((1, cin), jnp.float32),
        "c1_w": 0.05 * jax.random.normal(ks[0], (3, 3, cin, hidden), jnp.float32),
        "c1_b": 0.05 * jax.random.normal(ks[1], (1, hidden), jnp.float32),
        "b2_g": jnp.ones((1, hidden), jnp.float32),
        "b2_b": jnp.zeros((1, hidden), jnp.float32),
        "c2_w": 0.05 * jax.random.normal(ks[2], (3, 3, hidden, cout), jnp.float32),
        "c2_b": 0.05 * jax.random.normal(ks[3], (1, cout), jnp.float32),
        "csc_w": 0.05 * jax.random.normal(ks[4], (cin, cout), jnp.float32),
        "csc_b": 0.05 * jax.random.normal(ks[5], (1, cout), jnp.float32),
    }


def init_params(key, latent, ch, bw):
    keys = jax.random.split(key, 7)
    out1 = bw * bw * ch
    return {
        "l1_w": 0.05 * jax.random.normal(keys[0], (latent, out1), jnp.float32),
        "l1_b": 0.05 * jax.random.normal(keys[1], (1, out1), jnp.float32),
        "block2": init_genblock(keys[2], ch, ch),
        "block3": init_genblock(keys[3], ch, ch),
        "block4": init_genblock(keys[4], ch, ch),
        "b5_g": jnp.ones((1, ch), jnp.float32),
        "b5_b": jnp.zeros((1, ch), jnp.float32),
        "c5_w": 0.05 * jax.random.normal(keys[5], (3, 3, ch, 3), jnp.float32),
        "c5_b": 0.05 * jax.random.normal(keys[6], (1, 3), jnp.float32),
    }


# ----------------------------------------------------------------------------
# Pure-JAX reference (NHWC) for correctness checking of the Pallas path.
# ----------------------------------------------------------------------------
def upsample2x(x):
    return jnp.repeat(jnp.repeat(x, 2, axis=1), 2, axis=2)


def _bn_relu_ref(x, g, b):
    mean = jnp.mean(x, axis=(0, 1, 2), keepdims=True)
    var = jnp.mean((x - mean) ** 2, axis=(0, 1, 2), keepdims=True)
    y = (x - mean) * jax.lax.rsqrt(var + EPS) * g.reshape(1, 1, 1, -1) \
        + b.reshape(1, 1, 1, -1)
    return jnp.maximum(y, 0.0)


def _conv_ref(x, w, b):
    y = jax.lax.conv_general_dilated(
        x, w, window_strides=(1, 1), padding="SAME",
        dimension_numbers=("NHWC", "HWIO", "NHWC"))
    return y + b.reshape(1, 1, 1, -1)


def _conv1x1_ref(x, w, b):
    return jnp.einsum("bhwc,co->bhwo", x, w) + b.reshape(1, 1, 1, -1)


def generator_ref(z, params, ch, bw):
    B = z.shape[0]
    h = z @ params["l1_w"] + params["l1_b"]
    h = h.reshape(B, ch, bw, bw).transpose(0, 2, 3, 1)
    for name in ("block2", "block3", "block4"):
        p = params[name]
        r = _bn_relu_ref(h, p["b1_g"], p["b1_b"])
        r = _conv_ref(upsample2x(r), p["c1_w"], p["c1_b"])
        r = _bn_relu_ref(r, p["b2_g"], p["b2_b"])
        r = _conv_ref(r, p["c2_w"], p["c2_b"])
        sc = _conv1x1_ref(upsample2x(h), p["csc_w"], p["csc_b"])
        h = r + sc
    h = _bn_relu_ref(h, params["b5_g"], params["b5_b"])
    h = jax.nn.sigmoid(_conv_ref(h, params["c5_w"], params["c5_b"]))
    return h.transpose(0, 3, 1, 2)


# ----------------------------------------------------------------------------
if __name__ == "__main__":
    # latent_dim=16, gf_dim=8, bottom_width=4, batch=2  ->  output (2, 3, 32, 32)
    B, LATENT, CH, BW = 2, 16, 8, 4

    key = jax.random.PRNGKey(0)
    kp, kz = jax.random.split(key)
    params = init_params(kp, LATENT, CH, BW)
    z = jax.random.normal(kz, (B, LATENT), jnp.float32)

    names, consts = prepare_inputs(params, B, CH, BW)
    ref = generator_ref(z, params, CH, BW)

    # f32 matmul path (v5e-friendly): tight check against the pure-JAX reference.
    out = jax.block_until_ready(
        generator_forward(z, names, consts, B, CH, BW, compute_dtype=jnp.float32))
    assert out.shape == (B, 3, BW * 8, BW * 8), out.shape
    assert jnp.allclose(out, ref, atol=3e-3, rtol=3e-3), \
        float(jnp.max(jnp.abs(out - ref)))

    # bf16 matmul-operand path (v6e / v7x MXU, f32 accumulation): looser check.
    out_bf16 = jax.block_until_ready(
        generator_forward(z, names, consts, B, CH, BW, compute_dtype=jnp.bfloat16))
    assert jnp.allclose(out_bf16, ref, atol=5e-2, rtol=5e-2), \
        float(jnp.max(jnp.abs(out_bf16 - ref)))

    print("KERNEL_OK")
</pallas_src>

<mosaic_0001>
module attributes {stable_mosaic.version = 11 : i64} {
  func.func @_fused_generator_kernel(%arg0: memref<2x16xf32, #tpu.memory_space<vmem>>, %arg1: memref<4x16x32xf32, #tpu.memory_space<vmem>>, %arg2: memref<4x8x2xf32, #tpu.memory_space<vmem>>, %arg3: memref<8x32xf32, #tpu.memory_space<vmem>>, %arg4: memref<32x8xf32, #tpu.memory_space<vmem>>, %arg5: memref<8x32xf32, #tpu.memory_space<vmem>>, %arg6: memref<64x8xf32, #tpu.memory_space<vmem>>, %arg7: memref<8x64xf32, #tpu.memory_space<vmem>>, %arg8: memref<128x8xf32, #tpu.memory_space<vmem>>, %arg9: memref<8x128xf32, #tpu.memory_space<vmem>>, %arg10: memref<256x8xf32, #tpu.memory_space<vmem>>, %arg11: memref<8x256xf32, #tpu.memory_space<vmem>>, %arg12: memref<1x8xf32, #tpu.memory_space<vmem>>, %arg13: memref<1x8xf32, #tpu.memory_space<vmem>>, %arg14: memref<3x16x8xf32, #tpu.memory_space<vmem>>, %arg15: memref<3x32x64xf32, #tpu.memory_space<vmem>>, %arg16: memref<1x64xf32, #tpu.memory_space<vmem>>, %arg17: memref<1x8xf32, #tpu.memory_space<vmem>>, %arg18: memref<1x8xf32, #tpu.memory_space<vmem>>, %arg19: memref<3x16x16xf32, #tpu.memory_space<vmem>>, %arg20: memref<3x64x64xf32, #tpu.memory_space<vmem>>, %arg21: memref<1x64xf32, #tpu.memory_space<vmem>>, %arg22: memref<16x8xf32, #tpu.memory_space<vmem>>, %arg23: memref<32x64xf32, #tpu.memory_space<vmem>>, %arg24: memref<1x64xf32, #tpu.memory_space<vmem>>, %arg25: memref<1x8xf32, #tpu.memory_space<vmem>>, %arg26: memref<1x8xf32, #tpu.memory_space<vmem>>, %arg27: memref<3x32x16xf32, #tpu.memory_space<vmem>>, %arg28: memref<3x64x128xf32, #tpu.memory_space<vmem>>, %arg29: memref<1x128xf32, #tpu.memory_space<vmem>>, %arg30: memref<1x8xf32, #tpu.memory_space<vmem>>, %arg31: memref<1x8xf32, #tpu.memory_space<vmem>>, %arg32: memref<3x32x32xf32, #tpu.memory_space<vmem>>, %arg33: memref<3x128x128xf32, #tpu.memory_space<vmem>>, %arg34: memref<1x128xf32, #tpu.memory_space<vmem>>, %arg35: memref<32x16xf32, #tpu.memory_space<vmem>>, %arg36: memref<64x128xf32, #tpu.memory_space<vmem>>, %arg37: memref<1x128xf32, #tpu.memory_space<vmem>>, %arg38: memref<1x8xf32, #tpu.memory_space<vmem>>, %arg39: memref<1x8xf32, #tpu.memory_space<vmem>>, %arg40: memref<3x64x32xf32, #tpu.memory_space<vmem>>, %arg41: memref<3x128x256xf32, #tpu.memory_space<vmem>>, %arg42: memref<1x256xf32, #tpu.memory_space<vmem>>, %arg43: memref<1x8xf32, #tpu.memory_space<vmem>>, %arg44: memref<1x8xf32, #tpu.memory_space<vmem>>, %arg45: memref<3x64x64xf32, #tpu.memory_space<vmem>>, %arg46: memref<3x256x256xf32, #tpu.memory_space<vmem>>, %arg47: memref<1x256xf32, #tpu.memory_space<vmem>>, %arg48: memref<64x32xf32, #tpu.memory_space<vmem>>, %arg49: memref<128x256xf32, #tpu.memory_space<vmem>>, %arg50: memref<1x256xf32, #tpu.memory_space<vmem>>, %arg51: memref<1x8xf32, #tpu.memory_space<vmem>>, %arg52: memref<1x8xf32, #tpu.memory_space<vmem>>, %arg53: memref<3x64x64xf32, #tpu.memory_space<vmem>>, %arg54: memref<3x256x96xf32, #tpu.memory_space<vmem>>, %arg55: memref<1x96xf32, #tpu.memory_space<vmem>>, %arg56: memref<64x96xf32, #tpu.memory_space<vmem>>) attributes {dimension_semantics = [], scalar_prefetch = 0 : i64, scratch_operands = 0 : i64, tpu.core_type = #tpu.core_type<tc>} {
    %c0 = arith.constant 0 : index
    %c0_0 = arith.constant 0 : index
    %0 = vector.load %arg0[%c0, %c0_0] : memref<2x16xf32, #tpu.memory_space<vmem>>, vector<2x16xf32>
    %c0_1 = arith.constant 0 : index
    %c0_2 = arith.constant 0 : index
    %1 = vector.load %arg3[%c0_1, %c0_2] : memref<8x32xf32, #tpu.memory_space<vmem>>, vector<8x32xf32>
    %c0_3 = arith.constant 0 : index
    %c0_4 = arith.constant 0 : index
    %c0_5 = arith.constant 0 : index
    %2 = vector.load %arg2[%c0_3, %c0_4, %c0_5] : memref<4x8x2xf32, #tpu.memory_space<vmem>>, vector<1x8x2xf32>
    %3 = vector.shape_cast %2 : vector<1x8x2xf32> to vector<8x2xf32>
    %c0_6 = arith.constant 0 : index
    %c0_7 = arith.constant 0 : index
    %c0_8 = arith.constant 0 : index
    %4 = vector.load %arg1[%c0_6, %c0_7, %c0_8] : memref<4x16x32xf32, #tpu.memory_space<vmem>>, vector<1x16x32xf32>
    %5 = vector.shape_cast %4 : vector<1x16x32xf32> to vector<16x32xf32>
    %cst = arith.constant dense<0.000000e+00> : vector<2x32xf32>
    %6 = tpu.matmul %0, %5, %cst {dimension_numbers = #tpu.dot_dimension_numbers<[1], [0], [0], [1], [0, 0, 1, 1], [], []>} : vector<2x16xf32>, vector<16x32xf32>, vector<2x32xf32> -> vector<2x32xf32>
    %cst_9 = arith.constant dense<0.000000e+00> : vector<8x32xf32>
    %7 = tpu.matmul %3, %6, %cst_9 {dimension_numbers = #tpu.dot_dimension_numbers<[1], [0], [0], [1], [0, 0, 1, 1], [], []>} : vector<8x2xf32>, vector<2x32xf32>, vector<8x32xf32> -> vector<8x32xf32>
    %8 = arith.addf %1, %7 : vector<8x32xf32>
    %c1 = arith.constant 1 : index
    %c0_10 = arith.constant 0 : index
    %c0_11 = arith.constant 0 : index
    %9 = vector.load %arg2[%c1, %c0_10, %c0_11] : memref<4x8x2xf32, #tpu.memory_space<vmem>>, vector<1x8x2xf32>
    %10 = vector.shape_cast %9 : vector<1x8x2xf32> to vector<8x2xf32>
    %c1_12 = arith.constant 1 : index
    %c0_13 = arith.constant 0 : index
    %c0_14 = arith.constant 0 : index
    %11 = vector.load %arg1[%c1_12, %c0_13, %c0_14] : memref<4x16x32xf32, #tpu.memory_space<vmem>>, vector<1x16x32xf32>
    %12 = vector.shape_cast %11 : vector<1x16x32xf32> to vector<16x32xf32>
    %cst_15 = arith.constant dense<0.000000e+00> : vector<2x32xf32>
    %13 = tpu.matmul %0, %12, %cst_15 {dimension_numbers = #tpu.dot_dimension_numbers<[1], [0], [0], [1], [0, 0, 1, 1], [], []>} : vector<2x16xf32>, vector<16x32xf32>, vector<2x32xf32> -> vector<2x32xf32>
    %cst_16 = arith.constant dense<0.000000e+00> : vector<8x32xf32>
    %14 = tpu.matmul %10, %13, %cst_16 {dimension_numbers = #tpu.dot_dimension_numbers<[1], [0], [0], [1], [0, 0, 1, 1], [], []>} : vector<8x2xf32>, vector<2x32xf32>, vector<8x32xf32> -> vector<8x32xf32>
    %15 = arith.addf %8, %14 : vector<8x32xf32>
    %c2 = arith.constant 2 : index
    %c0_17 = arith.constant 0 : index
    %c0_18 = arith.constant 0 : index
    %16 = vector.load %arg2[%c2, %c0_17, %c0_18] : memref<4x8x2xf32, #tpu.memory_space<vmem>>, vector<1x8x2xf32>
    %17 = vector.shape_cast %16 : vector<1x8x2xf32> to vector<8x2xf32>
    %c2_19 = arith.constant 2 : index
    %c0_20 = arith.constant 0 : index
    %c0_21 = arith.constant 0 : index
    %18 = vector.load %arg1[%c2_19, %c0_20, %c0_21] : memref<4x16x32xf32, #tpu.memory_space<vmem>>, vector<1x16x32xf32>
    %19 = vector.shape_cast %18 : vector<1x16x32xf32> to vector<16x32xf32>
    %cst_22 = arith.constant dense<0.000000e+00> : vector<2x32xf32>
    %20 = tpu.matmul %0, %19, %cst_22 {dimension_numbers = #tpu.dot_dimension_numbers<[1], [0], [0], [1], [0, 0, 1, 1], [], []>} : vector<2x16xf32>, vector<16x32xf32>, vector<2x32xf32> -> vector<2x32xf32>
    %cst_23 = arith.constant dense<0.000000e+00> : vector<8x32xf32>
    %21 = tpu.matmul %17, %20, %cst_23 {dimension_numbers = #tpu.dot_dimension_numbers<[1], [0], [0], [1], [0, 0, 1, 1], [], []>} : vector<8x2xf32>, vector<2x32xf32>, vector<8x32xf32> -> vector<8x32xf32>
    %22 = arith.addf %15, %21 : vector<8x32xf32>
    %c3 = arith.constant 3 : index
    %c0_24 = arith.constant 0 : index
    %c0_25 = arith.constant 0 : index
    %23 = vector.load %arg2[%c3, %c0_24, %c0_25] : memref<4x8x2xf32, #tpu.memory_space<vmem>>, vector<1x8x2xf32>
    %24 = vector.shape_cast %23 : vector<1x8x2xf32> to vector<8x2xf32>
    %c3_26 = arith.constant 3 : index
    %c0_27 = arith.constant 0 : index
    %c0_28 = arith.constant 0 : index
    %25 = vector.load %arg1[%c3_26, %c0_27, %c0_28] : memref<4x16x32xf32, #tpu.memory_space<vmem>>, vector<1x16x32xf32>
    %26 = vector.shape_cast %25 : vector<1x16x32xf32> to vector<16x32xf32>
    %cst_29 = arith.constant dense<0.000000e+00> : vector<2x32xf32>
    %27 = tpu.matmul %0, %26, %cst_29 {dimension_numbers = #tpu.dot_dimension_numbers<[1], [0], [0], [1], [0, 0, 1, 1], [], []>} : vector<2x16xf32>, vector<16x32xf32>, vector<2x32xf32> -> vector<2x32xf32>
    %cst_30 = arith.constant dense<0.000000e+00> : vector<8x32xf32>
    %28 = tpu.matmul %24, %27, %cst_30 {dimension_numbers = #tpu.dot_dimension_numbers<[1], [0], [0], [1], [0, 0, 1, 1], [], []>} : vector<8x2xf32>, vector<2x32xf32>, vector<8x32xf32> -> vector<8x32xf32>
    %29 = arith.addf %22, %28 : vector<8x32xf32>
    %c0_31 = arith.constant 0 : index
    %c0_32 = arith.constant 0 : index
    %30 = vector.load %arg4[%c0_31, %c0_32] : memref<32x8xf32, #tpu.memory_space<vmem>>, vector<32x8xf32>
    %c0_33 = arith.constant 0 : index
    %c0_34 = arith.constant 0 : index
    %31 = vector.load %arg5[%c0_33, %c0_34] : memref<8x32xf32, #tpu.memory_space<vmem>>, vector<8x32xf32>
    %cst_35 = arith.constant dense<0.000000e+00> : vector<32xf32>
    %32 = vector.multi_reduction <add>, %29, %cst_35 [0] : vector<8x32xf32> to vector<32xf32>
    %33 = vector.shape_cast %32 : vector<32xf32> to vector<1x32xf32>
    %34 = arith.mulf %29, %29 : vector<8x32xf32>
    %cst_36 = arith.constant dense<0.000000e+00> : vector<32xf32>
    %35 = vector.multi_reduction <add>, %34, %cst_36 [0] : vector<8x32xf32> to vector<32xf32>
    %36 = vector.shape_cast %35 : vector<32xf32> to vector<1x32xf32>
    %cst_37 = arith.constant dense<0.000000e+00> : vector<1x8xf32>
    %37 = tpu.matmul %33, %30, %cst_37 {dimension_numbers = #tpu.dot_dimension_numbers<[1], [0], [0], [1], [0, 0, 1, 1], [], []>} : vector<1x32xf32>, vector<32x8xf32>, vector<1x8xf32> -> vector<1x8xf32>
    %cst_38 = arith.constant dense<0.000000e+00> : vector<1x8xf32>
    %38 = tpu.matmul %36, %30, %cst_38 {dimension_numbers = #tpu.dot_dimension_numbers<[1], [0], [0], [1], [0, 0, 1, 1], [], []>} : vector<1x32xf32>, vector<32x8xf32>, vector<1x8xf32> -> vector<1x8xf32>
    %cst_39 = arith.constant 3.125000e-02 : f32
    %39 = vector.broadcast %cst_39 : f32 to vector<1x8xf32>
    %40 = arith.mulf %37, %39 : vector<1x8xf32>
    %cst_40 = arith.constant 3.125000e-02 : f32
    %41 = vector.broadcast %cst_40 : f32 to vector<1x8xf32>
    %42 = arith.mulf %38, %41 : vector<1x8xf32>
    %43 = arith.mulf %40, %40 : vector<1x8xf32>
    %44 = arith.subf %42, %43 : vector<1x8xf32>
    %c0_41 = arith.constant 0 : index
    %c0_42 = arith.constant 0 : index
    %45 = vector.load %arg12[%c0_41, %c0_42] : memref<1x8xf32, #tpu.memory_space<vmem>>, vector<1x8xf32>
    %cst_43 = arith.constant 9.99999974E-6 : f32
    %46 = vector.broadcast %cst_43 : f32 to vector<1x8xf32>
    %47 = arith.addf %44, %46 : vector<1x8xf32>
    %48 = math.rsqrt %47 : vector<1x8xf32>
    %49 = arith.mulf %45, %48 : vector<1x8xf32>
    %c0_44 = arith.constant 0 : index
    %c0_45 = arith.constant 0 : index
    %50 = vector.load %arg13[%c0_44, %c0_45] : memref<1x8xf32, #tpu.memory_space<vmem>>, vector<1x8xf32>
    %51 = arith.mulf %40, %49 : vector<1x8xf32>
    %52 = arith.subf %50, %51 : vector<1x8xf32>
    %cst_46 = arith.constant dense<0.000000e+00> : vector<1x32xf32>
    %53 = tpu.matmul %49, %31, %cst_46 {dimension_numbers = #tpu.dot_dimension_numbers<[1], [0], [0], [1], [0, 0, 1, 1], [], []>} : vector<1x8xf32>, vector<8x32xf32>, vector<1x32xf32> -> vector<1x32xf32>
    %cst_47 = arith.constant dense<0.000000e+00> : vector<1x32xf32>
    %54 = tpu.matmul %52, %31, %cst_47 {dimension_numbers = #tpu.dot_dimension_numbers<[1], [0], [0], [1], [0, 0, 1, 1], [], []>} : vector<1x8xf32>, vector<8x32xf32>, vector<1x32xf32> -> vector<1x32xf32>
    %55 = vector.broadcast %53 : vector<1x32xf32> to vector<8x32xf32>
    %56 = arith.mulf %29, %55 : vector<8x32xf32>
    %57 = vector.broadcast %54 : vector<1x32xf32> to vector<8x32xf32>
    %58 = arith.addf %56, %57 : vector<8x32xf32>
    %cst_48 = arith.constant 0.000000e+00 : f32
    %59 = vector.broadcast %cst_48 : f32 to vector<8x32xf32>
    %60 = arith.maximumf %58, %59 : vector<8x32xf32>
    %c0_49 = arith.constant 0 : index
    %c0_50 = arith.constant 0 : index
    %c0_51 = arith.constant 0 : index
    %61 = vector.load %arg14[%c0_49, %c0_50, %c0_51] : memref<3x16x8xf32, #tpu.memory_space<vmem>>, vector<1x16x8xf32>
    %62 = vector.shape_cast %61 : vector<1x16x8xf32> to vector<16x8xf32>
    %c0_52 = arith.constant 0 : index
    %c0_53 = arith.constant 0 : index
    %c0_54 = arith.constant 0 : index
    %63 = vector.load %arg15[%c0_52, %c0_53, %c0_54] : memref<3x32x64xf32, #tpu.memory_space<vmem>>, vector<1x32x64xf32>
    %64 = vector.shape_cast %63 : vector<1x32x64xf32> to vector<32x64xf32>
    %cst_55 = arith.constant dense<0.000000e+00> : vector<8x64xf32>
    %65 = tpu.matmul %60, %64, %cst_55 {dimension_numbers = #tpu.dot_dimension_numbers<[1], [0], [0], [1], [0, 0, 1, 1], [], []>} : vector<8x32xf32>, vector<32x64xf32>, vector<8x64xf32> -> vector<8x64xf32>
    %cst_56 = arith.constant dense<0.000000e+00> : vector<16x64xf32>
    %66 = tpu.matmul %62, %65, %cst_56 {dimension_numbers = #tpu.dot_dimension_numbers<[1], [0], [0], [1], [0, 0, 1, 1], [], []>} : vector<16x8xf32>, vector<8x64xf32>, vector<16x64xf32> -> vector<16x64xf32>
    %c1_57 = arith.constant 1 : index
    %c0_58 = arith.constant 0 : index
    %c0_59 = arith.constant 0 : index
    %67 = vector.load %arg14[%c1_57, %c0_58, %c0_59] : memref<3x16x8xf32, #tpu.memory_space<vmem>>, vector<1x16x8xf32>
    %68 = vector.shape_cast %67 : vector<1x16x8xf32> to vector<16x8xf32>
    %c1_60 = arith.constant 1 : index
    %c0_61 = arith.constant 0 : index
    %c0_62 = arith.constant 0 : index
    %69 = vector.load %arg15[%c1_60, %c0_61, %c0_62] : memref<3x32x64xf32, #tpu.memory_space<vmem>>, vector<1x32x64xf32>
    %70 = vector.shape_cast %69 : vector<1x32x64xf32> to vector<32x64xf32>
    %cst_63 = arith.constant dense<0.000000e+00> : vector<8x64xf32>
    %71 = tpu.matmul %60, %70, %cst_63 {dimension_numbers = #tpu.dot_dimension_numbers<[1], [0], [0], [1], [0, 0, 1, 1], [], []>} : vector<8x32xf32>, vector<32x64xf32>, vector<8x64xf32> -> vector<8x64xf32>
    %cst_64 = arith.constant dense<0.000000e+00> : vector<16x64xf32>
    %72 = tpu.matmul %68, %71, %cst_64 {dimension_numbers = #tpu.dot_dimension_numbers<[1], [0], [0], [1], [0, 0, 1, 1], [], []>} : vector<16x8xf32>, vector<8x64xf32>, vector<16x64xf32> -> vector<16x64xf32>
    %73 = arith.addf %66, %72 : vector<16x64xf32>
    %c2_65 = arith.constant 2 : index
    %c0_66 = arith.constant 0 : index
    %c0_67 = arith.constant 0 : index
    %74 = vector.load %arg14[%c2_65, %c0_66, %c0_67] : memref<3x16x8xf32, #tpu.memory_space<vmem>>, vector<1x16x8xf32>
    %75 = vector.shape_cast %74 : vector<1x16x8xf32> to vector<16x8xf32>
    %c2_68 = arith.constant 2 : index
    %c0_69 = arith.constant 0 : index
    %c0_70 = arith.constant 0 : index
    %76 = vector.load %arg15[%c2_68, %c0_69, %c0_70] : memref<3x32x64xf32, #tpu.memory_space<vmem>>, vector<1x32x64xf32>
    %77 = vector.shape_cast %76 : vector<1x32x64xf32> to vector<32x64xf32>
    %cst_71 = arith.constant dense<0.000000e+00> : vector<8x64xf32>
    %78 = tpu.matmul %60, %77, %cst_71 {dimension_numbers = #tpu.dot_dimension_numbers<[1], [0], [0], [1], [0, 0, 1, 1], [], []>} : vector<8x32xf32>, vector<32x64xf32>, vector<8x64xf32> -> vector<8x64xf32>
    %cst_72 = arith.constant dense<0.000000e+00> : vector<16x64xf32>
    %79 = tpu.matmul %75, %78, %cst_72 {dimension_numbers = #tpu.dot_dimension_numbers<[1], [0], [0], [1], [0, 0, 1, 1], [], []>} : vector<16x8xf32>, vector<8x64xf32>, vector<16x64xf32> -> vector<16x64xf32>
    %80 = arith.addf %73, %79 : vector<16x64xf32>
    %c0_73 = arith.constant 0 : index
    %c0_74 = arith.constant 0 : index
    %81 = vector.load %arg16[%c0_73, %c0_74] : memref<1x64xf32, #tpu.memory_space<vmem>>, vector<1x64xf32>
    %82 = vector.broadcast %81 : vector<1x64xf32> to vector<16x64xf32>
    %83 = arith.addf %80, %82 : vector<16x64xf32>
    %c0_75 = arith.constant 0 : index
    %c0_76 = arith.constant 0 : index
    %84 = vector.load %arg6[%c0_75, %c0_76] : memref<64x8xf32, #tpu.memory_space<vmem>>, vector<64x8xf32>
    %c0_77 = arith.constant 0 : index
    %c0_78 = arith.constant 0 : index
    %85 = vector.load %arg7[%c0_77, %c0_78] : memref<8x64xf32, #tpu.memory_space<vmem>>, vector<8x64xf32>
    %cst_79 = arith.constant dense<0.000000e+00> : vector<64xf32>
    %86 = vector.multi_reduction <add>, %83, %cst_79 [0] : vector<16x64xf32> to vector<64xf32>
    %87 = vector.shape_cast %86 : vector<64xf32> to vector<1x64xf32>
    %88 = arith.mulf %83, %83 : vector<16x64xf32>
    %cst_80 = arith.constant dense<0.000000e+00> : vector<64xf32>
    %89 = vector.multi_reduction <add>, %88, %cst_80 [0] : vector<16x64xf32> to vector<64xf32>
    %90 = vector.shape_cast %89 : vector<64xf32> to vector<1x64xf32>
    %cst_81 = arith.constant dense<0.000000e+00> : vector<1x8xf32>
    %91 = tpu.matmul %87, %84, %cst_81 {dimension_numbers = #tpu.dot_dimension_numbers<[1], [0], [0], [1], [0, 0, 1, 1], [], []>} : vector<1x64xf32>, vector<64x8xf32>, vector<1x8xf32> -> vector<1x8xf32>
    %cst_82 = arith.constant dense<0.000000e+00> : vector<1x8xf32>
    %92 = tpu.matmul %90, %84, %cst_82 {dimension_numbers = #tpu.dot_dimension_numbers<[1], [0], [0], [1], [0, 0, 1, 1], [], []>} : vector<1x64xf32>, vector<64x8xf32>, vector<1x8xf32> -> vector<1x8xf32>
    %cst_83 = arith.constant 7.812500e-03 : f32
    %93 = vector.broadcast %cst_83 : f32 to vector<1x8xf32>
    %94 = arith.mulf %91, %93 : vector<1x8xf32>
    %cst_84 = arith.constant 7.812500e-03 : f32
    %95 = vector.broadcast %cst_84 : f32 to vector<1x8xf32>
    %96 = arith.mulf %92, %95 : vector<1x8xf32>
    %97 = arith.mulf %94, %94 : vector<1x8xf32>
    %98 = arith.subf %96, %97 : vector<1x8xf32>
    %c0_85 = arith.constant 0 : index
    %c0_86 = arith.constant 0 : index
    %99 = vector.load %arg17[%c0_85, %c0_86] : memref<1x8xf32, #tpu.memory_space<vmem>>, vector<1x8xf32>
    %cst_87 = arith.constant 9.99999974E-6 : f32
    %100 = vector.broadcast %cst_87 : f32 to vector<1x8xf32>
    %101 = arith.addf %98, %100 : vector<1x8xf32>
    %102 = math.rsqrt %101 : vector<1x8xf32>
    %103 = arith.mulf %99, %102 : vector<1x8xf32>
    %c0_88 = arith.constant 0 : index
    %c0_89 = arith.constant 0 : index
    %104 = vector.load %arg18[%c0_88, %c0_89] : memref<1x8xf32, #tpu.memory_space<vmem>>, vector<1x8xf32>
    %105 = arith.mulf %94, %103 : vector<1x8xf32>
    %106 = arith.subf %104, %105 : vector<1x8xf32>
    %cst_90 = arith.constant dense<0.000000e+00> : vector<1x64xf32>
    %107 = tpu.matmul %103, %85, %cst_90 {dimension_numbers = #tpu.dot_dimension_numbers<[1], [0], [0], [1], [0, 0, 1, 1], [], []>} : vector<1x8xf32>, vector<8x64xf32>, vector<1x64xf32> -> vector<1x64xf32>
    %cst_91 = arith.constant dense<0.000000e+00> : vector<1x64xf32>
    %108 = tpu.matmul %106, %85, %cst_91 {dimension_numbers = #tpu.dot_dimension_numbers<[1], [0], [0], [1], [0, 0, 1, 1], [], []>} : vector<1x8xf32>, vector<8x64xf32>, vector<1x64xf32> -> vector<1x64xf32>
    %109 = vector.broadcast %107 : vector<1x64xf32> to vector<16x64xf32>
    %110 = arith.mulf %83, %109 : vector<16x64xf32>
    %111 = vector.broadcast %108 : vector<1x64xf32> to vector<16x64xf32>
    %112 = arith.addf %110, %111 : vector<16x64xf32>
    %cst_92 = arith.constant 0.000000e+00 : f32
    %113 = vector.broadcast %cst_92 : f32 to vector<16x64xf32>
    %114 = arith.maximumf %112, %113 : vector<16x64xf32>
    %c0_93 = arith.constant 0 : index
    %c0_94 = arith.constant 0 : index
    %c0_95 = arith.constant 0 : index
    %115 = vector.load %arg19[%c0_93, %c0_94, %c0_95] : memref<3x16x16xf32, #tpu.memory_space<vmem>>, vector<1x16x16xf32>
    %116 = vector.shape_cast %115 : vector<1x16x16xf32> to vector<16x16xf32>
    %c0_96 = arith.constant 0 : index
    %c0_97 = arith.constant 0 : index
    %c0_98 = arith.constant 0 : index
    %117 = vector.load %arg20[%c0_96, %c0_97, %c0_98] : memref<3x64x64xf32, #tpu.memory_space<vmem>>, vector<1x64x64xf32>
    %118 = vector.shape_cast %117 : vector<1x64x64xf32> to vector<64x64xf32>
    %cst_99 = arith.constant dense<0.000000e+00> : vector<16x64xf32>
    %119 = tpu.matmul %114, %118, %cst_99 {dimension_numbers = #tpu.dot_dimension_numbers<[1], [0], [0], [1], [0, 0, 1, 1], [], []>} : vector<16x64xf32>, vector<64x64xf32>, vector<16x64xf32> -> vector<16x64xf32>
    %cst_100 = arith.constant dense<0.000000e+00> : vector<16x64xf32>
    %120 = tpu.matmul %116, %119, %cst_100 {dimension_numbers = #tpu.dot_dimension_numbers<[1], [0], [0], [1], [0, 0, 1, 1], [], []>} : vector<16x16xf32>, vector<16x64xf32>, vector<16x64xf32> -> vector<16x64xf32>
    %c1_101 = arith.constant 1 : index
    %c0_102 = arith.constant 0 : index
    %c0_103 = arith.constant 0 : index
    %121 = vector.load %arg19[%c1_101, %c0_102, %c0_103] : memref<3x16x16xf32, #tpu.memory_space<vmem>>, vector<1x16x16xf32>
    %122 = vector.shape_cast %121 : vector<1x16x16xf32> to vector<16x16xf32>
    %c1_104 = arith.constant 1 : index
    %c0_105 = arith.constant 0 : index
    %c0_106 = arith.constant 0 : index
    %123 = vector.load %arg20[%c1_104, %c0_105, %c0_106] : memref<3x64x64xf32, #tpu.memory_space<vmem>>, vector<1x64x64xf32>
    %124 = vector.shape_cast %123 : vector<1x64x64xf32> to vector<64x64xf32>
    %cst_107 = arith.constant dense<0.000000e+00> : vector<16x64xf32>
    %125 = tpu.matmul %114, %124, %cst_107 {dimension_numbers = #tpu.dot_dimension_numbers<[1], [0], [0], [1], [0, 0, 1, 1], [], []>} : vector<16x64xf32>, vector<64x64xf32>, vector<16x64xf32> -> vector<16x64xf32>
    %cst_108 = arith.constant dense<0.000000e+00> : vector<16x64xf32>
    %126 = tpu.matmul %122, %125, %cst_108 {dimension_numbers = #tpu.dot_dimension_numbers<[1], [0], [0], [1], [0, 0, 1, 1], [], []>} : vector<16x16xf32>, vector<16x64xf32>, vector<16x64xf32> -> vector<16x64xf32>
    %127 = arith.addf %120, %126 : vector<16x64xf32>
    %c2_109 = arith.constant 2 : index
    %c0_110 = arith.constant 0 : index
    %c0_111 = arith.constant 0 : index
    %128 = vector.load %arg19[%c2_109, %c0_110, %c0_111] : memref<3x16x16xf32, #tpu.memory_space<vmem>>, vector<1x16x16xf32>
    %129 = vector.shape_cast %128 : vector<1x16x16xf32> to vector<16x16xf32>
    %c2_112 = arith.constant 2 : index
    %c0_113 = arith.constant 0 : index
    %c0_114 = arith.constant 0 : index
    %130 = vector.load %arg20[%c2_112, %c0_113, %c0_114] : memref<3x64x64xf32, #tpu.memory_space<vmem>>, vector<1x64x64xf32>
    %131 = vector.shape_cast %130 : vector<1x64x64xf32> to vector<64x64xf32>
    %cst_115 = arith.constant dense<0.000000e+00> : vector<16x64xf32>
    %132 = tpu.matmul %114, %131, %cst_115 {dimension_numbers = #tpu.dot_dimension_numbers<[1], [0], [0], [1], [0, 0, 1, 1], [], []>} : vector<16x64xf32>, vector<64x64xf32>, vector<16x64xf32> -> vector<16x64xf32>
    %cst_116 = arith.constant dense<0.000000e+00> : vector<16x64xf32>
    %133 = tpu.matmul %129, %132, %cst_116 {dimension_numbers = #tpu.dot_dimension_numbers<[1], [0], [0], [1], [0, 0, 1, 1], [], []>} : vector<16x16xf32>, vector<16x64xf32>, vector<16x64xf32> -> vector<16x64xf32>
    %134 = arith.addf %127, %133 : vector<16x64xf32>
    %c0_117 = arith.constant 0 : index
    %c0_118 = arith.constant 0 : index
    %135 = vector.load %arg21[%c0_117, %c0_118] : memref<1x64xf32, #tpu.memory_space<vmem>>, vector<1x64xf32>
    %136 = vector.broadcast %135 : vector<1x64xf32> to vector<16x64xf32>
    %137 = arith.addf %134, %136 : vector<16x64xf32>
    %c0_119 = arith.constant 0 : index
    %c0_120 = arith.constant 0 : index
    %138 = vector.load %arg22[%c0_119, %c0_120] : memref<16x8xf32, #tpu.memory_space<vmem>>, vector<16x8xf32>
    %c0_121 = arith.constant 0 : index
    %c0_122 = arith.constant 0 : index
    %139 = vector.load %arg23[%c0_121, %c0_122] : memref<32x64xf32, #tpu.memory_space<vmem>>, vector<32x64xf32>
    %cst_123 = arith.constant dense<0.000000e+00> : vector<8x64xf32>
    %140 = tpu.matmul %29, %139, %cst_123 {dimension_numbers = #tpu.dot_dimension_numbers<[1], [0], [0], [1], [0, 0, 1, 1], [], []>} : vector<8x32xf32>, vector<32x64xf32>, vector<8x64xf32> -> vector<8x64xf32>
    %cst_124 = arith.constant dense<0.000000e+00> : vector<16x64xf32>
    %141 = tpu.matmul %138, %140, %cst_124 {dimension_numbers = #tpu.dot_dimension_numbers<[1], [0], [0], [1], [0, 0, 1, 1], [], []>} : vector<16x8xf32>, vector<8x64xf32>, vector<16x64xf32> -> vector<16x64xf32>
    %c0_125 = arith.constant 0 : index
    %c0_126 = arith.constant 0 : index
    %142 = vector.load %arg24[%c0_125, %c0_126] : memref<1x64xf32, #tpu.memory_space<vmem>>, vector<1x64xf32>
    %143 = vector.broadcast %142 : vector<1x64xf32> to vector<16x64xf32>
    %144 = arith.addf %141, %143 : vector<16x64xf32>
    %145 = arith.addf %137, %144 : vector<16x64xf32>
    %c0_127 = arith.constant 0 : index
    %c0_128 = arith.constant 0 : index
    %146 = vector.load %arg6[%c0_127, %c0_128] : memref<64x8xf32, #tpu.memory_space<vmem>>, vector<64x8xf32>
    %c0_129 = arith.constant 0 : index
    %c0_130 = arith.constant 0 : index
    %147 = vector.load %arg7[%c0_129, %c0_130] : memref<8x64xf32, #tpu.memory_space<vmem>>, vector<8x64xf32>
    %cst_131 = arith.constant dense<0.000000e+00> : vector<64xf32>
    %148 = vector.multi_reduction <add>, %145, %cst_131 [0] : vector<16x64xf32> to vector<64xf32>
    %149 = vector.shape_cast %148 : vector<64xf32> to vector<1x64xf32>
    %150 = arith.mulf %145, %145 : vector<16x64xf32>
    %cst_132 = arith.constant dense<0.000000e+00> : vector<64xf32>
    %151 = vector.multi_reduction <add>, %150, %cst_132 [0] : vector<16x64xf32> to vector<64xf32>
    %152 = vector.shape_cast %151 : vector<64xf32> to vector<1x64xf32>
    %cst_133 = arith.constant dense<0.000000e+00> : vector<1x8xf32>
    %153 = tpu.matmul %149, %146, %cst_133 {dimension_numbers = #tpu.dot_dimension_numbers<[1], [0], [0], [1], [0, 0, 1, 1], [], []>} : vector<1x64xf32>, vector<64x8xf32>, vector<1x8xf32> -> vector<1x8xf32>
    %cst_134 = arith.constant dense<0.000000e+00> : vector<1x8xf32>
    %154 = tpu.matmul %152, %146, %cst_134 {dimension_numbers = #tpu.dot_dimension_numbers<[1], [0], [0], [1], [0, 0, 1, 1], [], []>} : vector<1x64xf32>, vector<64x8xf32>, vector<1x8xf32> -> vector<1x8xf32>
    %cst_135 = arith.constant 7.812500e-03 : f32
    %155 = vector.broadcast %cst_135 : f32 to vector<1x8xf32>
    %156 = arith.mulf %153, %155 : vector<1x8xf32>
    %cst_136 = arith.constant 7.812500e-03 : f32
    %157 = vector.broadcast %cst_136 : f32 to vector<1x8xf32>
    %158 = arith.mulf %154, %157 : vector<1x8xf32>
    %159 = arith.mulf %156, %156 : vector<1x8xf32>
    %160 = arith.subf %158, %159 : vector<1x8xf32>
    %c0_137 = arith.constant 0 : index
    %c0_138 = arith.constant 0 : index
    %161 = vector.load %arg25[%c0_137, %c0_138] : memref<1x8xf32, #tpu.memory_space<vmem>>, vector<1x8xf32>
    %cst_139 = arith.constant 9.99999974E-6 : f32
    %162 = vector.broadcast %cst_139 : f32 to vector<1x8xf32>
    %163 = arith.addf %160, %162 : vector<1x8xf32>
    %164 = math.rsqrt %163 : vector<1x8xf32>
    %165 = arith.mulf %161, %164 : vector<1x8xf32>
    %c0_140 = arith.constant 0 : index
    %c0_141 = arith.constant 0 : index
    %166 = vector.load %arg26[%c0_140, %c0_141] : memref<1x8xf32, #tpu.memory_space<vmem>>, vector<1x8xf32>
    %167 = arith.mulf %156, %165 : vector<1x8xf32>
    %168 = arith.subf %166, %167 : vector<1x8xf32>
    %cst_142 = arith.constant dense<0.000000e+00> : vector<1x64xf32>
    %169 = tpu.matmul %165, %147, %cst_142 {dimension_numbers = #tpu.dot_dimension_numbers<[1], [0], [0], [1], [0, 0, 1, 1], [], []>} : vector<1x8xf32>, vector<8x64xf32>, vector<1x64xf32> -> vector<1x64xf32>
    %cst_143 = arith.constant dense<0.000000e+00> : vector<1x64xf32>
    %170 = tpu.matmul %168, %147, %cst_143 {dimension_numbers = #tpu.dot_dimension_numbers<[1], [0], [0], [1], [0, 0, 1, 1], [], []>} : vector<1x8xf32>, vector<8x64xf32>, vector<1x64xf32> -> vector<1x64xf32>
    %171 = vector.broadcast %169 : vector<1x64xf32> to vector<16x64xf32>
    %172 = arith.mulf %145, %171 : vector<16x64xf32>
    %173 = vector.broadcast %170 : vector<1x64xf32> to vector<16x64xf32>
    %174 = arith.addf %172, %173 : vector<16x64xf32>
    %cst_144 = arith.constant 0.000000e+00 : f32
    %175 = vector.broadcast %cst_144 : f32 to vector<16x64xf32>
    %176 = arith.maximumf %174, %175 : vector<16x64xf32>
    %c0_145 = arith.constant 0 : index
    %c0_146 = arith.constant 0 : index
    %c0_147 = arith.constant 0 : index
    %177 = vector.load %arg27[%c0_145, %c0_146, %c0_147] : memref<3x32x16xf32, #tpu.memory_space<vmem>>, vector<1x32x16xf32>
    %178 = vector.shape_cast %177 : vector<1x32x16xf32> to vector<32x16xf32>
    %c0_148 = arith.constant 0 : index
    %c0_149 = arith.constant 0 : index
    %c0_150 = arith.constant 0 : index
    %179 = vector.load %arg28[%c0_148, %c0_149, %c0_150] : memref<3x64x128xf32, #tpu.memory_space<vmem>>, vector<1x64x128xf32>
    %180 = vector.shape_cast %179 : vector<1x64x128xf32> to vector<64x128xf32>
    %cst_151 = arith.constant dense<0.000000e+00> : vector<16x128xf32>
    %181 = tpu.matmul %176, %180, %cst_151 {dimension_numbers = #tpu.dot_dimension_numbers<[1], [0], [0], [1], [0, 0, 1, 1], [], []>} : vector<16x64xf32>, vector<64x128xf32>, vector<16x128xf32> -> vector<16x128xf32>
    %cst_152 = arith.constant dense<0.000000e+00> : vector<32x128xf32>
    %182 = tpu.matmul %178, %181, %cst_152 {dimension_numbers = #tpu.dot_dimension_numbers<[1], [0], [0], [1], [0, 0, 1, 1], [], []>} : vector<32x16xf32>, vector<16x128xf32>, vector<32x128xf32> -> vector<32x128xf32>
    %c1_153 = arith.constant 1 : index
    %c0_154 = arith.constant 0 : index
    %c0_155 = arith.constant 0 : index
    %183 = vector.load %arg27[%c1_153, %c0_154, %c0_155] : memref<3x32x16xf32, #tpu.memory_space<vmem>>, vector<1x32x16xf32>
    %184 = vector.shape_cast %183 : vector<1x32x16xf32> to vector<32x16xf32>
    %c1_156 = arith.constant 1 : index
    %c0_157 = arith.constant 0 : index
    %c0_158 = arith.constant 0 : index
    %185 = vector.load %arg28[%c1_156, %c0_157, %c0_158] : memref<3x64x128xf32, #tpu.memory_space<vmem>>, vector<1x64x128xf32>
    %186 = vector.shape_cast %185 : vector<1x64x128xf32> to vector<64x128xf32>
    %cst_159 = arith.constant dense<0.000000e+00> : vector<16x128xf32>
    %187 = tpu.matmul %176, %186, %cst_159 {dimension_numbers = #tpu.dot_dimension_numbers<[1], [0], [0], [1], [0, 0, 1, 1], [], []>} : vector<16x64xf32>, vector<64x128xf32>, vector<16x128xf32> -> vector<16x128xf32>
    %cst_160 = arith.constant dense<0.000000e+00> : vector<32x128xf32>
    %188 = tpu.matmul %184, %187, %cst_160 {dimension_numbers = #tpu.dot_dimension_numbers<[1], [0], [0], [1], [0, 0, 1, 1], [], []>} : vector<32x16xf32>, vector<16x128xf32>, vector<32x128xf32> -> vector<32x128xf32>
    %189 = arith.addf %182, %188 : vector<32x128xf32>
    %c2_161 = arith.constant 2 : index
    %c0_162 = arith.constant 0 : index
    %c0_163 = arith.constant 0 : index
    %190 = vector.load %arg27[%c2_161, %c0_162, %c0_163] : memref<3x32x16xf32, #tpu.memory_space<vmem>>, vector<1x32x16xf32>
    %191 = vector.shape_cast %190 : vector<1x32x16xf32> to vector<32x16xf32>
    %c2_164 = arith.constant 2 : index
    %c0_165 = arith.constant 0 : index
    %c0_166 = arith.constant 0 : index
    %192 = vector.load %arg28[%c2_164, %c0_165, %c0_166] : memref<3x64x128xf32, #tpu.memory_space<vmem>>, vector<1x64x128xf32>
    %193 = vector.shape_cast %192 : vector<1x64x128xf32> to vector<64x128xf32>
    %cst_167 = arith.constant dense<0.000000e+00> : vector<16x128xf32>
    %194 = tpu.matmul %176, %193, %cst_167 {dimension_numbers = #tpu.dot_dimension_numbers<[1], [0], [0], [1], [0, 0, 1, 1], [], []>} : vector<16x64xf32>, vector<64x128xf32>, vector<16x128xf32> -> vector<16x128xf32>
    %cst_168 = arith.constant dense<0.000000e+00> : vector<32x128xf32>
    %195 = tpu.matmul %191, %194, %cst_168 {dimension_numbers = #tpu.dot_dimension_numbers<[1], [0], [0], [1], [0, 0, 1, 1], [], []>} : vector<32x16xf32>, vector<16x128xf32>, vector<32x128xf32> -> vector<32x128xf32>
    %196 = arith.addf %189, %195 : vector<32x128xf32>
    %c0_169 = arith.constant 0 : index
    %c0_170 = arith.constant 0 : index
    %197 = vector.load %arg29[%c0_169, %c0_170] : memref<1x128xf32, #tpu.memory_space<vmem>>, vector<1x128xf32>
    %198 = vector.broadcast %197 : vector<1x128xf32> to vector<32x128xf32>
    %199 = arith.addf %196, %198 : vector<32x128xf32>
    %c0_171 = arith.constant 0 : index
    %c0_172 = arith.constant 0 : index
    %200 = vector.load %arg8[%c0_171, %c0_172] : memref<128x8xf32, #tpu.memory_space<vmem>>, vector<128x8xf32>
    %c0_173 = arith.constant 0 : index
    %c0_174 = arith.constant 0 : index
    %201 = vector.load %arg9[%c0_173, %c0_174] : memref<8x128xf32, #tpu.memory_space<vmem>>, vector<8x128xf32>
    %cst_175 = arith.constant dense<0.000000e+00> : vector<128xf32>
    %202 = vector.multi_reduction <add>, %199, %cst_175 [0] : vector<32x128xf32> to vector<128xf32>
    %203 = vector.shape_cast %202 : vector<128xf32> to vector<1x128xf32>
    %204 = arith.mulf %199, %199 : vector<32x128xf32>
    %cst_176 = arith.constant dense<0.000000e+00> : vector<128xf32>
    %205 = vector.multi_reduction <add>, %204, %cst_176 [0] : vector<32x128xf32> to vector<128xf32>
    %206 = vector.shape_cast %205 : vector<128xf32> to vector<1x128xf32>
    %cst_177 = arith.constant dense<0.000000e+00> : vector<1x8xf32>
    %207 = tpu.matmul %203, %200, %cst_177 {dimension_numbers = #tpu.dot_dimension_numbers<[1], [0], [0], [1], [0, 0, 1, 1], [], []>} : vector<1x128xf32>, vector<128x8xf32>, vector<1x8xf32> -> vector<1x8xf32>
    %cst_178 = arith.constant dense<0.000000e+00> : vector<1x8xf32>
    %208 = tpu.matmul %206, %200, %cst_178 {dimension_numbers = #tpu.dot_dimension_numbers<[1], [0], [0], [1], [0, 0, 1, 1], [], []>} : vector<1x128xf32>, vector<128x8xf32>, vector<1x8xf32> -> vector<1x8xf32>
    %cst_179 = arith.constant 0.001953125 : f32
    %209 = vector.broadcast %cst_179 : f32 to vector<1x8xf32>
    %210 = arith.mulf %207, %209 : vector<1x8xf32>
    %cst_180 = arith.constant 0.001953125 : f32
    %211 = vector.broadcast %cst_180 : f32 to vector<1x8xf32>
    %212 = arith.mulf %208, %211 : vector<1x8xf32>
    %213 = arith.mulf %210, %210 : vector<1x8xf32>
    %214 = arith.subf %212, %213 : vector<1x8xf32>
    %c0_181 = arith.constant 0 : index
    %c0_182 = arith.constant 0 : index
    %215 = vector.load %arg30[%c0_181, %c0_182] : memref<1x8xf32, #tpu.memory_space<vmem>>, vector<1x8xf32>
    %cst_183 = arith.constant 9.99999974E-6 : f32
    %216 = vector.broadcast %cst_183 : f32 to vector<1x8xf32>
    %217 = arith.addf %214, %216 : vector<1x8xf32>
    %218 = math.rsqrt %217 : vector<1x8xf32>
    %219 = arith.mulf %215, %218 : vector<1x8xf32>
    %c0_184 = arith.constant 0 : index
    %c0_185 = arith.constant 0 : index
    %220 = vector.load %arg31[%c0_184, %c0_185] : memref<1x8xf32, #tpu.memory_space<vmem>>, vector<1x8xf32>
    %221 = arith.mulf %210, %219 : vector<1x8xf32>
    %222 = arith.subf %220, %221 : vector<1x8xf32>
    %cst_186 = arith.constant dense<0.000000e+00> : vector<1x128xf32>
    %223 = tpu.matmul %219, %201, %cst_186 {dimension_numbers = #tpu.dot_dimension_numbers<[1], [0], [0], [1], [0, 0, 1, 1], [], []>} : vector<1x8xf32>, vector<8x128xf32>, vector<1x128xf32> -> vector<1x128xf32>
    %cst_187 = arith.constant dense<0.000000e+00> : vector<1x128xf32>
    %224 = tpu.matmul %222, %201, %cst_187 {dimension_numbers = #tpu.dot_dimension_numbers<[1], [0], [0], [1], [0, 0, 1, 1], [], []>} : vector<1x8xf32>, vector<8x128xf32>, vector<1x128xf32> -> vector<1x128xf32>
    %225 = vector.broadcast %223 : vector<1x128xf32> to vector<32x128xf32>
    %226 = arith.mulf %199, %225 : vector<32x128xf32>
    %227 = vector.broadcast %224 : vector<1x128xf32> to vector<32x128xf32>
    %228 = arith.addf %226, %227 : vector<32x128xf32>
    %cst_188 = arith.constant 0.000000e+00 : f32
    %229 = vector.broadcast %cst_188 : f32 to vector<32x128xf32>
    %230 = arith.maximumf %228, %229 : vector<32x128xf32>
    %c0_189 = arith.constant 0 : index
    %c0_190 = arith.constant 0 : index
    %c0_191 = arith.constant 0 : index
    %231 = vector.load %arg32[%c0_189, %c0_190, %c0_191] : memref<3x32x32xf32, #tpu.memory_space<vmem>>, vector<1x32x32xf32>
    %232 = vector.shape_cast %231 : vector<1x32x32xf32> to vector<32x32xf32>
    %c0_192 = arith.constant 0 : index
    %c0_193 = arith.constant 0 : index
    %c0_194 = arith.constant 0 : index
    %233 = vector.load %arg33[%c0_192, %c0_193, %c0_194] : memref<3x128x128xf32, #tpu.memory_space<vmem>>, vector<1x128x128xf32>
    %234 = vector.shape_cast %233 : vector<1x128x128xf32> to vector<128x128xf32>
    %cst_195 = arith.constant dense<0.000000e+00> : vector<32x128xf32>
    %235 = tpu.matmul %230, %234, %cst_195 {dimension_numbers = #tpu.dot_dimension_numbers<[1], [0], [0], [1], [0, 0, 1, 1], [], []>} : vector<32x128xf32>, vector<128x128xf32>, vector<32x128xf32> -> vector<32x128xf32>
    %cst_196 = arith.constant dense<0.000000e+00> : vector<32x128xf32>
    %236 = tpu.matmul %232, %235, %cst_196 {dimension_numbers = #tpu.dot_dimension_numbers<[1], [0], [0], [1], [0, 0, 1, 1], [], []>} : vector<32x32xf32>, vector<32x128xf32>, vector<32x128xf32> -> vector<32x128xf32>
    %c1_197 = arith.constant 1 : index
    %c0_198 = arith.constant 0 : index
    %c0_199 = arith.constant 0 : index
    %237 = vector.load %arg32[%c1_197, %c0_198, %c0_199] : memref<3x32x32xf32, #tpu.memory_space<vmem>>, vector<1x32x32xf32>
    %238 = vector.shape_cast %237 : vector<1x32x32xf32> to vector<32x32xf32>
    %c1_200 = arith.constant 1 : index
    %c0_201 = arith.constant 0 : index
    %c0_202 = arith.constant 0 : index
    %239 = vector.load %arg33[%c1_200, %c0_201, %c0_202] : memref<3x128x128xf32, #tpu.memory_space<vmem>>, vector<1x128x128xf32>
    %240 = vector.shape_cast %239 : vector<1x128x128xf32> to vector<128x128xf32>
    %cst_203 = arith.constant dense<0.000000e+00> : vector<32x128xf32>
    %241 = tpu.matmul %230, %240, %cst_203 {dimension_numbers = #tpu.dot_dimension_numbers<[1], [0], [0], [1], [0, 0, 1, 1], [], []>} : vector<32x128xf32>, vector<128x128xf32>, vector<32x128xf32> -> vector<32x128xf32>
    %cst_204 = arith.constant dense<0.000000e+00> : vector<32x128xf32>
    %242 = tpu.matmul %238, %241, %cst_204 {dimension_numbers = #tpu.dot_dimension_numbers<[1], [0], [0], [1], [0, 0, 1, 1], [], []>} : vector<32x32xf32>, vector<32x128xf32>, vector<32x128xf32> -> vector<32x128xf32>
    %243 = arith.addf %236, %242 : vector<32x128xf32>
    %c2_205 = arith.constant 2 : index
    %c0_206 = arith.constant 0 : index
    %c0_207 = arith.constant 0 : index
    %244 = vector.load %arg32[%c2_205, %c0_206, %c0_207] : memref<3x32x32xf32, #tpu.memory_space<vmem>>, vector<1x32x32xf32>
    %245 = vector.shape_cast %244 : vector<1x32x32xf32> to vector<32x32xf32>
    %c2_208 = arith.constant 2 : index
    %c0_209 = arith.constant 0 : index
    %c0_210 = arith.constant 0 : index
    %246 = vector.load %arg33[%c2_208, %c0_209, %c0_210] : memref<3x128x128xf32, #tpu.memory_space<vmem>>, vector<1x128x128xf32>
    %247 = vector.shape_cast %246 : vector<1x128x128xf32> to vector<128x128xf32>
    %cst_211 = arith.constant dense<0.000000e+00> : vector<32x128xf32>
    %248 = tpu.matmul %230, %247, %cst_211 {dimension_numbers = #tpu.dot_dimension_numbers<[1], [0], [0], [1], [0, 0, 1, 1], [], []>} : vector<32x128xf32>, vector<128x128xf32>, vector<32x128xf32> -> vector<32x128xf32>
    %cst_212 = arith.constant dense<0.000000e+00> : vector<32x128xf32>
    %249 = tpu.matmul %245, %248, %cst_212 {dimension_numbers = #tpu.dot_dimension_numbers<[1], [0], [0], [1], [0, 0, 1, 1], [], []>} : vector<32x32xf32>, vector<32x128xf32>, vector<32x128xf32> -> vector<32x128xf32>
    %250 = arith.addf %243, %249 : vector<32x128xf32>
    %c0_213 = arith.constant 0 : index
    %c0_214 = arith.constant 0 : index
    %251 = vector.load %arg34[%c0_213, %c0_214] : memref<1x128xf32, #tpu.memory_space<vmem>>, vector<1x128xf32>
    %252 = vector.broadcast %251 : vector<1x128xf32> to vector<32x128xf32>
    %253 = arith.addf %250, %252 : vector<32x128xf32>
    %c0_215 = arith.constant 0 : index
    %c0_216 = arith.constant 0 : index
    %254 = vector.load %arg35[%c0_215, %c0_216] : memref<32x16xf32, #tpu.memory_space<vmem>>, vector<32x16xf32>
    %c0_217 = arith.constant 0 : index
    %c0_218 = arith.constant 0 : index
    %255 = vector.load %arg36[%c0_217, %c0_218] : memref<64x128xf32, #tpu.memory_space<vmem>>, vector<64x128xf32>
    %cst_219 = arith.constant dense<0.000000e+00> : vector<16x128xf32>
    %256 = tpu.matmul %145, %255, %cst_219 {dimension_numbers = #tpu.dot_dimension_numbers<[1], [0], [0], [1], [0, 0, 1, 1], [], []>} : vector<16x64xf32>, vector<64x128xf32>, vector<16x128xf32> -> vector<16x128xf32>
    %cst_220 = arith.constant dense<0.000000e+00> : vector<32x128xf32>
    %257 = tpu.matmul %254, %256, %cst_220 {dimension_numbers = #tpu.dot_dimension_numbers<[1], [0], [0], [1], [0, 0, 1, 1], [], []>} : vector<32x16xf32>, vector<16x128xf32>, vector<32x128xf32> -> vector<32x128xf32>
    %c0_221 = arith.constant 0 : index
    %c0_222 = arith.constant 0 : index
    %258 = vector.load %arg37[%c0_221, %c0_222] : memref<1x128xf32, #tpu.memory_space<vmem>>, vector<1x128xf32>
    %259 = vector.broadcast %258 : vector<1x128xf32> to vector<32x128xf32>
    %260 = arith.addf %257, %259 : vector<32x128xf32>
    %261 = arith.addf %253, %260 : vector<32x128xf32>
    %c0_223 = arith.constant 0 : index
    %c0_224 = arith.constant 0 : index
    %262 = vector.load %arg8[%c0_223, %c0_224] : memref<128x8xf32, #tpu.memory_space<vmem>>, vector<128x8xf32>
    %c0_225 = arith.constant 0 : index
    %c0_226 = arith.constant 0 : index
    %263 = vector.load %arg9[%c0_225, %c0_226] : memref<8x128xf32, #tpu.memory_space<vmem>>, vector<8x128xf32>
    %cst_227 = arith.constant dense<0.000000e+00> : vector<128xf32>
    %264 = vector.multi_reduction <add>, %261, %cst_227 [0] : vector<32x128xf32> to vector<128xf32>
    %265 = vector.shape_cast %264 : vector<128xf32> to vector<1x128xf32>
    %266 = arith.mulf %261, %261 : vector<32x128xf32>
    %cst_228 = arith.constant dense<0.000000e+00> : vector<128xf32>
    %267 = vector.multi_reduction <add>, %266, %cst_228 [0] : vector<32x128xf32> to vector<128xf32>
    %268 = vector.shape_cast %267 : vector<128xf32> to vector<1x128xf32>
    %cst_229 = arith.constant dense<0.000000e+00> : vector<1x8xf32>
    %269 = tpu.matmul %265, %262, %cst_229 {dimension_numbers = #tpu.dot_dimension_numbers<[1], [0], [0], [1], [0, 0, 1, 1], [], []>} : vector<1x128xf32>, vector<128x8xf32>, vector<1x8xf32> -> vector<1x8xf32>
    %cst_230 = arith.constant dense<0.000000e+00> : vector<1x8xf32>
    %270 = tpu.matmul %268, %262, %cst_230 {dimension_numbers = #tpu.dot_dimension_numbers<[1], [0], [0], [1], [0, 0, 1, 1], [], []>} : vector<1x128xf32>, vector<128x8xf32>, vector<1x8xf32> -> vector<1x8xf32>
    %cst_231 = arith.constant 0.001953125 : f32
    %271 = vector.broadcast %cst_231 : f32 to vector<1x8xf32>
    %272 = arith.mulf %269, %271 : vector<1x8xf32>
    %cst_232 = arith.constant 0.001953125 : f32
    %273 = vector.broadcast %cst_232 : f32 to vector<1x8xf32>
    %274 = arith.mulf %270, %273 : vector<1x8xf32>
    %275 = arith.mulf %272, %272 : vector<1x8xf32>
    %276 = arith.subf %274, %275 : vector<1x8xf32>
    %c0_233 = arith.constant 0 : index
    %c0_234 = arith.constant 0 : index
    %277 = vector.load %arg38[%c0_233, %c0_234] : memref<1x8xf32, #tpu.memory_space<vmem>>, vector<1x8xf32>
    %cst_235 = arith.constant 9.99999974E-6 : f32
    %278 = vector.broadcast %cst_235 : f32 to vector<1x8xf32>
    %279 = arith.addf %276, %278 : vector<1x8xf32>
    %280 = math.rsqrt %279 : vector<1x8xf32>
    %281 = arith.mulf %277, %280 : vector<1x8xf32>
    %c0_236 = arith.constant 0 : index
    %c0_237 = arith.constant 0 : index
    %282 = vector.load %arg39[%c0_236, %c0_237] : memref<1x8xf32, #tpu.memory_space<vmem>>, vector<1x8xf32>
    %283 = arith.mulf %272, %281 : vector<1x8xf32>
    %284 = arith.subf %282, %283 : vector<1x8xf32>
    %cst_238 = arith.constant dense<0.000000e+00> : vector<1x128xf32>
    %285 = tpu.matmul %281, %263, %cst_238 {dimension_numbers = #tpu.dot_dimension_numbers<[1], [0], [0], [1], [0, 0, 1, 1], [], []>} : vector<1x8xf32>, vector<8x128xf32>, vector<1x128xf32> -> vector<1x128xf32>
    %cst_239 = arith.constant dense<0.000000e+00> : vector<1x128xf32>
    %286 = tpu.matmul %284, %263, %cst_239 {dimension_numbers = #tpu.dot_dimension_numbers<[1], [0], [0], [1], [0, 0, 1, 1], [], []>} : vector<1x8xf32>, vector<8x128xf32>, vector<1x128xf32> -> vector<1x128xf32>
    %287 = vector.broadcast %285 : vector<1x128xf32> to vector<32x128xf32>
    %288 = arith.mulf %261, %287 : vector<32x128xf32>
    %289 = vector.broadcast %286 : vector<1x128xf32> to vector<32x128xf32>
    %290 = arith.addf %288, %289 : vector<32x128xf32>
    %cst_240 = arith.constant 0.000000e+00 : f32
    %291 = vector.broadcast %cst_240 : f32 to vector<32x128xf32>
    %292 = arith.maximumf %290, %291 : vector<32x128xf32>
    %c0_241 = arith.constant 0 : index
    %c0_242 = arith.constant 0 : index
    %c0_243 = arith.constant 0 : index
    %293 = vector.load %arg40[%c0_241, %c0_242, %c0_243] : memref<3x64x32xf32, #tpu.memory_space<vmem>>, vector<1x64x32xf32>
    %294 = vector.shape_cast %293 : vector<1x64x32xf32> to vector<64x32xf32>
    %c0_244 = arith.constant 0 : index
    %c0_245 = arith.constant 0 : index
    %c0_246 = arith.constant 0 : index
    %295 = vector.load %arg41[%c0_244, %c0_245, %c0_246] : memref<3x128x256xf32, #tpu.memory_space<vmem>>, vector<1x128x256xf32>
    %296 = vector.shape_cast %295 : vector<1x128x256xf32> to vector<128x256xf32>
    %cst_247 = arith.constant dense<0.000000e+00> : vector<32x256xf32>
    %297 = tpu.matmul %292, %296, %cst_247 {dimension_numbers = #tpu.dot_dimension_numbers<[1], [0], [0], [1], [0, 0, 1, 1], [], []>} : vector<32x128xf32>, vector<128x256xf32>, vector<32x256xf32> -> vector<32x256xf32>
    %cst_248 = arith.constant dense<0.000000e+00> : vector<64x256xf32>
    %298 = tpu.matmul %294, %297, %cst_248 {dimension_numbers = #tpu.dot_dimension_numbers<[1], [0], [0], [1], [0, 0, 1, 1], [], []>} : vector<64x32xf32>, vector<32x256xf32>, vector<64x256xf32> -> vector<64x256xf32>
    %c1_249 = arith.constant 1 : index
    %c0_250 = arith.constant 0 : index
    %c0_251 = arith.constant 0 : index
    %299 = vector.load %arg40[%c1_249, %c0_250, %c0_251] : memref<3x64x32xf32, #tpu.memory_space<vmem>>, vector<1x64x32xf32>
    %300 = vector.shape_cast %299 : vector<1x64x32xf32> to vector<64x32xf32>
    %c1_252 = arith.constant 1 : index
    %c0_253 = arith.constant 0 : index
    %c0_254 = arith.constant 0 : index
    %301 = vector.load %arg41[%c1_252, %c0_253, %c0_254] : memref<3x128x256xf32, #tpu.memory_space<vmem>>, vector<1x128x256xf32>
    %302 = vector.shape_cast %301 : vector<1x128x256xf32> to vector<128x256xf32>
    %cst_255 = arith.constant dense<0.000000e+00> : vector<32x256xf32>
    %303 = tpu.matmul %292, %302, %cst_255 {dimension_numbers = #tpu.dot_dimension_numbers<[1], [0], [0], [1], [0, 0, 1, 1], [], []>} : vector<32x128xf32>, vector<128x256xf32>, vector<32x256xf32> -> vector<32x256xf32>
    %cst_256 = arith.constant dense<0.000000e+00> : vector<64x256xf32>
    %304 = tpu.matmul %300, %303, %cst_256 {dimension_numbers = #tpu.dot_dimension_numbers<[1], [0], [0], [1], [0, 0, 1, 1], [], []>} : vector<64x32xf32>, vector<32x256xf32>, vector<64x256xf32> -> vector<64x256xf32>
    %305 = arith.addf %298, %304 : vector<64x256xf32>
    %c2_257 = arith.constant 2 : index
    %c0_258 = arith.constant 0 : index
    %c0_259 = arith.constant 0 : index
    %306 = vector.load %arg40[%c2_257, %c0_258, %c0_259] : memref<3x64x32xf32, #tpu.memory_space<vmem>>, vector<1x64x32xf32>
    %307 = vector.shape_cast %306 : vector<1x64x32xf32> to vector<64x32xf32>
    %c2_260 = arith.constant 2 : index
    %c0_261 = arith.constant 0 : index
    %c0_262 = arith.constant 0 : index
    %308 = vector.load %arg41[%c2_260, %c0_261, %c0_262] : memref<3x128x256xf32, #tpu.memory_space<vmem>>, vector<1x128x256xf32>
    %309 = vector.shape_cast %308 : vector<1x128x256xf32> to vector<128x256xf32>
    %cst_263 = arith.constant dense<0.000000e+00> : vector<32x256xf32>
    %310 = tpu.matmul %292, %309, %cst_263 {dimension_numbers = #tpu.dot_dimension_numbers<[1], [0], [0], [1], [0, 0, 1, 1], [], []>} : vector<32x128xf32>, vector<128x256xf32>, vector<32x256xf32> -> vector<32x256xf32>
    %cst_264 = arith.constant dense<0.000000e+00> : vector<64x256xf32>
    %311 = tpu.matmul %307, %310, %cst_264 {dimension_numbers = #tpu.dot_dimension_numbers<[1], [0], [0], [1], [0, 0, 1, 1], [], []>} : vector<64x32xf32>, vector<32x256xf32>, vector<64x256xf32> -> vector<64x256xf32>
    %312 = arith.addf %305, %311 : vector<64x256xf32>
    %c0_265 = arith.constant 0 : index
    %c0_266 = arith.constant 0 : index
    %313 = vector.load %arg42[%c0_265, %c0_266] : memref<1x256xf32, #tpu.memory_space<vmem>>, vector<1x256xf32>
    %314 = vector.broadcast %313 : vector<1x256xf32> to vector<64x256xf32>
    %315 = arith.addf %312, %314 : vector<64x256xf32>
    %c0_267 = arith.constant 0 : index
    %c0_268 = arith.constant 0 : index
    %316 = vector.load %arg10[%c0_267, %c0_268] : memref<256x8xf32, #tpu.memory_space<vmem>>, vector<256x8xf32>
    %c0_269 = arith.constant 0 : index
    %c0_270 = arith.constant 0 : index
    %317 = vector.load %arg11[%c0_269, %c0_270] : memref<8x256xf32, #tpu.memory_space<vmem>>, vector<8x256xf32>
    %cst_271 = arith.constant dense<0.000000e+00> : vector<256xf32>
    %318 = vector.multi_reduction <add>, %315, %cst_271 [0] : vector<64x256xf32> to vector<256xf32>
    %319 = vector.shape_cast %318 : vector<256xf32> to vector<1x256xf32>
    %320 = arith.mulf %315, %315 : vector<64x256xf32>
    %cst_272 = arith.constant dense<0.000000e+00> : vector<256xf32>
    %321 = vector.multi_reduction <add>, %320, %cst_272 [0] : vector<64x256xf32> to vector<256xf32>
    %322 = vector.shape_cast %321 : vector<256xf32> to vector<1x256xf32>
    %cst_273 = arith.constant dense<0.000000e+00> : vector<1x8xf32>
    %323 = tpu.matmul %319, %316, %cst_273 {dimension_numbers = #tpu.dot_dimension_numbers<[1], [0], [0], [1], [0, 0, 1, 1], [], []>} : vector<1x256xf32>, vector<256x8xf32>, vector<1x8xf32> -> vector<1x8xf32>
    %cst_274 = arith.constant dense<0.000000e+00> : vector<1x8xf32>
    %324 = tpu.matmul %322, %316, %cst_274 {dimension_numbers = #tpu.dot_dimension_numbers<[1], [0], [0], [1], [0, 0, 1, 1], [], []>} : vector<1x256xf32>, vector<256x8xf32>, vector<1x8xf32> -> vector<1x8xf32>
    %cst_275 = arith.constant 4.8828125E-4 : f32
    %325 = vector.broadcast %cst_275 : f32 to vector<1x8xf32>
    %326 = arith.mulf %323, %325 : vector<1x8xf32>
    %cst_276 = arith.constant 4.8828125E-4 : f32
    %327 = vector.broadcast %cst_276 : f32 to vector<1x8xf32>
    %328 = arith.mulf %324, %327 : vector<1x8xf32>
    %329 = arith.mulf %326, %326 : vector<1x8xf32>
    %330 = arith.subf %328, %329 : vector<1x8xf32>
    %c0_277 = arith.constant 0 : index
    %c0_278 = arith.constant 0 : index
    %331 = vector.load %arg43[%c0_277, %c0_278] : memref<1x8xf32, #tpu.memory_space<vmem>>, vector<1x8xf32>
    %cst_279 = arith.constant 9.99999974E-6 : f32
    %332 = vector.broadcast %cst_279 : f32 to vector<1x8xf32>
    %333 = arith.addf %330, %332 : vector<1x8xf32>
    %334 = math.rsqrt %333 : vector<1x8xf32>
    %335 = arith.mulf %331, %334 : vector<1x8xf32>
    %c0_280 = arith.constant 0 : index
    %c0_281 = arith.constant 0 : index
    %336 = vector.load %arg44[%c0_280, %c0_281] : memref<1x8xf32, #tpu.memory_space<vmem>>, vector<1x8xf32>
    %337 = arith.mulf %326, %335 : vector<1x8xf32>
    %338 = arith.subf %336, %337 : vector<1x8xf32>
    %cst_282 = arith.constant dense<0.000000e+00> : vector<1x256xf32>
    %339 = tpu.matmul %335, %317, %cst_282 {dimension_numbers = #tpu.dot_dimension_numbers<[1], [0], [0], [1], [0, 0, 1, 1], [], []>} : vector<1x8xf32>, vector<8x256xf32>, vector<1x256xf32> -> vector<1x256xf32>
    %cst_283 = arith.constant dense<0.000000e+00> : vector<1x256xf32>
    %340 = tpu.matmul %338, %317, %cst_283 {dimension_numbers = #tpu.dot_dimension_numbers<[1], [0], [0], [1], [0, 0, 1, 1], [], []>} : vector<1x8xf32>, vector<8x256xf32>, vector<1x256xf32> -> vector<1x256xf32>
    %341 = vector.broadcast %339 : vector<1x256xf32> to vector<64x256xf32>
    %342 = arith.mulf %315, %341 : vector<64x256xf32>
    %343 = vector.broadcast %340 : vector<1x256xf32> to vector<64x256xf32>
    %344 = arith.addf %342, %343 : vector<64x256xf32>
    %cst_284 = arith.constant 0.000000e+00 : f32
    %345 = vector.broadcast %cst_284 : f32 to vector<64x256xf32>
    %346 = arith.maximumf %344, %345 : vector<64x256xf32>
    %c0_285 = arith.constant 0 : index
    %c0_286 = arith.constant 0 : index
    %c0_287 = arith.constant 0 : index
    %347 = vector.load %arg45[%c0_285, %c0_286, %c0_287] : memref<3x64x64xf32, #tpu.memory_space<vmem>>, vector<1x64x64xf32>
    %348 = vector.shape_cast %347 : vector<1x64x64xf32> to vector<64x64xf32>
    %c0_288 = arith.constant 0 : index
    %c0_289 = arith.constant 0 : index
    %c0_290 = arith.constant 0 : index
    %349 = vector.load %arg46[%c0_288, %c0_289, %c0_290] : memref<3x256x256xf32, #tpu.memory_space<vmem>>, vector<1x256x256xf32>
    %350 = vector.shape_cast %349 : vector<1x256x256xf32> to vector<256x256xf32>
    %cst_291 = arith.constant dense<0.000000e+00> : vector<64x256xf32>
    %351 = tpu.matmul %346, %350, %cst_291 {dimension_numbers = #tpu.dot_dimension_numbers<[1], [0], [0], [1], [0, 0, 1, 1], [], []>} : vector<64x256xf32>, vector<256x256xf32>, vector<64x256xf32> -> vector<64x256xf32>
    %cst_292 = arith.constant dense<0.000000e+00> : vector<64x256xf32>
    %352 = tpu.matmul %348, %351, %cst_292 {dimension_numbers = #tpu.dot_dimension_numbers<[1], [0], [0], [1], [0, 0, 1, 1], [], []>} : vector<64x64xf32>, vector<64x256xf32>, vector<64x256xf32> -> vector<64x256xf32>
    %c1_293 = arith.constant 1 : index
    %c0_294 = arith.constant 0 : index
    %c0_295 = arith.constant 0 : index
    %353 = vector.load %arg45[%c1_293, %c0_294, %c0_295] : memref<3x64x64xf32, #tpu.memory_space<vmem>>, vector<1x64x64xf32>
    %354 = vector.shape_cast %353 : vector<1x64x64xf32> to vector<64x64xf32>
    %c1_296 = arith.constant 1 : index
    %c0_297 = arith.constant 0 : index
    %c0_298 = arith.constant 0 : index
    %355 = vector.load %arg46[%c1_296, %c0_297, %c0_298] : memref<3x256x256xf32, #tpu.memory_space<vmem>>, vector<1x256x256xf32>
    %356 = vector.shape_cast %355 : vector<1x256x256xf32> to vector<256x256xf32>
    %cst_299 = arith.constant dense<0.000000e+00> : vector<64x256xf32>
    %357 = tpu.matmul %346, %356, %cst_299 {dimension_numbers = #tpu.dot_dimension_numbers<[1], [0], [0], [1], [0, 0, 1, 1], [], []>} : vector<64x256xf32>, vector<256x256xf32>, vector<64x256xf32> -> vector<64x256xf32>
    %cst_300 = arith.constant dense<0.000000e+00> : vector<64x256xf32>
    %358 = tpu.matmul %354, %357, %cst_300 {dimension_numbers = #tpu.dot_dimension_numbers<[1], [0], [0], [1], [0, 0, 1, 1], [], []>} : vector<64x64xf32>, vector<64x256xf32>, vector<64x256xf32> -> vector<64x256xf32>
    %359 = arith.addf %352, %358 : vector<64x256xf32>
    %c2_301 = arith.constant 2 : index
    %c0_302 = arith.constant 0 : index
    %c0_303 = arith.constant 0 : index
    %360 = vector.load %arg45[%c2_301, %c0_302, %c0_303] : memref<3x64x64xf32, #tpu.memory_space<vmem>>, vector<1x64x64xf32>
    %361 = vector.shape_cast %360 : vector<1x64x64xf32> to vector<64x64xf32>
    %c2_304 = arith.constant 2 : index
    %c0_305 = arith.constant 0 : index
    %c0_306 = arith.constant 0 : index
    %362 = vector.load %arg46[%c2_304, %c0_305, %c0_306] : memref<3x256x256xf32, #tpu.memory_space<vmem>>, vector<1x256x256xf32>
    %363 = vector.shape_cast %362 : vector<1x256x256xf32> to vector<256x256xf32>
    %cst_307 = arith.constant dense<0.000000e+00> : vector<64x256xf32>
    %364 = tpu.matmul %346, %363, %cst_307 {dimension_numbers = #tpu.dot_dimension_numbers<[1], [0], [0], [1], [0, 0, 1, 1], [], []>} : vector<64x256xf32>, vector<256x256xf32>, vector<64x256xf32> -> vector<64x256xf32>
    %cst_308 = arith.constant dense<0.000000e+00> : vector<64x256xf32>
    %365 = tpu.matmul %361, %364, %cst_308 {dimension_numbers = #tpu.dot_dimension_numbers<[1], [0], [0], [1], [0, 0, 1, 1], [], []>} : vector<64x64xf32>, vector<64x256xf32>, vector<64x256xf32> -> vector<64x256xf32>
    %366 = arith.addf %359, %365 : vector<64x256xf32>
    %c0_309 = arith.constant 0 : index
    %c0_310 = arith.constant 0 : index
    %367 = vector.load %arg47[%c0_309, %c0_310] : memref<1x256xf32, #tpu.memory_space<vmem>>, vector<1x256xf32>
    %368 = vector.broadcast %367 : vector<1x256xf32> to vector<64x256xf32>
    %369 = arith.addf %366, %368 : vector<64x256xf32>
    %c0_311 = arith.constant 0 : index
    %c0_312 = arith.constant 0 : index
    %370 = vector.load %arg48[%c0_311, %c0_312] : memref<64x32xf32, #tpu.memory_space<vmem>>, vector<64x32xf32>
    %c0_313 = arith.constant 0 : index
    %c0_314 = arith.constant 0 : index
    %371 = vector.load %arg49[%c0_313, %c0_314] : memref<128x256xf32, #tpu.memory_space<vmem>>, vector<128x256xf32>
    %cst_315 = arith.constant dense<0.000000e+00> : vector<32x256xf32>
    %372 = tpu.matmul %261, %371, %cst_315 {dimension_numbers = #tpu.dot_dimension_numbers<[1], [0], [0], [1], [0, 0, 1, 1], [], []>} : vector<32x128xf32>, vector<128x256xf32>, vector<32x256xf32> -> vector<32x256xf32>
    %cst_316 = arith.constant dense<0.000000e+00> : vector<64x256xf32>
    %373 = tpu.matmul %370, %372, %cst_316 {dimension_numbers = #tpu.dot_dimension_numbers<[1], [0], [0], [1], [0, 0, 1, 1], [], []>} : vector<64x32xf32>, vector<32x256xf32>, vector<64x256xf32> -> vector<64x256xf32>
    %c0_317 = arith.constant 0 : index
    %c0_318 = arith.constant 0 : index
    %374 = vector.load %arg50[%c0_317, %c0_318] : memref<1x256xf32, #tpu.memory_space<vmem>>, vector<1x256xf32>
    %375 = vector.broadcast %374 : vector<1x256xf32> to vector<64x256xf32>
    %376 = arith.addf %373, %375 : vector<64x256xf32>
    %377 = arith.addf %369, %376 : vector<64x256xf32>
    %c0_319 = arith.constant 0 : index
    %c0_320 = arith.constant 0 : index
    %378 = vector.load %arg10[%c0_319, %c0_320] : memref<256x8xf32, #tpu.memory_space<vmem>>, vector<256x8xf32>
    %c0_321 = arith.constant 0 : index
    %c0_322 = arith.constant 0 : index
    %379 = vector.load %arg11[%c0_321, %c0_322] : memref<8x256xf32, #tpu.memory_space<vmem>>, vector<8x256xf32>
    %cst_323 = arith.constant dense<0.000000e+00> : vector<256xf32>
    %380 = vector.multi_reduction <add>, %377, %cst_323 [0] : vector<64x256xf32> to vector<256xf32>
    %381 = vector.shape_cast %380 : vector<256xf32> to vector<1x256xf32>
    %382 = arith.mulf %377, %377 : vector<64x256xf32>
    %cst_324 = arith.constant dense<0.000000e+00> : vector<256xf32>
    %383 = vector.multi_reduction <add>, %382, %cst_324 [0] : vector<64x256xf32> to vector<256xf32>
    %384 = vector.shape_cast %383 : vector<256xf32> to vector<1x256xf32>
    %cst_325 = arith.constant dense<0.000000e+00> : vector<1x8xf32>
    %385 = tpu.matmul %381, %378, %cst_325 {dimension_numbers = #tpu.dot_dimension_numbers<[1], [0], [0], [1], [0, 0, 1, 1], [], []>} : vector<1x256xf32>, vector<256x8xf32>, vector<1x8xf32> -> vector<1x8xf32>
    %cst_326 = arith.constant dense<0.000000e+00> : vector<1x8xf32>
    %386 = tpu.matmul %384, %378, %cst_326 {dimension_numbers = #tpu.dot_dimension_numbers<[1], [0], [0], [1], [0, 0, 1, 1], [], []>} : vector<1x256xf32>, vector<256x8xf32>, vector<1x8xf32> -> vector<1x8xf32>
    %cst_327 = arith.constant 4.8828125E-4 : f32
    %387 = vector.broadcast %cst_327 : f32 to vector<1x8xf32>
    %388 = arith.mulf %385, %387 : vector<1x8xf32>
    %cst_328 = arith.constant 4.8828125E-4 : f32
    %389 = vector.broadcast %cst_328 : f32 to vector<1x8xf32>
    %390 = arith.mulf %386, %389 : vector<1x8xf32>
    %391 = arith.mulf %388, %388 : vector<1x8xf32>
    %392 = arith.subf %390, %391 : vector<1x8xf32>
    %c0_329 = arith.constant 0 : index
    %c0_330 = arith.constant 0 : index
    %393 = vector.load %arg51[%c0_329, %c0_330] : memref<1x8xf32, #tpu.memory_space<vmem>>, vector<1x8xf32>
    %cst_331 = arith.constant 9.99999974E-6 : f32
    %394 = vector.broadcast %cst_331 : f32 to vector<1x8xf32>
    %395 = arith.addf %392, %394 : vector<1x8xf32>
    %396 = math.rsqrt %395 : vector<1x8xf32>
    %397 = arith.mulf %393, %396 : vector<1x8xf32>
    %c0_332 = arith.constant 0 : index
    %c0_333 = arith.constant 0 : index
    %398 = vector.load %arg52[%c0_332, %c0_333] : memref<1x8xf32, #tpu.memory_space<vmem>>, vector<1x8xf32>
    %399 = arith.mulf %388, %397 : vector<1x8xf32>
    %400 = arith.subf %398, %399 : vector<1x8xf32>
    %cst_334 = arith.constant dense<0.000000e+00> : vector<1x256xf32>
    %401 = tpu.matmul %397, %379, %cst_334 {dimension_numbers = #tpu.dot_dimension_numbers<[1], [0], [0], [1], [0, 0, 1, 1], [], []>} : vector<1x8xf32>, vector<8x256xf32>, vector<1x256xf32> -> vector<1x256xf32>
    %cst_335 = arith.constant dense<0.000000e+00> : vector<1x256xf32>
    %402 = tpu.matmul %400, %379, %cst_335 {dimension_numbers = #tpu.dot_dimension_numbers<[1], [0], [0], [1], [0, 0, 1, 1], [], []>} : vector<1x8xf32>, vector<8x256xf32>, vector<1x256xf32> -> vector<1x256xf32>
    %403 = vector.broadcast %401 : vector<1x256xf32> to vector<64x256xf32>
    %404 = arith.mulf %377, %403 : vector<64x256xf32>
    %405 = vector.broadcast %402 : vector<1x256xf32> to vector<64x256xf32>
    %406 = arith.addf %404, %405 : vector<64x256xf32>
    %cst_336 = arith.constant 0.000000e+00 : f32
    %407 = vector.broadcast %cst_336 : f32 to vector<64x256xf32>
    %408 = arith.maximumf %406, %407 : vector<64x256xf32>
    %c0_337 = arith.constant 0 : index
    %c0_338 = arith.constant 0 : index
    %c0_339 = arith.constant 0 : index
    %409 = vector.load %arg53[%c0_337, %c0_338, %c0_339] : memref<3x64x64xf32, #tpu.memory_space<vmem>>, vector<1x64x64xf32>
    %410 = vector.shape_cast %409 : vector<1x64x64xf32> to vector<64x64xf32>
    %c0_340 = arith.constant 0 : index
    %c0_341 = arith.constant 0 : index
    %c0_342 = arith.constant 0 : index
    %411 = vector.load %arg54[%c0_340, %c0_341, %c0_342] : memref<3x256x96xf32, #tpu.memory_space<vmem>>, vector<1x256x96xf32>
    %412 = vector.shape_cast %411 : vector<1x256x96xf32> to vector<256x96xf32>
    %cst_343 = arith.constant dense<0.000000e+00> : vector<64x96xf32>
    %413 = tpu.matmul %408, %412, %cst_343 {dimension_numbers = #tpu.dot_dimension_numbers<[1], [0], [0], [1], [0, 0, 1, 1], [], []>} : vector<64x256xf32>, vector<256x96xf32>, vector<64x96xf32> -> vector<64x96xf32>
    %cst_344 = arith.constant dense<0.000000e+00> : vector<64x96xf32>
    %414 = tpu.matmul %410, %413, %cst_344 {dimension_numbers = #tpu.dot_dimension_numbers<[1], [0], [0], [1], [0, 0, 1, 1], [], []>} : vector<64x64xf32>, vector<64x96xf32>, vector<64x96xf32> -> vector<64x96xf32>
    %c1_345 = arith.constant 1 : index
    %c0_346 = arith.constant 0 : index
    %c0_347 = arith.constant 0 : index
    %415 = vector.load %arg53[%c1_345, %c0_346, %c0_347] : memref<3x64x64xf32, #tpu.memory_space<vmem>>, vector<1x64x64xf32>
    %416 = vector.shape_cast %415 : vector<1x64x64xf32> to vector<64x64xf32>
    %c1_348 = arith.constant 1 : index
    %c0_349 = arith.constant 0 : index
    %c0_350 = arith.constant 0 : index
    %417 = vector.load %arg54[%c1_348, %c0_349, %c0_350] : memref<3x256x96xf32, #tpu.memory_space<vmem>>, vector<1x256x96xf32>
    %418 = vector.shape_cast %417 : vector<1x256x96xf32> to vector<256x96xf32>
    %cst_351 = arith.constant dense<0.000000e+00> : vector<64x96xf32>
    %419 = tpu.matmul %408, %418, %cst_351 {dimension_numbers = #tpu.dot_dimension_numbers<[1], [0], [0], [1], [0, 0, 1, 1], [], []>} : vector<64x256xf32>, vector<256x96xf32>, vector<64x96xf32> -> vector<64x96xf32>
    %cst_352 = arith.constant dense<0.000000e+00> : vector<64x96xf32>
    %420 = tpu.matmul %416, %419, %cst_352 {dimension_numbers = #tpu.dot_dimension_numbers<[1], [0], [0], [1], [0, 0, 1, 1], [], []>} : vector<64x64xf32>, vector<64x96xf32>, vector<64x96xf32> -> vector<64x96xf32>
    %421 = arith.addf %414, %420 : vector<64x96xf32>
    %c2_353 = arith.constant 2 : index
    %c0_354 = arith.constant 0 : index
    %c0_355 = arith.constant 0 : index
    %422 = vector.load %arg53[%c2_353, %c0_354, %c0_355] : memref<3x64x64xf32, #tpu.memory_space<vmem>>, vector<1x64x64xf32>
    %423 = vector.shape_cast %422 : vector<1x64x64xf32> to vector<64x64xf32>
    %c2_356 = arith.constant 2 : index
    %c0_357 = arith.constant 0 : index
    %c0_358 = arith.constant 0 : index
    %424 = vector.load %arg54[%c2_356, %c0_357, %c0_358] : memref<3x256x96xf32, #tpu.memory_space<vmem>>, vector<1x256x96xf32>
    %425 = vector.shape_cast %424 : vector<1x256x96xf32> to vector<256x96xf32>
    %cst_359 = arith.constant dense<0.000000e+00> : vector<64x96xf32>
    %426 = tpu.matmul %408, %425, %cst_359 {dimension_numbers = #tpu.dot_dimension_numbers<[1], [0], [0], [1], [0, 0, 1, 1], [], []>} : vector<64x256xf32>, vector<256x96xf32>, vector<64x96xf32> -> vector<64x96xf32>
    %cst_360 = arith.constant dense<0.000000e+00> : vector<64x96xf32>
    %427 = tpu.matmul %423, %426, %cst_360 {dimension_numbers = #tpu.dot_dimension_numbers<[1], [0], [0], [1], [0, 0, 1, 1], [], []>} : vector<64x64xf32>, vector<64x96xf32>, vector<64x96xf32> -> vector<64x96xf32>
    %428 = arith.addf %421, %427 : vector<64x96xf32>
    %c0_361 = arith.constant 0 : index
    %c0_362 = arith.constant 0 : index
    %429 = vector.load %arg55[%c0_361, %c0_362] : memref<1x96xf32, #tpu.memory_space<vmem>>, vector<1x96xf32>
    %430 = vector.broadcast %429 : vector<1x96xf32> to vector<64x96xf32>
    %431 = arith.addf %428, %430 : vector<64x96xf32>
    %432 = arith.negf %431 : vector<64x96xf32>
    %433 = math.exp %432 : vector<64x96xf32>
    %cst_363 = arith.constant 1.000000e+00 : f32
    %434 = vector.broadcast %cst_363 : f32 to vector<64x96xf32>
    %435 = arith.addf %434, %433 : vector<64x96xf32>
    %436 = arith.divf %434, %435 : vector<64x96xf32>
    %c0_364 = arith.constant 0 : index
    %c0_365 = arith.constant 0 : index
    %437 = vector.load %arg56[%c0_364, %c0_365] : memref<64x96xf32, #tpu.memory_space<vmem>>, vector<64x96xf32>
    tpu.vector_store %arg56[%c0_364, %c0_365], %436 {strides = array<i32>} : memref<64x96xf32, #tpu.memory_space<vmem>>, vector<64x96xf32>,
    return
  }
}

</mosaic_0001>

<llo_original>
// kernel: tpu_custom_call.1
$region0: #{tpu_custom_call.1}
  #allocation0 [shape = 'u32[]', space=smem, size = 0x4, offset = 0x4, fixed_abs, tag = 'smem constant byte address 0x4 - core index']
  #allocation1 [shape = 'u32[144,128]{1,0:T(1,128)}', space=vmem, size = 0x12000, scoped, tag = 'internal scratch']
  %s0 = inlined_call_operand.smem [shape: u32[57], index: -1, kind: input, shape index: {}]
  %s1 = sld [smem:[%s0]]
  %s2 = scalar_lea.smem %s0, 1
  %s3 = sld [smem:[%s2]]
  %s4 = scalar_lea.smem %s0, 2
  %s5 = sld [smem:[%s4]]
  %s6 = scalar_lea.smem %s0, 3
  %s7 = sld [smem:[%s6]]
  %s8 = scalar_lea.smem %s0, 4
  %s9 = sld [smem:[%s8]]
  %s10 = scalar_lea.smem %s0, 5
  %s11 = sld [smem:[%s10]]
  %s12 = scalar_lea.smem %s0, 6
  %s13 = sld [smem:[%s12]]
  %s14 = scalar_lea.smem %s0, 7
  %s15 = sld [smem:[%s14]]
  %s16 = scalar_lea.smem %s0, 8
  %s17 = sld [smem:[%s16]]
  %s18 = scalar_lea.smem %s0, 9
  %s19 = sld [smem:[%s18]]
  %s20 = scalar_lea.smem %s0, 10
  %s21 = sld [smem:[%s20]]
  %s22 = scalar_lea.smem %s0, 11
  %s23 = sld [smem:[%s22]]
  %s24 = scalar_lea.smem %s0, 12
  %s25 = sld [smem:[%s24]]
  %s26 = scalar_lea.smem %s0, 13
  %s27 = sld [smem:[%s26]]
  %s28 = scalar_lea.smem %s0, 14
  %s29 = sld [smem:[%s28]]
  %s30 = scalar_lea.smem %s0, 15
  %s31 = sld [smem:[%s30]]
  %s32 = scalar_lea.smem %s0, 16
  %s33 = sld [smem:[%s32]]
  %s34 = scalar_lea.smem %s0, 17
  %s35 = sld [smem:[%s34]]
  %s36 = scalar_lea.smem %s0, 18
  %s37 = sld [smem:[%s36]]
  %s38 = scalar_lea.smem %s0, 19
  %s39 = sld [smem:[%s38]]
  %s40 = scalar_lea.smem %s0, 20
  %s41 = sld [smem:[%s40]]
  %s42 = scalar_lea.smem %s0, 21
  %s43 = sld [smem:[%s42]]
  %s44 = scalar_lea.smem %s0, 22
  %s45 = sld [smem:[%s44]]
  %s46 = scalar_lea.smem %s0, 23
  %s47 = sld [smem:[%s46]]
  %s48 = scalar_lea.smem %s0, 24
  %s49 = sld [smem:[%s48]]
  %s50 = scalar_lea.smem %s0, 25
  %s51 = sld [smem:[%s50]]
  %s52 = scalar_lea.smem %s0, 26
  %s53 = sld [smem:[%s52]]
  %s54 = scalar_lea.smem %s0, 27
  %s55 = sld [smem:[%s54]]
  %s56 = scalar_lea.smem %s0, 28
  %s57 = sld [smem:[%s56]]
  %s58 = scalar_lea.smem %s0, 29
  %s59 = sld [smem:[%s58]]
  %s60 = scalar_lea.smem %s0, 30
  %s61 = sld [smem:[%s60]]
  %s62 = scalar_lea.smem %s0, 31
  %s63 = sld [smem:[%s62]]
  %s64 = scalar_lea.smem %s0, 32
  %s65 = sld [smem:[%s64]]
  %s66 = scalar_lea.smem %s0, 33
  %s67 = sld [smem:[%s66]]
  %s68 = scalar_lea.smem %s0, 34
  %s69 = sld [smem:[%s68]]
  %s70 = scalar_lea.smem %s0, 35
  %s71 = sld [smem:[%s70]]
  %s72 = scalar_lea.smem %s0, 36
  %s73 = sld [smem:[%s72]]
  %s74 = scalar_lea.smem %s0, 37
  %s75 = sld [smem:[%s74]]
  %s76 = scalar_lea.smem %s0, 38
  %s77 = sld [smem:[%s76]]
  %s78 = scalar_lea.smem %s0, 39
  %s79 = sld [smem:[%s78]]
  %s80 = scalar_lea.smem %s0, 40
  %s81 = sld [smem:[%s80]]
  %s82 = scalar_lea.smem %s0, 41
  %s83 = sld [smem:[%s82]]
  %s84 = scalar_lea.smem %s0, 42
  %s85 = sld [smem:[%s84]]
  %s86 = scalar_lea.smem %s0, 43
  %s87 = sld [smem:[%s86]]
  %s88 = scalar_lea.smem %s0, 44
  %s89 = sld [smem:[%s88]]
  %s90 = scalar_lea.smem %s0, 45
  %s91 = sld [smem:[%s90]]
  %s92 = scalar_lea.smem %s0, 46
  %s93 = sld [smem:[%s92]]
  %s94 = scalar_lea.smem %s0, 47
  %s95 = sld [smem:[%s94]]
  %s96 = scalar_lea.smem %s0, 48
  %s97 = sld [smem:[%s96]]
  %s98 = scalar_lea.smem %s0, 49
  %s99 = sld [smem:[%s98]]
  %s100 = scalar_lea.smem %s0, 50
  %s101 = sld [smem:[%s100]]
  %s102 = scalar_lea.smem %s0, 51
  %s103 = sld [smem:[%s102]]
  %s104 = scalar_lea.smem %s0, 52
  %s105 = sld [smem:[%s104]]
  %s106 = scalar_lea.smem %s0, 53
  %s107 = sld [smem:[%s106]]
  %s108 = scalar_lea.smem %s0, 54
  %s109 = sld [smem:[%s108]]
  %s110 = scalar_lea.smem %s0, 55
  %s111 = sld [smem:[%s110]]
  %s112 = scalar_lea.smem %s0, 56
  %s113 = sld [smem:[%s112]]
  %s114 = sld [smem:[#allocation0]]
  $region362: #{tpu_custom_call.1} parent=0
    _
  %s116 = ssub.s32 1, %s114
  %s117 = scalar_select 0, %s116, %s114
  $region1: #{tpu_custom_call.1} parent=0
    #allocation2 [shape = 'u8[32768]{0}', space=vmem, size = 0x8000, scoped, tag = 'input window, operand 1, single buffered']
    #allocation3 [shape = 's32[1]{0}', space=sflag, size = 0x4, scoped, tag = 'scoped memory for tpu_custom_call.1']
    #allocation4 [shape = 's32[1]{0}', space=sflag, size = 0x4, scoped, tag = 'scoped memory for tpu_custom_call.1']
    #allocation5 [shape = 'u8[4096]{0}', space=vmem, size = 0x1000, scoped, tag = 'input window, operand 5, single buffered']
    #allocation6 [shape = 's32[1]{0}', space=sflag, size = 0x4, scoped, tag = 'scoped memory for tpu_custom_call.1']
    #allocation7 [shape = 'u8[4096]{0}', space=vmem, size = 0x1000, scoped, tag = 'input window, operand 7, single buffered']
    #allocation8 [shape = 'u8[4096]{0}', space=vmem, size = 0x1000, scoped, tag = 'input window, operand 9, single buffered']
    #allocation9 [shape = 's32[1]{0}', space=sflag, size = 0x4, scoped, tag = 'scoped memory for tpu_custom_call.1']
    #allocation10 [shape = 'u8[8192]{0}', space=vmem, size = 0x2000, scoped, tag = 'input window, operand 11, single buffered']
    #allocation11 [shape = 'u8[512]{0}', space=vmem, size = 0x400, scoped, tag = 'input window, operand 12, single buffered']
    #allocation12 [shape = 's32[1]{0}', space=sflag, size = 0x4, scoped, tag = 'scoped memory for tpu_custom_call.1']
    #allocation13 [shape = 'u8[512]{0}', space=vmem, size = 0x400, scoped, tag = 'input window, operand 13, single buffered']
    #allocation14 [shape = 'u8[49152]{0}', space=vmem, size = 0xc000, scoped, tag = 'input window, operand 15, single buffered']
    #allocation15 [shape = 's32[1]{0}', space=sflag, size = 0x4, scoped, tag = 'scoped memory for tpu_custom_call.1']
    #allocation16 [shape = 'u8[512]{0}', space=vmem, size = 0x400, scoped, tag = 'input window, operand 16, single buffered']
    #allocation17 [shape = 'u8[512]{0}', space=vmem, size = 0x400, scoped, tag = 'input window, operand 17, single buffered']
    #allocation18 [shape = 's32[1]{0}', space=sflag, size = 0x4, scoped, tag = 'scoped memory for tpu_custom_call.1']
    #allocation19 [shape = 'u8[512]{0}', space=vmem, size = 0x400, scoped, tag = 'input window, operand 18, single buffered']
    #allocation20 [shape = 'u8[98304]{0}', space=vmem, size = 0x18000, scoped, tag = 'input window, operand 20, single buffered']
    #allocation21 [shape = 's32[1]{0}', space=sflag, size = 0x4, scoped, tag = 'scoped memory for tpu_custom_call.1']
    #allocation22 [shape = 'u8[512]{0}', space=vmem, size = 0x400, scoped, tag = 'input window, operand 21, single buffered']
    #allocation23 [shape = 'u8[16384]{0}', space=vmem, size = 0x4000, scoped, tag = 'input window, operand 23, single buffered']
    #allocation24 [shape = 's32[1]{0}', space=sflag, size = 0x4, scoped, tag = 'scoped memory for tpu_custom_call.1']
    #allocation25 [shape = 'u8[512]{0}', space=vmem, size = 0x400, scoped, tag = 'input window, operand 24, single buffered']
    #allocation26 [shape = 'u8[512]{0}', space=vmem, size = 0x400, scoped, tag = 'input window, operand 25, single buffered']
    #allocation27 [shape = 's32[1]{0}', space=sflag, size = 0x4, scoped, tag = 'scoped memory for tpu_custom_call.1']
    #allocation28 [shape = 'u8[512]{0}', space=vmem, size = 0x400, scoped, tag = 'input window, operand 26, single buffered']
    #allocation29 [shape = 'u8[98304]{0}', space=vmem, size = 0x18000, scoped, tag = 'input window, operand 28, single buffered']
    #allocation30 [shape = 's32[1]{0}', space=sflag, size = 0x4, scoped, tag = 'scoped memory for tpu_custom_call.1']
    #allocation31 [shape = 'u8[512]{0}', space=vmem, size = 0x400, scoped, tag = 'input window, operand 29, single buffered']
    #allocation32 [shape = 'u8[512]{0}', space=vmem, size = 0x400, scoped, tag = 'input window, operand 30, single buffered']
    #allocation33 [shape = 's32[1]{0}', space=sflag, size = 0x4, scoped, tag = 'scoped memory for tpu_custom_call.1']
    #allocation34 [shape = 'u8[512]{0}', space=vmem, size = 0x400, scoped, tag = 'input window, operand 31, single buffered']
    #allocation35 [shape = 'u8[49152]{0}', space=vmem, size = 0xc000, scoped, tag = 'input window, operand 32, single buffered']
    #allocation36 [shape = 's32[1]{0}', space=sflag, size = 0x4, scoped, tag = 'scoped memory for tpu_custom_call.1']
    #allocation37 [shape = 'u8[512]{0}', space=vmem, size = 0x400, scoped, tag = 'input window, operand 34, single buffered']
    #allocation38 [shape = 'u8[32768]{0}', space=vmem, size = 0x8000, scoped, tag = 'input window, operand 36, single buffered']
    #allocation39 [shape = 's32[1]{0}', space=sflag, size = 0x4, scoped, tag = 'scoped memory for tpu_custom_call.1']
    #allocation40 [shape = 'u8[512]{0}', space=vmem, size = 0x400, scoped, tag = 'input window, operand 37, single buffered']
    #allocation41 [shape = 'u8[512]{0}', space=vmem, size = 0x400, scoped, tag = 'input window, operand 38, single buffered']
    #allocation42 [shape = 's32[1]{0}', space=sflag, size = 0x4, scoped, tag = 'scoped memory for tpu_custom_call.1']
    #allocation43 [shape = 'u8[512]{0}', space=vmem, size = 0x400, scoped, tag = 'input window, operand 39, single buffered']
    #allocation44 [shape = 'u8[512]{0}', space=vmem, size = 0x400, scoped, tag = 'input window, operand 43, single buffered']
    #allocation45 [shape = 's32[1]{0}', space=sflag, size = 0x4, scoped, tag = 'scoped memory for tpu_custom_call.1']
    #allocation46 [shape = 'u8[512]{0}', space=vmem, size = 0x400, scoped, tag = 'input window, operand 44, single buffered']
    #allocation47 [shape = 'u8[98304]{0}', space=vmem, size = 0x18000, scoped, tag = 'input window, operand 45, single buffered']
    #allocation48 [shape = 's32[1]{0}', space=sflag, size = 0x4, scoped, tag = 'scoped memory for tpu_custom_call.1']
    #allocation49 [shape = 'u8[131072]{0}', space=vmem, size = 0x20000, scoped, tag = 'input window, operand 49, single buffered']
    #allocation50 [shape = 'u8[98304]{0}', space=vmem, size = 0x18000, scoped, tag = 'input window, operand 53, single buffered']
    #allocation51 [shape = 's32[1]{0}', space=sflag, size = 0x4, scoped, tag = 'scoped memory for tpu_custom_call.1']
    #allocation52 [shape = 'u8[32768]{0}', space=vmem, size = 0x8000, scoped, tag = 'output window, operand 0, single buffered']
    %118 = vsyncpa [#allocation3], 0
    %119 = vsyncpa [#allocation6], 0
    %120 = vsyncpa [#allocation9], 0
    %121 = vsyncpa [#allocation12], 0
    %122 = vsyncpa [#allocation15], 0
    %123 = vsyncpa [#allocation18], 0
    %124 = vsyncpa [#allocation21], 0
    %125 = vsyncpa [#allocation24], 0
    %126 = vsyncpa [#allocation27], 0
    %127 = vsyncpa [#allocation30], 0
    %128 = vsyncpa [#allocation33], 0
    %129 = vsyncpa [#allocation36], 0
    %130 = vsyncpa [#allocation39], 0
    %131 = vsyncpa [#allocation42], 0
    %132 = vsyncpa [#allocation45], 0
    %133 = vsyncpa [#allocation48], 0
    %134 = vsyncpa [#allocation51], 0
    %135 = vsyncpa [#allocation4], 0
    // Predicated region
    $region2: #{tpu_custom_call.1} parent=1 // pred_check
      _
    $region3: #{tpu_custom_call.1} parent=1 // pred_check_branch
      %137 = sbr.rel (0) target = $region5
    $region4: #{tpu_custom_call.1} parent=1 // pred_region
      _
    $region5: #{tpu_custom_call.1} parent=1 // pred_fallthru
      _
    // Predicated region
    $region6: #{tpu_custom_call.1} parent=1 // pred_check
      _
    $region7: #{tpu_custom_call.1} parent=1 // pred_check_branch
      %139 = sbr.rel (0) target = $region9
    $region8: #{tpu_custom_call.1} parent=1 // pred_region
      %s141 = ssub.s32 1024, 1024
      %142 = vsyncadd [#allocation3], %s141
      %s143 = sshll.u32 [#allocation2], 4
      %s144 = int_to_ptr.vmem [resolvable:$true] %s143
      %149 = dma.hbm_to_vmem [thread:$0]  %s3, 1024, %s144, [#allocation3], 128, 128, 8
    $region9: #{tpu_custom_call.1} parent=1 // pred_fallthru
      _
    // Predicated region
    $region10: #{tpu_custom_call.1} parent=1 // pred_check
      _
    $region11: #{tpu_custom_call.1} parent=1 // pred_check_branch
      %151 = sbr.rel (0) target = $region13
    $region12: #{tpu_custom_call.1} parent=1 // pred_region
      _
    $region13: #{tpu_custom_call.1} parent=1 // pred_fallthru
      _
    // Predicated region
    $region14: #{tpu_custom_call.1} parent=1 // pred_check
      _
    $region15: #{tpu_custom_call.1} parent=1 // pred_check_branch
      %153 = sbr.rel (0) target = $region17
    $region16: #{tpu_custom_call.1} parent=1 // pred_region
      _
    $region17: #{tpu_custom_call.1} parent=1 // pred_fallthru
      _
    // Predicated region
    $region18: #{tpu_custom_call.1} parent=1 // pred_check
      _
    $region19: #{tpu_custom_call.1} parent=1 // pred_check_branch
      %155 = sbr.rel (0) target = $region21
    $region20: #{tpu_custom_call.1} parent=1 // pred_region
      _
    $region21: #{tpu_custom_call.1} parent=1 // pred_fallthru
      _
    // Predicated region
    $region22: #{tpu_custom_call.1} parent=1 // pred_check
      _
    $region23: #{tpu_custom_call.1} parent=1 // pred_check_branch
      %157 = sbr.rel (0) target = $region25
    $region24: #{tpu_custom_call.1} parent=1 // pred_region
      %s159 = ssub.s32 128, 128
      %160 = vsyncadd [#allocation6], %s159
      %s162 = sshll.u32 [#allocation5], 4
      %s163 = int_to_ptr.vmem [resolvable:$true] %s162
      %165 = dma.hbm_to_vmem [thread:$0]  %s11, 128, %s163, [#allocation6]
    $region25: #{tpu_custom_call.1} parent=1 // pred_fallthru
      _
    // Predicated region
    $region26: #{tpu_custom_call.1} parent=1 // pred_check
      _
    $region27: #{tpu_custom_call.1} parent=1 // pred_check_branch
      %167 = sbr.rel (0) target = $region29
    $region28: #{tpu_custom_call.1} parent=1 // pred_region
      _
    $region29: #{tpu_custom_call.1} parent=1 // pred_fallthru
      _
    // Predicated region
    $region30: #{tpu_custom_call.1} parent=1 // pred_check
      _
    $region31: #{tpu_custom_call.1} parent=1 // pred_check_branch
      %169 = sbr.rel (0) target = $region33
    $region32: #{tpu_custom_call.1} parent=1 // pred_region
      %s171 = ssub.s32 128, 128
      %172 = vsyncadd [#allocation6], %s171
      %s174 = sshll.u32 [#allocation7], 4
      %s175 = int_to_ptr.vmem [resolvable:$true] %s174
      %177 = dma.hbm_to_vmem [thread:$0]  %s15, 128, %s175, [#allocation6]
    $region33: #{tpu_custom_call.1} parent=1 // pred_fallthru
      _
    // Predicated region
    $region34: #{tpu_custom_call.1} parent=1 // pred_check
      _
    $region35: #{tpu_custom_call.1} parent=1 // pred_check_branch
      %179 = sbr.rel (0) target = $region37
    $region36: #{tpu_custom_call.1} parent=1 // pred_region
      _
    $region37: #{tpu_custom_call.1} parent=1 // pred_fallthru
      _
    // Predicated region
    $region38: #{tpu_custom_call.1} parent=1 // pred_check
      _
    $region39: #{tpu_custom_call.1} parent=1 // pred_check_branch
      %181 = sbr.rel (0) target = $region41
    $region40: #{tpu_custom_call.1} parent=1 // pred_region
      %s183 = ssub.s32 128, 128
      %184 = vsyncadd [#allocation9], %s183
      %s186 = sshll.u32 [#allocation8], 4
      %s187 = int_to_ptr.vmem [resolvable:$true] %s186
      %189 = dma.hbm_to_vmem [thread:$0]  %s19, 128, %s187, [#allocation9]
    $region41: #{tpu_custom_call.1} parent=1 // pred_fallthru
      _
    // Predicated region
    $region42: #{tpu_custom_call.1} parent=1 // pred_check
      _
    $region43: #{tpu_custom_call.1} parent=1 // pred_check_branch
      %191 = sbr.rel (0) target = $region45
    $region44: #{tpu_custom_call.1} parent=1 // pred_region
      _
    $region45: #{tpu_custom_call.1} parent=1 // pred_fallthru
      _
    // Predicated region
    $region46: #{tpu_custom_call.1} parent=1 // pred_check
      _
    $region47: #{tpu_custom_call.1} parent=1 // pred_check_branch
      %193 = sbr.rel (0) target = $region49
    $region48: #{tpu_custom_call.1} parent=1 // pred_region
      %s195 = ssub.s32 256, 256
      %196 = vsyncadd [#allocation9], %s195
      %s198 = sshll.u32 [#allocation10], 4
      %s199 = int_to_ptr.vmem [resolvable:$true] %s198
      %201 = dma.hbm_to_vmem [thread:$0]  %s23, 256, %s199, [#allocation9]
    $region49: #{tpu_custom_call.1} parent=1 // pred_fallthru
      _
    // Predicated region
    $region50: #{tpu_custom_call.1} parent=1 // pred_check
      _
    $region51: #{tpu_custom_call.1} parent=1 // pred_check_branch
      %203 = sbr.rel (0) target = $region53
    $region52: #{tpu_custom_call.1} parent=1 // pred_region
      %s205 = ssub.s32 16, 16
      %206 = vsyncadd [#allocation12], %s205
      %s208 = sshll.u32 [#allocation11], 4
      %s209 = int_to_ptr.vmem [resolvable:$true] %s208
      %211 = dma.hbm_to_vmem [thread:$0]  %s25, 16, %s209, [#allocation12]
    $region53: #{tpu_custom_call.1} parent=1 // pred_fallthru
      _
    // Predicated region
    $region54: #{tpu_custom_call.1} parent=1 // pred_check
      _
    $region55: #{tpu_custom_call.1} parent=1 // pred_check_branch
      %213 = sbr.rel (0) target = $region57
    $region56: #{tpu_custom_call.1} parent=1 // pred_region
      %s215 = ssub.s32 16, 16
      %216 = vsyncadd [#allocation12], %s215
      %s218 = sshll.u32 [#allocation13], 4
      %s219 = int_to_ptr.vmem [resolvable:$true] %s218
      %221 = dma.hbm_to_vmem [thread:$0]  %s27, 16, %s219, [#allocation12]
    $region57: #{tpu_custom_call.1} parent=1 // pred_fallthru
      _
    // Predicated region
    $region58: #{tpu_custom_call.1} parent=1 // pred_check
      _
    $region59: #{tpu_custom_call.1} parent=1 // pred_check_branch
      %223 = sbr.rel (0) target = $region61
    $region60: #{tpu_custom_call.1} parent=1 // pred_region
      _
    $region61: #{tpu_custom_call.1} parent=1 // pred_fallthru
      _
    // Predicated region
    $region62: #{tpu_custom_call.1} parent=1 // pred_check
      _
    $region63: #{tpu_custom_call.1} parent=1 // pred_check_branch
      %225 = sbr.rel (0) target = $region65
    $region64: #{tpu_custom_call.1} parent=1 // pred_region
      %s227 = ssub.s32 1536, 1536
      %228 = vsyncadd [#allocation15], %s227
      %s229 = sshll.u32 [#allocation14], 4
      %s230 = int_to_ptr.vmem [resolvable:$true] %s229
      %235 = dma.hbm_to_vmem [thread:$0]  %s31, 1536, %s230, [#allocation15], 128, 128, 8
    $region65: #{tpu_custom_call.1} parent=1 // pred_fallthru
      _
    // Predicated region
    $region66: #{tpu_custom_call.1} parent=1 // pred_check
      _
    $region67: #{tpu_custom_call.1} parent=1 // pred_check_branch
      %237 = sbr.rel (0) target = $region69
    $region68: #{tpu_custom_call.1} parent=1 // pred_region
      %s239 = ssub.s32 16, 16
      %240 = vsyncadd [#allocation15], %s239
      %s242 = sshll.u32 [#allocation16], 4
      %s243 = int_to_ptr.vmem [resolvable:$true] %s242
      %245 = dma.hbm_to_vmem [thread:$0]  %s33, 16, %s243, [#allocation15]
    $region69: #{tpu_custom_call.1} parent=1 // pred_fallthru
      _
    // Predicated region
    $region70: #{tpu_custom_call.1} parent=1 // pred_check
      _
    $region71: #{tpu_custom_call.1} parent=1 // pred_check_branch
      %247 = sbr.rel (0) target = $region73
    $region72: #{tpu_custom_call.1} parent=1 // pred_region
      %s249 = ssub.s32 16, 16
      %250 = vsyncadd [#allocation18], %s249
      %s252 = sshll.u32 [#allocation17], 4
      %s253 = int_to_ptr.vmem [resolvable:$true] %s252
      %255 = dma.hbm_to_vmem [thread:$0]  %s35, 16, %s253, [#allocation18]
    $region73: #{tpu_custom_call.1} parent=1 // pred_fallthru
      _
    // Predicated region
    $region74: #{tpu_custom_call.1} parent=1 // pred_check
      _
    $region75: #{tpu_custom_call.1} parent=1 // pred_check_branch
      %257 = sbr.rel (0) target = $region77
    $region76: #{tpu_custom_call.1} parent=1 // pred_region
      %s259 = ssub.s32 16, 16
      %260 = vsyncadd [#allocation18], %s259
      %s262 = sshll.u32 [#allocation19], 4
      %s263 = int_to_ptr.vmem [resolvable:$true] %s262
      %265 = dma.hbm_to_vmem [thread:$0]  %s37, 16, %s263, [#allocation18]
    $region77: #{tpu_custom_call.1} parent=1 // pred_fallthru
      _
    // Predicated region
    $region78: #{tpu_custom_call.1} parent=1 // pred_check
      _
    $region79: #{tpu_custom_call.1} parent=1 // pred_check_branch
      %267 = sbr.rel (0) target = $region81
    $region80: #{tpu_custom_call.1} parent=1 // pred_region
      _
    $region81: #{tpu_custom_call.1} parent=1 // pred_fallthru
      _
    // Predicated region
    $region82: #{tpu_custom_call.1} parent=1 // pred_check
      _
    $region83: #{tpu_custom_call.1} parent=1 // pred_check_branch
      %269 = sbr.rel (0) target = $region85
    $region84: #{tpu_custom_call.1} parent=1 // pred_region
      %s271 = ssub.s32 3072, 3072
      %272 = vsyncadd [#allocation21], %s271
      %s273 = sshll.u32 [#allocation20], 4
      %s274 = int_to_ptr.vmem [resolvable:$true] %s273
      %279 = dma.hbm_to_vmem [thread:$0]  %s41, 3072, %s274, [#allocation21], 128, 128, 8
    $region85: #{tpu_custom_call.1} parent=1 // pred_fallthru
      _
    // Predicated region
    $region86: #{tpu_custom_call.1} parent=1 // pred_check
      _
    $region87: #{tpu_custom_call.1} parent=1 // pred_check_branch
      %281 = sbr.rel (0) target = $region89
    $region88: #{tpu_custom_call.1} parent=1 // pred_region
      %s283 = ssub.s32 16, 16
      %284 = vsyncadd [#allocation21], %s283
      %s286 = sshll.u32 [#allocation22], 4
      %s287 = int_to_ptr.vmem [resolvable:$true] %s286
      %289 = dma.hbm_to_vmem [thread:$0]  %s43, 16, %s287, [#allocation21]
    $region89: #{tpu_custom_call.1} parent=1 // pred_fallthru
      _
    // Predicated region
    $region90: #{tpu_custom_call.1} parent=1 // pred_check
      _
    $region91: #{tpu_custom_call.1} parent=1 // pred_check_branch
      %291 = sbr.rel (0) target = $region93
    $region92: #{tpu_custom_call.1} parent=1 // pred_region
      _
    $region93: #{tpu_custom_call.1} parent=1 // pred_fallthru
      _
    // Predicated region
    $region94: #{tpu_custom_call.1} parent=1 // pred_check
      _
    $region95: #{tpu_custom_call.1} parent=1 // pred_check_branch
      %293 = sbr.rel (0) target = $region97
    $region96: #{tpu_custom_call.1} parent=1 // pred_region
      %s295 = ssub.s32 512, 512
      %296 = vsyncadd [#allocation24], %s295
      %s297 = sshll.u32 [#allocation23], 4
      %s298 = int_to_ptr.vmem [resolvable:$true] %s297
      %303 = dma.hbm_to_vmem [thread:$0]  %s47, 512, %s298, [#allocation24], 128, 128, 8
    $region97: #{tpu_custom_call.1} parent=1 // pred_fallthru
      _
    // Predicated region
    $region98: #{tpu_custom_call.1} parent=1 // pred_check
      _
    $region99: #{tpu_custom_call.1} parent=1 // pred_check_branch
      %305 = sbr.rel (0) target = $region101
    $region100: #{tpu_custom_call.1} parent=1 // pred_region
      %s307 = ssub.s32 16, 16
      %308 = vsyncadd [#allocation24], %s307
      %s310 = sshll.u32 [#allocation25], 4
      %s311 = int_to_ptr.vmem [resolvable:$true] %s310
      %313 = dma.hbm_to_vmem [thread:$0]  %s49, 16, %s311, [#allocation24]
    $region101: #{tpu_custom_call.1} parent=1 // pred_fallthru
      _
    // Predicated region
    $region102: #{tpu_custom_call.1} parent=1 // pred_check
      _
    $region103: #{tpu_custom_call.1} parent=1 // pred_check_branch
      %315 = sbr.rel (0) target = $region105
    $region104: #{tpu_custom_call.1} parent=1 // pred_region
      %s317 = ssub.s32 16, 16
      %318 = vsyncadd [#allocation27], %s317
      %s320 = sshll.u32 [#allocation26], 4
      %s321 = int_to_ptr.vmem [resolvable:$true] %s320
      %323 = dma.hbm_to_vmem [thread:$0]  %s51, 16, %s321, [#allocation27]
    $region105: #{tpu_custom_call.1} parent=1 // pred_fallthru
      _
    // Predicated region
    $region106: #{tpu_custom_call.1} parent=1 // pred_check
      _
    $region107: #{tpu_custom_call.1} parent=1 // pred_check_branch
      %325 = sbr.rel (0) target = $region109
    $region108: #{tpu_custom_call.1} parent=1 // pred_region
      %s327 = ssub.s32 16, 16
      %328 = vsyncadd [#allocation27], %s327
      %s330 = sshll.u32 [#allocation28], 4
      %s331 = int_to_ptr.vmem [resolvable:$true] %s330
      %333 = dma.hbm_to_vmem [thread:$0]  %s53, 16, %s331, [#allocation27]
    $region109: #{tpu_custom_call.1} parent=1 // pred_fallthru
      _
    // Predicated region
    $region110: #{tpu_custom_call.1} parent=1 // pred_check
      _
    $region111: #{tpu_custom_call.1} parent=1 // pred_check_branch
      %335 = sbr.rel (0) target = $region113
    $region112: #{tpu_custom_call.1} parent=1 // pred_region
      _
    $region113: #{tpu_custom_call.1} parent=1 // pred_fallthru
      _
    // Predicated region
    $region114: #{tpu_custom_call.1} parent=1 // pred_check
      _
    $region115: #{tpu_custom_call.1} parent=1 // pred_check_branch
      %337 = sbr.rel (0) target = $region117
    $region116: #{tpu_custom_call.1} parent=1 // pred_region
      %s339 = ssub.s32 3072, 3072
      %340 = vsyncadd [#allocation30], %s339
      %s341 = sshll.u32 [#allocation29], 4
      %s342 = int_to_ptr.vmem [resolvable:$true] %s341
      %347 = dma.hbm_to_vmem [thread:$0]  %s57, 3072, %s342, [#allocation30], 128, 128, 8
    $region117: #{tpu_custom_call.1} parent=1 // pred_fallthru
      _
    // Predicated region
    $region118: #{tpu_custom_call.1} parent=1 // pred_check
      _
    $region119: #{tpu_custom_call.1} parent=1 // pred_check_branch
      %349 = sbr.rel (0) target = $region121
    $region120: #{tpu_custom_call.1} parent=1 // pred_region
      %s351 = ssub.s32 16, 16
      %352 = vsyncadd [#allocation30], %s351
      %s354 = sshll.u32 [#allocation31], 4
      %s355 = int_to_ptr.vmem [resolvable:$true] %s354
      %357 = dma.hbm_to_vmem [thread:$0]  %s59, 16, %s355, [#allocation30]
    $region121: #{tpu_custom_call.1} parent=1 // pred_fallthru
      _
    // Predicated region
    $region122: #{tpu_custom_call.1} parent=1 // pred_check
      _
    $region123: #{tpu_custom_call.1} parent=1 // pred_check_branch
      %359 = sbr.rel (0) target = $region125
    $region124: #{tpu_custom_call.1} parent=1 // pred_region
      %s361 = ssub.s32 16, 16
      %362 = vsyncadd [#allocation33], %s361
      %s364 = sshll.u32 [#allocation32], 4
      %s365 = int_to_ptr.vmem [resolvable:$true] %s364
      %367 = dma.hbm_to_vmem [thread:$0]  %s61, 16, %s365, [#allocation33]
    $region125: #{tpu_custom_call.1} parent=1 // pred_fallthru
      _
    // Predicated region
    $region126: #{tpu_custom_call.1} parent=1 // pred_check
      _
    $region127: #{tpu_custom_call.1} parent=1 // pred_check_branch
      %369 = sbr.rel (0) target = $region129
    $region128: #{tpu_custom_call.1} parent=1 // pred_region
      %s371 = ssub.s32 16, 16
      %372 = vsyncadd [#allocation33], %s371
      %s374 = sshll.u32 [#allocation34], 4
      %s375 = int_to_ptr.vmem [resolvable:$true] %s374
      %377 = dma.hbm_to_vmem [thread:$0]  %s63, 16, %s375, [#allocation33]
    $region129: #{tpu_custom_call.1} parent=1 // pred_fallthru
      _
    // Predicated region
    $region130: #{tpu_custom_call.1} parent=1 // pred_check
      _
    $region131: #{tpu_custom_call.1} parent=1 // pred_check_branch
      %379 = sbr.rel (0) target = $region133
    $region132: #{tpu_custom_call.1} parent=1 // pred_region
      %s381 = ssub.s32 1536, 1536
      %382 = vsyncadd [#allocation36], %s381
      %s383 = sshll.u32 [#allocation35], 4
      %s384 = int_to_ptr.vmem [resolvable:$true] %s383
      %389 = dma.hbm_to_vmem [thread:$0]  %s65, 1536, %s384, [#allocation36], 128, 128, 8
    $region133: #{tpu_custom_call.1} parent=1 // pred_fallthru
      _
    // Predicated region
    $region134: #{tpu_custom_call.1} parent=1 // pred_check
      _
    $region135: #{tpu_custom_call.1} parent=1 // pred_check_branch
      %391 = sbr.rel (0) target = $region137
    $region136: #{tpu_custom_call.1} parent=1 // pred_region
      _
    $region137: #{tpu_custom_call.1} parent=1 // pred_fallthru
      _
    // Predicated region
    $region138: #{tpu_custom_call.1} parent=1 // pred_check
      _
    $region139: #{tpu_custom_call.1} parent=1 // pred_check_branch
      %393 = sbr.rel (0) target = $region141
    $region140: #{tpu_custom_call.1} parent=1 // pred_region
      %s395 = ssub.s32 16, 16
      %396 = vsyncadd [#allocation36], %s395
      %s398 = sshll.u32 [#allocation37], 4
      %s399 = int_to_ptr.vmem [resolvable:$true] %s398
      %401 = dma.hbm_to_vmem [thread:$0]  %s69, 16, %s399, [#allocation36]
    $region141: #{tpu_custom_call.1} parent=1 // pred_fallthru
      _
    // Predicated region
    $region142: #{tpu_custom_call.1} parent=1 // pred_check
      _
    $region143: #{tpu_custom_call.1} parent=1 // pred_check_branch
      %403 = sbr.rel (0) target = $region145
    $region144: #{tpu_custom_call.1} parent=1 // pred_region
      _
    $region145: #{tpu_custom_call.1} parent=1 // pred_fallthru
      _
    // Predicated region
    $region146: #{tpu_custom_call.1} parent=1 // pred_check
      _
    $region147: #{tpu_custom_call.1} parent=1 // pred_check_branch
      %405 = sbr.rel (0) target = $region149
    $region148: #{tpu_custom_call.1} parent=1 // pred_region
      %s407 = ssub.s32 1024, 1024
      %408 = vsyncadd [#allocation39], %s407
      %s409 = sshll.u32 [#allocation38], 4
      %s410 = int_to_ptr.vmem [resolvable:$true] %s409
      %415 = dma.hbm_to_vmem [thread:$0]  %s73, 1024, %s410, [#allocation39], 128, 128, 8
    $region149: #{tpu_custom_call.1} parent=1 // pred_fallthru
      _
    // Predicated region
    $region150: #{tpu_custom_call.1} parent=1 // pred_check
      _
    $region151: #{tpu_custom_call.1} parent=1 // pred_check_branch
      %417 = sbr.rel (0) target = $region153
    $region152: #{tpu_custom_call.1} parent=1 // pred_region
      %s419 = ssub.s32 16, 16
      %420 = vsyncadd [#allocation39], %s419
      %s422 = sshll.u32 [#allocation40], 4
      %s423 = int_to_ptr.vmem [resolvable:$true] %s422
      %425 = dma.hbm_to_vmem [thread:$0]  %s75, 16, %s423, [#allocation39]
    $region153: #{tpu_custom_call.1} parent=1 // pred_fallthru
      _
    // Predicated region
    $region154: #{tpu_custom_call.1} parent=1 // pred_check
      _
    $region155: #{tpu_custom_call.1} parent=1 // pred_check_branch
      %427 = sbr.rel (0) target = $region157
    $region156: #{tpu_custom_call.1} parent=1 // pred_region
      %s429 = ssub.s32 16, 16
      %430 = vsyncadd [#allocation42], %s429
      %s432 = sshll.u32 [#allocation41], 4
      %s433 = int_to_ptr.vmem [resolvable:$true] %s432
      %435 = dma.hbm_to_vmem [thread:$0]  %s77, 16, %s433, [#allocation42]
    $region157: #{tpu_custom_call.1} parent=1 // pred_fallthru
      _
    // Predicated region
    $region158: #{tpu_custom_call.1} parent=1 // pred_check
      _
    $region159: #{tpu_custom_call.1} parent=1 // pred_check_branch
      %437 = sbr.rel (0) target = $region161
    $region160: #{tpu_custom_call.1} parent=1 // pred_region
      %s439 = ssub.s32 16, 16
      %440 = vsyncadd [#allocation42], %s439
      %s442 = sshll.u32 [#allocation43], 4
      %s443 = int_to_ptr.vmem [resolvable:$true] %s442
      %445 = dma.hbm_to_vmem [thread:$0]  %s79, 16, %s443, [#allocation42]
    $region161: #{tpu_custom_call.1} parent=1 // pred_fallthru
      _
    // Predicated region
    $region162: #{tpu_custom_call.1} parent=1 // pred_check
      _
    $region163: #{tpu_custom_call.1} parent=1 // pred_check_branch
      %447 = sbr.rel (0) target = $region165
    $region164: #{tpu_custom_call.1} parent=1 // pred_region
      _
    $region165: #{tpu_custom_call.1} parent=1 // pred_fallthru
      _
    // Predicated region
    $region166: #{tpu_custom_call.1} parent=1 // pred_check
      _
    $region167: #{tpu_custom_call.1} parent=1 // pred_check_branch
      %449 = sbr.rel (0) target = $region169
    $region168: #{tpu_custom_call.1} parent=1 // pred_region
      _
    $region169: #{tpu_custom_call.1} parent=1 // pred_fallthru
      _
    // Predicated region
    $region170: #{tpu_custom_call.1} parent=1 // pred_check
      _
    $region171: #{tpu_custom_call.1} parent=1 // pred_check_branch
      %451 = sbr.rel (0) target = $region173
    $region172: #{tpu_custom_call.1} parent=1 // pred_region
      _
    $region173: #{tpu_custom_call.1} parent=1 // pred_fallthru
      _
    // Predicated region
    $region174: #{tpu_custom_call.1} parent=1 // pred_check
      _
    $region175: #{tpu_custom_call.1} parent=1 // pred_check_branch
      %453 = sbr.rel (0) target = $region177
    $region176: #{tpu_custom_call.1} parent=1 // pred_region
      %s455 = ssub.s32 16, 16
      %456 = vsyncadd [#allocation45], %s455
      %s458 = sshll.u32 [#allocation44], 4
      %s459 = int_to_ptr.vmem [resolvable:$true] %s458
      %461 = dma.hbm_to_vmem [thread:$0]  %s87, 16, %s459, [#allocation45]
    $region177: #{tpu_custom_call.1} parent=1 // pred_fallthru
      _
    // Predicated region
    $region178: #{tpu_custom_call.1} parent=1 // pred_check
      _
    $region179: #{tpu_custom_call.1} parent=1 // pred_check_branch
      %463 = sbr.rel (0) target = $region181
    $region180: #{tpu_custom_call.1} parent=1 // pred_region
      %s465 = ssub.s32 16, 16
      %466 = vsyncadd [#allocation45], %s465
      %s468 = sshll.u32 [#allocation46], 4
      %s469 = int_to_ptr.vmem [resolvable:$true] %s468
      %471 = dma.hbm_to_vmem [thread:$0]  %s89, 16, %s469, [#allocation45]
    $region181: #{tpu_custom_call.1} parent=1 // pred_fallthru
      _
    // Predicated region
    $region182: #{tpu_custom_call.1} parent=1 // pred_check
      _
    $region183: #{tpu_custom_call.1} parent=1 // pred_check_branch
      %473 = sbr.rel (0) target = $region185
    $region184: #{tpu_custom_call.1} parent=1 // pred_region
      %s475 = ssub.s32 3072, 3072
      %476 = vsyncadd [#allocation48], %s475
      %s477 = sshll.u32 [#allocation47], 4
      %s478 = int_to_ptr.vmem [resolvable:$true] %s477
      %483 = dma.hbm_to_vmem [thread:$0]  %s91, 3072, %s478, [#allocation48], 128, 128, 8
    $region185: #{tpu_custom_call.1} parent=1 // pred_fallthru
      _
    // Predicated region
    $region186: #{tpu_custom_call.1} parent=1 // pred_check
      _
    $region187: #{tpu_custom_call.1} parent=1 // pred_check_branch
      %485 = sbr.rel (0) target = $region189
    $region188: #{tpu_custom_call.1} parent=1 // pred_region
      _
    $region189: #{tpu_custom_call.1} parent=1 // pred_fallthru
      _
    // Predicated region
    $region190: #{tpu_custom_call.1} parent=1 // pred_check
      _
    $region191: #{tpu_custom_call.1} parent=1 // pred_check_branch
      %487 = sbr.rel (0) target = $region193
    $region192: #{tpu_custom_call.1} parent=1 // pred_region
      _
    $region193: #{tpu_custom_call.1} parent=1 // pred_fallthru
      _
    // Predicated region
    $region194: #{tpu_custom_call.1} parent=1 // pred_check
      _
    $region195: #{tpu_custom_call.1} parent=1 // pred_check_branch
      %489 = sbr.rel (0) target = $region197
    $region196: #{tpu_custom_call.1} parent=1 // pred_region
      _
    $region197: #{tpu_custom_call.1} parent=1 // pred_fallthru
      _
    // Predicated region
    $region198: #{tpu_custom_call.1} parent=1 // pred_check
      _
    $region199: #{tpu_custom_call.1} parent=1 // pred_check_branch
      %491 = sbr.rel (0) target = $region201
    $region200: #{tpu_custom_call.1} parent=1 // pred_region
      %s493 = ssub.s32 4096, 4096
      %494 = vsyncadd [#allocation48], %s493
      %s495 = sshll.u32 [#allocation49], 4
      %s496 = int_to_ptr.vmem [resolvable:$true] %s495
      %501 = dma.hbm_to_vmem [thread:$0]  %s99, 4096, %s496, [#allocation48], 256, 256, 16
    $region201: #{tpu_custom_call.1} parent=1 // pred_fallthru
      _
    // Predicated region
    $region202: #{tpu_custom_call.1} parent=1 // pred_check
      _
    $region203: #{tpu_custom_call.1} parent=1 // pred_check_branch
      %503 = sbr.rel (0) target = $region205
    $region204: #{tpu_custom_call.1} parent=1 // pred_region
      _
    $region205: #{tpu_custom_call.1} parent=1 // pred_fallthru
      _
    // Predicated region
    $region206: #{tpu_custom_call.1} parent=1 // pred_check
      _
    $region207: #{tpu_custom_call.1} parent=1 // pred_check_branch
      %505 = sbr.rel (0) target = $region209
    $region208: #{tpu_custom_call.1} parent=1 // pred_region
      _
    $region209: #{tpu_custom_call.1} parent=1 // pred_fallthru
      _
    // Predicated region
    $region210: #{tpu_custom_call.1} parent=1 // pred_check
      _
    $region211: #{tpu_custom_call.1} parent=1 // pred_check_branch
      %507 = sbr.rel (0) target = $region213
    $region212: #{tpu_custom_call.1} parent=1 // pred_region
      _
    $region213: #{tpu_custom_call.1} parent=1 // pred_fallthru
      _
    // Predicated region
    $region214: #{tpu_custom_call.1} parent=1 // pred_check
      _
    $region215: #{tpu_custom_call.1} parent=1 // pred_check_branch
      %509 = sbr.rel (0) target = $region217
    $region216: #{tpu_custom_call.1} parent=1 // pred_region
      %s511 = ssub.s32 3072, 3072
      %512 = vsyncadd [#allocation51], %s511
      %s513 = sshll.u32 [#allocation50], 4
      %s514 = int_to_ptr.vmem [resolvable:$true] %s513
      %519 = dma.hbm_to_vmem [thread:$0]  %s107, 3072, %s514, [#allocation51], 128, 128, 8
    $region217: #{tpu_custom_call.1} parent=1 // pred_fallthru
      _
    // Predicated region
    $region218: #{tpu_custom_call.1} parent=1 // pred_check
      _
    $region219: #{tpu_custom_call.1} parent=1 // pred_check_branch
      %521 = sbr.rel (0) target = $region221
    $region220: #{tpu_custom_call.1} parent=1 // pred_region
      _
    $region221: #{tpu_custom_call.1} parent=1 // pred_fallthru
      _
    // Predicated region
    $region222: #{tpu_custom_call.1} parent=1 // pred_check
      _
    $region223: #{tpu_custom_call.1} parent=1 // pred_check_branch
      %523 = sbr.rel (0) target = $region225
    $region224: #{tpu_custom_call.1} parent=1 // pred_region
      _
    $region225: #{tpu_custom_call.1} parent=1 // pred_fallthru
      _
    // Predicated region
    $region226: #{tpu_custom_call.1} parent=1 // pred_check
      _
    $region227: #{tpu_custom_call.1} parent=1 // pred_check_branch
      %525 = sbr.rel (0) target = $region229
    $region228: #{tpu_custom_call.1} parent=1 // pred_region
      %526 = dma.done [#allocation3], 1024
    $region229: #{tpu_custom_call.1} parent=1 // pred_fallthru
      _
    // Predicated region
    $region230: #{tpu_custom_call.1} parent=1 // pred_check
      _
    $region231: #{tpu_custom_call.1} parent=1 // pred_check_branch
      %528 = sbr.rel (0) target = $region233
    $region232: #{tpu_custom_call.1} parent=1 // pred_region
      %529 = dma.done [#allocation6], 128
    $region233: #{tpu_custom_call.1} parent=1 // pred_fallthru
      _
    // Predicated region
    $region234: #{tpu_custom_call.1} parent=1 // pred_check
      _
    $region235: #{tpu_custom_call.1} parent=1 // pred_check_branch
      %531 = sbr.rel (0) target = $region237
    $region236: #{tpu_custom_call.1} parent=1 // pred_region
      %532 = dma.done [#allocation6], 128
    $region237: #{tpu_custom_call.1} parent=1 // pred_fallthru
      _
    // Predicated region
    $region238: #{tpu_custom_call.1} parent=1 // pred_check
      _
    $region239: #{tpu_custom_call.1} parent=1 // pred_check_branch
      %534 = sbr.rel (0) target = $region241
    $region240: #{tpu_custom_call.1} parent=1 // pred_region
      %535 = dma.done [#allocation9], 128
    $region241: #{tpu_custom_call.1} parent=1 // pred_fallthru
      _
    // Predicated region
    $region242: #{tpu_custom_call.1} parent=1 // pred_check
      _
    $region243: #{tpu_custom_call.1} parent=1 // pred_check_branch
      %537 = sbr.rel (0) target = $region245
    $region244: #{tpu_custom_call.1} parent=1 // pred_region
      %538 = dma.done [#allocation9], 256
    $region245: #{tpu_custom_call.1} parent=1 // pred_fallthru
      _
    // Predicated region
    $region246: #{tpu_custom_call.1} parent=1 // pred_check
      _
    $region247: #{tpu_custom_call.1} parent=1 // pred_check_branch
      %540 = sbr.rel (0) target = $region249
    $region248: #{tpu_custom_call.1} parent=1 // pred_region
      %541 = dma.done [#allocation12], 16
    $region249: #{tpu_custom_call.1} parent=1 // pred_fallthru
      _
    // Predicated region
    $region250: #{tpu_custom_call.1} parent=1 // pred_check
      _
    $region251: #{tpu_custom_call.1} parent=1 // pred_check_branch
      %543 = sbr.rel (0) target = $region253
    $region252: #{tpu_custom_call.1} parent=1 // pred_region
      %544 = dma.done [#allocation12], 16
    $region253: #{tpu_custom_call.1} parent=1 // pred_fallthru
      _
    // Predicated region
    $region254: #{tpu_custom_call.1} parent=1 // pred_check
      _
    $region255: #{tpu_custom_call.1} parent=1 // pred_check_branch
      %546 = sbr.rel (0) target = $region257
    $region256: #{tpu_custom_call.1} parent=1 // pred_region
      %547 = dma.done [#allocation15], 1536
    $region257: #{tpu_custom_call.1} parent=1 // pred_fallthru
      _
    // Predicated region
    $region258: #{tpu_custom_call.1} parent=1 // pred_check
      _
    $region259: #{tpu_custom_call.1} parent=1 // pred_check_branch
      %549 = sbr.rel (0) target = $region261
    $region260: #{tpu_custom_call.1} parent=1 // pred_region
      %550 = dma.done [#allocation15], 16
    $region261: #{tpu_custom_call.1} parent=1 // pred_fallthru
      _
    // Predicated region
    $region262: #{tpu_custom_call.1} parent=1 // pred_check
      _
    $region263: #{tpu_custom_call.1} parent=1 // pred_check_branch
      %552 = sbr.rel (0) target = $region265
    $region264: #{tpu_custom_call.1} parent=1 // pred_region
      %553 = dma.done [#allocation18], 16
    $region265: #{tpu_custom_call.1} parent=1 // pred_fallthru
      _
    // Predicated region
    $region266: #{tpu_custom_call.1} parent=1 // pred_check
      _
    $region267: #{tpu_custom_call.1} parent=1 // pred_check_branch
      %555 = sbr.rel (0) target = $region269
    $region268: #{tpu_custom_call.1} parent=1 // pred_region
      %556 = dma.done [#allocation18], 16
    $region269: #{tpu_custom_call.1} parent=1 // pred_fallthru
      _
    // Predicated region
    $region270: #{tpu_custom_call.1} parent=1 // pred_check
      _
    $region271: #{tpu_custom_call.1} parent=1 // pred_check_branch
      %558 = sbr.rel (0) target = $region273
    $region272: #{tpu_custom_call.1} parent=1 // pred_region
      %559 = dma.done [#allocation21], 3072
    $region273: #{tpu_custom_call.1} parent=1 // pred_fallthru
      _
    // Predicated region
    $region274: #{tpu_custom_call.1} parent=1 // pred_check
      _
    $region275: #{tpu_custom_call.1} parent=1 // pred_check_branch
      %561 = sbr.rel (0) target = $region277
    $region276: #{tpu_custom_call.1} parent=1 // pred_region
      %562 = dma.done [#allocation21], 16
    $region277: #{tpu_custom_call.1} parent=1 // pred_fallthru
      _
    // Predicated region
    $region278: #{tpu_custom_call.1} parent=1 // pred_check
      _
    $region279: #{tpu_custom_call.1} parent=1 // pred_check_branch
      %564 = sbr.rel (0) target = $region281
    $region280: #{tpu_custom_call.1} parent=1 // pred_region
      %565 = dma.done [#allocation24], 512
    $region281: #{tpu_custom_call.1} parent=1 // pred_fallthru
      _
    // Predicated region
    $region282: #{tpu_custom_call.1} parent=1 // pred_check
      _
    $region283: #{tpu_custom_call.1} parent=1 // pred_check_branch
      %567 = sbr.rel (0) target = $region285
    $region284: #{tpu_custom_call.1} parent=1 // pred_region
      %568 = dma.done [#allocation24], 16
    $region285: #{tpu_custom_call.1} parent=1 // pred_fallthru
      _
    // Predicated region
    $region286: #{tpu_custom_call.1} parent=1 // pred_check
      _
    $region287: #{tpu_custom_call.1} parent=1 // pred_check_branch
      %570 = sbr.rel (0) target = $region289
    $region288: #{tpu_custom_call.1} parent=1 // pred_region
      %571 = dma.done [#allocation27], 16
    $region289: #{tpu_custom_call.1} parent=1 // pred_fallthru
      _
    // Predicated region
    $region290: #{tpu_custom_call.1} parent=1 // pred_check
      _
    $region291: #{tpu_custom_call.1} parent=1 // pred_check_branch
      %573 = sbr.rel (0) target = $region293
    $region292: #{tpu_custom_call.1} parent=1 // pred_region
      %574 = dma.done [#allocation27], 16
    $region293: #{tpu_custom_call.1} parent=1 // pred_fallthru
      _
    // Predicated region
    $region294: #{tpu_custom_call.1} parent=1 // pred_check
      _
    $region295: #{tpu_custom_call.1} parent=1 // pred_check_branch
      %576 = sbr.rel (0) target = $region297
    $region296: #{tpu_custom_call.1} parent=1 // pred_region
      %577 = dma.done [#allocation30], 3072
    $region297: #{tpu_custom_call.1} parent=1 // pred_fallthru
      _
    // Predicated region
    $region298: #{tpu_custom_call.1} parent=1 // pred_check
      _
    $region299: #{tpu_custom_call.1} parent=1 // pred_check_branch
      %579 = sbr.rel (0) target = $region301
    $region300: #{tpu_custom_call.1} parent=1 // pred_region
      %580 = dma.done [#allocation30], 16
    $region301: #{tpu_custom_call.1} parent=1 // pred_fallthru
      _
    // Predicated region
    $region302: #{tpu_custom_call.1} parent=1 // pred_check
      _
    $region303: #{tpu_custom_call.1} parent=1 // pred_check_branch
      %582 = sbr.rel (0) target = $region305
    $region304: #{tpu_custom_call.1} parent=1 // pred_region
      %583 = dma.done [#allocation33], 16
    $region305: #{tpu_custom_call.1} parent=1 // pred_fallthru
      _
    // Predicated region
    $region306: #{tpu_custom_call.1} parent=1 // pred_check
      _
    $region307: #{tpu_custom_call.1} parent=1 // pred_check_branch
      %585 = sbr.rel (0) target = $region309
    $region308: #{tpu_custom_call.1} parent=1 // pred_region
      %586 = dma.done [#allocation33], 16
    $region309: #{tpu_custom_call.1} parent=1 // pred_fallthru
      _
    // Predicated region
    $region310: #{tpu_custom_call.1} parent=1 // pred_check
      _
    $region311: #{tpu_custom_call.1} parent=1 // pred_check_branch
      %588 = sbr.rel (0) target = $region313
    $region312: #{tpu_custom_call.1} parent=1 // pred_region
      %589 = dma.done [#allocation36], 1536
    $region313: #{tpu_custom_call.1} parent=1 // pred_fallthru
      _
    // Predicated region
    $region314: #{tpu_custom_call.1} parent=1 // pred_check
      _
    $region315: #{tpu_custom_call.1} parent=1 // pred_check_branch
      %591 = sbr.rel (0) target = $region317
    $region316: #{tpu_custom_call.1} parent=1 // pred_region
      %592 = dma.done [#allocation36], 16
    $region317: #{tpu_custom_call.1} parent=1 // pred_fallthru
      _
    // Predicated region
    $region318: #{tpu_custom_call.1} parent=1 // pred_check
      _
    $region319: #{tpu_custom_call.1} parent=1 // pred_check_branch
      %594 = sbr.rel (0) target = $region321
    $region320: #{tpu_custom_call.1} parent=1 // pred_region
      %595 = dma.done [#allocation39], 1024
    $region321: #{tpu_custom_call.1} parent=1 // pred_fallthru
      _
    // Predicated region
    $region322: #{tpu_custom_call.1} parent=1 // pred_check
      _
    $region323: #{tpu_custom_call.1} parent=1 // pred_check_branch
      %597 = sbr.rel (0) target = $region325
    $region324: #{tpu_custom_call.1} parent=1 // pred_region
      %598 = dma.done [#allocation39], 16
    $region325: #{tpu_custom_call.1} parent=1 // pred_fallthru
      _
    // Predicated region
    $region326: #{tpu_custom_call.1} parent=1 // pred_check
      _
    $region327: #{tpu_custom_call.1} parent=1 // pred_check_branch
      %600 = sbr.rel (0) target = $region329
    $region328: #{tpu_custom_call.1} parent=1 // pred_region
      %601 = dma.done [#allocation42], 16
    $region329: #{tpu_custom_call.1} parent=1 // pred_fallthru
      _
    // Predicated region
    $region330: #{tpu_custom_call.1} parent=1 // pred_check
      _
    $region331: #{tpu_custom_call.1} parent=1 // pred_check_branch
      %603 = sbr.rel (0) target = $region333
    $region332: #{tpu_custom_call.1} parent=1 // pred_region
      %604 = dma.done [#allocation42], 16
    $region333: #{tpu_custom_call.1} parent=1 // pred_fallthru
      _
    // Predicated region
    $region334: #{tpu_custom_call.1} parent=1 // pred_check
      _
    $region335: #{tpu_custom_call.1} parent=1 // pred_check_branch
      %606 = sbr.rel (0) target = $region337
    $region336: #{tpu_custom_call.1} parent=1 // pred_region
      %607 = dma.done [#allocation45], 16
    $region337: #{tpu_custom_call.1} parent=1 // pred_fallthru
      _
    // Predicated region
    $region338: #{tpu_custom_call.1} parent=1 // pred_check
      _
    $region339: #{tpu_custom_call.1} parent=1 // pred_check_branch
      %609 = sbr.rel (0) target = $region341
    $region340: #{tpu_custom_call.1} parent=1 // pred_region
      %610 = dma.done [#allocation45], 16
    $region341: #{tpu_custom_call.1} parent=1 // pred_fallthru
      _
    // Predicated region
    $region342: #{tpu_custom_call.1} parent=1 // pred_check
      _
    $region343: #{tpu_custom_call.1} parent=1 // pred_check_branch
      %612 = sbr.rel (0) target = $region345
    $region344: #{tpu_custom_call.1} parent=1 // pred_region
      %613 = dma.done [#allocation48], 3072
    $region345: #{tpu_custom_call.1} parent=1 // pred_fallthru
      _
    // Predicated region
    $region346: #{tpu_custom_call.1} parent=1 // pred_check
      _
    $region347: #{tpu_custom_call.1} parent=1 // pred_check_branch
      %615 = sbr.rel (0) target = $region349
    $region348: #{tpu_custom_call.1} parent=1 // pred_region
      %616 = dma.done [#allocation48], 4096
    $region349: #{tpu_custom_call.1} parent=1 // pred_fallthru
      _
    // Predicated region
    $region350: #{tpu_custom_call.1} parent=1 // pred_check
      _
    $region351: #{tpu_custom_call.1} parent=1 // pred_check_branch
      %618 = sbr.rel (0) target = $region353
    $region352: #{tpu_custom_call.1} parent=1 // pred_region
      %619 = dma.done [#allocation51], 3072
    $region353: #{tpu_custom_call.1} parent=1 // pred_fallthru
      _
    %v620 = vld [vmem:[%s1] sm:$0x3]
    %v621 = vld [vmem:[%s7] sm:$0xff]
    %v622 = vld [vmem:[%s5] sm:$0xff]
    %v623 = vld [vmem:[#allocation2] sm:$0xff]
    %v624 = vld [vmem:[#allocation2 + $0x8] sm:$0xff]
    %vm625 = vcmask 130048
    %v627 = vsel %vm625, %v620, 0
    %629 = vmatprep.subr.mxu0 0.0
    %630 = vmatpush1.msra.mxu0 %v623
    %631 = vmatprep.subr.mxu0 0.0
    %632 = vmatpush1.msra.mxu0 %v624
    %633 = vmatprep.subr.mxu0 0.0
    %634 = vmatpush1.msra.mxu0 0.0
    %635 = vmatprep.subr.mxu0 0.0
    %636 = vmatpush1.msra.mxu0 0.0
    %637 = vmatprep.subr.mxu0 0.0
    %638 = vmatpush1.msra.mxu0 0.0
    %639 = vmatprep.subr.mxu0 0.0
    %640 = vmatpush1.msra.mxu0 0.0
    %641 = vmatprep.subr.mxu0 0.0
    %642 = vmatpush1.msra.mxu0 0.0
    %643 = vmatprep.subr.mxu0 0.0
    %644 = vmatpush1.msra.mxu0 0.0
    %645 = vmatprep.subr.mxu0 0.0
    %646 = vmatpush1.msra.mxu0 0.0
    %647 = vmatprep.subr.mxu0 0.0
    %648 = vmatpush1.msra.mxu0 0.0
    %649 = vmatprep.subr.mxu0 0.0
    %650 = vmatpush1.msra.mxu0 0.0
    %651 = vmatprep.subr.mxu0 0.0
    %652 = vmatpush1.msra.mxu0 0.0
    %653 = vmatprep.subr.mxu0 0.0
    %654 = vmatpush1.msra.mxu0 0.0
    %655 = vmatprep.subr.mxu0 0.0
    %656 = vmatpush1.msra.mxu0 0.0
    %657 = vmatprep.subr.mxu0 0.0
    %658 = vmatpush1.msra.mxu0 0.0
    %659 = vmatprep.subr.mxu0 0.0
    %660 = vmatpush1.msra.mxu0 0.0
    %661 = vmatprep.subr.mxu0 0.0
    %662 = vmatpush1.msra.mxu0 0.0
    %663 = vmatprep.subr.mxu0 0.0
    %664 = vmatpush1.msra.mxu0 0.0
    %665 = vmatprep.subr.mxu0 0.0
    %666 = vmatpush1.msra.mxu0 0.0
    %667 = vmatprep.subr.mxu0 0.0
    %668 = vmatpush1.msra.mxu0 0.0
    %669 = vmatprep.subr.mxu0 0.0
    %670 = vmatpush1.msra.mxu0 0.0
    %671 = vmatprep.subr.mxu0 0.0
    %672 = vmatpush1.msra.mxu0 0.0
    %673 = vmatprep.subr.mxu0 0.0
    %674 = vmatpush1.msra.mxu0 0.0
    %675 = vmatprep.subr.mxu0 0.0
    %676 = vmatpush1.msra.mxu0 0.0
    %677 = vmatprep.subr.mxu0 0.0
    %678 = vmatpush1.msra.mxu0 0.0
    %679 = vmatprep.subr.mxu0 0.0
    %680 = vmatpush1.msra.mxu0 0.0
    %681 = vmatprep.subr.mxu0 0.0
    %682 = vmatpush1.msra.mxu0 0.0
    %683 = vmatprep.subr.mxu0 0.0
    %684 = vmatpush1.msra.mxu0 0.0
    %685 = vmatprep.subr.mxu0 0.0
    %686 = vmatpush1.msra.mxu0 0.0
    %687 = vmatprep.subr.mxu0 0.0
    %688 = vmatpush1.msra.mxu0 0.0
    %689 = vmatprep.subr.mxu0 0.0
    %690 = vmatpush1.msra.mxu0 0.0
    %691 = vmatprep.subr.mxu0 0.0
    %692 = vmatpush1.msra.mxu0 0.0
    %693 = vmatprep.mubr.f32.mxu0 0.0
    %694 = vmatmul.mubr.f32.gmra.mrb[0].mxu0 %v627
    %v695 = vpop.f32.mrb[0].mxu0
    %v696 = vadd.f32 0.0, %v695
    %v697 = vpop.f32.mrb[0].mxu0
    %698 = vdwg.mxu0
    %vm699 = vcmask 15360
    %v701 = vsel %vm699, %v622, 0
    %vm703 = vcmask 1041408
    %v705 = vsel %vm703, %v696, 0
    %707 = vmatprep.subr.mxu0 0.0
    %708 = vmatpush1.msra.mxu0 %v705
    %709 = vmatprep.subr.mxu0 0.0
    %710 = vmatpush1.msra.mxu0 0.0
    %711 = vmatprep.subr.mxu0 0.0
    %712 = vmatpush1.msra.mxu0 0.0
    %713 = vmatprep.subr.mxu0 0.0
    %714 = vmatpush1.msra.mxu0 0.0
    %715 = vmatprep.subr.mxu0 0.0
    %716 = vmatpush1.msra.mxu0 0.0
    %717 = vmatprep.subr.mxu0 0.0
    %718 = vmatpush1.msra.mxu0 0.0
    %719 = vmatprep.subr.mxu0 0.0
    %720 = vmatpush1.msra.mxu0 0.0
    %721 = vmatprep.subr.mxu0 0.0
    %722 = vmatpush1.msra.mxu0 0.0
    %723 = vmatprep.subr.mxu0 0.0
    %724 = vmatpush1.msra.mxu0 0.0
    %725 = vmatprep.subr.mxu0 0.0
    %726 = vmatpush1.msra.mxu0 0.0
    %727 = vmatprep.subr.mxu0 0.0
    %728 = vmatpush1.msra.mxu0 0.0
    %729 = vmatprep.subr.mxu0 0.0
    %730 = vmatpush1.msra.mxu0 0.0
    %731 = vmatprep.subr.mxu0 0.0
    %732 = vmatpush1.msra.mxu0 0.0
    %733 = vmatprep.subr.mxu0 0.0
    %734 = vmatpush1.msra.mxu0 0.0
    %735 = vmatprep.subr.mxu0 0.0
    %736 = vmatpush1.msra.mxu0 0.0
    %737 = vmatprep.subr.mxu0 0.0
    %738 = vmatpush1.msra.mxu0 0.0
    %739 = vmatprep.subr.mxu0 0.0
    %740 = vmatpush1.msra.mxu0 0.0
    %741 = vmatprep.subr.mxu0 0.0
    %742 = vmatpush1.msra.mxu0 0.0
    %743 = vmatprep.subr.mxu0 0.0
    %744 = vmatpush1.msra.mxu0 0.0
    %745 = vmatprep.subr.mxu0 0.0
    %746 = vmatpush1.msra.mxu0 0.0
    %747 = vmatprep.subr.mxu0 0.0
    %748 = vmatpush1.msra.mxu0 0.0
    %749 = vmatprep.subr.mxu0 0.0
    %750 = vmatpush1.msra.mxu0 0.0
    %751 = vmatprep.subr.mxu0 0.0
    %752 = vmatpush1.msra.mxu0 0.0
    %753 = vmatprep.subr.mxu0 0.0
    %754 = vmatpush1.msra.mxu0 0.0
    %755 = vmatprep.subr.mxu0 0.0
    %756 = vmatpush1.msra.mxu0 0.0
    %757 = vmatprep.subr.mxu0 0.0
    %758 = vmatpush1.msra.mxu0 0.0
    %759 = vmatprep.subr.mxu0 0.0
    %760 = vmatpush1.msra.mxu0 0.0
    %761 = vmatprep.subr.mxu0 0.0
    %762 = vmatpush1.msra.mxu0 0.0
    %763 = vmatprep.subr.mxu0 0.0
    %764 = vmatpush1.msra.mxu0 0.0
    %765 = vmatprep.subr.mxu0 0.0
    %766 = vmatpush1.msra.mxu0 0.0
    %767 = vmatprep.subr.mxu0 0.0
    %768 = vmatpush1.msra.mxu0 0.0
    %769 = vmatprep.subr.mxu0 0.0
    %770 = vmatpush1.msra.mxu0 0.0
    %771 = vmatprep.mubr.f32.mxu0 0.0
    %772 = vmatmul.mubr.f32.gmra.mrb[0].mxu0 %v701
    %v773 = vpop.f32.mrb[0].mxu0
    %v774 = vadd.f32 0.0, %v773
    %v775 = vpop.f32.mrb[0].mxu0
    %776 = vdwg.mxu0
    %v777 = vadd.f32 %v621, %v774
    %s778 = scalar_lea.vmem %s5, 8
    %v779 = vld [vmem:[%s778] sm:$0xff]
    %s780 = scalar_lea.vmem [#allocation2], 16
    %v781 = vld [vmem:[%s780] sm:$0xff]
    %v782 = vld [vmem:[%s780 + $0x8] sm:$0xff]
    %783 = vmatprep.subr.mxu0 0.0
    %784 = vmatpush1.msra.mxu0 %v781
    %785 = vmatprep.subr.mxu0 0.0
    %786 = vmatpush1.msra.mxu0 %v782
    %787 = vmatprep.subr.mxu0 0.0
    %788 = vmatpush1.msra.mxu0 0.0
    %789 = vmatprep.subr.mxu0 0.0
    %790 = vmatpush1.msra.mxu0 0.0
    %791 = vmatprep.subr.mxu0 0.0
    %792 = vmatpush1.msra.mxu0 0.0
    %793 = vmatprep.subr.mxu0 0.0
    %794 = vmatpush1.msra.mxu0 0.0
    %795 = vmatprep.subr.mxu0 0.0
    %796 = vmatpush1.msra.mxu0 0.0
    %797 = vmatprep.subr.mxu0 0.0
    %798 = vmatpush1.msra.mxu0 0.0
    %799 = vmatprep.subr.mxu0 0.0
    %800 = vmatpush1.msra.mxu0 0.0
    %801 = vmatprep.subr.mxu0 0.0
    %802 = vmatpush1.msra.mxu0 0.0
    %803 = vmatprep.subr.mxu0 0.0
    %804 = vmatpush1.msra.mxu0 0.0
    %805 = vmatprep.subr.mxu0 0.0
    %806 = vmatpush1.msra.mxu0 0.0
    %807 = vmatprep.subr.mxu0 0.0
    %808 = vmatpush1.msra.mxu0 0.0
    %809 = vmatprep.subr.mxu0 0.0
    %810 = vmatpush1.msra.mxu0 0.0
    %811 = vmatprep.subr.mxu0 0.0
    %812 = vmatpush1.msra.mxu0 0.0
    %813 = vmatprep.subr.mxu0 0.0
    %814 = vmatpush1.msra.mxu0 0.0
    %815 = vmatprep.subr.mxu0 0.0
    %816 = vmatpush1.msra.mxu0 0.0
    %817 = vmatprep.subr.mxu0 0.0
    %818 = vmatpush1.msra.mxu0 0.0
    %819 = vmatprep.subr.mxu0 0.0
    %820 = vmatpush1.msra.mxu0 0.0
    %821 = vmatprep.subr.mxu0 0.0
    %822 = vmatpush1.msra.mxu0 0.0
    %823 = vmatprep.subr.mxu0 0.0
    %824 = vmatpush1.msra.mxu0 0.0
    %825 = vmatprep.subr.mxu0 0.0
    %826 = vmatpush1.msra.mxu0 0.0
    %827 = vmatprep.subr.mxu0 0.0
    %828 = vmatpush1.msra.mxu0 0.0
    %829 = vmatprep.subr.mxu0 0.0
    %830 = vmatpush1.msra.mxu0 0.0
    %831 = vmatprep.subr.mxu0 0.0
    %832 = vmatpush1.msra.mxu0 0.0
    %833 = vmatprep.subr.mxu0 0.0
    %834 = vmatpush1.msra.mxu0 0.0
    %835 = vmatprep.subr.mxu0 0.0
    %836 = vmatpush1.msra.mxu0 0.0
    %837 = vmatprep.subr.mxu0 0.0
    %838 = vmatpush1.msra.mxu0 0.0
    %839 = vmatprep.subr.mxu0 0.0
    %840 = vmatpush1.msra.mxu0 0.0
    %841 = vmatprep.subr.mxu0 0.0
    %842 = vmatpush1.msra.mxu0 0.0
    %843 = vmatprep.subr.mxu0 0.0
    %844 = vmatpush1.msra.mxu0 0.0
    %845 = vmatprep.subr.mxu0 0.0
    %846 = vmatpush1.msra.mxu0 0.0
    %847 = vmatprep.mubr.f32.mxu0 0.0
    %848 = vmatmul.mubr.f32.gmra.mrb[0].mxu0 %v627
    %v849 = vpop.f32.mrb[0].mxu0
    %v850 = vadd.f32 0.0, %v849
    %v851 = vpop.f32.mrb[0].mxu0
    %852 = vdwg.mxu0
    %v854 = vsel %vm699, %v779, 0
    %v857 = vsel %vm703, %v850, 0
    %859 = vmatprep.subr.mxu0 0.0
    %860 = vmatpush1.msra.mxu0 %v857
    %861 = vmatprep.subr.mxu0 0.0
    %862 = vmatpush1.msra.mxu0 0.0
    %863 = vmatprep.subr.mxu0 0.0
    %864 = vmatpush1.msra.mxu0 0.0
    %865 = vmatprep.subr.mxu0 0.0
    %866 = vmatpush1.msra.mxu0 0.0
    %867 = vmatprep.subr.mxu0 0.0
    %868 = vmatpush1.msra.mxu0 0.0
    %869 = vmatprep.subr.mxu0 0.0
    %870 = vmatpush1.msra.mxu0 0.0
    %871 = vmatprep.subr.mxu0 0.0
    %872 = vmatpush1.msra.mxu0 0.0
    %873 = vmatprep.subr.mxu0 0.0
    %874 = vmatpush1.msra.mxu0 0.0
    %875 = vmatprep.subr.mxu0 0.0
    %876 = vmatpush1.msra.mxu0 0.0
    %877 = vmatprep.subr.mxu0 0.0
    %878 = vmatpush1.msra.mxu0 0.0
    %879 = vmatprep.subr.mxu0 0.0
    %880 = vmatpush1.msra.mxu0 0.0
    %881 = vmatprep.subr.mxu0 0.0
    %882 = vmatpush1.msra.mxu0 0.0
    %883 = vmatprep.subr.mxu0 0.0
    %884 = vmatpush1.msra.mxu0 0.0
    %885 = vmatprep.subr.mxu0 0.0
    %886 = vmatpush1.msra.mxu0 0.0
    %887 = vmatprep.subr.mxu0 0.0
    %888 = vmatpush1.msra.mxu0 0.0
    %889 = vmatprep.subr.mxu0 0.0
    %890 = vmatpush1.msra.mxu0 0.0
    %891 = vmatprep.subr.mxu0 0.0
    %892 = vmatpush1.msra.mxu0 0.0
    %893 = vmatprep.subr.mxu0 0.0
    %894 = vmatpush1.msra.mxu0 0.0
    %895 = vmatprep.subr.mxu0 0.0
    %896 = vmatpush1.msra.mxu0 0.0
    %897 = vmatprep.subr.mxu0 0.0
    %898 = vmatpush1.msra.mxu0 0.0
    %899 = vmatprep.subr.mxu0 0.0
    %900 = vmatpush1.msra.mxu0 0.0
    %901 = vmatprep.subr.mxu0 0.0
    %902 = vmatpush1.msra.mxu0 0.0
    %903 = vmatprep.subr.mxu0 0.0
    %904 = vmatpush1.msra.mxu0 0.0
    %905 = vmatprep.subr.mxu0 0.0
    %906 = vmatpush1.msra.mxu0 0.0
    %907 = vmatprep.subr.mxu0 0.0
    %908 = vmatpush1.msra.mxu0 0.0
    %909 = vmatprep.subr.mxu0 0.0
    %910 = vmatpush1.msra.mxu0 0.0
    %911 = vmatprep.subr.mxu0 0.0
    %912 = vmatpush1.msra.mxu0 0.0
    %913 = vmatprep.subr.mxu0 0.0
    %914 = vmatpush1.msra.mxu0 0.0
    %915 = vmatprep.subr.mxu0 0.0
    %916 = vmatpush1.msra.mxu0 0.0
    %917 = vmatprep.subr.mxu0 0.0
    %918 = vmatpush1.msra.mxu0 0.0
    %919 = vmatprep.subr.mxu0 0.0
    %920 = vmatpush1.msra.mxu0 0.0
    %921 = vmatprep.subr.mxu0 0.0
    %922 = vmatpush1.msra.mxu0 0.0
    %923 = vmatprep.mubr.f32.mxu0 0.0
    %924 = vmatmul.mubr.f32.gmra.mrb[0].mxu0 %v854
    %v925 = vpop.f32.mrb[0].mxu0
    %v926 = vadd.f32 0.0, %v925
    %v927 = vpop.f32.mrb[0].mxu0
    %928 = vdwg.mxu0
    %v929 = vadd.f32 %v777, %v926
    %s930 = scalar_lea.vmem %s5, 16
    %v931 = vld [vmem:[%s930] sm:$0xff]
    %s932 = scalar_lea.vmem [#allocation2], 32
    %v933 = vld [vmem:[%s932] sm:$0xff]
    %v934 = vld [vmem:[%s932 + $0x8] sm:$0xff]
    %935 = vmatprep.subr.mxu0 0.0
    %936 = vmatpush1.msra.mxu0 %v933
    %937 = vmatprep.subr.mxu0 0.0
    %938 = vmatpush1.msra.mxu0 %v934
    %939 = vmatprep.subr.mxu0 0.0
    %940 = vmatpush1.msra.mxu0 0.0
    %941 = vmatprep.subr.mxu0 0.0
    %942 = vmatpush1.msra.mxu0 0.0
    %943 = vmatprep.subr.mxu0 0.0
    %944 = vmatpush1.msra.mxu0 0.0
    %945 = vmatprep.subr.mxu0 0.0
    %946 = vmatpush1.msra.mxu0 0.0
    %947 = vmatprep.subr.mxu0 0.0
    %948 = vmatpush1.msra.mxu0 0.0
    %949 = vmatprep.subr.mxu0 0.0
    %950 = vmatpush1.msra.mxu0 0.0
    %951 = vmatprep.subr.mxu0 0.0
    %952 = vmatpush1.msra.mxu0 0.0
    %953 = vmatprep.subr.mxu0 0.0
    %954 = vmatpush1.msra.mxu0 0.0
    %955 = vmatprep.subr.mxu0 0.0
    %956 = vmatpush1.msra.mxu0 0.0
    %957 = vmatprep.subr.mxu0 0.0
    %958 = vmatpush1.msra.mxu0 0.0
    %959 = vmatprep.subr.mxu0 0.0
    %960 = vmatpush1.msra.mxu0 0.0
    %961 = vmatprep.subr.mxu0 0.0
    %962 = vmatpush1.msra.mxu0 0.0
    %963 = vmatprep.subr.mxu0 0.0
    %964 = vmatpush1.msra.mxu0 0.0
    %965 = vmatprep.subr.mxu0 0.0
    %966 = vmatpush1.msra.mxu0 0.0
    %967 = vmatprep.subr.mxu0 0.0
    %968 = vmatpush1.msra.mxu0 0.0
    %969 = vmatprep.subr.mxu0 0.0
    %970 = vmatpush1.msra.mxu0 0.0
    %971 = vmatprep.subr.mxu0 0.0
    %972 = vmatpush1.msra.mxu0 0.0
    %973 = vmatprep.subr.mxu0 0.0
    %974 = vmatpush1.msra.mxu0 0.0
    %975 = vmatprep.subr.mxu0 0.0
    %976 = vmatpush1.msra.mxu0 0.0
    %977 = vmatprep.subr.mxu0 0.0
    %978 = vmatpush1.msra.mxu0 0.0
    %979 = vmatprep.subr.mxu0 0.0
    %980 = vmatpush1.msra.mxu0 0.0
    %981 = vmatprep.subr.mxu0 0.0
    %982 = vmatpush1.msra.mxu0 0.0
    %983 = vmatprep.subr.mxu0 0.0
    %984 = vmatpush1.msra.mxu0 0.0
    %985 = vmatprep.subr.mxu0 0.0
    %986 = vmatpush1.msra.mxu0 0.0
    %987 = vmatprep.subr.mxu0 0.0
    %988 = vmatpush1.msra.mxu0 0.0
    %989 = vmatprep.subr.mxu0 0.0
    %990 = vmatpush1.msra.mxu0 0.0
    %991 = vmatprep.subr.mxu0 0.0
    %992 = vmatpush1.msra.mxu0 0.0
    %993 = vmatprep.subr.mxu0 0.0
    %994 = vmatpush1.msra.mxu0 0.0
    %995 = vmatprep.subr.mxu0 0.0
    %996 = vmatpush1.msra.mxu0 0.0
    %997 = vmatprep.subr.mxu0 0.0
    %998 = vmatpush1.msra.mxu0 0.0
    %999 = vmatprep.mubr.f32.mxu0 0.0
    %1000 = vmatmul.mubr.f32.gmra.mrb[0].mxu0 %v627
    %v1001 = vpop.f32.mrb[0].mxu0
    %v1002 = vadd.f32 0.0, %v1001
    %v1003 = vpop.f32.mrb[0].mxu0
    %1004 = vdwg.mxu0
    %v1006 = vsel %vm699, %v931, 0
    %v1009 = vsel %vm703, %v1002, 0
    %1011 = vmatprep.subr.mxu0 0.0
    %1012 = vmatpush1.msra.mxu0 %v1009
    %1013 = vmatprep.subr.mxu0 0.0
    %1014 = vmatpush1.msra.mxu0 0.0
    %1015 = vmatprep.subr.mxu0 0.0
    %1016 = vmatpush1.msra.mxu0 0.0
    %1017 = vmatprep.subr.mxu0 0.0
    %1018 = vmatpush1.msra.mxu0 0.0
    %1019 = vmatprep.subr.mxu0 0.0
    %1020 = vmatpush1.msra.mxu0 0.0
    %1021 = vmatprep.subr.mxu0 0.0
    %1022 = vmatpush1.msra.mxu0 0.0
    %1023 = vmatprep.subr.mxu0 0.0
    %1024 = vmatpush1.msra.mxu0 0.0
    %1025 = vmatprep.subr.mxu0 0.0
    %1026 = vmatpush1.msra.mxu0 0.0
    %1027 = vmatprep.subr.mxu0 0.0
    %1028 = vmatpush1.msra.mxu0 0.0
    %1029 = vmatprep.subr.mxu0 0.0
    %1030 = vmatpush1.msra.mxu0 0.0
    %1031 = vmatprep.subr.mxu0 0.0
    %1032 = vmatpush1.msra.mxu0 0.0
    %1033 = vmatprep.subr.mxu0 0.0
    %1034 = vmatpush1.msra.mxu0 0.0
    %1035 = vmatprep.subr.mxu0 0.0
    %1036 = vmatpush1.msra.mxu0 0.0
    %1037 = vmatprep.subr.mxu0 0.0
    %1038 = vmatpush1.msra.mxu0 0.0
    %1039 = vmatprep.subr.mxu0 0.0
    %1040 = vmatpush1.msra.mxu0 0.0
    %1041 = vmatprep.subr.mxu0 0.0
    %1042 = vmatpush1.msra.mxu0 0.0
    %1043 = vmatprep.subr.mxu0 0.0
    %1044 = vmatpush1.msra.mxu0 0.0
    %1045 = vmatprep.subr.mxu0 0.0
    %1046 = vmatpush1.msra.mxu0 0.0
    %1047 = vmatprep.subr.mxu0 0.0
    %1048 = vmatpush1.msra.mxu0 0.0
    %1049 = vmatprep.subr.mxu0 0.0
    %1050 = vmatpush1.msra.mxu0 0.0
    %1051 = vmatprep.subr.mxu0 0.0
    %1052 = vmatpush1.msra.mxu0 0.0
    %1053 = vmatprep.subr.mxu0 0.0
    %1054 = vmatpush1.msra.mxu0 0.0
    %1055 = vmatprep.subr.mxu0 0.0
    %1056 = vmatpush1.msra.mxu0 0.0
    %1057 = vmatprep.subr.mxu0 0.0
    %1058 = vmatpush1.msra.mxu0 0.0
    %1059 = vmatprep.subr.mxu0 0.0
    %1060 = vmatpush1.msra.mxu0 0.0
    %1061 = vmatprep.subr.mxu0 0.0
    %1062 = vmatpush1.msra.mxu0 0.0
    %1063 = vmatprep.subr.mxu0 0.0
    %1064 = vmatpush1.msra.mxu0 0.0
    %1065 = vmatprep.subr.mxu0 0.0
    %1066 = vmatpush1.msra.mxu0 0.0
    %1067 = vmatprep.subr.mxu0 0.0
    %1068 = vmatpush1.msra.mxu0 0.0
    %1069 = vmatprep.subr.mxu0 0.0
    %1070 = vmatpush1.msra.mxu0 0.0
    %1071 = vmatprep.subr.mxu0 0.0
    %1072 = vmatpush1.msra.mxu0 0.0
    %1073 = vmatprep.subr.mxu0 0.0
    %1074 = vmatpush1.msra.mxu0 0.0
    %1075 = vmatprep.mubr.f32.mxu0 0.0
    %1076 = vmatmul.mubr.f32.gmra.mrb[0].mxu0 %v1006
    %v1077 = vpop.f32.mrb[0].mxu0
    %v1078 = vadd.f32 0.0, %v1077
    %v1079 = vpop.f32.mrb[0].mxu0
    %1080 = vdwg.mxu0
    %v1081 = vadd.f32 %v929, %v1078
    %s1082 = scalar_lea.vmem %s5, 24
    %v1083 = vld [vmem:[%s1082] sm:$0xff]
    %s1084 = scalar_lea.vmem [#allocation2], 48
    %v1085 = vld [vmem:[%s1084] sm:$0xff]
    %v1086 = vld [vmem:[%s1084 + $0x8] sm:$0xff]
    %1087 = vmatprep.subr.mxu0 0.0
    %1088 = vmatpush1.msra.mxu0 %v1085
    %1089 = vmatprep.subr.mxu0 0.0
    %1090 = vmatpush1.msra.mxu0 %v1086
    %1091 = vmatprep.subr.mxu0 0.0
    %1092 = vmatpush1.msra.mxu0 0.0
    %1093 = vmatprep.subr.mxu0 0.0
    %1094 = vmatpush1.msra.mxu0 0.0
    %1095 = vmatprep.subr.mxu0 0.0
    %1096 = vmatpush1.msra.mxu0 0.0
    %1097 = vmatprep.subr.mxu0 0.0
    %1098 = vmatpush1.msra.mxu0 0.0
    %1099 = vmatprep.subr.mxu0 0.0
    %1100 = vmatpush1.msra.mxu0 0.0
    %1101 = vmatprep.subr.mxu0 0.0
    %1102 = vmatpush1.msra.mxu0 0.0
    %1103 = vmatprep.subr.mxu0 0.0
    %1104 = vmatpush1.msra.mxu0 0.0
    %1105 = vmatprep.subr.mxu0 0.0
    %1106 = vmatpush1.msra.mxu0 0.0
    %1107 = vmatprep.subr.mxu0 0.0
    %1108 = vmatpush1.msra.mxu0 0.0
    %1109 = vmatprep.subr.mxu0 0.0
    %1110 = vmatpush1.msra.mxu0 0.0
    %1111 = vmatprep.subr.mxu0 0.0
    %1112 = vmatpush1.msra.mxu0 0.0
    %1113 = vmatprep.subr.mxu0 0.0
    %1114 = vmatpush1.msra.mxu0 0.0
    %1115 = vmatprep.subr.mxu0 0.0
    %1116 = vmatpush1.msra.mxu0 0.0
    %1117 = vmatprep.subr.mxu0 0.0
    %1118 = vmatpush1.msra.mxu0 0.0
    %1119 = vmatprep.subr.mxu0 0.0
    %1120 = vmatpush1.msra.mxu0 0.0
    %1121 = vmatprep.subr.mxu0 0.0
    %1122 = vmatpush1.msra.mxu0 0.0
    %1123 = vmatprep.subr.mxu0 0.0
    %1124 = vmatpush1.msra.mxu0 0.0
    %1125 = vmatprep.subr.mxu0 0.0
    %1126 = vmatpush1.msra.mxu0 0.0
    %1127 = vmatprep.subr.mxu0 0.0
    %1128 = vmatpush1.msra.mxu0 0.0
    %1129 = vmatprep.subr.mxu0 0.0
    %1130 = vmatpush1.msra.mxu0 0.0
    %1131 = vmatprep.subr.mxu0 0.0
    %1132 = vmatpush1.msra.mxu0 0.0
    %1133 = vmatprep.subr.mxu0 0.0
    %1134 = vmatpush1.msra.mxu0 0.0
    %1135 = vmatprep.subr.mxu0 0.0
    %1136 = vmatpush1.msra.mxu0 0.0
    %1137 = vmatprep.subr.mxu0 0.0
    %1138 = vmatpush1.msra.mxu0 0.0
    %1139 = vmatprep.subr.mxu0 0.0
    %1140 = vmatpush1.msra.mxu0 0.0
    %1141 = vmatprep.subr.mxu0 0.0
    %1142 = vmatpush1.msra.mxu0 0.0
    %1143 = vmatprep.subr.mxu0 0.0
    %1144 = vmatpush1.msra.mxu0 0.0
    %1145 = vmatprep.subr.mxu0 0.0
    %1146 = vmatpush1.msra.mxu0 0.0
    %1147 = vmatprep.subr.mxu0 0.0
    %1148 = vmatpush1.msra.mxu0 0.0
    %1149 = vmatprep.subr.mxu0 0.0
    %1150 = vmatpush1.msra.mxu0 0.0
    %1151 = vmatprep.mubr.f32.mxu0 0.0
    %1152 = vmatmul.mubr.f32.gmra.mrb[0].mxu0 %v627
    %v1153 = vpop.f32.mrb[0].mxu0
    %v1154 = vadd.f32 0.0, %v1153
    %v1155 = vpop.f32.mrb[0].mxu0
    %1156 = vdwg.mxu0
    %v1158 = vsel %vm699, %v1083, 0
    %v1161 = vsel %vm703, %v1154, 0
    %1163 = vmatprep.subr.mxu0 0.0
    %1164 = vmatpush1.msra.mxu0 %v1161
    %1165 = vmatprep.subr.mxu0 0.0
    %1166 = vmatpush1.msra.mxu0 0.0
    %1167 = vmatprep.subr.mxu0 0.0
    %1168 = vmatpush1.msra.mxu0 0.0
    %1169 = vmatprep.subr.mxu0 0.0
    %1170 = vmatpush1.msra.mxu0 0.0
    %1171 = vmatprep.subr.mxu0 0.0
    %1172 = vmatpush1.msra.mxu0 0.0
    %1173 = vmatprep.subr.mxu0 0.0
    %1174 = vmatpush1.msra.mxu0 0.0
    %1175 = vmatprep.subr.mxu0 0.0
    %1176 = vmatpush1.msra.mxu0 0.0
    %1177 = vmatprep.subr.mxu0 0.0
    %1178 = vmatpush1.msra.mxu0 0.0
    %1179 = vmatprep.subr.mxu0 0.0
    %1180 = vmatpush1.msra.mxu0 0.0
    %1181 = vmatprep.subr.mxu0 0.0
    %1182 = vmatpush1.msra.mxu0 0.0
    %1183 = vmatprep.subr.mxu0 0.0
    %1184 = vmatpush1.msra.mxu0 0.0
    %1185 = vmatprep.subr.mxu0 0.0
    %1186 = vmatpush1.msra.mxu0 0.0
    %1187 = vmatprep.subr.mxu0 0.0
    %1188 = vmatpush1.msra.mxu0 0.0
    %1189 = vmatprep.subr.mxu0 0.0
    %1190 = vmatpush1.msra.mxu0 0.0
    %1191 = vmatprep.subr.mxu0 0.0
    %1192 = vmatpush1.msra.mxu0 0.0
    %1193 = vmatprep.subr.mxu0 0.0
    %1194 = vmatpush1.msra.mxu0 0.0
    %1195 = vmatprep.subr.mxu0 0.0
    %1196 = vmatpush1.msra.mxu0 0.0
    %1197 = vmatprep.subr.mxu0 0.0
    %1198 = vmatpush1.msra.mxu0 0.0
    %1199 = vmatprep.subr.mxu0 0.0
    %1200 = vmatpush1.msra.mxu0 0.0
    %1201 = vmatprep.subr.mxu0 0.0
    %1202 = vmatpush1.msra.mxu0 0.0
    %1203 = vmatprep.subr.mxu0 0.0
    %1204 = vmatpush1.msra.mxu0 0.0
    %1205 = vmatprep.subr.mxu0 0.0
    %1206 = vmatpush1.msra.mxu0 0.0
    %1207 = vmatprep.subr.mxu0 0.0
    %1208 = vmatpush1.msra.mxu0 0.0
    %1209 = vmatprep.subr.mxu0 0.0
    %1210 = vmatpush1.msra.mxu0 0.0
    %1211 = vmatprep.subr.mxu0 0.0
    %1212 = vmatpush1.msra.mxu0 0.0
    %1213 = vmatprep.subr.mxu0 0.0
    %1214 = vmatpush1.msra.mxu0 0.0
    %1215 = vmatprep.subr.mxu0 0.0
    %1216 = vmatpush1.msra.mxu0 0.0
    %1217 = vmatprep.subr.mxu0 0.0
    %1218 = vmatpush1.msra.mxu0 0.0
    %1219 = vmatprep.subr.mxu0 0.0
    %1220 = vmatpush1.msra.mxu0 0.0
    %1221 = vmatprep.subr.mxu0 0.0
    %1222 = vmatpush1.msra.mxu0 0.0
    %1223 = vmatprep.subr.mxu0 0.0
    %1224 = vmatpush1.msra.mxu0 0.0
    %1225 = vmatprep.subr.mxu0 0.0
    %1226 = vmatpush1.msra.mxu0 0.0
    %1227 = vmatprep.mubr.f32.mxu0 0.0
    %1228 = vmatmul.mubr.f32.gmra.mrb[0].mxu0 %v1158
    %v1229 = vpop.f32.mrb[0].mxu0
    %v1230 = vadd.f32 0.0, %v1229
    %v1231 = vpop.f32.mrb[0].mxu0
    %1232 = vdwg.mxu0
    %v1233 = vadd.f32 %v1081, %v1230
    %v1234 = vld [vmem:[%s9] sm:$0xff]
    %v1235 = vld [vmem:[%s9 + $0x8] sm:$0xff]
    %v1236 = vld [vmem:[%s9 + $0x10] sm:$0xff]
    %v1237 = vld [vmem:[%s9 + $0x18] sm:$0xff]
    %v1238 = vld [vmem:[#allocation5] sm:$0xff]
    %vm1239 = vcmask 261120
    %v1240 = vsel %vm1239, %v1233, 0.0
    %v1241 = vrot.slane %v1240, 4
    %v1242 = vadd.f32 %v1240, %v1241
    %v1243 = vrot.slane %v1242, 2
    %v1244 = vadd.f32 %v1242, %v1243
    %v1245 = vrot.slane %v1244, 1
    %v1246 = vadd.f32 %v1244, %v1245
    %v1247 = vmul.f32 %v1233, %v1233
    %v1248 = vsel %vm1239, %v1247, 0.0
    %v1249 = vrot.slane %v1248, 4
    %v1250 = vadd.f32 %v1248, %v1249
    %v1251 = vrot.slane %v1250, 2
    %v1252 = vadd.f32 %v1250, %v1251
    %v1253 = vrot.slane %v1252, 1
    %v1254 = vadd.f32 %v1252, %v1253
    %v1256 = vsel %vm1239, %v1246, 0
    %1258 = vmatprep.subr.mxu0 0.0
    %1259 = vmatpush1.msra.mxu0 %v1234
    %1260 = vmatprep.subr.mxu0 0.0
    %1261 = vmatpush1.msra.mxu0 %v1235
    %1262 = vmatprep.subr.mxu0 0.0
    %1263 = vmatpush1.msra.mxu0 %v1236
    %1264 = vmatprep.subr.mxu0 0.0
    %1265 = vmatpush1.msra.mxu0 %v1237
    %1266 = vmatprep.subr.mxu0 0.0
    %1267 = vmatpush1.msra.mxu0 0.0
    %1268 = vmatprep.subr.mxu0 0.0
    %1269 = vmatpush1.msra.mxu0 0.0
    %1270 = vmatprep.subr.mxu0 0.0
    %1271 = vmatpush1.msra.mxu0 0.0
    %1272 = vmatprep.subr.mxu0 0.0
    %1273 = vmatpush1.msra.mxu0 0.0
    %1274 = vmatprep.subr.mxu0 0.0
    %1275 = vmatpush1.msra.mxu0 0.0
    %1276 = vmatprep.subr.mxu0 0.0
    %1277 = vmatpush1.msra.mxu0 0.0
    %1278 = vmatprep.subr.mxu0 0.0
    %1279 = vmatpush1.msra.mxu0 0.0
    %1280 = vmatprep.subr.mxu0 0.0
    %1281 = vmatpush1.msra.mxu0 0.0
    %1282 = vmatprep.subr.mxu0 0.0
    %1283 = vmatpush1.msra.mxu0 0.0
    %1284 = vmatprep.subr.mxu0 0.0
    %1285 = vmatpush1.msra.mxu0 0.0
    %1286 = vmatprep.subr.mxu0 0.0
    %1287 = vmatpush1.msra.mxu0 0.0
    %1288 = vmatprep.subr.mxu0 0.0
    %1289 = vmatpush1.msra.mxu0 0.0
    %1290 = vmatprep.subr.mxu0 0.0
    %1291 = vmatpush1.msra.mxu0 0.0
    %1292 = vmatprep.subr.mxu0 0.0
    %1293 = vmatpush1.msra.mxu0 0.0
    %1294 = vmatprep.subr.mxu0 0.0
    %1295 = vmatpush1.msra.mxu0 0.0
    %1296 = vmatprep.subr.mxu0 0.0
    %1297 = vmatpush1.msra.mxu0 0.0
    %1298 = vmatprep.subr.mxu0 0.0
    %1299 = vmatpush1.msra.mxu0 0.0
    %1300 = vmatprep.subr.mxu0 0.0
    %1301 = vmatpush1.msra.mxu0 0.0
    %1302 = vmatprep.subr.mxu0 0.0
    %1303 = vmatpush1.msra.mxu0 0.0
    %1304 = vmatprep.subr.mxu0 0.0
    %1305 = vmatpush1.msra.mxu0 0.0
    %1306 = vmatprep.subr.mxu0 0.0
    %1307 = vmatpush1.msra.mxu0 0.0
    %1308 = vmatprep.subr.mxu0 0.0
    %1309 = vmatpush1.msra.mxu0 0.0
    %1310 = vmatprep.subr.mxu0 0.0
    %1311 = vmatpush1.msra.mxu0 0.0
    %1312 = vmatprep.subr.mxu0 0.0
    %1313 = vmatpush1.msra.mxu0 0.0
    %1314 = vmatprep.subr.mxu0 0.0
    %1315 = vmatpush1.msra.mxu0 0.0
    %1316 = vmatprep.subr.mxu0 0.0
    %1317 = vmatpush1.msra.mxu0 0.0
    %1318 = vmatprep.subr.mxu0 0.0
    %1319 = vmatpush1.msra.mxu0 0.0
    %1320 = vmatprep.subr.mxu0 0.0
    %1321 = vmatpush1.msra.mxu0 0.0
    %1322 = vmatprep.mubr.f32.mxu0 0.0
    %1323 = vmatmul.mubr.f32.gmra.mrb[0].mxu0 %v1256
    %v1324 = vpop.f32.mrb[0].mxu0
    %v1325 = vadd.f32 0.0, %v1324
    %v1326 = vpop.f32.mrb[0].mxu0
    %1327 = vdwg.mxu0
    %v1329 = vsel %vm1239, %v1254, 0
    %1331 = vmatprep.subr.mxu0 0.0
    %1332 = vmatpush1.msra.mxu0 %v1234
    %1333 = vmatprep.subr.mxu0 0.0
    %1334 = vmatpush1.msra.mxu0 %v1235
    %1335 = vmatprep.subr.mxu0 0.0
    %1336 = vmatpush1.msra.mxu0 %v1236
    %1337 = vmatprep.subr.mxu0 0.0
    %1338 = vmatpush1.msra.mxu0 %v1237
    %1339 = vmatprep.subr.mxu0 0.0
    %1340 = vmatpush1.msra.mxu0 0.0
    %1341 = vmatprep.subr.mxu0 0.0
    %1342 = vmatpush1.msra.mxu0 0.0
    %1343 = vmatprep.subr.mxu0 0.0
    %1344 = vmatpush1.msra.mxu0 0.0
    %1345 = vmatprep.subr.mxu0 0.0
    %1346 = vmatpush1.msra.mxu0 0.0
    %1347 = vmatprep.subr.mxu0 0.0
    %1348 = vmatpush1.msra.mxu0 0.0
    %1349 = vmatprep.subr.mxu0 0.0
    %1350 = vmatpush1.msra.mxu0 0.0
    %1351 = vmatprep.subr.mxu0 0.0
    %1352 = vmatpush1.msra.mxu0 0.0
    %1353 = vmatprep.subr.mxu0 0.0
    %1354 = vmatpush1.msra.mxu0 0.0
    %1355 = vmatprep.subr.mxu0 0.0
    %1356 = vmatpush1.msra.mxu0 0.0
    %1357 = vmatprep.subr.mxu0 0.0
    %1358 = vmatpush1.msra.mxu0 0.0
    %1359 = vmatprep.subr.mxu0 0.0
    %1360 = vmatpush1.msra.mxu0 0.0
    %1361 = vmatprep.subr.mxu0 0.0
    %1362 = vmatpush1.msra.mxu0 0.0
    %1363 = vmatprep.subr.mxu0 0.0
    %1364 = vmatpush1.msra.mxu0 0.0
    %1365 = vmatprep.subr.mxu0 0.0
    %1366 = vmatpush1.msra.mxu0 0.0
    %1367 = vmatprep.subr.mxu0 0.0
    %1368 = vmatpush1.msra.mxu0 0.0
    %1369 = vmatprep.subr.mxu0 0.0
    %1370 = vmatpush1.msra.mxu0 0.0
    %1371 = vmatprep.subr.mxu0 0.0
    %1372 = vmatpush1.msra.mxu0 0.0
    %1373 = vmatprep.subr.mxu0 0.0
    %1374 = vmatpush1.msra.mxu0 0.0
    %1375 = vmatprep.subr.mxu0 0.0
    %1376 = vmatpush1.msra.mxu0 0.0
    %1377 = vmatprep.subr.mxu0 0.0
    %1378 = vmatpush1.msra.mxu0 0.0
    %1379 = vmatprep.subr.mxu0 0.0
    %1380 = vmatpush1.msra.mxu0 0.0
    %1381 = vmatprep.subr.mxu0 0.0
    %1382 = vmatpush1.msra.mxu0 0.0
    %1383 = vmatprep.subr.mxu0 0.0
    %1384 = vmatpush1.msra.mxu0 0.0
    %1385 = vmatprep.subr.mxu0 0.0
    %1386 = vmatpush1.msra.mxu0 0.0
    %1387 = vmatprep.subr.mxu0 0.0
    %1388 = vmatpush1.msra.mxu0 0.0
    %1389 = vmatprep.subr.mxu0 0.0
    %1390 = vmatpush1.msra.mxu0 0.0
    %1391 = vmatprep.subr.mxu0 0.0
    %1392 = vmatpush1.msra.mxu0 0.0
    %1393 = vmatprep.subr.mxu0 0.0
    %1394 = vmatpush1.msra.mxu0 0.0
    %1395 = vmatprep.mubr.f32.mxu0 0.0
    %1396 = vmatmul.mubr.f32.gmra.mrb[0].mxu0 %v1329
    %v1397 = vpop.f32.mrb[0].mxu0
    %v1398 = vadd.f32 0.0, %v1397
    %v1399 = vpop.f32.mrb[0].mxu0
    %1400 = vdwg.mxu0
    %v1401 = vmul.f32 %v1325, 0.03125
    %v1402 = vmul.f32 %v1398, 0.03125
    %v1403 = vmul.f32 %v1401, %v1401
    %v1404 = vsub.f32 %v1402, %v1403
    %v1405 = vld [vmem:[#allocation11] sm:$0x1]
    %v1406 = vadd.f32 %v1404, 1e-05
    %v1407 = vrsqrt.pop %v1406
    %v1408 = vmul.f32 %v1405, %v1407
    %v1409 = vld [vmem:[#allocation13] sm:$0x1]
    %v1410 = vmul.f32 %v1401, %v1408
    %v1411 = vsub.f32 %v1409, %v1410
    %vm1412 = vcmask 64512
    %v1414 = vsel %vm1412, %v1408, 0
    %1416 = vmatprep.subr.mxu0 0.0
    %1417 = vmatpush1.msra.mxu0 %v1238
    %1418 = vmatprep.subr.mxu0 0.0
    %1419 = vmatpush1.msra.mxu0 0.0
    %1420 = vmatprep.subr.mxu0 0.0
    %1421 = vmatpush1.msra.mxu0 0.0
    %1422 = vmatprep.subr.mxu0 0.0
    %1423 = vmatpush1.msra.mxu0 0.0
    %1424 = vmatprep.subr.mxu0 0.0
    %1425 = vmatpush1.msra.mxu0 0.0
    %1426 = vmatprep.subr.mxu0 0.0
    %1427 = vmatpush1.msra.mxu0 0.0
    %1428 = vmatprep.subr.mxu0 0.0
    %1429 = vmatpush1.msra.mxu0 0.0
    %1430 = vmatprep.subr.mxu0 0.0
    %1431 = vmatpush1.msra.mxu0 0.0
    %1432 = vmatprep.subr.mxu0 0.0
    %1433 = vmatpush1.msra.mxu0 0.0
    %1434 = vmatprep.subr.mxu0 0.0
    %1435 = vmatpush1.msra.mxu0 0.0
    %1436 = vmatprep.subr.mxu0 0.0
    %1437 = vmatpush1.msra.mxu0 0.0
    %1438 = vmatprep.subr.mxu0 0.0
    %1439 = vmatpush1.msra.mxu0 0.0
    %1440 = vmatprep.subr.mxu0 0.0
    %1441 = vmatpush1.msra.mxu0 0.0
    %1442 = vmatprep.subr.mxu0 0.0
    %1443 = vmatpush1.msra.mxu0 0.0
    %1444 = vmatprep.subr.mxu0 0.0
    %1445 = vmatpush1.msra.mxu0 0.0
    %1446 = vmatprep.subr.mxu0 0.0
    %1447 = vmatpush1.msra.mxu0 0.0
    %1448 = vmatprep.subr.mxu0 0.0
    %1449 = vmatpush1.msra.mxu0 0.0
    %1450 = vmatprep.subr.mxu0 0.0
    %1451 = vmatpush1.msra.mxu0 0.0
    %1452 = vmatprep.subr.mxu0 0.0
    %1453 = vmatpush1.msra.mxu0 0.0
    %1454 = vmatprep.subr.mxu0 0.0
    %1455 = vmatpush1.msra.mxu0 0.0
    %1456 = vmatprep.subr.mxu0 0.0
    %1457 = vmatpush1.msra.mxu0 0.0
    %1458 = vmatprep.subr.mxu0 0.0
    %1459 = vmatpush1.msra.mxu0 0.0
    %1460 = vmatprep.subr.mxu0 0.0
    %1461 = vmatpush1.msra.mxu0 0.0
    %1462 = vmatprep.subr.mxu0 0.0
    %1463 = vmatpush1.msra.mxu0 0.0
    %1464 = vmatprep.subr.mxu0 0.0
    %1465 = vmatpush1.msra.mxu0 0.0
    %1466 = vmatprep.subr.mxu0 0.0
    %1467 = vmatpush1.msra.mxu0 0.0
    %1468 = vmatprep.subr.mxu0 0.0
    %1469 = vmatpush1.msra.mxu0 0.0
    %1470 = vmatprep.subr.mxu0 0.0
    %1471 = vmatpush1.msra.mxu0 0.0
    %1472 = vmatprep.subr.mxu0 0.0
    %1473 = vmatpush1.msra.mxu0 0.0
    %1474 = vmatprep.subr.mxu0 0.0
    %1475 = vmatpush1.msra.mxu0 0.0
    %1476 = vmatprep.subr.mxu0 0.0
    %1477 = vmatpush1.msra.mxu0 0.0
    %1478 = vmatprep.subr.mxu0 0.0
    %1479 = vmatpush1.msra.mxu0 0.0
    %1480 = vmatprep.mubr.f32.mxu0 0.0
    %1481 = vmatmul.mubr.f32.gmra.mrb[0].mxu0 %v1414
    %v1482 = vpop.f32.mrb[0].mxu0
    %v1483 = vadd.f32 0.0, %v1482
    %v1484 = vpop.f32.mrb[0].mxu0
    %1485 = vdwg.mxu0
    %v1487 = vsel %vm1412, %v1411, 0
    %1489 = vmatprep.subr.mxu0 0.0
    %1490 = vmatpush1.msra.mxu0 %v1238
    %1491 = vmatprep.subr.mxu0 0.0
    %1492 = vmatpush1.msra.mxu0 0.0
    %1493 = vmatprep.subr.mxu0 0.0
    %1494 = vmatpush1.msra.mxu0 0.0
    %1495 = vmatprep.subr.mxu0 0.0
    %1496 = vmatpush1.msra.mxu0 0.0
    %1497 = vmatprep.subr.mxu0 0.0
    %1498 = vmatpush1.msra.mxu0 0.0
    %1499 = vmatprep.subr.mxu0 0.0
    %1500 = vmatpush1.msra.mxu0 0.0
    %1501 = vmatprep.subr.mxu0 0.0
    %1502 = vmatpush1.msra.mxu0 0.0
    %1503 = vmatprep.subr.mxu0 0.0
    %1504 = vmatpush1.msra.mxu0 0.0
    %1505 = vmatprep.subr.mxu0 0.0
    %1506 = vmatpush1.msra.mxu0 0.0
    %1507 = vmatprep.subr.mxu0 0.0
    %1508 = vmatpush1.msra.mxu0 0.0
    %1509 = vmatprep.subr.mxu0 0.0
    %1510 = vmatpush1.msra.mxu0 0.0
    %1511 = vmatprep.subr.mxu0 0.0
    %1512 = vmatpush1.msra.mxu0 0.0
    %1513 = vmatprep.subr.mxu0 0.0
    %1514 = vmatpush1.msra.mxu0 0.0
    %1515 = vmatprep.subr.mxu0 0.0
    %1516 = vmatpush1.msra.mxu0 0.0
    %1517 = vmatprep.subr.mxu0 0.0
    %1518 = vmatpush1.msra.mxu0 0.0
    %1519 = vmatprep.subr.mxu0 0.0
    %1520 = vmatpush1.msra.mxu0 0.0
    %1521 = vmatprep.subr.mxu0 0.0
    %1522 = vmatpush1.msra.mxu0 0.0
    %1523 = vmatprep.subr.mxu0 0.0
    %1524 = vmatpush1.msra.mxu0 0.0
    %1525 = vmatprep.subr.mxu0 0.0
    %1526 = vmatpush1.msra.mxu0 0.0
    %1527 = vmatprep.subr.mxu0 0.0
    %1528 = vmatpush1.msra.mxu0 0.0
    %1529 = vmatprep.subr.mxu0 0.0
    %1530 = vmatpush1.msra.mxu0 0.0
    %1531 = vmatprep.subr.mxu0 0.0
    %1532 = vmatpush1.msra.mxu0 0.0
    %1533 = vmatprep.subr.mxu0 0.0
    %1534 = vmatpush1.msra.mxu0 0.0
    %1535 = vmatprep.subr.mxu0 0.0
    %1536 = vmatpush1.msra.mxu0 0.0
    %1537 = vmatprep.subr.mxu0 0.0
    %1538 = vmatpush1.msra.mxu0 0.0
    %1539 = vmatprep.subr.mxu0 0.0
    %1540 = vmatpush1.msra.mxu0 0.0
    %1541 = vmatprep.subr.mxu0 0.0
    %1542 = vmatpush1.msra.mxu0 0.0
    %1543 = vmatprep.subr.mxu0 0.0
    %1544 = vmatpush1.msra.mxu0 0.0
    %1545 = vmatprep.subr.mxu0 0.0
    %1546 = vmatpush1.msra.mxu0 0.0
    %1547 = vmatprep.subr.mxu0 0.0
    %1548 = vmatpush1.msra.mxu0 0.0
    %1549 = vmatprep.subr.mxu0 0.0
    %1550 = vmatpush1.msra.mxu0 0.0
    %1551 = vmatprep.subr.mxu0 0.0
    %1552 = vmatpush1.msra.mxu0 0.0
    %1553 = vmatprep.mubr.f32.mxu0 0.0
    %1554 = vmatmul.mubr.f32.gmra.mrb[0].mxu0 %v1487
    %v1555 = vpop.f32.mrb[0].mxu0
    %v1556 = vadd.f32 0.0, %v1555
    %v1557 = vpop.f32.mrb[0].mxu0
    %1558 = vdwg.mxu0
    %v1559 = vlaneseq
    %v1560 = vshrl.u32 %v1559, 7
    %v1561 = vsub.s32 0, %v1560
    %v1562 = vrot.slane %v1483, %v1561
    %v1563 = vmul.f32 %v1233, %v1562
    %v1564 = vlaneseq
    %v1565 = vshrl.u32 %v1564, 7
    %v1566 = vsub.s32 0, %v1565
    %v1567 = vrot.slane %v1556, %v1566
    %v1568 = vadd.f32 %v1563, %v1567
    %v1569 = vmax.f32 %v1568, 0.0
    %v1570 = vld [vmem:[%s29] sm:$0xff]
    %v1571 = vld [vmem:[%s29 + $0x8] sm:$0xff]
    %v1572 = vld [vmem:[#allocation14] sm:$0xff]
    %v1573 = vld [vmem:[#allocation14 + $0x8] sm:$0xff]
    %v1574 = vld [vmem:[#allocation14 + $0x10] sm:$0xff]
    %v1575 = vld [vmem:[#allocation14 + $0x18] sm:$0xff]
    %v1577 = vsel %vm1239, %v1569, 0
    %1579 = vmatprep.subr.mxu0 0.0
    %1580 = vmatpush1.msra.mxu0 %v1572
    %1581 = vmatprep.subr.mxu0 0.0
    %1582 = vmatpush1.msra.mxu0 %v1573
    %1583 = vmatprep.subr.mxu0 0.0
    %1584 = vmatpush1.msra.mxu0 %v1574
    %1585 = vmatprep.subr.mxu0 0.0
    %1586 = vmatpush1.msra.mxu0 %v1575
    %1587 = vmatprep.subr.mxu0 0.0
    %1588 = vmatpush1.msra.mxu0 0.0
    %1589 = vmatprep.subr.mxu0 0.0
    %1590 = vmatpush1.msra.mxu0 0.0
    %1591 = vmatprep.subr.mxu0 0.0
    %1592 = vmatpush1.msra.mxu0 0.0
    %1593 = vmatprep.subr.mxu0 0.0
    %1594 = vmatpush1.msra.mxu0 0.0
    %1595 = vmatprep.subr.mxu0 0.0
    %1596 = vmatpush1.msra.mxu0 0.0
    %1597 = vmatprep.subr.mxu0 0.0
    %1598 = vmatpush1.msra.mxu0 0.0
    %1599 = vmatprep.subr.mxu0 0.0
    %1600 = vmatpush1.msra.mxu0 0.0
    %1601 = vmatprep.subr.mxu0 0.0
    %1602 = vmatpush1.msra.mxu0 0.0
    %1603 = vmatprep.subr.mxu0 0.0
    %1604 = vmatpush1.msra.mxu0 0.0
    %1605 = vmatprep.subr.mxu0 0.0
    %1606 = vmatpush1.msra.mxu0 0.0
    %1607 = vmatprep.subr.mxu0 0.0
    %1608 = vmatpush1.msra.mxu0 0.0
    %1609 = vmatprep.subr.mxu0 0.0
    %1610 = vmatpush1.msra.mxu0 0.0
    %1611 = vmatprep.subr.mxu0 0.0
    %1612 = vmatpush1.msra.mxu0 0.0
    %1613 = vmatprep.subr.mxu0 0.0
    %1614 = vmatpush1.msra.mxu0 0.0
    %1615 = vmatprep.subr.mxu0 0.0
    %1616 = vmatpush1.msra.mxu0 0.0
    %1617 = vmatprep.subr.mxu0 0.0
    %1618 = vmatpush1.msra.mxu0 0.0
    %1619 = vmatprep.subr.mxu0 0.0
    %1620 = vmatpush1.msra.mxu0 0.0
    %1621 = vmatprep.subr.mxu0 0.0
    %1622 = vmatpush1.msra.mxu0 0.0
    %1623 = vmatprep.subr.mxu0 0.0
    %1624 = vmatpush1.msra.mxu0 0.0
    %1625 = vmatprep.subr.mxu0 0.0
    %1626 = vmatpush1.msra.mxu0 0.0
    %1627 = vmatprep.subr.mxu0 0.0
    %1628 = vmatpush1.msra.mxu0 0.0
    %1629 = vmatprep.subr.mxu0 0.0
    %1630 = vmatpush1.msra.mxu0 0.0
    %1631 = vmatprep.subr.mxu0 0.0
    %1632 = vmatpush1.msra.mxu0 0.0
    %1633 = vmatprep.subr.mxu0 0.0
    %1634 = vmatpush1.msra.mxu0 0.0
    %1635 = vmatprep.subr.mxu0 0.0
    %1636 = vmatpush1.msra.mxu0 0.0
    %1637 = vmatprep.subr.mxu0 0.0
    %1638 = vmatpush1.msra.mxu0 0.0
    %1639 = vmatprep.subr.mxu0 0.0
    %1640 = vmatpush1.msra.mxu0 0.0
    %1641 = vmatprep.subr.mxu0 0.0
    %1642 = vmatpush1.msra.mxu0 0.0
    %1643 = vmatprep.mubr.f32.mxu0 0.0
    %1644 = vmatmul.mubr.f32.gmra.mrb[0].mxu0 %v1577
    %v1645 = vpop.f32.mrb[0].mxu0
    %v1646 = vadd.f32 0.0, %v1645
    %v1647 = vpop.f32.mrb[0].mxu0
    %1648 = vdwg.mxu0
    %s1649 = scalar_lea.vmem %s29, 16
    %v1650 = vld [vmem:[%s1649] sm:$0xff]
    %v1651 = vld [vmem:[%s1649 + $0x8] sm:$0xff]
    %s1652 = scalar_lea.vmem [#allocation14], 32
    %v1653 = vld [vmem:[%s1652] sm:$0xff]
    %v1654 = vld [vmem:[%s1652 + $0x8] sm:$0xff]
    %v1655 = vld [vmem:[%s1652 + $0x10] sm:$0xff]
    %v1656 = vld [vmem:[%s1652 + $0x18] sm:$0xff]
    %1657 = vmatprep.subr.mxu0 0.0
    %1658 = vmatpush1.msra.mxu0 %v1653
    %1659 = vmatprep.subr.mxu0 0.0
    %1660 = vmatpush1.msra.mxu0 %v1654
    %1661 = vmatprep.subr.mxu0 0.0
    %1662 = vmatpush1.msra.mxu0 %v1655
    %1663 = vmatprep.subr.mxu0 0.0
    %1664 = vmatpush1.msra.mxu0 %v1656
    %1665 = vmatprep.subr.mxu0 0.0
    %1666 = vmatpush1.msra.mxu0 0.0
    %1667 = vmatprep.subr.mxu0 0.0
    %1668 = vmatpush1.msra.mxu0 0.0
    %1669 = vmatprep.subr.mxu0 0.0
    %1670 = vmatpush1.msra.mxu0 0.0
    %1671 = vmatprep.subr.mxu0 0.0
    %1672 = vmatpush1.msra.mxu0 0.0
    %1673 = vmatprep.subr.mxu0 0.0
    %1674 = vmatpush1.msra.mxu0 0.0
    %1675 = vmatprep.subr.mxu0 0.0
    %1676 = vmatpush1.msra.mxu0 0.0
    %1677 = vmatprep.subr.mxu0 0.0
    %1678 = vmatpush1.msra.mxu0 0.0
    %1679 = vmatprep.subr.mxu0 0.0
    %1680 = vmatpush1.msra.mxu0 0.0
    %1681 = vmatprep.subr.mxu0 0.0
    %1682 = vmatpush1.msra.mxu0 0.0
    %1683 = vmatprep.subr.mxu0 0.0
    %1684 = vmatpush1.msra.mxu0 0.0
    %1685 = vmatprep.subr.mxu0 0.0
    %1686 = vmatpush1.msra.mxu0 0.0
    %1687 = vmatprep.subr.mxu0 0.0
    %1688 = vmatpush1.msra.mxu0 0.0
    %1689 = vmatprep.subr.mxu0 0.0
    %1690 = vmatpush1.msra.mxu0 0.0
    %1691 = vmatprep.subr.mxu0 0.0
    %1692 = vmatpush1.msra.mxu0 0.0
    %1693 = vmatprep.subr.mxu0 0.0
    %1694 = vmatpush1.msra.mxu0 0.0
    %1695 = vmatprep.subr.mxu0 0.0
    %1696 = vmatpush1.msra.mxu0 0.0
    %1697 = vmatprep.subr.mxu0 0.0
    %1698 = vmatpush1.msra.mxu0 0.0
    %1699 = vmatprep.subr.mxu0 0.0
    %1700 = vmatpush1.msra.mxu0 0.0
    %1701 = vmatprep.subr.mxu0 0.0
    %1702 = vmatpush1.msra.mxu0 0.0
    %1703 = vmatprep.subr.mxu0 0.0
    %1704 = vmatpush1.msra.mxu0 0.0
    %1705 = vmatprep.subr.mxu0 0.0
    %1706 = vmatpush1.msra.mxu0 0.0
    %1707 = vmatprep.subr.mxu0 0.0
    %1708 = vmatpush1.msra.mxu0 0.0
    %1709 = vmatprep.subr.mxu0 0.0
    %1710 = vmatpush1.msra.mxu0 0.0
    %1711 = vmatprep.subr.mxu0 0.0
    %1712 = vmatpush1.msra.mxu0 0.0
    %1713 = vmatprep.subr.mxu0 0.0
    %1714 = vmatpush1.msra.mxu0 0.0
    %1715 = vmatprep.subr.mxu0 0.0
    %1716 = vmatpush1.msra.mxu0 0.0
    %1717 = vmatprep.subr.mxu0 0.0
    %1718 = vmatpush1.msra.mxu0 0.0
    %1719 = vmatprep.subr.mxu0 0.0
    %1720 = vmatpush1.msra.mxu0 0.0
    %1721 = vmatprep.mubr.f32.mxu0 0.0
    %1722 = vmatmul.mubr.f32.gmra.mrb[0].mxu0 %v1577
    %v1723 = vpop.f32.mrb[0].mxu0
    %v1724 = vadd.f32 0.0, %v1723
    %v1725 = vpop.f32.mrb[0].mxu0
    %1726 = vdwg.mxu0
    %v1728 = vsel %vm1412, %v1650, 0
    %v1731 = vsel %vm1412, %v1651, 0
    %1733 = vmatprep.subr.mxu0 0.0
    %1734 = vmatpush1.msra.mxu0 %v1724
    %1735 = vmatprep.subr.mxu0 0.0
    %1736 = vmatpush1.msra.mxu0 0.0
    %1737 = vmatprep.subr.mxu0 0.0
    %1738 = vmatpush1.msra.mxu0 0.0
    %1739 = vmatprep.subr.mxu0 0.0
    %1740 = vmatpush1.msra.mxu0 0.0
    %1741 = vmatprep.subr.mxu0 0.0
    %1742 = vmatpush1.msra.mxu0 0.0
    %1743 = vmatprep.subr.mxu0 0.0
    %1744 = vmatpush1.msra.mxu0 0.0
    %1745 = vmatprep.subr.mxu0 0.0
    %1746 = vmatpush1.msra.mxu0 0.0
    %1747 = vmatprep.subr.mxu0 0.0
    %1748 = vmatpush1.msra.mxu0 0.0
    %1749 = vmatprep.subr.mxu0 0.0
    %1750 = vmatpush1.msra.mxu0 0.0
    %1751 = vmatprep.subr.mxu0 0.0
    %1752 = vmatpush1.msra.mxu0 0.0
    %1753 = vmatprep.subr.mxu0 0.0
    %1754 = vmatpush1.msra.mxu0 0.0
    %1755 = vmatprep.subr.mxu0 0.0
    %1756 = vmatpush1.msra.mxu0 0.0
    %1757 = vmatprep.subr.mxu0 0.0
    %1758 = vmatpush1.msra.mxu0 0.0
    %1759 = vmatprep.subr.mxu0 0.0
    %1760 = vmatpush1.msra.mxu0 0.0
    %1761 = vmatprep.subr.mxu0 0.0
    %1762 = vmatpush1.msra.mxu0 0.0
    %1763 = vmatprep.subr.mxu0 0.0
    %1764 = vmatpush1.msra.mxu0 0.0
    %1765 = vmatprep.subr.mxu0 0.0
    %1766 = vmatpush1.msra.mxu0 0.0
    %1767 = vmatprep.subr.mxu0 0.0
    %1768 = vmatpush1.msra.mxu0 0.0
    %1769 = vmatprep.subr.mxu0 0.0
    %1770 = vmatpush1.msra.mxu0 0.0
    %1771 = vmatprep.subr.mxu0 0.0
    %1772 = vmatpush1.msra.mxu0 0.0
    %1773 = vmatprep.subr.mxu0 0.0
    %1774 = vmatpush1.msra.mxu0 0.0
    %1775 = vmatprep.subr.mxu0 0.0
    %1776 = vmatpush1.msra.mxu0 0.0
    %1777 = vmatprep.subr.mxu0 0.0
    %1778 = vmatpush1.msra.mxu0 0.0
    %1779 = vmatprep.subr.mxu0 0.0
    %1780 = vmatpush1.msra.mxu0 0.0
    %1781 = vmatprep.subr.mxu0 0.0
    %1782 = vmatpush1.msra.mxu0 0.0
    %1783 = vmatprep.subr.mxu0 0.0
    %1784 = vmatpush1.msra.mxu0 0.0
    %1785 = vmatprep.subr.mxu0 0.0
    %1786 = vmatpush1.msra.mxu0 0.0
    %1787 = vmatprep.subr.mxu0 0.0
    %1788 = vmatpush1.msra.mxu0 0.0
    %1789 = vmatprep.subr.mxu0 0.0
    %1790 = vmatpush1.msra.mxu0 0.0
    %1791 = vmatprep.subr.mxu0 0.0
    %1792 = vmatpush1.msra.mxu0 0.0
    %1793 = vmatprep.subr.mxu0 0.0
    %1794 = vmatpush1.msra.mxu0 0.0
    %1795 = vmatprep.subr.mxu0 0.0
    %1796 = vmatpush1.msra.mxu0 0.0
    %1797 = vmatprep.mubr.f32.mxu0 0.0
    %1798 = vmatmul.mubr.f32.gmra.mrb[0].mxu0 %v1728
    %v1799 = vpop.f32.mrb[0].mxu0
    %v1800 = vadd.f32 0.0, %v1799
    %v1801 = vpop.f32.mrb[0].mxu0
    %1802 = vmatprep.mubr.f32.mxu0 0.0
    %1803 = vmatmul.mubr.f32.gmra.mrb[0].mxu0 %v1731
    %v1804 = vpop.f32.mrb[0].mxu0
    %v1805 = vadd.f32 0.0, %v1804
    %v1806 = vpop.f32.mrb[0].mxu0
    %1807 = vdwg.mxu0
    %v1809 = vsel %vm1412, %v1570, 0
    %v1812 = vsel %vm1412, %v1571, 0
    %1814 = vmatprep.subr.mxu0 0.0
    %1815 = vmatpush1.msra.mxu0 %v1646
    %1816 = vmatprep.subr.mxu0 0.0
    %1817 = vmatpush1.msra.mxu0 0.0
    %1818 = vmatprep.subr.mxu0 0.0
    %1819 = vmatpush1.msra.mxu0 0.0
    %1820 = vmatprep.subr.mxu0 0.0
    %1821 = vmatpush1.msra.mxu0 0.0
    %1822 = vmatprep.subr.mxu0 0.0
    %1823 = vmatpush1.msra.mxu0 0.0
    %1824 = vmatprep.subr.mxu0 0.0
    %1825 = vmatpush1.msra.mxu0 0.0
    %1826 = vmatprep.subr.mxu0 0.0
    %1827 = vmatpush1.msra.mxu0 0.0
    %1828 = vmatprep.subr.mxu0 0.0
    %1829 = vmatpush1.msra.mxu0 0.0
    %1830 = vmatprep.subr.mxu0 0.0
    %1831 = vmatpush1.msra.mxu0 0.0
    %1832 = vmatprep.subr.mxu0 0.0
    %1833 = vmatpush1.msra.mxu0 0.0
    %1834 = vmatprep.subr.mxu0 0.0
    %1835 = vmatpush1.msra.mxu0 0.0
    %1836 = vmatprep.subr.mxu0 0.0
    %1837 = vmatpush1.msra.mxu0 0.0
    %1838 = vmatprep.subr.mxu0 0.0
    %1839 = vmatpush1.msra.mxu0 0.0
    %1840 = vmatprep.subr.mxu0 0.0
    %1841 = vmatpush1.msra.mxu0 0.0
    %1842 = vmatprep.subr.mxu0 0.0
    %1843 = vmatpush1.msra.mxu0 0.0
    %1844 = vmatprep.subr.mxu0 0.0
    %1845 = vmatpush1.msra.mxu0 0.0
    %1846 = vmatprep.subr.mxu0 0.0
    %1847 = vmatpush1.msra.mxu0 0.0
    %1848 = vmatprep.subr.mxu0 0.0
    %1849 = vmatpush1.msra.mxu0 0.0
    %1850 = vmatprep.subr.mxu0 0.0
    %1851 = vmatpush1.msra.mxu0 0.0
    %1852 = vmatprep.subr.mxu0 0.0
    %1853 = vmatpush1.msra.mxu0 0.0
    %1854 = vmatprep.subr.mxu0 0.0
    %1855 = vmatpush1.msra.mxu0 0.0
    %1856 = vmatprep.subr.mxu0 0.0
    %1857 = vmatpush1.msra.mxu0 0.0
    %1858 = vmatprep.subr.mxu0 0.0
    %1859 = vmatpush1.msra.mxu0 0.0
    %1860 = vmatprep.subr.mxu0 0.0
    %1861 = vmatpush1.msra.mxu0 0.0
    %1862 = vmatprep.subr.mxu0 0.0
    %1863 = vmatpush1.msra.mxu0 0.0
    %1864 = vmatprep.subr.mxu0 0.0
    %1865 = vmatpush1.msra.mxu0 0.0
    %1866 = vmatprep.subr.mxu0 0.0
    %1867 = vmatpush1.msra.mxu0 0.0
    %1868 = vmatprep.subr.mxu0 0.0
    %1869 = vmatpush1.msra.mxu0 0.0
    %1870 = vmatprep.subr.mxu0 0.0
    %1871 = vmatpush1.msra.mxu0 0.0
    %1872 = vmatprep.subr.mxu0 0.0
    %1873 = vmatpush1.msra.mxu0 0.0
    %1874 = vmatprep.subr.mxu0 0.0
    %1875 = vmatpush1.msra.mxu0 0.0
    %1876 = vmatprep.subr.mxu0 0.0
    %1877 = vmatpush1.msra.mxu0 0.0
    %1878 = vmatprep.mubr.f32.mxu0 0.0
    %1879 = vmatmul.mubr.f32.gmra.mrb[0].mxu0 %v1809
    %v1880 = vpop.f32.mrb[0].mxu0
    %v1881 = vadd.f32 %v1800, %v1880
    %v1882 = vpop.f32.mrb[0].mxu0
    %1883 = vmatprep.mubr.f32.mxu0 0.0
    %1884 = vmatmul.mubr.f32.gmra.mrb[0].mxu0 %v1812
    %v1885 = vpop.f32.mrb[0].mxu0
    %v1886 = vadd.f32 %v1805, %v1885
    %v1887 = vpop.f32.mrb[0].mxu0
    %1888 = vdwg.mxu0
    %s1889 = scalar_lea.vmem %s29, 32
    %v1890 = vld [vmem:[%s1889] sm:$0xff]
    %v1891 = vld [vmem:[%s1889 + $0x8] sm:$0xff]
    %s1892 = scalar_lea.vmem [#allocation14], 64
    %v1893 = vld [vmem:[%s1892] sm:$0xff]
    %v1894 = vld [vmem:[%s1892 + $0x8] sm:$0xff]
    %v1895 = vld [vmem:[%s1892 + $0x10] sm:$0xff]
    %v1896 = vld [vmem:[%s1892 + $0x18] sm:$0xff]
    %1897 = vmatprep.subr.mxu0 0.0
    %1898 = vmatpush1.msra.mxu0 %v1893
    %1899 = vmatprep.subr.mxu0 0.0
    %1900 = vmatpush1.msra.mxu0 %v1894
    %1901 = vmatprep.subr.mxu0 0.0
    %1902 = vmatpush1.msra.mxu0 %v1895
    %1903 = vmatprep.subr.mxu0 0.0
    %1904 = vmatpush1.msra.mxu0 %v1896
    %1905 = vmatprep.subr.mxu0 0.0
    %1906 = vmatpush1.msra.mxu0 0.0
    %1907 = vmatprep.subr.mxu0 0.0
    %1908 = vmatpush1.msra.mxu0 0.0
    %1909 = vmatprep.subr.mxu0 0.0
    %1910 = vmatpush1.msra.mxu0 0.0
    %1911 = vmatprep.subr.mxu0 0.0
    %1912 = vmatpush1.msra.mxu0 0.0
    %1913 = vmatprep.subr.mxu0 0.0
    %1914 = vmatpush1.msra.mxu0 0.0
    %1915 = vmatprep.subr.mxu0 0.0
    %1916 = vmatpush1.msra.mxu0 0.0
    %1917 = vmatprep.subr.mxu0 0.0
    %1918 = vmatpush1.msra.mxu0 0.0
    %1919 = vmatprep.subr.mxu0 0.0
    %1920 = vmatpush1.msra.mxu0 0.0
    %1921 = vmatprep.subr.mxu0 0.0
    %1922 = vmatpush1.msra.mxu0 0.0
    %1923 = vmatprep.subr.mxu0 0.0
    %1924 = vmatpush1.msra.mxu0 0.0
    %1925 = vmatprep.subr.mxu0 0.0
    %1926 = vmatpush1.msra.mxu0 0.0
    %1927 = vmatprep.subr.mxu0 0.0
    %1928 = vmatpush1.msra.mxu0 0.0
    %1929 = vmatprep.subr.mxu0 0.0
    %1930 = vmatpush1.msra.mxu0 0.0
    %1931 = vmatprep.subr.mxu0 0.0
    %1932 = vmatpush1.msra.mxu0 0.0
    %1933 = vmatprep.subr.mxu0 0.0
    %1934 = vmatpush1.msra.mxu0 0.0
    %1935 = vmatprep.subr.mxu0 0.0
    %1936 = vmatpush1.msra.mxu0 0.0
    %1937 = vmatprep.subr.mxu0 0.0
    %1938 = vmatpush1.msra.mxu0 0.0
    %1939 = vmatprep.subr.mxu0 0.0
    %1940 = vmatpush1.msra.mxu0 0.0
    %1941 = vmatprep.subr.mxu0 0.0
    %1942 = vmatpush1.msra.mxu0 0.0
    %1943 = vmatprep.subr.mxu0 0.0
    %1944 = vmatpush1.msra.mxu0 0.0
    %1945 = vmatprep.subr.mxu0 0.0
    %1946 = vmatpush1.msra.mxu0 0.0
    %1947 = vmatprep.subr.mxu0 0.0
    %1948 = vmatpush1.msra.mxu0 0.0
    %1949 = vmatprep.subr.mxu0 0.0
    %1950 = vmatpush1.msra.mxu0 0.0
    %1951 = vmatprep.subr.mxu0 0.0
    %1952 = vmatpush1.msra.mxu0 0.0
    %1953 = vmatprep.subr.mxu0 0.0
    %1954 = vmatpush1.msra.mxu0 0.0
    %1955 = vmatprep.subr.mxu0 0.0
    %1956 = vmatpush1.msra.mxu0 0.0
    %1957 = vmatprep.subr.mxu0 0.0
    %1958 = vmatpush1.msra.mxu0 0.0
    %1959 = vmatprep.subr.mxu0 0.0
    %1960 = vmatpush1.msra.mxu0 0.0
    %1961 = vmatprep.mubr.f32.mxu0 0.0
    %1962 = vmatmul.mubr.f32.gmra.mrb[0].mxu0 %v1577
    %v1963 = vpop.f32.mrb[0].mxu0
    %v1964 = vadd.f32 0.0, %v1963
    %v1965 = vpop.f32.mrb[0].mxu0
    %1966 = vdwg.mxu0
    %v1968 = vsel %vm1412, %v1890, 0
    %v1971 = vsel %vm1412, %v1891, 0
    %1973 = vmatprep.subr.mxu0 0.0
    %1974 = vmatpush1.msra.mxu0 %v1964
    %1975 = vmatprep.subr.mxu0 0.0
    %1976 = vmatpush1.msra.mxu0 0.0
    %1977 = vmatprep.subr.mxu0 0.0
    %1978 = vmatpush1.msra.mxu0 0.0
    %1979 = vmatprep.subr.mxu0 0.0
    %1980 = vmatpush1.msra.mxu0 0.0
    %1981 = vmatprep.subr.mxu0 0.0
    %1982 = vmatpush1.msra.mxu0 0.0
    %1983 = vmatprep.subr.mxu0 0.0
    %1984 = vmatpush1.msra.mxu0 0.0
    %1985 = vmatprep.subr.mxu0 0.0
    %1986 = vmatpush1.msra.mxu0 0.0
    %1987 = vmatprep.subr.mxu0 0.0
    %1988 = vmatpush1.msra.mxu0 0.0
    %1989 = vmatprep.subr.mxu0 0.0
    %1990 = vmatpush1.msra.mxu0 0.0
    %1991 = vmatprep.subr.mxu0 0.0
    %1992 = vmatpush1.msra.mxu0 0.0
    %1993 = vmatprep.subr.mxu0 0.0
    %1994 = vmatpush1.msra.mxu0 0.0
    %1995 = vmatprep.subr.mxu0 0.0
    %1996 = vmatpush1.msra.mxu0 0.0
    %1997 = vmatprep.subr.mxu0 0.0
    %1998 = vmatpush1.msra.mxu0 0.0
    %1999 = vmatprep.subr.mxu0 0.0
    %2000 = vmatpush1.msra.mxu0 0.0
    %2001 = vmatprep.subr.mxu0 0.0
    %2002 = vmatpush1.msra.mxu0 0.0
    %2003 = vmatprep.subr.mxu0 0.0
    %2004 = vmatpush1.msra.mxu0 0.0
    %2005 = vmatprep.subr.mxu0 0.0
    %2006 = vmatpush1.msra.mxu0 0.0
    %2007 = vmatprep.subr.mxu0 0.0
    %2008 = vmatpush1.msra.mxu0 0.0
    %2009 = vmatprep.subr.mxu0 0.0
    %2010 = vmatpush1.msra.mxu0 0.0
    %2011 = vmatprep.subr.mxu0 0.0
    %2012 = vmatpush1.msra.mxu0 0.0
    %2013 = vmatprep.subr.mxu0 0.0
    %2014 = vmatpush1.msra.mxu0 0.0
    %2015 = vmatprep.subr.mxu0 0.0
    %2016 = vmatpush1.msra.mxu0 0.0
    %2017 = vmatprep.subr.mxu0 0.0
    %2018 = vmatpush1.msra.mxu0 0.0
    %2019 = vmatprep.subr.mxu0 0.0
    %2020 = vmatpush1.msra.mxu0 0.0
    %2021 = vmatprep.subr.mxu0 0.0
    %2022 = vmatpush1.msra.mxu0 0.0
    %2023 = vmatprep.subr.mxu0 0.0
    %2024 = vmatpush1.msra.mxu0 0.0
    %2025 = vmatprep.subr.mxu0 0.0
    %2026 = vmatpush1.msra.mxu0 0.0
    %2027 = vmatprep.subr.mxu0 0.0
    %2028 = vmatpush1.msra.mxu0 0.0
    %2029 = vmatprep.subr.mxu0 0.0
    %2030 = vmatpush1.msra.mxu0 0.0
    %2031 = vmatprep.subr.mxu0 0.0
    %2032 = vmatpush1.msra.mxu0 0.0
    %2033 = vmatprep.subr.mxu0 0.0
    %2034 = vmatpush1.msra.mxu0 0.0
    %2035 = vmatprep.subr.mxu0 0.0
    %2036 = vmatpush1.msra.mxu0 0.0
    %2037 = vmatprep.mubr.f32.mxu0 0.0
    %2038 = vmatmul.mubr.f32.gmra.mrb[0].mxu0 %v1968
    %v2039 = vpop.f32.mrb[0].mxu0
    %v2040 = vadd.f32 0.0, %v2039
    %v2041 = vpop.f32.mrb[0].mxu0
    %2042 = vmatprep.mubr.f32.mxu0 0.0
    %2043 = vmatmul.mubr.f32.gmra.mrb[0].mxu0 %v1971
    %v2044 = vpop.f32.mrb[0].mxu0
    %v2045 = vadd.f32 0.0, %v2044
    %v2046 = vpop.f32.mrb[0].mxu0
    %2047 = vdwg.mxu0
    %v2048 = vadd.f32 %v1881, %v2040
    %v2049 = vadd.f32 %v1886, %v2045
    %v2050 = vld [vmem:[#allocation16] sm:$0x1]
    %v2052 = vlaneseq
    %v2053 = vshrl.u32 %v2052, 7
    %v2054 = vsub.s32 0, %v2053
    %v2055 = vrot.slane %v2050, %v2054
    %v2057 = vadd.f32 %v2048, %v2055
    %v2058 = vadd.f32 %v2049, %v2055
    %v2059 = vld [vmem:[%s13] sm:$0xff]
    %v2060 = vld [vmem:[%s13 + $0x8] sm:$0xff]
    %v2061 = vld [vmem:[%s13 + $0x10] sm:$0xff]
    %v2062 = vld [vmem:[%s13 + $0x18] sm:$0xff]
    %v2063 = vld [vmem:[%s13 + $0x20] sm:$0xff]
    %v2064 = vld [vmem:[%s13 + $0x28] sm:$0xff]
    %v2065 = vld [vmem:[%s13 + $0x30] sm:$0xff]
    %v2066 = vld [vmem:[%s13 + $0x38] sm:$0xff]
    %v2067 = vld [vmem:[#allocation7] sm:$0xff]
    %vm2068 = vcmask 523264
    %v2069 = vsel %vm2068, %v2057, 0.0
    %v2070 = vsel %vm2068, %v2058, 0.0
    %v2071 = vadd.f32 %v2069, %v2070
    %v2072 = vrot.slane %v2071, 4
    %v2073 = vadd.f32 %v2071, %v2072
    %v2074 = vrot.slane %v2073, 2
    %v2075 = vadd.f32 %v2073, %v2074
    %v2076 = vrot.slane %v2075, 1
    %v2077 = vadd.f32 %v2075, %v2076
    %v2078 = vmul.f32 %v2057, %v2057
    %v2079 = vmul.f32 %v2058, %v2058
    %v2080 = vsel %vm2068, %v2078, 0.0
    %v2081 = vsel %vm2068, %v2079, 0.0
    %v2082 = vadd.f32 %v2080, %v2081
    %v2083 = vrot.slane %v2082, 4
    %v2084 = vadd.f32 %v2082, %v2083
    %v2085 = vrot.slane %v2084, 2
    %v2086 = vadd.f32 %v2084, %v2085
    %v2087 = vrot.slane %v2086, 1
    %v2088 = vadd.f32 %v2086, %v2087
    %v2090 = vsel %vm2068, %v2077, 0
    %2092 = vmatprep.subr.mxu0 0.0
    %2093 = vmatpush1.msra.mxu0 %v2059
    %2094 = vmatprep.subr.mxu0 0.0
    %2095 = vmatpush1.msra.mxu0 %v2060
    %2096 = vmatprep.subr.mxu0 0.0
    %2097 = vmatpush1.msra.mxu0 %v2061
    %2098 = vmatprep.subr.mxu0 0.0
    %2099 = vmatpush1.msra.mxu0 %v2062
    %2100 = vmatprep.subr.mxu0 0.0
    %2101 = vmatpush1.msra.mxu0 %v2063
    %2102 = vmatprep.subr.mxu0 0.0
    %2103 = vmatpush1.msra.mxu0 %v2064
    %2104 = vmatprep.subr.mxu0 0.0
    %2105 = vmatpush1.msra.mxu0 %v2065
    %2106 = vmatprep.subr.mxu0 0.0
    %2107 = vmatpush1.msra.mxu0 %v2066
    %2108 = vmatprep.subr.mxu0 0.0
    %2109 = vmatpush1.msra.mxu0 0.0
    %2110 = vmatprep.subr.mxu0 0.0
    %2111 = vmatpush1.msra.mxu0 0.0
    %2112 = vmatprep.subr.mxu0 0.0
    %2113 = vmatpush1.msra.mxu0 0.0
    %2114 = vmatprep.subr.mxu0 0.0
    %2115 = vmatpush1.msra.mxu0 0.0
    %2116 = vmatprep.subr.mxu0 0.0
    %2117 = vmatpush1.msra.mxu0 0.0
    %2118 = vmatprep.subr.mxu0 0.0
    %2119 = vmatpush1.msra.mxu0 0.0
    %2120 = vmatprep.subr.mxu0 0.0
    %2121 = vmatpush1.msra.mxu0 0.0
    %2122 = vmatprep.subr.mxu0 0.0
    %2123 = vmatpush1.msra.mxu0 0.0
    %2124 = vmatprep.subr.mxu0 0.0
    %2125 = vmatpush1.msra.mxu0 0.0
    %2126 = vmatprep.subr.mxu0 0.0
    %2127 = vmatpush1.msra.mxu0 0.0
    %2128 = vmatprep.subr.mxu0 0.0
    %2129 = vmatpush1.msra.mxu0 0.0
    %2130 = vmatprep.subr.mxu0 0.0
    %2131 = vmatpush1.msra.mxu0 0.0
    %2132 = vmatprep.subr.mxu0 0.0
    %2133 = vmatpush1.msra.mxu0 0.0
    %2134 = vmatprep.subr.mxu0 0.0
    %2135 = vmatpush1.msra.mxu0 0.0
    %2136 = vmatprep.subr.mxu0 0.0
    %2137 = vmatpush1.msra.mxu0 0.0
    %2138 = vmatprep.subr.mxu0 0.0
    %2139 = vmatpush1.msra.mxu0 0.0
    %2140 = vmatprep.subr.mxu0 0.0
    %2141 = vmatpush1.msra.mxu0 0.0
    %2142 = vmatprep.subr.mxu0 0.0
    %2143 = vmatpush1.msra.mxu0 0.0
    %2144 = vmatprep.subr.mxu0 0.0
    %2145 = vmatpush1.msra.mxu0 0.0
    %2146 = vmatprep.subr.mxu0 0.0
    %2147 = vmatpush1.msra.mxu0 0.0
    %2148 = vmatprep.subr.mxu0 0.0
    %2149 = vmatpush1.msra.mxu0 0.0
    %2150 = vmatprep.subr.mxu0 0.0
    %2151 = vmatpush1.msra.mxu0 0.0
    %2152 = vmatprep.subr.mxu0 0.0
    %2153 = vmatpush1.msra.mxu0 0.0
    %2154 = vmatprep.subr.mxu0 0.0
    %2155 = vmatpush1.msra.mxu0 0.0
    %2156 = vmatprep.mubr.f32.mxu0 0.0
    %2157 = vmatmul.mubr.f32.gmra.mrb[0].mxu0 %v2090
    %v2158 = vpop.f32.mrb[0].mxu0
    %v2159 = vadd.f32 0.0, %v2158
    %v2160 = vpop.f32.mrb[0].mxu0
    %2161 = vdwg.mxu0
    %v2163 = vsel %vm2068, %v2088, 0
    %2165 = vmatprep.subr.mxu0 0.0
    %2166 = vmatpush1.msra.mxu0 %v2059
    %2167 = vmatprep.subr.mxu0 0.0
    %2168 = vmatpush1.msra.mxu0 %v2060
    %2169 = vmatprep.subr.mxu0 0.0
    %2170 = vmatpush1.msra.mxu0 %v2061
    %2171 = vmatprep.subr.mxu0 0.0
    %2172 = vmatpush1.msra.mxu0 %v2062
    %2173 = vmatprep.subr.mxu0 0.0
    %2174 = vmatpush1.msra.mxu0 %v2063
    %2175 = vmatprep.subr.mxu0 0.0
    %2176 = vmatpush1.msra.mxu0 %v2064
    %2177 = vmatprep.subr.mxu0 0.0
    %2178 = vmatpush1.msra.mxu0 %v2065
    %2179 = vmatprep.subr.mxu0 0.0
    %2180 = vmatpush1.msra.mxu0 %v2066
    %2181 = vmatprep.subr.mxu0 0.0
    %2182 = vmatpush1.msra.mxu0 0.0
    %2183 = vmatprep.subr.mxu0 0.0
    %2184 = vmatpush1.msra.mxu0 0.0
    %2185 = vmatprep.subr.mxu0 0.0
    %2186 = vmatpush1.msra.mxu0 0.0
    %2187 = vmatprep.subr.mxu0 0.0
    %2188 = vmatpush1.msra.mxu0 0.0
    %2189 = vmatprep.subr.mxu0 0.0
    %2190 = vmatpush1.msra.mxu0 0.0
    %2191 = vmatprep.subr.mxu0 0.0
    %2192 = vmatpush1.msra.mxu0 0.0
    %2193 = vmatprep.subr.mxu0 0.0
    %2194 = vmatpush1.msra.mxu0 0.0
    %2195 = vmatprep.subr.mxu0 0.0
    %2196 = vmatpush1.msra.mxu0 0.0
    %2197 = vmatprep.subr.mxu0 0.0
    %2198 = vmatpush1.msra.mxu0 0.0
    %2199 = vmatprep.subr.mxu0 0.0
    %2200 = vmatpush1.msra.mxu0 0.0
    %2201 = vmatprep.subr.mxu0 0.0
    %2202 = vmatpush1.msra.mxu0 0.0
    %2203 = vmatprep.subr.mxu0 0.0
    %2204 = vmatpush1.msra.mxu0 0.0
    %2205 = vmatprep.subr.mxu0 0.0
    %2206 = vmatpush1.msra.mxu0 0.0
    %2207 = vmatprep.subr.mxu0 0.0
    %2208 = vmatpush1.msra.mxu0 0.0
    %2209 = vmatprep.subr.mxu0 0.0
    %2210 = vmatpush1.msra.mxu0 0.0
    %2211 = vmatprep.subr.mxu0 0.0
    %2212 = vmatpush1.msra.mxu0 0.0
    %2213 = vmatprep.subr.mxu0 0.0
    %2214 = vmatpush1.msra.mxu0 0.0
    %2215 = vmatprep.subr.mxu0 0.0
    %2216 = vmatpush1.msra.mxu0 0.0
    %2217 = vmatprep.subr.mxu0 0.0
    %2218 = vmatpush1.msra.mxu0 0.0
    %2219 = vmatprep.subr.mxu0 0.0
    %2220 = vmatpush1.msra.mxu0 0.0
    %2221 = vmatprep.subr.mxu0 0.0
    %2222 = vmatpush1.msra.mxu0 0.0
    %2223 = vmatprep.subr.mxu0 0.0
    %2224 = vmatpush1.msra.mxu0 0.0
    %2225 = vmatprep.subr.mxu0 0.0
    %2226 = vmatpush1.msra.mxu0 0.0
    %2227 = vmatprep.subr.mxu0 0.0
    %2228 = vmatpush1.msra.mxu0 0.0
    %2229 = vmatprep.mubr.f32.mxu0 0.0
    %2230 = vmatmul.mubr.f32.gmra.mrb[0].mxu0 %v2163
    %v2231 = vpop.f32.mrb[0].mxu0
    %v2232 = vadd.f32 0.0, %v2231
    %v2233 = vpop.f32.mrb[0].mxu0
    %2234 = vdwg.mxu0
    %v2235 = vmul.f32 %v2159, 0.0078125
    %v2236 = vmul.f32 %v2232, 0.0078125
    %v2237 = vmul.f32 %v2235, %v2235
    %v2238 = vsub.f32 %v2236, %v2237
    %v2239 = vld [vmem:[#allocation17] sm:$0x1]
    %v2240 = vadd.f32 %v2238, 1e-05
    %v2241 = vrsqrt.pop %v2240
    %v2242 = vmul.f32 %v2239, %v2241
    %v2243 = vld [vmem:[#allocation19] sm:$0x1]
    %v2244 = vmul.f32 %v2235, %v2242
    %v2245 = vsub.f32 %v2243, %v2244
    %v2247 = vsel %vm1412, %v2242, 0
    %2249 = vmatprep.subr.mxu0 0.0
    %2250 = vmatpush1.msra.mxu0 %v2067
    %2251 = vmatprep.subr.mxu0 0.0
    %2252 = vmatpush1.msra.mxu0 0.0
    %2253 = vmatprep.subr.mxu0 0.0
    %2254 = vmatpush1.msra.mxu0 0.0
    %2255 = vmatprep.subr.mxu0 0.0
    %2256 = vmatpush1.msra.mxu0 0.0
    %2257 = vmatprep.subr.mxu0 0.0
    %2258 = vmatpush1.msra.mxu0 0.0
    %2259 = vmatprep.subr.mxu0 0.0
    %2260 = vmatpush1.msra.mxu0 0.0
    %2261 = vmatprep.subr.mxu0 0.0
    %2262 = vmatpush1.msra.mxu0 0.0
    %2263 = vmatprep.subr.mxu0 0.0
    %2264 = vmatpush1.msra.mxu0 0.0
    %2265 = vmatprep.subr.mxu0 0.0
    %2266 = vmatpush1.msra.mxu0 0.0
    %2267 = vmatprep.subr.mxu0 0.0
    %2268 = vmatpush1.msra.mxu0 0.0
    %2269 = vmatprep.subr.mxu0 0.0
    %2270 = vmatpush1.msra.mxu0 0.0
    %2271 = vmatprep.subr.mxu0 0.0
    %2272 = vmatpush1.msra.mxu0 0.0
    %2273 = vmatprep.subr.mxu0 0.0
    %2274 = vmatpush1.msra.mxu0 0.0
    %2275 = vmatprep.subr.mxu0 0.0
    %2276 = vmatpush1.msra.mxu0 0.0
    %2277 = vmatprep.subr.mxu0 0.0
    %2278 = vmatpush1.msra.mxu0 0.0
    %2279 = vmatprep.subr.mxu0 0.0
    %2280 = vmatpush1.msra.mxu0 0.0
    %2281 = vmatprep.subr.mxu0 0.0
    %2282 = vmatpush1.msra.mxu0 0.0
    %2283 = vmatprep.subr.mxu0 0.0
    %2284 = vmatpush1.msra.mxu0 0.0
    %2285 = vmatprep.subr.mxu0 0.0
    %2286 = vmatpush1.msra.mxu0 0.0
    %2287 = vmatprep.subr.mxu0 0.0
    %2288 = vmatpush1.msra.mxu0 0.0
    %2289 = vmatprep.subr.mxu0 0.0
    %2290 = vmatpush1.msra.mxu0 0.0
    %2291 = vmatprep.subr.mxu0 0.0
    %2292 = vmatpush1.msra.mxu0 0.0
    %2293 = vmatprep.subr.mxu0 0.0
    %2294 = vmatpush1.msra.mxu0 0.0
    %2295 = vmatprep.subr.mxu0 0.0
    %2296 = vmatpush1.msra.mxu0 0.0
    %2297 = vmatprep.subr.mxu0 0.0
    %2298 = vmatpush1.msra.mxu0 0.0
    %2299 = vmatprep.subr.mxu0 0.0
    %2300 = vmatpush1.msra.mxu0 0.0
    %2301 = vmatprep.subr.mxu0 0.0
    %2302 = vmatpush1.msra.mxu0 0.0
    %2303 = vmatprep.subr.mxu0 0.0
    %2304 = vmatpush1.msra.mxu0 0.0
    %2305 = vmatprep.subr.mxu0 0.0
    %2306 = vmatpush1.msra.mxu0 0.0
    %2307 = vmatprep.subr.mxu0 0.0
    %2308 = vmatpush1.msra.mxu0 0.0
    %2309 = vmatprep.subr.mxu0 0.0
    %2310 = vmatpush1.msra.mxu0 0.0
    %2311 = vmatprep.subr.mxu0 0.0
    %2312 = vmatpush1.msra.mxu0 0.0
    %2313 = vmatprep.mubr.f32.mxu0 0.0
    %2314 = vmatmul.mubr.f32.gmra.mrb[0].mxu0 %v2247
    %v2315 = vpop.f32.mrb[0].mxu0
    %v2316 = vadd.f32 0.0, %v2315
    %v2317 = vpop.f32.mrb[0].mxu0
    %2318 = vdwg.mxu0
    %v2320 = vsel %vm1412, %v2245, 0
    %2322 = vmatprep.subr.mxu0 0.0
    %2323 = vmatpush1.msra.mxu0 %v2067
    %2324 = vmatprep.subr.mxu0 0.0
    %2325 = vmatpush1.msra.mxu0 0.0
    %2326 = vmatprep.subr.mxu0 0.0
    %2327 = vmatpush1.msra.mxu0 0.0
    %2328 = vmatprep.subr.mxu0 0.0
    %2329 = vmatpush1.msra.mxu0 0.0
    %2330 = vmatprep.subr.mxu0 0.0
    %2331 = vmatpush1.msra.mxu0 0.0
    %2332 = vmatprep.subr.mxu0 0.0
    %2333 = vmatpush1.msra.mxu0 0.0
    %2334 = vmatprep.subr.mxu0 0.0
    %2335 = vmatpush1.msra.mxu0 0.0
    %2336 = vmatprep.subr.mxu0 0.0
    %2337 = vmatpush1.msra.mxu0 0.0
    %2338 = vmatprep.subr.mxu0 0.0
    %2339 = vmatpush1.msra.mxu0 0.0
    %2340 = vmatprep.subr.mxu0 0.0
    %2341 = vmatpush1.msra.mxu0 0.0
    %2342 = vmatprep.subr.mxu0 0.0
    %2343 = vmatpush1.msra.mxu0 0.0
    %2344 = vmatprep.subr.mxu0 0.0
    %2345 = vmatpush1.msra.mxu0 0.0
    %2346 = vmatprep.subr.mxu0 0.0
    %2347 = vmatpush1.msra.mxu0 0.0
    %2348 = vmatprep.subr.mxu0 0.0
    %2349 = vmatpush1.msra.mxu0 0.0
    %2350 = vmatprep.subr.mxu0 0.0
    %2351 = vmatpush1.msra.mxu0 0.0
    %2352 = vmatprep.subr.mxu0 0.0
    %2353 = vmatpush1.msra.mxu0 0.0
    %2354 = vmatprep.subr.mxu0 0.0
    %2355 = vmatpush1.msra.mxu0 0.0
    %2356 = vmatprep.subr.mxu0 0.0
    %2357 = vmatpush1.msra.mxu0 0.0
    %2358 = vmatprep.subr.mxu0 0.0
    %2359 = vmatpush1.msra.mxu0 0.0
    %2360 = vmatprep.subr.mxu0 0.0
    %2361 = vmatpush1.msra.mxu0 0.0
    %2362 = vmatprep.subr.mxu0 0.0
    %2363 = vmatpush1.msra.mxu0 0.0
    %2364 = vmatprep.subr.mxu0 0.0
    %2365 = vmatpush1.msra.mxu0 0.0
    %2366 = vmatprep.subr.mxu0 0.0
    %2367 = vmatpush1.msra.mxu0 0.0
    %2368 = vmatprep.subr.mxu0 0.0
    %2369 = vmatpush1.msra.mxu0 0.0
    %2370 = vmatprep.subr.mxu0 0.0
    %2371 = vmatpush1.msra.mxu0 0.0
    %2372 = vmatprep.subr.mxu0 0.0
    %2373 = vmatpush1.msra.mxu0 0.0
    %2374 = vmatprep.subr.mxu0 0.0
    %2375 = vmatpush1.msra.mxu0 0.0
    %2376 = vmatprep.subr.mxu0 0.0
    %2377 = vmatpush1.msra.mxu0 0.0
    %2378 = vmatprep.subr.mxu0 0.0
    %2379 = vmatpush1.msra.mxu0 0.0
    %2380 = vmatprep.subr.mxu0 0.0
    %2381 = vmatpush1.msra.mxu0 0.0
    %2382 = vmatprep.subr.mxu0 0.0
    %2383 = vmatpush1.msra.mxu0 0.0
    %2384 = vmatprep.subr.mxu0 0.0
    %2385 = vmatpush1.msra.mxu0 0.0
    %2386 = vmatprep.mubr.f32.mxu0 0.0
    %2387 = vmatmul.mubr.f32.gmra.mrb[0].mxu0 %v2320
    %v2388 = vpop.f32.mrb[0].mxu0
    %v2389 = vadd.f32 0.0, %v2388
    %v2390 = vpop.f32.mrb[0].mxu0
    %2391 = vdwg.mxu0
    %v2392 = vlaneseq
    %v2393 = vshrl.u32 %v2392, 7
    %v2394 = vsub.s32 0, %v2393
    %v2395 = vrot.slane %v2316, %v2394
    %v2396 = vmul.f32 %v2057, %v2395
    %v2397 = vmul.f32 %v2058, %v2395
    %v2398 = vlaneseq
    %v2399 = vshrl.u32 %v2398, 7
    %v2400 = vsub.s32 0, %v2399
    %v2401 = vrot.slane %v2389, %v2400
    %v2402 = vadd.f32 %v2396, %v2401
    %v2403 = vadd.f32 %v2397, %v2401
    %v2404 = vmax.f32 %v2402, 0.0
    %v2405 = vmax.f32 %v2403, 0.0
    %v2406 = vld [vmem:[%s39] sm:$0xff]
    %v2407 = vld [vmem:[%s39 + $0x8] sm:$0xff]
    %v2408 = vld [vmem:[#allocation20] sm:$0xff]
    %v2409 = vld [vmem:[#allocation20 + $0x8] sm:$0xff]
    %v2410 = vld [vmem:[#allocation20 + $0x10] sm:$0xff]
    %v2411 = vld [vmem:[#allocation20 + $0x18] sm:$0xff]
    %v2412 = vld [vmem:[#allocation20 + $0x20] sm:$0xff]
    %v2413 = vld [vmem:[#allocation20 + $0x28] sm:$0xff]
    %v2414 = vld [vmem:[#allocation20 + $0x30] sm:$0xff]
    %v2415 = vld [vmem:[#allocation20 + $0x38] sm:$0xff]
    %v2417 = vsel %vm2068, %v2404, 0
    %v2420 = vsel %vm2068, %v2405, 0
    %2422 = vmatprep.subr.mxu0 0.0
    %2423 = vmatpush1.msra.mxu0 %v2408
    %2424 = vmatprep.subr.mxu0 0.0
    %2425 = vmatpush1.msra.mxu0 %v2409
    %2426 = vmatprep.subr.mxu0 0.0
    %2427 = vmatpush1.msra.mxu0 %v2410
    %2428 = vmatprep.subr.mxu0 0.0
    %2429 = vmatpush1.msra.mxu0 %v2411
    %2430 = vmatprep.subr.mxu0 0.0
    %2431 = vmatpush1.msra.mxu0 %v2412
    %2432 = vmatprep.subr.mxu0 0.0
    %2433 = vmatpush1.msra.mxu0 %v2413
    %2434 = vmatprep.subr.mxu0 0.0
    %2435 = vmatpush1.msra.mxu0 %v2414
    %2436 = vmatprep.subr.mxu0 0.0
    %2437 = vmatpush1.msra.mxu0 %v2415
    %2438 = vmatprep.subr.mxu0 0.0
    %2439 = vmatpush1.msra.mxu0 0.0
    %2440 = vmatprep.subr.mxu0 0.0
    %2441 = vmatpush1.msra.mxu0 0.0
    %2442 = vmatprep.subr.mxu0 0.0
    %2443 = vmatpush1.msra.mxu0 0.0
    %2444 = vmatprep.subr.mxu0 0.0
    %2445 = vmatpush1.msra.mxu0 0.0
    %2446 = vmatprep.subr.mxu0 0.0
    %2447 = vmatpush1.msra.mxu0 0.0
    %2448 = vmatprep.subr.mxu0 0.0
    %2449 = vmatpush1.msra.mxu0 0.0
    %2450 = vmatprep.subr.mxu0 0.0
    %2451 = vmatpush1.msra.mxu0 0.0
    %2452 = vmatprep.subr.mxu0 0.0
    %2453 = vmatpush1.msra.mxu0 0.0
    %2454 = vmatprep.subr.mxu0 0.0
    %2455 = vmatpush1.msra.mxu0 0.0
    %2456 = vmatprep.subr.mxu0 0.0
    %2457 = vmatpush1.msra.mxu0 0.0
    %2458 = vmatprep.subr.mxu0 0.0
    %2459 = vmatpush1.msra.mxu0 0.0
    %2460 = vmatprep.subr.mxu0 0.0
    %2461 = vmatpush1.msra.mxu0 0.0
    %2462 = vmatprep.subr.mxu0 0.0
    %2463 = vmatpush1.msra.mxu0 0.0
    %2464 = vmatprep.subr.mxu0 0.0
    %2465 = vmatpush1.msra.mxu0 0.0
    %2466 = vmatprep.subr.mxu0 0.0
    %2467 = vmatpush1.msra.mxu0 0.0
    %2468 = vmatprep.subr.mxu0 0.0
    %2469 = vmatpush1.msra.mxu0 0.0
    %2470 = vmatprep.subr.mxu0 0.0
    %2471 = vmatpush1.msra.mxu0 0.0
    %2472 = vmatprep.subr.mxu0 0.0
    %2473 = vmatpush1.msra.mxu0 0.0
    %2474 = vmatprep.subr.mxu0 0.0
    %2475 = vmatpush1.msra.mxu0 0.0
    %2476 = vmatprep.subr.mxu0 0.0
    %2477 = vmatpush1.msra.mxu0 0.0
    %2478 = vmatprep.subr.mxu0 0.0
    %2479 = vmatpush1.msra.mxu0 0.0
    %2480 = vmatprep.subr.mxu0 0.0
    %2481 = vmatpush1.msra.mxu0 0.0
    %2482 = vmatprep.subr.mxu0 0.0
    %2483 = vmatpush1.msra.mxu0 0.0
    %2484 = vmatprep.subr.mxu0 0.0
    %2485 = vmatpush1.msra.mxu0 0.0
    %2486 = vmatprep.mubr.f32.mxu0 0.0
    %2487 = vmatmul.mubr.f32.gmra.mrb[0].mxu0 %v2417
    %v2488 = vpop.f32.mrb[0].mxu0
    %v2489 = vadd.f32 0.0, %v2488
    %v2490 = vpop.f32.mrb[0].mxu0
    %2491 = vmatprep.mubr.f32.mxu0 0.0
    %2492 = vmatmul.mubr.f32.gmra.mrb[0].mxu0 %v2420
    %v2493 = vpop.f32.mrb[0].mxu0
    %v2494 = vadd.f32 0.0, %v2493
    %v2495 = vpop.f32.mrb[0].mxu0
    %2496 = vdwg.mxu0
    %s2497 = scalar_lea.vmem %s39, 16
    %v2498 = vld [vmem:[%s2497] sm:$0xff]
    %v2499 = vld [vmem:[%s2497 + $0x8] sm:$0xff]
    %s2500 = scalar_lea.vmem [#allocation20], 64
    %v2501 = vld [vmem:[%s2500] sm:$0xff]
    %v2502 = vld [vmem:[%s2500 + $0x8] sm:$0xff]
    %v2503 = vld [vmem:[%s2500 + $0x10] sm:$0xff]
    %v2504 = vld [vmem:[%s2500 + $0x18] sm:$0xff]
    %v2505 = vld [vmem:[%s2500 + $0x20] sm:$0xff]
    %v2506 = vld [vmem:[%s2500 + $0x28] sm:$0xff]
    %v2507 = vld [vmem:[%s2500 + $0x30] sm:$0xff]
    %v2508 = vld [vmem:[%s2500 + $0x38] sm:$0xff]
    %2509 = vmatprep.subr.mxu0 0.0
    %2510 = vmatpush1.msra.mxu0 %v2501
    %2511 = vmatprep.subr.mxu0 0.0
    %2512 = vmatpush1.msra.mxu0 %v2502
    %2513 = vmatprep.subr.mxu0 0.0
    %2514 = vmatpush1.msra.mxu0 %v2503
    %2515 = vmatprep.subr.mxu0 0.0
    %2516 = vmatpush1.msra.mxu0 %v2504
    %2517 = vmatprep.subr.mxu0 0.0
    %2518 = vmatpush1.msra.mxu0 %v2505
    %2519 = vmatprep.subr.mxu0 0.0
    %2520 = vmatpush1.msra.mxu0 %v2506
    %2521 = vmatprep.subr.mxu0 0.0
    %2522 = vmatpush1.msra.mxu0 %v2507
    %2523 = vmatprep.subr.mxu0 0.0
    %2524 = vmatpush1.msra.mxu0 %v2508
    %2525 = vmatprep.subr.mxu0 0.0
    %2526 = vmatpush1.msra.mxu0 0.0
    %2527 = vmatprep.subr.mxu0 0.0
    %2528 = vmatpush1.msra.mxu0 0.0
    %2529 = vmatprep.subr.mxu0 0.0
    %2530 = vmatpush1.msra.mxu0 0.0
    %2531 = vmatprep.subr.mxu0 0.0
    %2532 = vmatpush1.msra.mxu0 0.0
    %2533 = vmatprep.subr.mxu0 0.0
    %2534 = vmatpush1.msra.mxu0 0.0
    %2535 = vmatprep.subr.mxu0 0.0
    %2536 = vmatpush1.msra.mxu0 0.0
    %2537 = vmatprep.subr.mxu0 0.0
    %2538 = vmatpush1.msra.mxu0 0.0
    %2539 = vmatprep.subr.mxu0 0.0
    %2540 = vmatpush1.msra.mxu0 0.0
    %2541 = vmatprep.subr.mxu0 0.0
    %2542 = vmatpush1.msra.mxu0 0.0
    %2543 = vmatprep.subr.mxu0 0.0
    %2544 = vmatpush1.msra.mxu0 0.0
    %2545 = vmatprep.subr.mxu0 0.0
    %2546 = vmatpush1.msra.mxu0 0.0
    %2547 = vmatprep.subr.mxu0 0.0
    %2548 = vmatpush1.msra.mxu0 0.0
    %2549 = vmatprep.subr.mxu0 0.0
    %2550 = vmatpush1.msra.mxu0 0.0
    %2551 = vmatprep.subr.mxu0 0.0
    %2552 = vmatpush1.msra.mxu0 0.0
    %2553 = vmatprep.subr.mxu0 0.0
    %2554 = vmatpush1.msra.mxu0 0.0
    %2555 = vmatprep.subr.mxu0 0.0
    %2556 = vmatpush1.msra.mxu0 0.0
    %2557 = vmatprep.subr.mxu0 0.0
    %2558 = vmatpush1.msra.mxu0 0.0
    %2559 = vmatprep.subr.mxu0 0.0
    %2560 = vmatpush1.msra.mxu0 0.0
    %2561 = vmatprep.subr.mxu0 0.0
    %2562 = vmatpush1.msra.mxu0 0.0
    %2563 = vmatprep.subr.mxu0 0.0
    %2564 = vmatpush1.msra.mxu0 0.0
    %2565 = vmatprep.subr.mxu0 0.0
    %2566 = vmatpush1.msra.mxu0 0.0
    %2567 = vmatprep.subr.mxu0 0.0
    %2568 = vmatpush1.msra.mxu0 0.0
    %2569 = vmatprep.subr.mxu0 0.0
    %2570 = vmatpush1.msra.mxu0 0.0
    %2571 = vmatprep.subr.mxu0 0.0
    %2572 = vmatpush1.msra.mxu0 0.0
    %2573 = vmatprep.mubr.f32.mxu0 0.0
    %2574 = vmatmul.mubr.f32.gmra.mrb[0].mxu0 %v2417
    %v2575 = vpop.f32.mrb[0].mxu0
    %v2576 = vadd.f32 0.0, %v2575
    %v2577 = vpop.f32.mrb[0].mxu0
    %2578 = vmatprep.mubr.f32.mxu0 0.0
    %2579 = vmatmul.mubr.f32.gmra.mrb[0].mxu0 %v2420
    %v2580 = vpop.f32.mrb[0].mxu0
    %v2581 = vadd.f32 0.0, %v2580
    %v2582 = vpop.f32.mrb[0].mxu0
    %2583 = vdwg.mxu0
    %v2585 = vsel %vm625, %v2498, 0
    %v2588 = vsel %vm625, %v2499, 0
    %2590 = vmatprep.subr.mxu0 0.0
    %2591 = vmatpush1.msra.mxu0 %v2576
    %2592 = vmatprep.subr.mxu0 0.0
    %2593 = vmatpush1.msra.mxu0 %v2581
    %2594 = vmatprep.subr.mxu0 0.0
    %2595 = vmatpush1.msra.mxu0 0.0
    %2596 = vmatprep.subr.mxu0 0.0
    %2597 = vmatpush1.msra.mxu0 0.0
    %2598 = vmatprep.subr.mxu0 0.0
    %2599 = vmatpush1.msra.mxu0 0.0
    %2600 = vmatprep.subr.mxu0 0.0
    %2601 = vmatpush1.msra.mxu0 0.0
    %2602 = vmatprep.subr.mxu0 0.0
    %2603 = vmatpush1.msra.mxu0 0.0
    %2604 = vmatprep.subr.mxu0 0.0
    %2605 = vmatpush1.msra.mxu0 0.0
    %2606 = vmatprep.subr.mxu0 0.0
    %2607 = vmatpush1.msra.mxu0 0.0
    %2608 = vmatprep.subr.mxu0 0.0
    %2609 = vmatpush1.msra.mxu0 0.0
    %2610 = vmatprep.subr.mxu0 0.0
    %2611 = vmatpush1.msra.mxu0 0.0
    %2612 = vmatprep.subr.mxu0 0.0
    %2613 = vmatpush1.msra.mxu0 0.0
    %2614 = vmatprep.subr.mxu0 0.0
    %2615 = vmatpush1.msra.mxu0 0.0
    %2616 = vmatprep.subr.mxu0 0.0
    %2617 = vmatpush1.msra.mxu0 0.0
    %2618 = vmatprep.subr.mxu0 0.0
    %2619 = vmatpush1.msra.mxu0 0.0
    %2620 = vmatprep.subr.mxu0 0.0
    %2621 = vmatpush1.msra.mxu0 0.0
    %2622 = vmatprep.subr.mxu0 0.0
    %2623 = vmatpush1.msra.mxu0 0.0
    %2624 = vmatprep.subr.mxu0 0.0
    %2625 = vmatpush1.msra.mxu0 0.0
    %2626 = vmatprep.subr.mxu0 0.0
    %2627 = vmatpush1.msra.mxu0 0.0
    %2628 = vmatprep.subr.mxu0 0.0
    %2629 = vmatpush1.msra.mxu0 0.0
    %2630 = vmatprep.subr.mxu0 0.0
    %2631 = vmatpush1.msra.mxu0 0.0
    %2632 = vmatprep.subr.mxu0 0.0
    %2633 = vmatpush1.msra.mxu0 0.0
    %2634 = vmatprep.subr.mxu0 0.0
    %2635 = vmatpush1.msra.mxu0 0.0
    %2636 = vmatprep.subr.mxu0 0.0
    %2637 = vmatpush1.msra.mxu0 0.0
    %2638 = vmatprep.subr.mxu0 0.0
    %2639 = vmatpush1.msra.mxu0 0.0
    %2640 = vmatprep.subr.mxu0 0.0
    %2641 = vmatpush1.msra.mxu0 0.0
    %2642 = vmatprep.subr.mxu0 0.0
    %2643 = vmatpush1.msra.mxu0 0.0
    %2644 = vmatprep.subr.mxu0 0.0
    %2645 = vmatpush1.msra.mxu0 0.0
    %2646 = vmatprep.subr.mxu0 0.0
    %2647 = vmatpush1.msra.mxu0 0.0
    %2648 = vmatprep.subr.mxu0 0.0
    %2649 = vmatpush1.msra.mxu0 0.0
    %2650 = vmatprep.subr.mxu0 0.0
    %2651 = vmatpush1.msra.mxu0 0.0
    %2652 = vmatprep.subr.mxu0 0.0
    %2653 = vmatpush1.msra.mxu0 0.0
    %2654 = vmatprep.mubr.f32.mxu0 0.0
    %2655 = vmatmul.mubr.f32.gmra.mrb[0].mxu0 %v2585
    %v2656 = vpop.f32.mrb[0].mxu0
    %v2657 = vadd.f32 0.0, %v2656
    %v2658 = vpop.f32.mrb[0].mxu0
    %2659 = vmatprep.mubr.f32.mxu0 0.0
    %2660 = vmatmul.mubr.f32.gmra.mrb[0].mxu0 %v2588
    %v2661 = vpop.f32.mrb[0].mxu0
    %v2662 = vadd.f32 0.0, %v2661
    %v2663 = vpop.f32.mrb[0].mxu0
    %2664 = vdwg.mxu0
    %v2666 = vsel %vm625, %v2406, 0
    %v2669 = vsel %vm625, %v2407, 0
    %2671 = vmatprep.subr.mxu0 0.0
    %2672 = vmatpush1.msra.mxu0 %v2489
    %2673 = vmatprep.subr.mxu0 0.0
    %2674 = vmatpush1.msra.mxu0 %v2494
    %2675 = vmatprep.subr.mxu0 0.0
    %2676 = vmatpush1.msra.mxu0 0.0
    %2677 = vmatprep.subr.mxu0 0.0
    %2678 = vmatpush1.msra.mxu0 0.0
    %2679 = vmatprep.subr.mxu0 0.0
    %2680 = vmatpush1.msra.mxu0 0.0
    %2681 = vmatprep.subr.mxu0 0.0
    %2682 = vmatpush1.msra.mxu0 0.0
    %2683 = vmatprep.subr.mxu0 0.0
    %2684 = vmatpush1.msra.mxu0 0.0
    %2685 = vmatprep.subr.mxu0 0.0
    %2686 = vmatpush1.msra.mxu0 0.0
    %2687 = vmatprep.subr.mxu0 0.0
    %2688 = vmatpush1.msra.mxu0 0.0
    %2689 = vmatprep.subr.mxu0 0.0
    %2690 = vmatpush1.msra.mxu0 0.0
    %2691 = vmatprep.subr.mxu0 0.0
    %2692 = vmatpush1.msra.mxu0 0.0
    %2693 = vmatprep.subr.mxu0 0.0
    %2694 = vmatpush1.msra.mxu0 0.0
    %2695 = vmatprep.subr.mxu0 0.0
    %2696 = vmatpush1.msra.mxu0 0.0
    %2697 = vmatprep.subr.mxu0 0.0
    %2698 = vmatpush1.msra.mxu0 0.0
    %2699 = vmatprep.subr.mxu0 0.0
    %2700 = vmatpush1.msra.mxu0 0.0
    %2701 = vmatprep.subr.mxu0 0.0
    %2702 = vmatpush1.msra.mxu0 0.0
    %2703 = vmatprep.subr.mxu0 0.0
    %2704 = vmatpush1.msra.mxu0 0.0
    %2705 = vmatprep.subr.mxu0 0.0
    %2706 = vmatpush1.msra.mxu0 0.0
    %2707 = vmatprep.subr.mxu0 0.0
    %2708 = vmatpush1.msra.mxu0 0.0
    %2709 = vmatprep.subr.mxu0 0.0
    %2710 = vmatpush1.msra.mxu0 0.0
    %2711 = vmatprep.subr.mxu0 0.0
    %2712 = vmatpush1.msra.mxu0 0.0
    %2713 = vmatprep.subr.mxu0 0.0
    %2714 = vmatpush1.msra.mxu0 0.0
    %2715 = vmatprep.subr.mxu0 0.0
    %2716 = vmatpush1.msra.mxu0 0.0
    %2717 = vmatprep.subr.mxu0 0.0
    %2718 = vmatpush1.msra.mxu0 0.0
    %2719 = vmatprep.subr.mxu0 0.0
    %2720 = vmatpush1.msra.mxu0 0.0
    %2721 = vmatprep.subr.mxu0 0.0
    %2722 = vmatpush1.msra.mxu0 0.0
    %2723 = vmatprep.subr.mxu0 0.0
    %2724 = vmatpush1.msra.mxu0 0.0
    %2725 = vmatprep.subr.mxu0 0.0
    %2726 = vmatpush1.msra.mxu0 0.0
    %2727 = vmatprep.subr.mxu0 0.0
    %2728 = vmatpush1.msra.mxu0 0.0
    %2729 = vmatprep.subr.mxu0 0.0
    %2730 = vmatpush1.msra.mxu0 0.0
    %2731 = vmatprep.subr.mxu0 0.0
    %2732 = vmatpush1.msra.mxu0 0.0
    %2733 = vmatprep.subr.mxu0 0.0
    %2734 = vmatpush1.msra.mxu0 0.0
    %2735 = vmatprep.mubr.f32.mxu0 0.0
    %2736 = vmatmul.mubr.f32.gmra.mrb[0].mxu0 %v2666
    %v2737 = vpop.f32.mrb[0].mxu0
    %v2738 = vadd.f32 %v2657, %v2737
    %v2739 = vpop.f32.mrb[0].mxu0
    %2740 = vmatprep.mubr.f32.mxu0 0.0
    %2741 = vmatmul.mubr.f32.gmra.mrb[0].mxu0 %v2669
    %v2742 = vpop.f32.mrb[0].mxu0
    %v2743 = vadd.f32 %v2662, %v2742
    %v2744 = vpop.f32.mrb[0].mxu0
    %2745 = vdwg.mxu0
    %s2746 = scalar_lea.vmem %s39, 32
    %v2747 = vld [vmem:[%s2746] sm:$0xff]
    %v2748 = vld [vmem:[%s2746 + $0x8] sm:$0xff]
    %s2749 = scalar_lea.vmem [#allocation20], 128
    %v2750 = vld [vmem:[%s2749] sm:$0xff]
    %v2751 = vld [vmem:[%s2749 + $0x8] sm:$0xff]
    %v2752 = vld [vmem:[%s2749 + $0x10] sm:$0xff]
    %v2753 = vld [vmem:[%s2749 + $0x18] sm:$0xff]
    %v2754 = vld [vmem:[%s2749 + $0x20] sm:$0xff]
    %v2755 = vld [vmem:[%s2749 + $0x28] sm:$0xff]
    %v2756 = vld [vmem:[%s2749 + $0x30] sm:$0xff]
    %v2757 = vld [vmem:[%s2749 + $0x38] sm:$0xff]
    %2758 = vmatprep.subr.mxu0 0.0
    %2759 = vmatpush1.msra.mxu0 %v2750
    %2760 = vmatprep.subr.mxu0 0.0
    %2761 = vmatpush1.msra.mxu0 %v2751
    %2762 = vmatprep.subr.mxu0 0.0
    %2763 = vmatpush1.msra.mxu0 %v2752
    %2764 = vmatprep.subr.mxu0 0.0
    %2765 = vmatpush1.msra.mxu0 %v2753
    %2766 = vmatprep.subr.mxu0 0.0
    %2767 = vmatpush1.msra.mxu0 %v2754
    %2768 = vmatprep.subr.mxu0 0.0
    %2769 = vmatpush1.msra.mxu0 %v2755
    %2770 = vmatprep.subr.mxu0 0.0
    %2771 = vmatpush1.msra.mxu0 %v2756
    %2772 = vmatprep.subr.mxu0 0.0
    %2773 = vmatpush1.msra.mxu0 %v2757
    %2774 = vmatprep.subr.mxu0 0.0
    %2775 = vmatpush1.msra.mxu0 0.0
    %2776 = vmatprep.subr.mxu0 0.0
    %2777 = vmatpush1.msra.mxu0 0.0
    %2778 = vmatprep.subr.mxu0 0.0
    %2779 = vmatpush1.msra.mxu0 0.0
    %2780 = vmatprep.subr.mxu0 0.0
    %2781 = vmatpush1.msra.mxu0 0.0
    %2782 = vmatprep.subr.mxu0 0.0
    %2783 = vmatpush1.msra.mxu0 0.0
    %2784 = vmatprep.subr.mxu0 0.0
    %2785 = vmatpush1.msra.mxu0 0.0
    %2786 = vmatprep.subr.mxu0 0.0
    %2787 = vmatpush1.msra.mxu0 0.0
    %2788 = vmatprep.subr.mxu0 0.0
    %2789 = vmatpush1.msra.mxu0 0.0
    %2790 = vmatprep.subr.mxu0 0.0
    %2791 = vmatpush1.msra.mxu0 0.0
    %2792 = vmatprep.subr.mxu0 0.0
    %2793 = vmatpush1.msra.mxu0 0.0
    %2794 = vmatprep.subr.mxu0 0.0
    %2795 = vmatpush1.msra.mxu0 0.0
    %2796 = vmatprep.subr.mxu0 0.0
    %2797 = vmatpush1.msra.mxu0 0.0
    %2798 = vmatprep.subr.mxu0 0.0
    %2799 = vmatpush1.msra.mxu0 0.0
    %2800 = vmatprep.subr.mxu0 0.0
    %2801 = vmatpush1.msra.mxu0 0.0
    %2802 = vmatprep.subr.mxu0 0.0
    %2803 = vmatpush1.msra.mxu0 0.0
    %2804 = vmatprep.subr.mxu0 0.0
    %2805 = vmatpush1.msra.mxu0 0.0
    %2806 = vmatprep.subr.mxu0 0.0
    %2807 = vmatpush1.msra.mxu0 0.0
    %2808 = vmatprep.subr.mxu0 0.0
    %2809 = vmatpush1.msra.mxu0 0.0
    %2810 = vmatprep.subr.mxu0 0.0
    %2811 = vmatpush1.msra.mxu0 0.0
    %2812 = vmatprep.subr.mxu0 0.0
    %2813 = vmatpush1.msra.mxu0 0.0
    %2814 = vmatprep.subr.mxu0 0.0
    %2815 = vmatpush1.msra.mxu0 0.0
    %2816 = vmatprep.subr.mxu0 0.0
    %2817 = vmatpush1.msra.mxu0 0.0
    %2818 = vmatprep.subr.mxu0 0.0
    %2819 = vmatpush1.msra.mxu0 0.0
    %2820 = vmatprep.subr.mxu0 0.0
    %2821 = vmatpush1.msra.mxu0 0.0
    %2822 = vmatprep.mubr.f32.mxu0 0.0
    %2823 = vmatmul.mubr.f32.gmra.mrb[0].mxu0 %v2417
    %v2824 = vpop.f32.mrb[0].mxu0
    %v2825 = vadd.f32 0.0, %v2824
    %v2826 = vpop.f32.mrb[0].mxu0
    %2827 = vmatprep.mubr.f32.mxu0 0.0
    %2828 = vmatmul.mubr.f32.gmra.mrb[0].mxu0 %v2420
    %v2829 = vpop.f32.mrb[0].mxu0
    %v2830 = vadd.f32 0.0, %v2829
    %v2831 = vpop.f32.mrb[0].mxu0
    %2832 = vdwg.mxu0
    %v2834 = vsel %vm625, %v2747, 0
    %v2837 = vsel %vm625, %v2748, 0
    %2839 = vmatprep.subr.mxu0 0.0
    %2840 = vmatpush1.msra.mxu0 %v2825
    %2841 = vmatprep.subr.mxu0 0.0
    %2842 = vmatpush1.msra.mxu0 %v2830
    %2843 = vmatprep.subr.mxu0 0.0
    %2844 = vmatpush1.msra.mxu0 0.0
    %2845 = vmatprep.subr.mxu0 0.0
    %2846 = vmatpush1.msra.mxu0 0.0
    %2847 = vmatprep.subr.mxu0 0.0
    %2848 = vmatpush1.msra.mxu0 0.0
    %2849 = vmatprep.subr.mxu0 0.0
    %2850 = vmatpush1.msra.mxu0 0.0
    %2851 = vmatprep.subr.mxu0 0.0
    %2852 = vmatpush1.msra.mxu0 0.0
    %2853 = vmatprep.subr.mxu0 0.0
    %2854 = vmatpush1.msra.mxu0 0.0
    %2855 = vmatprep.subr.mxu0 0.0
    %2856 = vmatpush1.msra.mxu0 0.0
    %2857 = vmatprep.subr.mxu0 0.0
    %2858 = vmatpush1.msra.mxu0 0.0
    %2859 = vmatprep.subr.mxu0 0.0
    %2860 = vmatpush1.msra.mxu0 0.0
    %2861 = vmatprep.subr.mxu0 0.0
    %2862 = vmatpush1.msra.mxu0 0.0
    %2863 = vmatprep.subr.mxu0 0.0
    %2864 = vmatpush1.msra.mxu0 0.0
    %2865 = vmatprep.subr.mxu0 0.0
    %2866 = vmatpush1.msra.mxu0 0.0
    %2867 = vmatprep.subr.mxu0 0.0
    %2868 = vmatpush1.msra.mxu0 0.0
    %2869 = vmatprep.subr.mxu0 0.0
    %2870 = vmatpush1.msra.mxu0 0.0
    %2871 = vmatprep.subr.mxu0 0.0
    %2872 = vmatpush1.msra.mxu0 0.0
    %2873 = vmatprep.subr.mxu0 0.0
    %2874 = vmatpush1.msra.mxu0 0.0
    %2875 = vmatprep.subr.mxu0 0.0
    %2876 = vmatpush1.msra.mxu0 0.0
    %2877 = vmatprep.subr.mxu0 0.0
    %2878 = vmatpush1.msra.mxu0 0.0
    %2879 = vmatprep.subr.mxu0 0.0
    %2880 = vmatpush1.msra.mxu0 0.0
    %2881 = vmatprep.subr.mxu0 0.0
    %2882 = vmatpush1.msra.mxu0 0.0
    %2883 = vmatprep.subr.mxu0 0.0
    %2884 = vmatpush1.msra.mxu0 0.0
    %2885 = vmatprep.subr.mxu0 0.0
    %2886 = vmatpush1.msra.mxu0 0.0
    %2887 = vmatprep.subr.mxu0 0.0
    %2888 = vmatpush1.msra.mxu0 0.0
    %2889 = vmatprep.subr.mxu0 0.0
    %2890 = vmatpush1.msra.mxu0 0.0
    %2891 = vmatprep.subr.mxu0 0.0
    %2892 = vmatpush1.msra.mxu0 0.0
    %2893 = vmatprep.subr.mxu0 0.0
    %2894 = vmatpush1.msra.mxu0 0.0
    %2895 = vmatprep.subr.mxu0 0.0
    %2896 = vmatpush1.msra.mxu0 0.0
    %2897 = vmatprep.subr.mxu0 0.0
    %2898 = vmatpush1.msra.mxu0 0.0
    %2899 = vmatprep.subr.mxu0 0.0
    %2900 = vmatpush1.msra.mxu0 0.0
    %2901 = vmatprep.subr.mxu0 0.0
    %2902 = vmatpush1.msra.mxu0 0.0
    %2903 = vmatprep.mubr.f32.mxu0 0.0
    %2904 = vmatmul.mubr.f32.gmra.mrb[0].mxu0 %v2834
    %v2905 = vpop.f32.mrb[0].mxu0
    %v2906 = vadd.f32 0.0, %v2905
    %v2907 = vpop.f32.mrb[0].mxu0
    %2908 = vmatprep.mubr.f32.mxu0 0.0
    %2909 = vmatmul.mubr.f32.gmra.mrb[0].mxu0 %v2837
    %v2910 = vpop.f32.mrb[0].mxu0
    %v2911 = vadd.f32 0.0, %v2910
    %v2912 = vpop.f32.mrb[0].mxu0
    %2913 = vdwg.mxu0
    %v2914 = vadd.f32 %v2738, %v2906
    %v2915 = vadd.f32 %v2743, %v2911
    %v2916 = vld [vmem:[#allocation22] sm:$0x1]
    %v2918 = vlaneseq
    %v2919 = vshrl.u32 %v2918, 7
    %v2920 = vsub.s32 0, %v2919
    %v2921 = vrot.slane %v2916, %v2920
    %v2923 = vadd.f32 %v2914, %v2921
    %v2924 = vadd.f32 %v2915, %v2921
    %v2925 = vld [vmem:[%s45] sm:$0xff]
    %v2926 = vld [vmem:[%s45 + $0x8] sm:$0xff]
    %v2927 = vld [vmem:[#allocation23] sm:$0xff]
    %v2928 = vld [vmem:[#allocation23 + $0x8] sm:$0xff]
    %v2929 = vld [vmem:[#allocation23 + $0x10] sm:$0xff]
    %v2930 = vld [vmem:[#allocation23 + $0x18] sm:$0xff]
    %v2932 = vsel %vm1239, %v1233, 0
    %2934 = vmatprep.subr.mxu0 0.0
    %2935 = vmatpush1.msra.mxu0 %v2927
    %2936 = vmatprep.subr.mxu0 0.0
    %2937 = vmatpush1.msra.mxu0 %v2928
    %2938 = vmatprep.subr.mxu0 0.0
    %2939 = vmatpush1.msra.mxu0 %v2929
    %2940 = vmatprep.subr.mxu0 0.0
    %2941 = vmatpush1.msra.mxu0 %v2930
    %2942 = vmatprep.subr.mxu0 0.0
    %2943 = vmatpush1.msra.mxu0 0.0
    %2944 = vmatprep.subr.mxu0 0.0
    %2945 = vmatpush1.msra.mxu0 0.0
    %2946 = vmatprep.subr.mxu0 0.0
    %2947 = vmatpush1.msra.mxu0 0.0
    %2948 = vmatprep.subr.mxu0 0.0
    %2949 = vmatpush1.msra.mxu0 0.0
    %2950 = vmatprep.subr.mxu0 0.0
    %2951 = vmatpush1.msra.mxu0 0.0
    %2952 = vmatprep.subr.mxu0 0.0
    %2953 = vmatpush1.msra.mxu0 0.0
    %2954 = vmatprep.subr.mxu0 0.0
    %2955 = vmatpush1.msra.mxu0 0.0
    %2956 = vmatprep.subr.mxu0 0.0
    %2957 = vmatpush1.msra.mxu0 0.0
    %2958 = vmatprep.subr.mxu0 0.0
    %2959 = vmatpush1.msra.mxu0 0.0
    %2960 = vmatprep.subr.mxu0 0.0
    %2961 = vmatpush1.msra.mxu0 0.0
    %2962 = vmatprep.subr.mxu0 0.0
    %2963 = vmatpush1.msra.mxu0 0.0
    %2964 = vmatprep.subr.mxu0 0.0
    %2965 = vmatpush1.msra.mxu0 0.0
    %2966 = vmatprep.subr.mxu0 0.0
    %2967 = vmatpush1.msra.mxu0 0.0
    %2968 = vmatprep.subr.mxu0 0.0
    %2969 = vmatpush1.msra.mxu0 0.0
    %2970 = vmatprep.subr.mxu0 0.0
    %2971 = vmatpush1.msra.mxu0 0.0
    %2972 = vmatprep.subr.mxu0 0.0
    %2973 = vmatpush1.msra.mxu0 0.0
    %2974 = vmatprep.subr.mxu0 0.0
    %2975 = vmatpush1.msra.mxu0 0.0
    %2976 = vmatprep.subr.mxu0 0.0
    %2977 = vmatpush1.msra.mxu0 0.0
    %2978 = vmatprep.subr.mxu0 0.0
    %2979 = vmatpush1.msra.mxu0 0.0
    %2980 = vmatprep.subr.mxu0 0.0
    %2981 = vmatpush1.msra.mxu0 0.0
    %2982 = vmatprep.subr.mxu0 0.0
    %2983 = vmatpush1.msra.mxu0 0.0
    %2984 = vmatprep.subr.mxu0 0.0
    %2985 = vmatpush1.msra.mxu0 0.0
    %2986 = vmatprep.subr.mxu0 0.0
    %2987 = vmatpush1.msra.mxu0 0.0
    %2988 = vmatprep.subr.mxu0 0.0
    %2989 = vmatpush1.msra.mxu0 0.0
    %2990 = vmatprep.subr.mxu0 0.0
    %2991 = vmatpush1.msra.mxu0 0.0
    %2992 = vmatprep.subr.mxu0 0.0
    %2993 = vmatpush1.msra.mxu0 0.0
    %2994 = vmatprep.subr.mxu0 0.0
    %2995 = vmatpush1.msra.mxu0 0.0
    %2996 = vmatprep.subr.mxu0 0.0
    %2997 = vmatpush1.msra.mxu0 0.0
    %2998 = vmatprep.mubr.f32.mxu0 0.0
    %2999 = vmatmul.mubr.f32.gmra.mrb[0].mxu0 %v2932
    %v3000 = vpop.f32.mrb[0].mxu0
    %v3001 = vadd.f32 0.0, %v3000
    %v3002 = vpop.f32.mrb[0].mxu0
    %3003 = vdwg.mxu0
    %v3004 = vld [vmem:[#allocation25] sm:$0x1]
    %v3006 = vlaneseq
    %v3007 = vshrl.u32 %v3006, 7
    %v3008 = vsub.s32 0, %v3007
    %v3009 = vrot.slane %v3004, %v3008
    %v3012 = vsel %vm1412, %v2925, 0
    %v3015 = vsel %vm1412, %v2926, 0
    %3017 = vmatprep.subr.mxu0 0.0
    %3018 = vmatpush1.msra.mxu0 %v3001
    %3019 = vmatprep.subr.mxu0 0.0
    %3020 = vmatpush1.msra.mxu0 0.0
    %3021 = vmatprep.subr.mxu0 0.0
    %3022 = vmatpush1.msra.mxu0 0.0
    %3023 = vmatprep.subr.mxu0 0.0
    %3024 = vmatpush1.msra.mxu0 0.0
    %3025 = vmatprep.subr.mxu0 0.0
    %3026 = vmatpush1.msra.mxu0 0.0
    %3027 = vmatprep.subr.mxu0 0.0
    %3028 = vmatpush1.msra.mxu0 0.0
    %3029 = vmatprep.subr.mxu0 0.0
    %3030 = vmatpush1.msra.mxu0 0.0
    %3031 = vmatprep.subr.mxu0 0.0
    %3032 = vmatpush1.msra.mxu0 0.0
    %3033 = vmatprep.subr.mxu0 0.0
    %3034 = vmatpush1.msra.mxu0 0.0
    %3035 = vmatprep.subr.mxu0 0.0
    %3036 = vmatpush1.msra.mxu0 0.0
    %3037 = vmatprep.subr.mxu0 0.0
    %3038 = vmatpush1.msra.mxu0 0.0
    %3039 = vmatprep.subr.mxu0 0.0
    %3040 = vmatpush1.msra.mxu0 0.0
    %3041 = vmatprep.subr.mxu0 0.0
    %3042 = vmatpush1.msra.mxu0 0.0
    %3043 = vmatprep.subr.mxu0 0.0
    %3044 = vmatpush1.msra.mxu0 0.0
    %3045 = vmatprep.subr.mxu0 0.0
    %3046 = vmatpush1.msra.mxu0 0.0
    %3047 = vmatprep.subr.mxu0 0.0
    %3048 = vmatpush1.msra.mxu0 0.0
    %3049 = vmatprep.subr.mxu0 0.0
    %3050 = vmatpush1.msra.mxu0 0.0
    %3051 = vmatprep.subr.mxu0 0.0
    %3052 = vmatpush1.msra.mxu0 0.0
    %3053 = vmatprep.subr.mxu0 0.0
    %3054 = vmatpush1.msra.mxu0 0.0
    %3055 = vmatprep.subr.mxu0 0.0
    %3056 = vmatpush1.msra.mxu0 0.0
    %3057 = vmatprep.subr.mxu0 0.0
    %3058 = vmatpush1.msra.mxu0 0.0
    %3059 = vmatprep.subr.mxu0 0.0
    %3060 = vmatpush1.msra.mxu0 0.0
    %3061 = vmatprep.subr.mxu0 0.0
    %3062 = vmatpush1.msra.mxu0 0.0
    %3063 = vmatprep.subr.mxu0 0.0
    %3064 = vmatpush1.msra.mxu0 0.0
    %3065 = vmatprep.subr.mxu0 0.0
    %3066 = vmatpush1.msra.mxu0 0.0
    %3067 = vmatprep.subr.mxu0 0.0
    %3068 = vmatpush1.msra.mxu0 0.0
    %3069 = vmatprep.subr.mxu0 0.0
    %3070 = vmatpush1.msra.mxu0 0.0
    %3071 = vmatprep.subr.mxu0 0.0
    %3072 = vmatpush1.msra.mxu0 0.0
    %3073 = vmatprep.subr.mxu0 0.0
    %3074 = vmatpush1.msra.mxu0 0.0
    %3075 = vmatprep.subr.mxu0 0.0
    %3076 = vmatpush1.msra.mxu0 0.0
    %3077 = vmatprep.subr.mxu0 0.0
    %3078 = vmatpush1.msra.mxu0 0.0
    %3079 = vmatprep.subr.mxu0 0.0
    %3080 = vmatpush1.msra.mxu0 0.0
    %3081 = vmatprep.mubr.f32.mxu0 0.0
    %3082 = vmatmul.mubr.f32.gmra.mrb[0].mxu0 %v3012
    %v3083 = vpop.f32.mrb[0].mxu0
    %v3084 = vadd.f32 %v3009, %v3083
    %v3085 = vpop.f32.mrb[0].mxu0
    %3086 = vmatprep.mubr.f32.mxu0 0.0
    %3087 = vmatmul.mubr.f32.gmra.mrb[0].mxu0 %v3015
    %v3088 = vpop.f32.mrb[0].mxu0
    %v3089 = vadd.f32 %v3009, %v3088
    %v3090 = vpop.f32.mrb[0].mxu0
    %3091 = vdwg.mxu0
    %v3092 = vadd.f32 %v2923, %v3084
    %v3093 = vadd.f32 %v2924, %v3089
    %v3094 = vsel %vm2068, %v3092, 0.0
    %v3095 = vsel %vm2068, %v3093, 0.0
    %v3096 = vadd.f32 %v3094, %v3095
    %v3097 = vrot.slane %v3096, 4
    %v3098 = vadd.f32 %v3096, %v3097
    %v3099 = vrot.slane %v3098, 2
    %v3100 = vadd.f32 %v3098, %v3099
    %v3101 = vrot.slane %v3100, 1
    %v3102 = vadd.f32 %v3100, %v3101
    %v3103 = vmul.f32 %v3092, %v3092
    %v3104 = vmul.f32 %v3093, %v3093
    %v3105 = vsel %vm2068, %v3103, 0.0
    %v3106 = vsel %vm2068, %v3104, 0.0
    %v3107 = vadd.f32 %v3105, %v3106
    %v3108 = vrot.slane %v3107, 4
    %v3109 = vadd.f32 %v3107, %v3108
    %v3110 = vrot.slane %v3109, 2
    %v3111 = vadd.f32 %v3109, %v3110
    %v3112 = vrot.slane %v3111, 1
    %v3113 = vadd.f32 %v3111, %v3112
    %v3115 = vsel %vm2068, %v3102, 0
    %3117 = vmatprep.subr.mxu0 0.0
    %3118 = vmatpush1.msra.mxu0 %v2059
    %3119 = vmatprep.subr.mxu0 0.0
    %3120 = vmatpush1.msra.mxu0 %v2060
    %3121 = vmatprep.subr.mxu0 0.0
    %3122 = vmatpush1.msra.mxu0 %v2061
    %3123 = vmatprep.subr.mxu0 0.0
    %3124 = vmatpush1.msra.mxu0 %v2062
    %3125 = vmatprep.subr.mxu0 0.0
    %3126 = vmatpush1.msra.mxu0 %v2063
    %3127 = vmatprep.subr.mxu0 0.0
    %3128 = vmatpush1.msra.mxu0 %v2064
    %3129 = vmatprep.subr.mxu0 0.0
    %3130 = vmatpush1.msra.mxu0 %v2065
    %3131 = vmatprep.subr.mxu0 0.0
    %3132 = vmatpush1.msra.mxu0 %v2066
    %3133 = vmatprep.subr.mxu0 0.0
    %3134 = vmatpush1.msra.mxu0 0.0
    %3135 = vmatprep.subr.mxu0 0.0
    %3136 = vmatpush1.msra.mxu0 0.0
    %3137 = vmatprep.subr.mxu0 0.0
    %3138 = vmatpush1.msra.mxu0 0.0
    %3139 = vmatprep.subr.mxu0 0.0
    %3140 = vmatpush1.msra.mxu0 0.0
    %3141 = vmatprep.subr.mxu0 0.0
    %3142 = vmatpush1.msra.mxu0 0.0
    %3143 = vmatprep.subr.mxu0 0.0
    %3144 = vmatpush1.msra.mxu0 0.0
    %3145 = vmatprep.subr.mxu0 0.0
    %3146 = vmatpush1.msra.mxu0 0.0
    %3147 = vmatprep.subr.mxu0 0.0
    %3148 = vmatpush1.msra.mxu0 0.0
    %3149 = vmatprep.subr.mxu0 0.0
    %3150 = vmatpush1.msra.mxu0 0.0
    %3151 = vmatprep.subr.mxu0 0.0
    %3152 = vmatpush1.msra.mxu0 0.0
    %3153 = vmatprep.subr.mxu0 0.0
    %3154 = vmatpush1.msra.mxu0 0.0
    %3155 = vmatprep.subr.mxu0 0.0
    %3156 = vmatpush1.msra.mxu0 0.0
    %3157 = vmatprep.subr.mxu0 0.0
    %3158 = vmatpush1.msra.mxu0 0.0
    %3159 = vmatprep.subr.mxu0 0.0
    %3160 = vmatpush1.msra.mxu0 0.0
    %3161 = vmatprep.subr.mxu0 0.0
    %3162 = vmatpush1.msra.mxu0 0.0
    %3163 = vmatprep.subr.mxu0 0.0
    %3164 = vmatpush1.msra.mxu0 0.0
    %3165 = vmatprep.subr.mxu0 0.0
    %3166 = vmatpush1.msra.mxu0 0.0
    %3167 = vmatprep.subr.mxu0 0.0
    %3168 = vmatpush1.msra.mxu0 0.0
    %3169 = vmatprep.subr.mxu0 0.0
    %3170 = vmatpush1.msra.mxu0 0.0
    %3171 = vmatprep.subr.mxu0 0.0
    %3172 = vmatpush1.msra.mxu0 0.0
    %3173 = vmatprep.subr.mxu0 0.0
    %3174 = vmatpush1.msra.mxu0 0.0
    %3175 = vmatprep.subr.mxu0 0.0
    %3176 = vmatpush1.msra.mxu0 0.0
    %3177 = vmatprep.subr.mxu0 0.0
    %3178 = vmatpush1.msra.mxu0 0.0
    %3179 = vmatprep.subr.mxu0 0.0
    %3180 = vmatpush1.msra.mxu0 0.0
    %3181 = vmatprep.mubr.f32.mxu0 0.0
    %3182 = vmatmul.mubr.f32.gmra.mrb[0].mxu0 %v3115
    %v3183 = vpop.f32.mrb[0].mxu0
    %v3184 = vadd.f32 0.0, %v3183
    %v3185 = vpop.f32.mrb[0].mxu0
    %3186 = vdwg.mxu0
    %v3188 = vsel %vm2068, %v3113, 0
    %3190 = vmatprep.subr.mxu0 0.0
    %3191 = vmatpush1.msra.mxu0 %v2059
    %3192 = vmatprep.subr.mxu0 0.0
    %3193 = vmatpush1.msra.mxu0 %v2060
    %3194 = vmatprep.subr.mxu0 0.0
    %3195 = vmatpush1.msra.mxu0 %v2061
    %3196 = vmatprep.subr.mxu0 0.0
    %3197 = vmatpush1.msra.mxu0 %v2062
    %3198 = vmatprep.subr.mxu0 0.0
    %3199 = vmatpush1.msra.mxu0 %v2063
    %3200 = vmatprep.subr.mxu0 0.0
    %3201 = vmatpush1.msra.mxu0 %v2064
    %3202 = vmatprep.subr.mxu0 0.0
    %3203 = vmatpush1.msra.mxu0 %v2065
    %3204 = vmatprep.subr.mxu0 0.0
    %3205 = vmatpush1.msra.mxu0 %v2066
    %3206 = vmatprep.subr.mxu0 0.0
    %3207 = vmatpush1.msra.mxu0 0.0
    %3208 = vmatprep.subr.mxu0 0.0
    %3209 = vmatpush1.msra.mxu0 0.0
    %3210 = vmatprep.subr.mxu0 0.0
    %3211 = vmatpush1.msra.mxu0 0.0
    %3212 = vmatprep.subr.mxu0 0.0
    %3213 = vmatpush1.msra.mxu0 0.0
    %3214 = vmatprep.subr.mxu0 0.0
    %3215 = vmatpush1.msra.mxu0 0.0
    %3216 = vmatprep.subr.mxu0 0.0
    %3217 = vmatpush1.msra.mxu0 0.0
    %3218 = vmatprep.subr.mxu0 0.0
    %3219 = vmatpush1.msra.mxu0 0.0
    %3220 = vmatprep.subr.mxu0 0.0
    %3221 = vmatpush1.msra.mxu0 0.0
    %3222 = vmatprep.subr.mxu0 0.0
    %3223 = vmatpush1.msra.mxu0 0.0
    %3224 = vmatprep.subr.mxu0 0.0
    %3225 = vmatpush1.msra.mxu0 0.0
    %3226 = vmatprep.subr.mxu0 0.0
    %3227 = vmatpush1.msra.mxu0 0.0
    %3228 = vmatprep.subr.mxu0 0.0
    %3229 = vmatpush1.msra.mxu0 0.0
    %3230 = vmatprep.subr.mxu0 0.0
    %3231 = vmatpush1.msra.mxu0 0.0
    %3232 = vmatprep.subr.mxu0 0.0
    %3233 = vmatpush1.msra.mxu0 0.0
    %3234 = vmatprep.subr.mxu0 0.0
    %3235 = vmatpush1.msra.mxu0 0.0
    %3236 = vmatprep.subr.mxu0 0.0
    %3237 = vmatpush1.msra.mxu0 0.0
    %3238 = vmatprep.subr.mxu0 0.0
    %3239 = vmatpush1.msra.mxu0 0.0
    %3240 = vmatprep.subr.mxu0 0.0
    %3241 = vmatpush1.msra.mxu0 0.0
    %3242 = vmatprep.subr.mxu0 0.0
    %3243 = vmatpush1.msra.mxu0 0.0
    %3244 = vmatprep.subr.mxu0 0.0
    %3245 = vmatpush1.msra.mxu0 0.0
    %3246 = vmatprep.subr.mxu0 0.0
    %3247 = vmatpush1.msra.mxu0 0.0
    %3248 = vmatprep.subr.mxu0 0.0
    %3249 = vmatpush1.msra.mxu0 0.0
    %3250 = vmatprep.subr.mxu0 0.0
    %3251 = vmatpush1.msra.mxu0 0.0
    %3252 = vmatprep.subr.mxu0 0.0
    %3253 = vmatpush1.msra.mxu0 0.0
    %3254 = vmatprep.mubr.f32.mxu0 0.0
    %3255 = vmatmul.mubr.f32.gmra.mrb[0].mxu0 %v3188
    %v3256 = vpop.f32.mrb[0].mxu0
    %v3257 = vadd.f32 0.0, %v3256
    %v3258 = vpop.f32.mrb[0].mxu0
    %3259 = vdwg.mxu0
    %v3260 = vmul.f32 %v3184, 0.0078125
    %v3261 = vmul.f32 %v3257, 0.0078125
    %v3262 = vmul.f32 %v3260, %v3260
    %v3263 = vsub.f32 %v3261, %v3262
    %v3264 = vld [vmem:[#allocation26] sm:$0x1]
    %v3265 = vadd.f32 %v3263, 1e-05
    %v3266 = vrsqrt.pop %v3265
    %v3267 = vmul.f32 %v3264, %v3266
    %v3268 = vld [vmem:[#allocation28] sm:$0x1]
    %v3269 = vmul.f32 %v3260, %v3267
    %v3270 = vsub.f32 %v3268, %v3269
    %v3272 = vsel %vm1412, %v3267, 0
    %3274 = vmatprep.subr.mxu0 0.0
    %3275 = vmatpush1.msra.mxu0 %v2067
    %3276 = vmatprep.subr.mxu0 0.0
    %3277 = vmatpush1.msra.mxu0 0.0
    %3278 = vmatprep.subr.mxu0 0.0
    %3279 = vmatpush1.msra.mxu0 0.0
    %3280 = vmatprep.subr.mxu0 0.0
    %3281 = vmatpush1.msra.mxu0 0.0
    %3282 = vmatprep.subr.mxu0 0.0
    %3283 = vmatpush1.msra.mxu0 0.0
    %3284 = vmatprep.subr.mxu0 0.0
    %3285 = vmatpush1.msra.mxu0 0.0
    %3286 = vmatprep.subr.mxu0 0.0
    %3287 = vmatpush1.msra.mxu0 0.0
    %3288 = vmatprep.subr.mxu0 0.0
    %3289 = vmatpush1.msra.mxu0 0.0
    %3290 = vmatprep.subr.mxu0 0.0
    %3291 = vmatpush1.msra.mxu0 0.0
    %3292 = vmatprep.subr.mxu0 0.0
    %3293 = vmatpush1.msra.mxu0 0.0
    %3294 = vmatprep.subr.mxu0 0.0
    %3295 = vmatpush1.msra.mxu0 0.0
    %3296 = vmatprep.subr.mxu0 0.0
    %3297 = vmatpush1.msra.mxu0 0.0
    %3298 = vmatprep.subr.mxu0 0.0
    %3299 = vmatpush1.msra.mxu0 0.0
    %3300 = vmatprep.subr.mxu0 0.0
    %3301 = vmatpush1.msra.mxu0 0.0
    %3302 = vmatprep.subr.mxu0 0.0
    %3303 = vmatpush1.msra.mxu0 0.0
    %3304 = vmatprep.subr.mxu0 0.0
    %3305 = vmatpush1.msra.mxu0 0.0
    %3306 = vmatprep.subr.mxu0 0.0
    %3307 = vmatpush1.msra.mxu0 0.0
    %3308 = vmatprep.subr.mxu0 0.0
    %3309 = vmatpush1.msra.mxu0 0.0
    %3310 = vmatprep.subr.mxu0 0.0
    %3311 = vmatpush1.msra.mxu0 0.0
    %3312 = vmatprep.subr.mxu0 0.0
    %3313 = vmatpush1.msra.mxu0 0.0
    %3314 = vmatprep.subr.mxu0 0.0
    %3315 = vmatpush1.msra.mxu0 0.0
    %3316 = vmatprep.subr.mxu0 0.0
    %3317 = vmatpush1.msra.mxu0 0.0
    %3318 = vmatprep.subr.mxu0 0.0
    %3319 = vmatpush1.msra.mxu0 0.0
    %3320 = vmatprep.subr.mxu0 0.0
    %3321 = vmatpush1.msra.mxu0 0.0
    %3322 = vmatprep.subr.mxu0 0.0
    %3323 = vmatpush1.msra.mxu0 0.0
    %3324 = vmatprep.subr.mxu0 0.0
    %3325 = vmatpush1.msra.mxu0 0.0
    %3326 = vmatprep.subr.mxu0 0.0
    %3327 = vmatpush1.msra.mxu0 0.0
    %3328 = vmatprep.subr.mxu0 0.0
    %3329 = vmatpush1.msra.mxu0 0.0
    %3330 = vmatprep.subr.mxu0 0.0
    %3331 = vmatpush1.msra.mxu0 0.0
    %3332 = vmatprep.subr.mxu0 0.0
    %3333 = vmatpush1.msra.mxu0 0.0
    %3334 = vmatprep.subr.mxu0 0.0
    %3335 = vmatpush1.msra.mxu0 0.0
    %3336 = vmatprep.subr.mxu0 0.0
    %3337 = vmatpush1.msra.mxu0 0.0
    %3338 = vmatprep.mubr.f32.mxu0 0.0
    %3339 = vmatmul.mubr.f32.gmra.mrb[0].mxu0 %v3272
    %v3340 = vpop.f32.mrb[0].mxu0
    %v3341 = vadd.f32 0.0, %v3340
    %v3342 = vpop.f32.mrb[0].mxu0
    %3343 = vdwg.mxu0
    %v3345 = vsel %vm1412, %v3270, 0
    %3347 = vmatprep.subr.mxu0 0.0
    %3348 = vmatpush1.msra.mxu0 %v2067
    %3349 = vmatprep.subr.mxu0 0.0
    %3350 = vmatpush1.msra.mxu0 0.0
    %3351 = vmatprep.subr.mxu0 0.0
    %3352 = vmatpush1.msra.mxu0 0.0
    %3353 = vmatprep.subr.mxu0 0.0
    %3354 = vmatpush1.msra.mxu0 0.0
    %3355 = vmatprep.subr.mxu0 0.0
    %3356 = vmatpush1.msra.mxu0 0.0
    %3357 = vmatprep.subr.mxu0 0.0
    %3358 = vmatpush1.msra.mxu0 0.0
    %3359 = vmatprep.subr.mxu0 0.0
    %3360 = vmatpush1.msra.mxu0 0.0
    %3361 = vmatprep.subr.mxu0 0.0
    %3362 = vmatpush1.msra.mxu0 0.0
    %3363 = vmatprep.subr.mxu0 0.0
    %3364 = vmatpush1.msra.mxu0 0.0
    %3365 = vmatprep.subr.mxu0 0.0
    %3366 = vmatpush1.msra.mxu0 0.0
    %3367 = vmatprep.subr.mxu0 0.0
    %3368 = vmatpush1.msra.mxu0 0.0
    %3369 = vmatprep.subr.mxu0 0.0
    %3370 = vmatpush1.msra.mxu0 0.0
    %3371 = vmatprep.subr.mxu0 0.0
    %3372 = vmatpush1.msra.mxu0 0.0
    %3373 = vmatprep.subr.mxu0 0.0
    %3374 = vmatpush1.msra.mxu0 0.0
    %3375 = vmatprep.subr.mxu0 0.0
    %3376 = vmatpush1.msra.mxu0 0.0
    %3377 = vmatprep.subr.mxu0 0.0
    %3378 = vmatpush1.msra.mxu0 0.0
    %3379 = vmatprep.subr.mxu0 0.0
    %3380 = vmatpush1.msra.mxu0 0.0
    %3381 = vmatprep.subr.mxu0 0.0
    %3382 = vmatpush1.msra.mxu0 0.0
    %3383 = vmatprep.subr.mxu0 0.0
    %3384 = vmatpush1.msra.mxu0 0.0
    %3385 = vmatprep.subr.mxu0 0.0
    %3386 = vmatpush1.msra.mxu0 0.0
    %3387 = vmatprep.subr.mxu0 0.0
    %3388 = vmatpush1.msra.mxu0 0.0
    %3389 = vmatprep.subr.mxu0 0.0
    %3390 = vmatpush1.msra.mxu0 0.0
    %3391 = vmatprep.subr.mxu0 0.0
    %3392 = vmatpush1.msra.mxu0 0.0
    %3393 = vmatprep.subr.mxu0 0.0
    %3394 = vmatpush1.msra.mxu0 0.0
    %3395 = vmatprep.subr.mxu0 0.0
    %3396 = vmatpush1.msra.mxu0 0.0
    %3397 = vmatprep.subr.mxu0 0.0
    %3398 = vmatpush1.msra.mxu0 0.0
    %3399 = vmatprep.subr.mxu0 0.0
    %3400 = vmatpush1.msra.mxu0 0.0
    %3401 = vmatprep.subr.mxu0 0.0
    %3402 = vmatpush1.msra.mxu0 0.0
    %3403 = vmatprep.subr.mxu0 0.0
    %3404 = vmatpush1.msra.mxu0 0.0
    %3405 = vmatprep.subr.mxu0 0.0
    %3406 = vmatpush1.msra.mxu0 0.0
    %3407 = vmatprep.subr.mxu0 0.0
    %3408 = vmatpush1.msra.mxu0 0.0
    %3409 = vmatprep.subr.mxu0 0.0
    %3410 = vmatpush1.msra.mxu0 0.0
    %3411 = vmatprep.mubr.f32.mxu0 0.0
    %3412 = vmatmul.mubr.f32.gmra.mrb[0].mxu0 %v3345
    %v3413 = vpop.f32.mrb[0].mxu0
    %v3414 = vadd.f32 0.0, %v3413
    %v3415 = vpop.f32.mrb[0].mxu0
    %3416 = vdwg.mxu0
    %v3417 = vlaneseq
    %v3418 = vshrl.u32 %v3417, 7
    %v3419 = vsub.s32 0, %v3418
    %v3420 = vrot.slane %v3341, %v3419
    %v3421 = vmul.f32 %v3092, %v3420
    %v3422 = vmul.f32 %v3093, %v3420
    %v3423 = vlaneseq
    %v3424 = vshrl.u32 %v3423, 7
    %v3425 = vsub.s32 0, %v3424
    %v3426 = vrot.slane %v3414, %v3425
    %v3427 = vadd.f32 %v3421, %v3426
    %v3428 = vadd.f32 %v3422, %v3426
    %v3429 = vmax.f32 %v3427, 0.0
    %v3430 = vmax.f32 %v3428, 0.0
    %v3431 = vld [vmem:[%s55] sm:$0xff]
    %v3432 = vld [vmem:[%s55 + $0x8] sm:$0xff]
    %v3433 = vld [vmem:[%s55 + $0x10] sm:$0xff]
    %v3434 = vld [vmem:[%s55 + $0x18] sm:$0xff]
    %v3435 = vld [vmem:[#allocation29] sm:$0xff]
    %v3436 = vld [vmem:[#allocation29 + $0x8] sm:$0xff]
    %v3437 = vld [vmem:[#allocation29 + $0x10] sm:$0xff]
    %v3438 = vld [vmem:[#allocation29 + $0x18] sm:$0xff]
    %v3439 = vld [vmem:[#allocation29 + $0x20] sm:$0xff]
    %v3440 = vld [vmem:[#allocation29 + $0x28] sm:$0xff]
    %v3441 = vld [vmem:[#allocation29 + $0x30] sm:$0xff]
    %v3442 = vld [vmem:[#allocation29 + $0x38] sm:$0xff]
    %v3444 = vsel %vm2068, %v3429, 0
    %v3447 = vsel %vm2068, %v3430, 0
    %3449 = vmatprep.subr.mxu0 0.0
    %3450 = vmatpush1.msra.mxu0 %v3435
    %3451 = vmatprep.subr.mxu0 0.0
    %3452 = vmatpush1.msra.mxu0 %v3436
    %3453 = vmatprep.subr.mxu0 0.0
    %3454 = vmatpush1.msra.mxu0 %v3437
    %3455 = vmatprep.subr.mxu0 0.0
    %3456 = vmatpush1.msra.mxu0 %v3438
    %3457 = vmatprep.subr.mxu0 0.0
    %3458 = vmatpush1.msra.mxu0 %v3439
    %3459 = vmatprep.subr.mxu0 0.0
    %3460 = vmatpush1.msra.mxu0 %v3440
    %3461 = vmatprep.subr.mxu0 0.0
    %3462 = vmatpush1.msra.mxu0 %v3441
    %3463 = vmatprep.subr.mxu0 0.0
    %3464 = vmatpush1.msra.mxu0 %v3442
    %3465 = vmatprep.subr.mxu0 0.0
    %3466 = vmatpush1.msra.mxu0 0.0
    %3467 = vmatprep.subr.mxu0 0.0
    %3468 = vmatpush1.msra.mxu0 0.0
    %3469 = vmatprep.subr.mxu0 0.0
    %3470 = vmatpush1.msra.mxu0 0.0
    %3471 = vmatprep.subr.mxu0 0.0
    %3472 = vmatpush1.msra.mxu0 0.0
    %3473 = vmatprep.subr.mxu0 0.0
    %3474 = vmatpush1.msra.mxu0 0.0
    %3475 = vmatprep.subr.mxu0 0.0
    %3476 = vmatpush1.msra.mxu0 0.0
    %3477 = vmatprep.subr.mxu0 0.0
    %3478 = vmatpush1.msra.mxu0 0.0
    %3479 = vmatprep.subr.mxu0 0.0
    %3480 = vmatpush1.msra.mxu0 0.0
    %3481 = vmatprep.subr.mxu0 0.0
    %3482 = vmatpush1.msra.mxu0 0.0
    %3483 = vmatprep.subr.mxu0 0.0
    %3484 = vmatpush1.msra.mxu0 0.0
    %3485 = vmatprep.subr.mxu0 0.0
    %3486 = vmatpush1.msra.mxu0 0.0
    %3487 = vmatprep.subr.mxu0 0.0
    %3488 = vmatpush1.msra.mxu0 0.0
    %3489 = vmatprep.subr.mxu0 0.0
    %3490 = vmatpush1.msra.mxu0 0.0
    %3491 = vmatprep.subr.mxu0 0.0
    %3492 = vmatpush1.msra.mxu0 0.0
    %3493 = vmatprep.subr.mxu0 0.0
    %3494 = vmatpush1.msra.mxu0 0.0
    %3495 = vmatprep.subr.mxu0 0.0
    %3496 = vmatpush1.msra.mxu0 0.0
    %3497 = vmatprep.subr.mxu0 0.0
    %3498 = vmatpush1.msra.mxu0 0.0
    %3499 = vmatprep.subr.mxu0 0.0
    %3500 = vmatpush1.msra.mxu0 0.0
    %3501 = vmatprep.subr.mxu0 0.0
    %3502 = vmatpush1.msra.mxu0 0.0
    %3503 = vmatprep.subr.mxu0 0.0
    %3504 = vmatpush1.msra.mxu0 0.0
    %3505 = vmatprep.subr.mxu0 0.0
    %3506 = vmatpush1.msra.mxu0 0.0
    %3507 = vmatprep.subr.mxu0 0.0
    %3508 = vmatpush1.msra.mxu0 0.0
    %3509 = vmatprep.subr.mxu0 0.0
    %3510 = vmatpush1.msra.mxu0 0.0
    %3511 = vmatprep.subr.mxu0 0.0
    %3512 = vmatpush1.msra.mxu0 0.0
    %3513 = vmatprep.mubr.f32.mxu0 0.0
    %3514 = vmatmul.mubr.f32.gmra.mrb[0].mxu0 %v3444
    %v3515 = vpop.f32.mrb[0].mxu0
    %v3516 = vadd.f32 0.0, %v3515
    %v3517 = vpop.f32.mrb[0].mxu0
    %3518 = vmatprep.mubr.f32.mxu0 0.0
    %3519 = vmatmul.mubr.f32.gmra.mrb[0].mxu0 %v3447
    %v3520 = vpop.f32.mrb[0].mxu0
    %v3521 = vadd.f32 0.0, %v3520
    %v3522 = vpop.f32.mrb[0].mxu0
    %3523 = vdwg.mxu0
    %s3524 = scalar_lea.vmem %s55, 32
    %v3525 = vld [vmem:[%s3524] sm:$0xff]
    %v3526 = vld [vmem:[%s3524 + $0x8] sm:$0xff]
    %v3527 = vld [vmem:[%s3524 + $0x10] sm:$0xff]
    %v3528 = vld [vmem:[%s3524 + $0x18] sm:$0xff]
    %s3529 = scalar_lea.vmem [#allocation29], 64
    %v3530 = vld [vmem:[%s3529] sm:$0xff]
    %v3531 = vld [vmem:[%s3529 + $0x8] sm:$0xff]
    %v3532 = vld [vmem:[%s3529 + $0x10] sm:$0xff]
    %v3533 = vld [vmem:[%s3529 + $0x18] sm:$0xff]
    %v3534 = vld [vmem:[%s3529 + $0x20] sm:$0xff]
    %v3535 = vld [vmem:[%s3529 + $0x28] sm:$0xff]
    %v3536 = vld [vmem:[%s3529 + $0x30] sm:$0xff]
    %v3537 = vld [vmem:[%s3529 + $0x38] sm:$0xff]
    %3538 = vmatprep.subr.mxu0 0.0
    %3539 = vmatpush1.msra.mxu0 %v3530
    %3540 = vmatprep.subr.mxu0 0.0
    %3541 = vmatpush1.msra.mxu0 %v3531
    %3542 = vmatprep.subr.mxu0 0.0
    %3543 = vmatpush1.msra.mxu0 %v3532
    %3544 = vmatprep.subr.mxu0 0.0
    %3545 = vmatpush1.msra.mxu0 %v3533
    %3546 = vmatprep.subr.mxu0 0.0
    %3547 = vmatpush1.msra.mxu0 %v3534
    %3548 = vmatprep.subr.mxu0 0.0
    %3549 = vmatpush1.msra.mxu0 %v3535
    %3550 = vmatprep.subr.mxu0 0.0
    %3551 = vmatpush1.msra.mxu0 %v3536
    %3552 = vmatprep.subr.mxu0 0.0
    %3553 = vmatpush1.msra.mxu0 %v3537
    %3554 = vmatprep.subr.mxu0 0.0
    %3555 = vmatpush1.msra.mxu0 0.0
    %3556 = vmatprep.subr.mxu0 0.0
    %3557 = vmatpush1.msra.mxu0 0.0
    %3558 = vmatprep.subr.mxu0 0.0
    %3559 = vmatpush1.msra.mxu0 0.0
    %3560 = vmatprep.subr.mxu0 0.0
    %3561 = vmatpush1.msra.mxu0 0.0
    %3562 = vmatprep.subr.mxu0 0.0
    %3563 = vmatpush1.msra.mxu0 0.0
    %3564 = vmatprep.subr.mxu0 0.0
    %3565 = vmatpush1.msra.mxu0 0.0
    %3566 = vmatprep.subr.mxu0 0.0
    %3567 = vmatpush1.msra.mxu0 0.0
    %3568 = vmatprep.subr.mxu0 0.0
    %3569 = vmatpush1.msra.mxu0 0.0
    %3570 = vmatprep.subr.mxu0 0.0
    %3571 = vmatpush1.msra.mxu0 0.0
    %3572 = vmatprep.subr.mxu0 0.0
    %3573 = vmatpush1.msra.mxu0 0.0
    %3574 = vmatprep.subr.mxu0 0.0
    %3575 = vmatpush1.msra.mxu0 0.0
    %3576 = vmatprep.subr.mxu0 0.0
    %3577 = vmatpush1.msra.mxu0 0.0
    %3578 = vmatprep.subr.mxu0 0.0
    %3579 = vmatpush1.msra.mxu0 0.0
    %3580 = vmatprep.subr.mxu0 0.0
    %3581 = vmatpush1.msra.mxu0 0.0
    %3582 = vmatprep.subr.mxu0 0.0
    %3583 = vmatpush1.msra.mxu0 0.0
    %3584 = vmatprep.subr.mxu0 0.0
    %3585 = vmatpush1.msra.mxu0 0.0
    %3586 = vmatprep.subr.mxu0 0.0
    %3587 = vmatpush1.msra.mxu0 0.0
    %3588 = vmatprep.subr.mxu0 0.0
    %3589 = vmatpush1.msra.mxu0 0.0
    %3590 = vmatprep.subr.mxu0 0.0
    %3591 = vmatpush1.msra.mxu0 0.0
    %3592 = vmatprep.subr.mxu0 0.0
    %3593 = vmatpush1.msra.mxu0 0.0
    %3594 = vmatprep.subr.mxu0 0.0
    %3595 = vmatpush1.msra.mxu0 0.0
    %3596 = vmatprep.subr.mxu0 0.0
    %3597 = vmatpush1.msra.mxu0 0.0
    %3598 = vmatprep.subr.mxu0 0.0
    %3599 = vmatpush1.msra.mxu0 0.0
    %3600 = vmatprep.subr.mxu0 0.0
    %3601 = vmatpush1.msra.mxu0 0.0
    %3602 = vmatprep.mubr.f32.mxu0 0.0
    %3603 = vmatmul.mubr.f32.gmra.mrb[0].mxu0 %v3444
    %v3604 = vpop.f32.mrb[0].mxu0
    %v3605 = vadd.f32 0.0, %v3604
    %v3606 = vpop.f32.mrb[0].mxu0
    %3607 = vmatprep.mubr.f32.mxu0 0.0
    %3608 = vmatmul.mubr.f32.gmra.mrb[0].mxu0 %v3447
    %v3609 = vpop.f32.mrb[0].mxu0
    %v3610 = vadd.f32 0.0, %v3609
    %v3611 = vpop.f32.mrb[0].mxu0
    %3612 = vdwg.mxu0
    %v3614 = vsel %vm625, %v3525, 0
    %v3617 = vsel %vm625, %v3526, 0
    %v3620 = vsel %vm625, %v3527, 0
    %v3623 = vsel %vm625, %v3528, 0
    %3625 = vmatprep.subr.mxu0 0.0
    %3626 = vmatpush1.msra.mxu0 %v3605
    %3627 = vmatprep.subr.mxu0 0.0
    %3628 = vmatpush1.msra.mxu0 %v3610
    %3629 = vmatprep.subr.mxu0 0.0
    %3630 = vmatpush1.msra.mxu0 0.0
    %3631 = vmatprep.subr.mxu0 0.0
    %3632 = vmatpush1.msra.mxu0 0.0
    %3633 = vmatprep.subr.mxu0 0.0
    %3634 = vmatpush1.msra.mxu0 0.0
    %3635 = vmatprep.subr.mxu0 0.0
    %3636 = vmatpush1.msra.mxu0 0.0
    %3637 = vmatprep.subr.mxu0 0.0
    %3638 = vmatpush1.msra.mxu0 0.0
    %3639 = vmatprep.subr.mxu0 0.0
    %3640 = vmatpush1.msra.mxu0 0.0
    %3641 = vmatprep.subr.mxu0 0.0
    %3642 = vmatpush1.msra.mxu0 0.0
    %3643 = vmatprep.subr.mxu0 0.0
    %3644 = vmatpush1.msra.mxu0 0.0
    %3645 = vmatprep.subr.mxu0 0.0
    %3646 = vmatpush1.msra.mxu0 0.0
    %3647 = vmatprep.subr.mxu0 0.0
    %3648 = vmatpush1.msra.mxu0 0.0
    %3649 = vmatprep.subr.mxu0 0.0
    %3650 = vmatpush1.msra.mxu0 0.0
    %3651 = vmatprep.subr.mxu0 0.0
    %3652 = vmatpush1.msra.mxu0 0.0
    %3653 = vmatprep.subr.mxu0 0.0
    %3654 = vmatpush1.msra.mxu0 0.0
    %3655 = vmatprep.subr.mxu0 0.0
    %3656 = vmatpush1.msra.mxu0 0.0
    %3657 = vmatprep.subr.mxu0 0.0
    %3658 = vmatpush1.msra.mxu0 0.0
    %3659 = vmatprep.subr.mxu0 0.0
    %3660 = vmatpush1.msra.mxu0 0.0
    %3661 = vmatprep.subr.mxu0 0.0
    %3662 = vmatpush1.msra.mxu0 0.0
    %3663 = vmatprep.subr.mxu0 0.0
    %3664 = vmatpush1.msra.mxu0 0.0
    %3665 = vmatprep.subr.mxu0 0.0
    %3666 = vmatpush1.msra.mxu0 0.0
    %3667 = vmatprep.subr.mxu0 0.0
    %3668 = vmatpush1.msra.mxu0 0.0
    %3669 = vmatprep.subr.mxu0 0.0
    %3670 = vmatpush1.msra.mxu0 0.0
    %3671 = vmatprep.subr.mxu0 0.0
    %3672 = vmatpush1.msra.mxu0 0.0
    %3673 = vmatprep.subr.mxu0 0.0
    %3674 = vmatpush1.msra.mxu0 0.0
    %3675 = vmatprep.subr.mxu0 0.0
    %3676 = vmatpush1.msra.mxu0 0.0
    %3677 = vmatprep.subr.mxu0 0.0
    %3678 = vmatpush1.msra.mxu0 0.0
    %3679 = vmatprep.subr.mxu0 0.0
    %3680 = vmatpush1.msra.mxu0 0.0
    %3681 = vmatprep.subr.mxu0 0.0
    %3682 = vmatpush1.msra.mxu0 0.0
    %3683 = vmatprep.subr.mxu0 0.0
    %3684 = vmatpush1.msra.mxu0 0.0
    %3685 = vmatprep.subr.mxu0 0.0
    %3686 = vmatpush1.msra.mxu0 0.0
    %3687 = vmatprep.subr.mxu0 0.0
    %3688 = vmatpush1.msra.mxu0 0.0
    %3689 = vmatprep.mubr.f32.mxu0 0.0
    %3690 = vmatmul.mubr.f32.gmra.mrb[0].mxu0 %v3614
    %v3691 = vpop.f32.mrb[0].mxu0
    %v3692 = vadd.f32 0.0, %v3691
    %v3693 = vpop.f32.mrb[0].mxu0
    %3694 = vmatprep.mubr.f32.mxu0 0.0
    %3695 = vmatmul.mubr.f32.gmra.mrb[0].mxu0 %v3617
    %v3696 = vpop.f32.mrb[0].mxu0
    %v3697 = vadd.f32 0.0, %v3696
    %v3698 = vpop.f32.mrb[0].mxu0
    %3699 = vmatprep.mubr.f32.mxu0 0.0
    %3700 = vmatmul.mubr.f32.gmra.mrb[0].mxu0 %v3620
    %v3701 = vpop.f32.mrb[0].mxu0
    %v3702 = vadd.f32 0.0, %v3701
    %v3703 = vpop.f32.mrb[0].mxu0
    %3704 = vmatprep.mubr.f32.mxu0 0.0
    %3705 = vmatmul.mubr.f32.gmra.mrb[0].mxu0 %v3623
    %v3706 = vpop.f32.mrb[0].mxu0
    %v3707 = vadd.f32 0.0, %v3706
    %v3708 = vpop.f32.mrb[0].mxu0
    %3709 = vdwg.mxu0
    %v3711 = vsel %vm625, %v3431, 0
    %v3714 = vsel %vm625, %v3432, 0
    %v3717 = vsel %vm625, %v3433, 0
    %v3720 = vsel %vm625, %v3434, 0
    %3722 = vmatprep.subr.mxu0 0.0
    %3723 = vmatpush1.msra.mxu0 %v3516
    %3724 = vmatprep.subr.mxu0 0.0
    %3725 = vmatpush1.msra.mxu0 %v3521
    %3726 = vmatprep.subr.mxu0 0.0
    %3727 = vmatpush1.msra.mxu0 0.0
    %3728 = vmatprep.subr.mxu0 0.0
    %3729 = vmatpush1.msra.mxu0 0.0
    %3730 = vmatprep.subr.mxu0 0.0
    %3731 = vmatpush1.msra.mxu0 0.0
    %3732 = vmatprep.subr.mxu0 0.0
    %3733 = vmatpush1.msra.mxu0 0.0
    %3734 = vmatprep.subr.mxu0 0.0
    %3735 = vmatpush1.msra.mxu0 0.0
    %3736 = vmatprep.subr.mxu0 0.0
    %3737 = vmatpush1.msra.mxu0 0.0
    %3738 = vmatprep.subr.mxu0 0.0
    %3739 = vmatpush1.msra.mxu0 0.0
    %3740 = vmatprep.subr.mxu0 0.0
    %3741 = vmatpush1.msra.mxu0 0.0
    %3742 = vmatprep.subr.mxu0 0.0
    %3743 = vmatpush1.msra.mxu0 0.0
    %3744 = vmatprep.subr.mxu0 0.0
    %3745 = vmatpush1.msra.mxu0 0.0
    %3746 = vmatprep.subr.mxu0 0.0
    %3747 = vmatpush1.msra.mxu0 0.0
    %3748 = vmatprep.subr.mxu0 0.0
    %3749 = vmatpush1.msra.mxu0 0.0
    %3750 = vmatprep.subr.mxu0 0.0
    %3751 = vmatpush1.msra.mxu0 0.0
    %3752 = vmatprep.subr.mxu0 0.0
    %3753 = vmatpush1.msra.mxu0 0.0
    %3754 = vmatprep.subr.mxu0 0.0
    %3755 = vmatpush1.msra.mxu0 0.0
    %3756 = vmatprep.subr.mxu0 0.0
    %3757 = vmatpush1.msra.mxu0 0.0
    %3758 = vmatprep.subr.mxu0 0.0
    %3759 = vmatpush1.msra.mxu0 0.0
    %3760 = vmatprep.subr.mxu0 0.0
    %3761 = vmatpush1.msra.mxu0 0.0
    %3762 = vmatprep.subr.mxu0 0.0
    %3763 = vmatpush1.msra.mxu0 0.0
    %3764 = vmatprep.subr.mxu0 0.0
    %3765 = vmatpush1.msra.mxu0 0.0
    %3766 = vmatprep.subr.mxu0 0.0
    %3767 = vmatpush1.msra.mxu0 0.0
    %3768 = vmatprep.subr.mxu0 0.0
    %3769 = vmatpush1.msra.mxu0 0.0
    %3770 = vmatprep.subr.mxu0 0.0
    %3771 = vmatpush1.msra.mxu0 0.0
    %3772 = vmatprep.subr.mxu0 0.0
    %3773 = vmatpush1.msra.mxu0 0.0
    %3774 = vmatprep.subr.mxu0 0.0
    %3775 = vmatpush1.msra.mxu0 0.0
    %3776 = vmatprep.subr.mxu0 0.0
    %3777 = vmatpush1.msra.mxu0 0.0
    %3778 = vmatprep.subr.mxu0 0.0
    %3779 = vmatpush1.msra.mxu0 0.0
    %3780 = vmatprep.subr.mxu0 0.0
    %3781 = vmatpush1.msra.mxu0 0.0
    %3782 = vmatprep.subr.mxu0 0.0
    %3783 = vmatpush1.msra.mxu0 0.0
    %3784 = vmatprep.subr.mxu0 0.0
    %3785 = vmatpush1.msra.mxu0 0.0
    %3786 = vmatprep.mubr.f32.mxu0 0.0
    %3787 = vmatmul.mubr.f32.gmra.mrb[0].mxu0 %v3711
    %v3788 = vpop.f32.mrb[0].mxu0
    %v3789 = vadd.f32 %v3692, %v3788
    %v3790 = vpop.f32.mrb[0].mxu0
    %3791 = vmatprep.mubr.f32.mxu0 0.0
    %3792 = vmatmul.mubr.f32.gmra.mrb[0].mxu0 %v3714
    %v3793 = vpop.f32.mrb[0].mxu0
    %v3794 = vadd.f32 %v3697, %v3793
    %v3795 = vpop.f32.mrb[0].mxu0
    %3796 = vmatprep.mubr.f32.mxu0 0.0
    %3797 = vmatmul.mubr.f32.gmra.mrb[0].mxu0 %v3717
    %v3798 = vpop.f32.mrb[0].mxu0
    %v3799 = vadd.f32 %v3702, %v3798
    %v3800 = vpop.f32.mrb[0].mxu0
    %3801 = vmatprep.mubr.f32.mxu0 0.0
    %3802 = vmatmul.mubr.f32.gmra.mrb[0].mxu0 %v3720
    %v3803 = vpop.f32.mrb[0].mxu0
    %v3804 = vadd.f32 %v3707, %v3803
    %v3805 = vpop.f32.mrb[0].mxu0
    %3806 = vdwg.mxu0
    %s3807 = scalar_lea.vmem %s55, 64
    %v3808 = vld [vmem:[%s3807] sm:$0xff]
    %v3809 = vld [vmem:[%s3807 + $0x8] sm:$0xff]
    %v3810 = vld [vmem:[%s3807 + $0x10] sm:$0xff]
    %v3811 = vld [vmem:[%s3807 + $0x18] sm:$0xff]
    %s3812 = scalar_lea.vmem [#allocation29], 128
    %v3813 = vld [vmem:[%s3812] sm:$0xff]
    %v3814 = vld [vmem:[%s3812 + $0x8] sm:$0xff]
    %v3815 = vld [vmem:[%s3812 + $0x10] sm:$0xff]
    %v3816 = vld [vmem:[%s3812 + $0x18] sm:$0xff]
    %v3817 = vld [vmem:[%s3812 + $0x20] sm:$0xff]
    %v3818 = vld [vmem:[%s3812 + $0x28] sm:$0xff]
    %v3819 = vld [vmem:[%s3812 + $0x30] sm:$0xff]
    %v3820 = vld [vmem:[%s3812 + $0x38] sm:$0xff]
    %3821 = vmatprep.subr.mxu0 0.0
    %3822 = vmatpush1.msra.mxu0 %v3813
    %3823 = vmatprep.subr.mxu0 0.0
    %3824 = vmatpush1.msra.mxu0 %v3814
    %3825 = vmatprep.subr.mxu0 0.0
    %3826 = vmatpush1.msra.mxu0 %v3815
    %3827 = vmatprep.subr.mxu0 0.0
    %3828 = vmatpush1.msra.mxu0 %v3816
    %3829 = vmatprep.subr.mxu0 0.0
    %3830 = vmatpush1.msra.mxu0 %v3817
    %3831 = vmatprep.subr.mxu0 0.0
    %3832 = vmatpush1.msra.mxu0 %v3818
    %3833 = vmatprep.subr.mxu0 0.0
    %3834 = vmatpush1.msra.mxu0 %v3819
    %3835 = vmatprep.subr.mxu0 0.0
    %3836 = vmatpush1.msra.mxu0 %v3820
    %3837 = vmatprep.subr.mxu0 0.0
    %3838 = vmatpush1.msra.mxu0 0.0
    %3839 = vmatprep.subr.mxu0 0.0
    %3840 = vmatpush1.msra.mxu0 0.0
    %3841 = vmatprep.subr.mxu0 0.0
    %3842 = vmatpush1.msra.mxu0 0.0
    %3843 = vmatprep.subr.mxu0 0.0
    %3844 = vmatpush1.msra.mxu0 0.0
    %3845 = vmatprep.subr.mxu0 0.0
    %3846 = vmatpush1.msra.mxu0 0.0
    %3847 = vmatprep.subr.mxu0 0.0
    %3848 = vmatpush1.msra.mxu0 0.0
    %3849 = vmatprep.subr.mxu0 0.0
    %3850 = vmatpush1.msra.mxu0 0.0
    %3851 = vmatprep.subr.mxu0 0.0
    %3852 = vmatpush1.msra.mxu0 0.0
    %3853 = vmatprep.subr.mxu0 0.0
    %3854 = vmatpush1.msra.mxu0 0.0
    %3855 = vmatprep.subr.mxu0 0.0
    %3856 = vmatpush1.msra.mxu0 0.0
    %3857 = vmatprep.subr.mxu0 0.0
    %3858 = vmatpush1.msra.mxu0 0.0
    %3859 = vmatprep.subr.mxu0 0.0
    %3860 = vmatpush1.msra.mxu0 0.0
    %3861 = vmatprep.subr.mxu0 0.0
    %3862 = vmatpush1.msra.mxu0 0.0
    %3863 = vmatprep.subr.mxu0 0.0
    %3864 = vmatpush1.msra.mxu0 0.0
    %3865 = vmatprep.subr.mxu0 0.0
    %3866 = vmatpush1.msra.mxu0 0.0
    %3867 = vmatprep.subr.mxu0 0.0
    %3868 = vmatpush1.msra.mxu0 0.0
    %3869 = vmatprep.subr.mxu0 0.0
    %3870 = vmatpush1.msra.mxu0 0.0
    %3871 = vmatprep.subr.mxu0 0.0
    %3872 = vmatpush1.msra.mxu0 0.0
    %3873 = vmatprep.subr.mxu0 0.0
    %3874 = vmatpush1.msra.mxu0 0.0
    %3875 = vmatprep.subr.mxu0 0.0
    %3876 = vmatpush1.msra.mxu0 0.0
    %3877 = vmatprep.subr.mxu0 0.0
    %3878 = vmatpush1.msra.mxu0 0.0
    %3879 = vmatprep.subr.mxu0 0.0
    %3880 = vmatpush1.msra.mxu0 0.0
    %3881 = vmatprep.subr.mxu0 0.0
    %3882 = vmatpush1.msra.mxu0 0.0
    %3883 = vmatprep.subr.mxu0 0.0
    %3884 = vmatpush1.msra.mxu0 0.0
    %3885 = vmatprep.mubr.f32.mxu0 0.0
    %3886 = vmatmul.mubr.f32.gmra.mrb[0].mxu0 %v3444
    %v3887 = vpop.f32.mrb[0].mxu0
    %v3888 = vadd.f32 0.0, %v3887
    %v3889 = vpop.f32.mrb[0].mxu0
    %3890 = vmatprep.mubr.f32.mxu0 0.0
    %3891 = vmatmul.mubr.f32.gmra.mrb[0].mxu0 %v3447
    %v3892 = vpop.f32.mrb[0].mxu0
    %v3893 = vadd.f32 0.0, %v3892
    %v3894 = vpop.f32.mrb[0].mxu0
    %3895 = vdwg.mxu0
    %v3897 = vsel %vm625, %v3808, 0
    %v3900 = vsel %vm625, %v3809, 0
    %v3903 = vsel %vm625, %v3810, 0
    %v3906 = vsel %vm625, %v3811, 0
    %3908 = vmatprep.subr.mxu0 0.0
    %3909 = vmatpush1.msra.mxu0 %v3888
    %3910 = vmatprep.subr.mxu0 0.0
    %3911 = vmatpush1.msra.mxu0 %v3893
    %3912 = vmatprep.subr.mxu0 0.0
    %3913 = vmatpush1.msra.mxu0 0.0
    %3914 = vmatprep.subr.mxu0 0.0
    %3915 = vmatpush1.msra.mxu0 0.0
    %3916 = vmatprep.subr.mxu0 0.0
    %3917 = vmatpush1.msra.mxu0 0.0
    %3918 = vmatprep.subr.mxu0 0.0
    %3919 = vmatpush1.msra.mxu0 0.0
    %3920 = vmatprep.subr.mxu0 0.0
    %3921 = vmatpush1.msra.mxu0 0.0
    %3922 = vmatprep.subr.mxu0 0.0
    %3923 = vmatpush1.msra.mxu0 0.0
    %3924 = vmatprep.subr.mxu0 0.0
    %3925 = vmatpush1.msra.mxu0 0.0
    %3926 = vmatprep.subr.mxu0 0.0
    %3927 = vmatpush1.msra.mxu0 0.0
    %3928 = vmatprep.subr.mxu0 0.0
    %3929 = vmatpush1.msra.mxu0 0.0
    %3930 = vmatprep.subr.mxu0 0.0
    %3931 = vmatpush1.msra.mxu0 0.0
    %3932 = vmatprep.subr.mxu0 0.0
    %3933 = vmatpush1.msra.mxu0 0.0
    %3934 = vmatprep.subr.mxu0 0.0
    %3935 = vmatpush1.msra.mxu0 0.0
    %3936 = vmatprep.subr.mxu0 0.0
    %3937 = vmatpush1.msra.mxu0 0.0
    %3938 = vmatprep.subr.mxu0 0.0
    %3939 = vmatpush1.msra.mxu0 0.0
    %3940 = vmatprep.subr.mxu0 0.0
    %3941 = vmatpush1.msra.mxu0 0.0
    %3942 = vmatprep.subr.mxu0 0.0
    %3943 = vmatpush1.msra.mxu0 0.0
    %3944 = vmatprep.subr.mxu0 0.0
    %3945 = vmatpush1.msra.mxu0 0.0
    %3946 = vmatprep.subr.mxu0 0.0
    %3947 = vmatpush1.msra.mxu0 0.0
    %3948 = vmatprep.subr.mxu0 0.0
    %3949 = vmatpush1.msra.mxu0 0.0
    %3950 = vmatprep.subr.mxu0 0.0
    %3951 = vmatpush1.msra.mxu0 0.0
    %3952 = vmatprep.subr.mxu0 0.0
    %3953 = vmatpush1.msra.mxu0 0.0
    %3954 = vmatprep.subr.mxu0 0.0
    %3955 = vmatpush1.msra.mxu0 0.0
    %3956 = vmatprep.subr.mxu0 0.0
    %3957 = vmatpush1.msra.mxu0 0.0
    %3958 = vmatprep.subr.mxu0 0.0
    %3959 = vmatpush1.msra.mxu0 0.0
    %3960 = vmatprep.subr.mxu0 0.0
    %3961 = vmatpush1.msra.mxu0 0.0
    %3962 = vmatprep.subr.mxu0 0.0
    %3963 = vmatpush1.msra.mxu0 0.0
    %3964 = vmatprep.subr.mxu0 0.0
    %3965 = vmatpush1.msra.mxu0 0.0
    %3966 = vmatprep.subr.mxu0 0.0
    %3967 = vmatpush1.msra.mxu0 0.0
    %3968 = vmatprep.subr.mxu0 0.0
    %3969 = vmatpush1.msra.mxu0 0.0
    %3970 = vmatprep.subr.mxu0 0.0
    %3971 = vmatpush1.msra.mxu0 0.0
    %3972 = vmatprep.mubr.f32.mxu0 0.0
    %3973 = vmatmul.mubr.f32.gmra.mrb[0].mxu0 %v3897
    %v3974 = vpop.f32.mrb[0].mxu0
    %v3975 = vadd.f32 0.0, %v3974
    %v3976 = vpop.f32.mrb[0].mxu0
    %3977 = vmatprep.mubr.f32.mxu0 0.0
    %3978 = vmatmul.mubr.f32.gmra.mrb[0].mxu0 %v3900
    %v3979 = vpop.f32.mrb[0].mxu0
    %v3980 = vadd.f32 0.0, %v3979
    %v3981 = vpop.f32.mrb[0].mxu0
    %3982 = vmatprep.mubr.f32.mxu0 0.0
    %3983 = vmatmul.mubr.f32.gmra.mrb[0].mxu0 %v3903
    %v3984 = vpop.f32.mrb[0].mxu0
    %v3985 = vadd.f32 0.0, %v3984
    %v3986 = vpop.f32.mrb[0].mxu0
    %3987 = vmatprep.mubr.f32.mxu0 0.0
    %3988 = vmatmul.mubr.f32.gmra.mrb[0].mxu0 %v3906
    %v3989 = vpop.f32.mrb[0].mxu0
    %v3990 = vadd.f32 0.0, %v3989
    %v3991 = vpop.f32.mrb[0].mxu0
    %3992 = vdwg.mxu0
    %v3993 = vadd.f32 %v3789, %v3975
    %v3994 = vadd.f32 %v3794, %v3980
    %v3995 = vadd.f32 %v3799, %v3985
    %v3996 = vadd.f32 %v3804, %v3990
    %v3997 = vld [vmem:[#allocation31] sm:$0x1]
    %v3999 = vlaneseq
    %v4000 = vshrl.u32 %v3999, 7
    %v4001 = vsub.s32 0, %v4000
    %v4002 = vrot.slane %v3997, %v4001
    %v4004 = vadd.f32 %v3993, %v4002
    %v4005 = vadd.f32 %v3994, %v4002
    %v4006 = vadd.f32 %v3995, %v4002
    %v4007 = vadd.f32 %v3996, %v4002
    %v4008 = vld [vmem:[%s17] sm:$0xff]
    %v4009 = vld [vmem:[%s17 + $0x8] sm:$0xff]
    %v4010 = vld [vmem:[%s17 + $0x10] sm:$0xff]
    %v4011 = vld [vmem:[%s17 + $0x18] sm:$0xff]
    %v4012 = vld [vmem:[%s17 + $0x20] sm:$0xff]
    %v4013 = vld [vmem:[%s17 + $0x28] sm:$0xff]
    %v4014 = vld [vmem:[%s17 + $0x30] sm:$0xff]
    %v4015 = vld [vmem:[%s17 + $0x38] sm:$0xff]
    %v4016 = vld [vmem:[%s17 + $0x40] sm:$0xff]
    %v4017 = vld [vmem:[%s17 + $0x48] sm:$0xff]
    %v4018 = vld [vmem:[%s17 + $0x50] sm:$0xff]
    %v4019 = vld [vmem:[%s17 + $0x58] sm:$0xff]
    %v4020 = vld [vmem:[%s17 + $0x60] sm:$0xff]
    %v4021 = vld [vmem:[%s17 + $0x68] sm:$0xff]
    %v4022 = vld [vmem:[%s17 + $0x70] sm:$0xff]
    %v4023 = vld [vmem:[%s17 + $0x78] sm:$0xff]
    %v4024 = vld [vmem:[#allocation8] sm:$0xff]
    %v4025 = vadd.f32 %v4004, %v4005
    %v4026 = vadd.f32 %v4025, %v4006
    %v4027 = vadd.f32 %v4026, %v4007
    %v4028 = vrot.slane %v4027, 4
    %v4029 = vadd.f32 %v4027, %v4028
    %v4030 = vrot.slane %v4029, 2
    %v4031 = vadd.f32 %v4029, %v4030
    %v4032 = vrot.slane %v4031, 1
    %v4033 = vadd.f32 %v4031, %v4032
    %v4034 = vmul.f32 %v4004, %v4004
    %v4035 = vmul.f32 %v4005, %v4005
    %v4036 = vmul.f32 %v4006, %v4006
    %v4037 = vmul.f32 %v4007, %v4007
    %v4038 = vadd.f32 %v4034, %v4035
    %v4039 = vadd.f32 %v4038, %v4036
    %v4040 = vadd.f32 %v4039, %v4037
    %v4041 = vrot.slane %v4040, 4
    %v4042 = vadd.f32 %v4040, %v4041
    %v4043 = vrot.slane %v4042, 2
    %v4044 = vadd.f32 %v4042, %v4043
    %v4045 = vrot.slane %v4044, 1
    %v4046 = vadd.f32 %v4044, %v4045
    %4047 = vmatprep.subr.mxu0 0.0
    %4048 = vmatpush1.msra.mxu0 %v4008
    %4049 = vmatprep.subr.mxu0 0.0
    %4050 = vmatpush1.msra.mxu0 %v4009
    %4051 = vmatprep.subr.mxu0 0.0
    %4052 = vmatpush1.msra.mxu0 %v4010
    %4053 = vmatprep.subr.mxu0 0.0
    %4054 = vmatpush1.msra.mxu0 %v4011
    %4055 = vmatprep.subr.mxu0 0.0
    %4056 = vmatpush1.msra.mxu0 %v4012
    %4057 = vmatprep.subr.mxu0 0.0
    %4058 = vmatpush1.msra.mxu0 %v4013
    %4059 = vmatprep.subr.mxu0 0.0
    %4060 = vmatpush1.msra.mxu0 %v4014
    %4061 = vmatprep.subr.mxu0 0.0
    %4062 = vmatpush1.msra.mxu0 %v4015
    %4063 = vmatprep.subr.mxu0 0.0
    %4064 = vmatpush1.msra.mxu0 %v4016
    %4065 = vmatprep.subr.mxu0 0.0
    %4066 = vmatpush1.msra.mxu0 %v4017
    %4067 = vmatprep.subr.mxu0 0.0
    %4068 = vmatpush1.msra.mxu0 %v4018
    %4069 = vmatprep.subr.mxu0 0.0
    %4070 = vmatpush1.msra.mxu0 %v4019
    %4071 = vmatprep.subr.mxu0 0.0
    %4072 = vmatpush1.msra.mxu0 %v4020
    %4073 = vmatprep.subr.mxu0 0.0
    %4074 = vmatpush1.msra.mxu0 %v4021
    %4075 = vmatprep.subr.mxu0 0.0
    %4076 = vmatpush1.msra.mxu0 %v4022
    %4077 = vmatprep.subr.mxu0 0.0
    %4078 = vmatpush1.msra.mxu0 %v4023
    %4079 = vmatprep.subr.mxu0 0.0
    %4080 = vmatpush1.msra.mxu0 0.0
    %4081 = vmatprep.subr.mxu0 0.0
    %4082 = vmatpush1.msra.mxu0 0.0
    %4083 = vmatprep.subr.mxu0 0.0
    %4084 = vmatpush1.msra.mxu0 0.0
    %4085 = vmatprep.subr.mxu0 0.0
    %4086 = vmatpush1.msra.mxu0 0.0
    %4087 = vmatprep.subr.mxu0 0.0
    %4088 = vmatpush1.msra.mxu0 0.0
    %4089 = vmatprep.subr.mxu0 0.0
    %4090 = vmatpush1.msra.mxu0 0.0
    %4091 = vmatprep.subr.mxu0 0.0
    %4092 = vmatpush1.msra.mxu0 0.0
    %4093 = vmatprep.subr.mxu0 0.0
    %4094 = vmatpush1.msra.mxu0 0.0
    %4095 = vmatprep.subr.mxu0 0.0
    %4096 = vmatpush1.msra.mxu0 0.0
    %4097 = vmatprep.subr.mxu0 0.0
    %4098 = vmatpush1.msra.mxu0 0.0
    %4099 = vmatprep.subr.mxu0 0.0
    %4100 = vmatpush1.msra.mxu0 0.0
    %4101 = vmatprep.subr.mxu0 0.0
    %4102 = vmatpush1.msra.mxu0 0.0
    %4103 = vmatprep.subr.mxu0 0.0
    %4104 = vmatpush1.msra.mxu0 0.0
    %4105 = vmatprep.subr.mxu0 0.0
    %4106 = vmatpush1.msra.mxu0 0.0
    %4107 = vmatprep.subr.mxu0 0.0
    %4108 = vmatpush1.msra.mxu0 0.0
    %4109 = vmatprep.subr.mxu0 0.0
    %4110 = vmatpush1.msra.mxu0 0.0
    %4111 = vmatprep.mubr.f32.mxu0 0.0
    %4112 = vmatmul.mubr.f32.gmra.mrb[0].mxu0 %v4033
    %v4113 = vpop.f32.mrb[0].mxu0
    %v4114 = vadd.f32 0.0, %v4113
    %v4115 = vpop.f32.mrb[0].mxu0
    %4116 = vdwg.mxu0
    %4117 = vmatprep.subr.mxu0 0.0
    %4118 = vmatpush1.msra.mxu0 %v4008
    %4119 = vmatprep.subr.mxu0 0.0
    %4120 = vmatpush1.msra.mxu0 %v4009
    %4121 = vmatprep.subr.mxu0 0.0
    %4122 = vmatpush1.msra.mxu0 %v4010
    %4123 = vmatprep.subr.mxu0 0.0
    %4124 = vmatpush1.msra.mxu0 %v4011
    %4125 = vmatprep.subr.mxu0 0.0
    %4126 = vmatpush1.msra.mxu0 %v4012
    %4127 = vmatprep.subr.mxu0 0.0
    %4128 = vmatpush1.msra.mxu0 %v4013
    %4129 = vmatprep.subr.mxu0 0.0
    %4130 = vmatpush1.msra.mxu0 %v4014
    %4131 = vmatprep.subr.mxu0 0.0
    %4132 = vmatpush1.msra.mxu0 %v4015
    %4133 = vmatprep.subr.mxu0 0.0
    %4134 = vmatpush1.msra.mxu0 %v4016
    %4135 = vmatprep.subr.mxu0 0.0
    %4136 = vmatpush1.msra.mxu0 %v4017
    %4137 = vmatprep.subr.mxu0 0.0
    %4138 = vmatpush1.msra.mxu0 %v4018
    %4139 = vmatprep.subr.mxu0 0.0
    %4140 = vmatpush1.msra.mxu0 %v4019
    %4141 = vmatprep.subr.mxu0 0.0
    %4142 = vmatpush1.msra.mxu0 %v4020
    %4143 = vmatprep.subr.mxu0 0.0
    %4144 = vmatpush1.msra.mxu0 %v4021
    %4145 = vmatprep.subr.mxu0 0.0
    %4146 = vmatpush1.msra.mxu0 %v4022
    %4147 = vmatprep.subr.mxu0 0.0
    %4148 = vmatpush1.msra.mxu0 %v4023
    %4149 = vmatprep.subr.mxu0 0.0
    %4150 = vmatpush1.msra.mxu0 0.0
    %4151 = vmatprep.subr.mxu0 0.0
    %4152 = vmatpush1.msra.mxu0 0.0
    %4153 = vmatprep.subr.mxu0 0.0
    %4154 = vmatpush1.msra.mxu0 0.0
    %4155 = vmatprep.subr.mxu0 0.0
    %4156 = vmatpush1.msra.mxu0 0.0
    %4157 = vmatprep.subr.mxu0 0.0
    %4158 = vmatpush1.msra.mxu0 0.0
    %4159 = vmatprep.subr.mxu0 0.0
    %4160 = vmatpush1.msra.mxu0 0.0
    %4161 = vmatprep.subr.mxu0 0.0
    %4162 = vmatpush1.msra.mxu0 0.0
    %4163 = vmatprep.subr.mxu0 0.0
    %4164 = vmatpush1.msra.mxu0 0.0
    %4165 = vmatprep.subr.mxu0 0.0
    %4166 = vmatpush1.msra.mxu0 0.0
    %4167 = vmatprep.subr.mxu0 0.0
    %4168 = vmatpush1.msra.mxu0 0.0
    %4169 = vmatprep.subr.mxu0 0.0
    %4170 = vmatpush1.msra.mxu0 0.0
    %4171 = vmatprep.subr.mxu0 0.0
    %4172 = vmatpush1.msra.mxu0 0.0
    %4173 = vmatprep.subr.mxu0 0.0
    %4174 = vmatpush1.msra.mxu0 0.0
    %4175 = vmatprep.subr.mxu0 0.0
    %4176 = vmatpush1.msra.mxu0 0.0
    %4177 = vmatprep.subr.mxu0 0.0
    %4178 = vmatpush1.msra.mxu0 0.0
    %4179 = vmatprep.subr.mxu0 0.0
    %4180 = vmatpush1.msra.mxu0 0.0
    %4181 = vmatprep.mubr.f32.mxu0 0.0
    %4182 = vmatmul.mubr.f32.gmra.mrb[0].mxu0 %v4046
    %v4183 = vpop.f32.mrb[0].mxu0
    %v4184 = vadd.f32 0.0, %v4183
    %v4185 = vpop.f32.mrb[0].mxu0
    %4186 = vdwg.mxu0
    %v4187 = vmul.f32 %v4114, 0.001953125
    %v4188 = vmul.f32 %v4184, 0.001953125
    %v4189 = vmul.f32 %v4187, %v4187
    %v4190 = vsub.f32 %v4188, %v4189
    %v4191 = vld [vmem:[#allocation32] sm:$0x1]
    %v4192 = vadd.f32 %v4190, 1e-05
    %v4193 = vrsqrt.pop %v4192
    %v4194 = vmul.f32 %v4191, %v4193
    %v4195 = vld [vmem:[#allocation34] sm:$0x1]
    %v4196 = vmul.f32 %v4187, %v4194
    %v4197 = vsub.f32 %v4195, %v4196
    %v4199 = vsel %vm1412, %v4194, 0
    %4201 = vmatprep.subr.mxu0 0.0
    %4202 = vmatpush1.msra.mxu0 %v4024
    %4203 = vmatprep.subr.mxu0 0.0
    %4204 = vmatpush1.msra.mxu0 0.0
    %4205 = vmatprep.subr.mxu0 0.0
    %4206 = vmatpush1.msra.mxu0 0.0
    %4207 = vmatprep.subr.mxu0 0.0
    %4208 = vmatpush1.msra.mxu0 0.0
    %4209 = vmatprep.subr.mxu0 0.0
    %4210 = vmatpush1.msra.mxu0 0.0
    %4211 = vmatprep.subr.mxu0 0.0
    %4212 = vmatpush1.msra.mxu0 0.0
    %4213 = vmatprep.subr.mxu0 0.0
    %4214 = vmatpush1.msra.mxu0 0.0
    %4215 = vmatprep.subr.mxu0 0.0
    %4216 = vmatpush1.msra.mxu0 0.0
    %4217 = vmatprep.subr.mxu0 0.0
    %4218 = vmatpush1.msra.mxu0 0.0
    %4219 = vmatprep.subr.mxu0 0.0
    %4220 = vmatpush1.msra.mxu0 0.0
    %4221 = vmatprep.subr.mxu0 0.0
    %4222 = vmatpush1.msra.mxu0 0.0
    %4223 = vmatprep.subr.mxu0 0.0
    %4224 = vmatpush1.msra.mxu0 0.0
    %4225 = vmatprep.subr.mxu0 0.0
    %4226 = vmatpush1.msra.mxu0 0.0
    %4227 = vmatprep.subr.mxu0 0.0
    %4228 = vmatpush1.msra.mxu0 0.0
    %4229 = vmatprep.subr.mxu0 0.0
    %4230 = vmatpush1.msra.mxu0 0.0
    %4231 = vmatprep.subr.mxu0 0.0
    %4232 = vmatpush1.msra.mxu0 0.0
    %4233 = vmatprep.subr.mxu0 0.0
    %4234 = vmatpush1.msra.mxu0 0.0
    %4235 = vmatprep.subr.mxu0 0.0
    %4236 = vmatpush1.msra.mxu0 0.0
    %4237 = vmatprep.subr.mxu0 0.0
    %4238 = vmatpush1.msra.mxu0 0.0
    %4239 = vmatprep.subr.mxu0 0.0
    %4240 = vmatpush1.msra.mxu0 0.0
    %4241 = vmatprep.subr.mxu0 0.0
    %4242 = vmatpush1.msra.mxu0 0.0
    %4243 = vmatprep.subr.mxu0 0.0
    %4244 = vmatpush1.msra.mxu0 0.0
    %4245 = vmatprep.subr.mxu0 0.0
    %4246 = vmatpush1.msra.mxu0 0.0
    %4247 = vmatprep.subr.mxu0 0.0
    %4248 = vmatpush1.msra.mxu0 0.0
    %4249 = vmatprep.subr.mxu0 0.0
    %4250 = vmatpush1.msra.mxu0 0.0
    %4251 = vmatprep.subr.mxu0 0.0
    %4252 = vmatpush1.msra.mxu0 0.0
    %4253 = vmatprep.subr.mxu0 0.0
    %4254 = vmatpush1.msra.mxu0 0.0
    %4255 = vmatprep.subr.mxu0 0.0
    %4256 = vmatpush1.msra.mxu0 0.0
    %4257 = vmatprep.subr.mxu0 0.0
    %4258 = vmatpush1.msra.mxu0 0.0
    %4259 = vmatprep.subr.mxu0 0.0
    %4260 = vmatpush1.msra.mxu0 0.0
    %4261 = vmatprep.subr.mxu0 0.0
    %4262 = vmatpush1.msra.mxu0 0.0
    %4263 = vmatprep.subr.mxu0 0.0
    %4264 = vmatpush1.msra.mxu0 0.0
    %4265 = vmatprep.mubr.f32.mxu0 0.0
    %4266 = vmatmul.mubr.f32.gmra.mrb[0].mxu0 %v4199
    %v4267 = vpop.f32.mrb[0].mxu0
    %v4268 = vadd.f32 0.0, %v4267
    %v4269 = vpop.f32.mrb[0].mxu0
    %4270 = vdwg.mxu0
    %v4272 = vsel %vm1412, %v4197, 0
    %4274 = vmatprep.subr.mxu0 0.0
    %4275 = vmatpush1.msra.mxu0 %v4024
    %4276 = vmatprep.subr.mxu0 0.0
    %4277 = vmatpush1.msra.mxu0 0.0
    %4278 = vmatprep.subr.mxu0 0.0
    %4279 = vmatpush1.msra.mxu0 0.0
    %4280 = vmatprep.subr.mxu0 0.0
    %4281 = vmatpush1.msra.mxu0 0.0
    %4282 = vmatprep.subr.mxu0 0.0
    %4283 = vmatpush1.msra.mxu0 0.0
    %4284 = vmatprep.subr.mxu0 0.0
    %4285 = vmatpush1.msra.mxu0 0.0
    %4286 = vmatprep.subr.mxu0 0.0
    %4287 = vmatpush1.msra.mxu0 0.0
    %4288 = vmatprep.subr.mxu0 0.0
    %4289 = vmatpush1.msra.mxu0 0.0
    %4290 = vmatprep.subr.mxu0 0.0
    %4291 = vmatpush1.msra.mxu0 0.0
    %4292 = vmatprep.subr.mxu0 0.0
    %4293 = vmatpush1.msra.mxu0 0.0
    %4294 = vmatprep.subr.mxu0 0.0
    %4295 = vmatpush1.msra.mxu0 0.0
    %4296 = vmatprep.subr.mxu0 0.0
    %4297 = vmatpush1.msra.mxu0 0.0
    %4298 = vmatprep.subr.mxu0 0.0
    %4299 = vmatpush1.msra.mxu0 0.0
    %4300 = vmatprep.subr.mxu0 0.0
    %4301 = vmatpush1.msra.mxu0 0.0
    %4302 = vmatprep.subr.mxu0 0.0
    %4303 = vmatpush1.msra.mxu0 0.0
    %4304 = vmatprep.subr.mxu0 0.0
    %4305 = vmatpush1.msra.mxu0 0.0
    %4306 = vmatprep.subr.mxu0 0.0
    %4307 = vmatpush1.msra.mxu0 0.0
    %4308 = vmatprep.subr.mxu0 0.0
    %4309 = vmatpush1.msra.mxu0 0.0
    %4310 = vmatprep.subr.mxu0 0.0
    %4311 = vmatpush1.msra.mxu0 0.0
    %4312 = vmatprep.subr.mxu0 0.0
    %4313 = vmatpush1.msra.mxu0 0.0
    %4314 = vmatprep.subr.mxu0 0.0
    %4315 = vmatpush1.msra.mxu0 0.0
    %4316 = vmatprep.subr.mxu0 0.0
    %4317 = vmatpush1.msra.mxu0 0.0
    %4318 = vmatprep.subr.mxu0 0.0
    %4319 = vmatpush1.msra.mxu0 0.0
    %4320 = vmatprep.subr.mxu0 0.0
    %4321 = vmatpush1.msra.mxu0 0.0
    %4322 = vmatprep.subr.mxu0 0.0
    %4323 = vmatpush1.msra.mxu0 0.0
    %4324 = vmatprep.subr.mxu0 0.0
    %4325 = vmatpush1.msra.mxu0 0.0
    %4326 = vmatprep.subr.mxu0 0.0
    %4327 = vmatpush1.msra.mxu0 0.0
    %4328 = vmatprep.subr.mxu0 0.0
    %4329 = vmatpush1.msra.mxu0 0.0
    %4330 = vmatprep.subr.mxu0 0.0
    %4331 = vmatpush1.msra.mxu0 0.0
    %4332 = vmatprep.subr.mxu0 0.0
    %4333 = vmatpush1.msra.mxu0 0.0
    %4334 = vmatprep.subr.mxu0 0.0
    %4335 = vmatpush1.msra.mxu0 0.0
    %4336 = vmatprep.subr.mxu0 0.0
    %4337 = vmatpush1.msra.mxu0 0.0
    %4338 = vmatprep.mubr.f32.mxu0 0.0
    %4339 = vmatmul.mubr.f32.gmra.mrb[0].mxu0 %v4272
    %v4340 = vpop.f32.mrb[0].mxu0
    %v4341 = vadd.f32 0.0, %v4340
    %v4342 = vpop.f32.mrb[0].mxu0
    %4343 = vdwg.mxu0
    %v4344 = vlaneseq
    %v4345 = vshrl.u32 %v4344, 7
    %v4346 = vsub.s32 0, %v4345
    %v4347 = vrot.slane %v4268, %v4346
    %v4348 = vmul.f32 %v4004, %v4347
    %v4349 = vmul.f32 %v4005, %v4347
    %v4350 = vmul.f32 %v4006, %v4347
    %v4351 = vmul.f32 %v4007, %v4347
    %v4352 = vlaneseq
    %v4353 = vshrl.u32 %v4352, 7
    %v4354 = vsub.s32 0, %v4353
    %v4355 = vrot.slane %v4341, %v4354
    %v4356 = vadd.f32 %v4348, %v4355
    %v4357 = vadd.f32 %v4349, %v4355
    %v4358 = vadd.f32 %v4350, %v4355
    %v4359 = vadd.f32 %v4351, %v4355
    %v4360 = vmax.f32 %v4356, 0.0
    %v4361 = vmax.f32 %v4357, 0.0
    %v4362 = vmax.f32 %v4358, 0.0
    %v4363 = vmax.f32 %v4359, 0.0
    %v4364 = vld [vmem:[#allocation35] sm:$0xff]
    %v4365 = vld [vmem:[#allocation35 + $0x8] sm:$0xff]
    %v4366 = vld [vmem:[#allocation35 + $0x10] sm:$0xff]
    %v4367 = vld [vmem:[#allocation35 + $0x18] sm:$0xff]
    %v4368 = vld [vmem:[%s67] sm:$0xff]
    %v4369 = vld [vmem:[%s67 + $0x8] sm:$0xff]
    %v4370 = vld [vmem:[%s67 + $0x10] sm:$0xff]
    %v4371 = vld [vmem:[%s67 + $0x18] sm:$0xff]
    %v4372 = vld [vmem:[%s67 + $0x20] sm:$0xff]
    %v4373 = vld [vmem:[%s67 + $0x28] sm:$0xff]
    %v4374 = vld [vmem:[%s67 + $0x30] sm:$0xff]
    %v4375 = vld [vmem:[%s67 + $0x38] sm:$0xff]
    %v4376 = vld [vmem:[%s67 + $0x40] sm:$0xff]
    %v4377 = vld [vmem:[%s67 + $0x48] sm:$0xff]
    %v4378 = vld [vmem:[%s67 + $0x50] sm:$0xff]
    %v4379 = vld [vmem:[%s67 + $0x58] sm:$0xff]
    %v4380 = vld [vmem:[%s67 + $0x60] sm:$0xff]
    %v4381 = vld [vmem:[%s67 + $0x68] sm:$0xff]
    %v4382 = vld [vmem:[%s67 + $0x70] sm:$0xff]
    %v4383 = vld [vmem:[%s67 + $0x78] sm:$0xff]
    %4384 = vmatprep.subr.mxu0 0.0
    %4385 = vmatpush1.msra.mxu0 %v4368
    %4386 = vmatprep.subr.mxu0 0.0
    %4387 = vmatpush1.msra.mxu0 %v4369
    %4388 = vmatprep.subr.mxu0 0.0
    %4389 = vmatpush1.msra.mxu0 %v4370
    %4390 = vmatprep.subr.mxu0 0.0
    %4391 = vmatpush1.msra.mxu0 %v4371
    %4392 = vmatprep.subr.mxu0 0.0
    %4393 = vmatpush1.msra.mxu0 %v4372
    %4394 = vmatprep.subr.mxu0 0.0
    %4395 = vmatpush1.msra.mxu0 %v4373
    %4396 = vmatprep.subr.mxu0 0.0
    %4397 = vmatpush1.msra.mxu0 %v4374
    %4398 = vmatprep.subr.mxu0 0.0
    %4399 = vmatpush1.msra.mxu0 %v4375
    %4400 = vmatprep.subr.mxu0 0.0
    %4401 = vmatpush1.msra.mxu0 %v4376
    %4402 = vmatprep.subr.mxu0 0.0
    %4403 = vmatpush1.msra.mxu0 %v4377
    %4404 = vmatprep.subr.mxu0 0.0
    %4405 = vmatpush1.msra.mxu0 %v4378
    %4406 = vmatprep.subr.mxu0 0.0
    %4407 = vmatpush1.msra.mxu0 %v4379
    %4408 = vmatprep.subr.mxu0 0.0
    %4409 = vmatpush1.msra.mxu0 %v4380
    %4410 = vmatprep.subr.mxu0 0.0
    %4411 = vmatpush1.msra.mxu0 %v4381
    %4412 = vmatprep.subr.mxu0 0.0
    %4413 = vmatpush1.msra.mxu0 %v4382
    %4414 = vmatprep.subr.mxu0 0.0
    %4415 = vmatpush1.msra.mxu0 %v4383
    %4416 = vmatprep.subr.mxu0 0.0
    %4417 = vmatpush1.msra.mxu0 0.0
    %4418 = vmatprep.subr.mxu0 0.0
    %4419 = vmatpush1.msra.mxu0 0.0
    %4420 = vmatprep.subr.mxu0 0.0
    %4421 = vmatpush1.msra.mxu0 0.0
    %4422 = vmatprep.subr.mxu0 0.0
    %4423 = vmatpush1.msra.mxu0 0.0
    %4424 = vmatprep.subr.mxu0 0.0
    %4425 = vmatpush1.msra.mxu0 0.0
    %4426 = vmatprep.subr.mxu0 0.0
    %4427 = vmatpush1.msra.mxu0 0.0
    %4428 = vmatprep.subr.mxu0 0.0
    %4429 = vmatpush1.msra.mxu0 0.0
    %4430 = vmatprep.subr.mxu0 0.0
    %4431 = vmatpush1.msra.mxu0 0.0
    %4432 = vmatprep.subr.mxu0 0.0
    %4433 = vmatpush1.msra.mxu0 0.0
    %4434 = vmatprep.subr.mxu0 0.0
    %4435 = vmatpush1.msra.mxu0 0.0
    %4436 = vmatprep.subr.mxu0 0.0
    %4437 = vmatpush1.msra.mxu0 0.0
    %4438 = vmatprep.subr.mxu0 0.0
    %4439 = vmatpush1.msra.mxu0 0.0
    %4440 = vmatprep.subr.mxu0 0.0
    %4441 = vmatpush1.msra.mxu0 0.0
    %4442 = vmatprep.subr.mxu0 0.0
    %4443 = vmatpush1.msra.mxu0 0.0
    %4444 = vmatprep.subr.mxu0 0.0
    %4445 = vmatpush1.msra.mxu0 0.0
    %4446 = vmatprep.subr.mxu0 0.0
    %4447 = vmatpush1.msra.mxu0 0.0
    %4448 = vmatprep.mubr.f32.mxu0 0.0
    %4449 = vmatmul.mubr.f32.gmra.mrb[0].mxu0 %v4360
    %v4450 = vpop.f32.mrb[0].mxu0
    %v4451 = vadd.f32 0.0, %v4450
    %v4452 = vpop.f32.mrb[0].mxu0
    %4453 = vmatprep.mubr.f32.mxu0 0.0
    %4454 = vmatmul.mubr.f32.gmra.mrb[0].mxu0 %v4361
    %v4455 = vpop.f32.mrb[0].mxu0
    %v4456 = vadd.f32 0.0, %v4455
    %v4457 = vpop.f32.mrb[0].mxu0
    %4458 = vmatprep.mubr.f32.mxu0 0.0
    %4459 = vmatmul.mubr.f32.gmra.mrb[0].mxu0 %v4362
    %v4460 = vpop.f32.mrb[0].mxu0
    %v4461 = vadd.f32 0.0, %v4460
    %v4462 = vpop.f32.mrb[0].mxu0
    %4463 = vmatprep.mubr.f32.mxu0 0.0
    %4464 = vmatmul.mubr.f32.gmra.mrb[0].mxu0 %v4363
    %v4465 = vpop.f32.mrb[0].mxu0
    %v4466 = vadd.f32 0.0, %v4465
    %v4467 = vpop.f32.mrb[0].mxu0
    %4468 = vdwg.mxu0
    %s4469 = scalar_lea.vmem [#allocation35], 32
    %v4470 = vld [vmem:[%s4469] sm:$0xff]
    %v4471 = vld [vmem:[%s4469 + $0x8] sm:$0xff]
    %v4472 = vld [vmem:[%s4469 + $0x10] sm:$0xff]
    %v4473 = vld [vmem:[%s4469 + $0x18] sm:$0xff]
    %s4474 = scalar_lea.vmem %s67, 128
    %v4475 = vld [vmem:[%s4474] sm:$0xff]
    %v4476 = vld [vmem:[%s4474 + $0x8] sm:$0xff]
    %v4477 = vld [vmem:[%s4474 + $0x10] sm:$0xff]
    %v4478 = vld [vmem:[%s4474 + $0x18] sm:$0xff]
    %v4479 = vld [vmem:[%s4474 + $0x20] sm:$0xff]
    %v4480 = vld [vmem:[%s4474 + $0x28] sm:$0xff]
    %v4481 = vld [vmem:[%s4474 + $0x30] sm:$0xff]
    %v4482 = vld [vmem:[%s4474 + $0x38] sm:$0xff]
    %v4483 = vld [vmem:[%s4474 + $0x40] sm:$0xff]
    %v4484 = vld [vmem:[%s4474 + $0x48] sm:$0xff]
    %v4485 = vld [vmem:[%s4474 + $0x50] sm:$0xff]
    %v4486 = vld [vmem:[%s4474 + $0x58] sm:$0xff]
    %v4487 = vld [vmem:[%s4474 + $0x60] sm:$0xff]
    %v4488 = vld [vmem:[%s4474 + $0x68] sm:$0xff]
    %v4489 = vld [vmem:[%s4474 + $0x70] sm:$0xff]
    %v4490 = vld [vmem:[%s4474 + $0x78] sm:$0xff]
    %4491 = vmatprep.subr.mxu0 0.0
    %4492 = vmatpush1.msra.mxu0 %v4475
    %4493 = vmatprep.subr.mxu0 0.0
    %4494 = vmatpush1.msra.mxu0 %v4476
    %4495 = vmatprep.subr.mxu0 0.0
    %4496 = vmatpush1.msra.mxu0 %v4477
    %4497 = vmatprep.subr.mxu0 0.0
    %4498 = vmatpush1.msra.mxu0 %v4478
    %4499 = vmatprep.subr.mxu0 0.0
    %4500 = vmatpush1.msra.mxu0 %v4479
    %4501 = vmatprep.subr.mxu0 0.0
    %4502 = vmatpush1.msra.mxu0 %v4480
    %4503 = vmatprep.subr.mxu0 0.0
    %4504 = vmatpush1.msra.mxu0 %v4481
    %4505 = vmatprep.subr.mxu0 0.0
    %4506 = vmatpush1.msra.mxu0 %v4482
    %4507 = vmatprep.subr.mxu0 0.0
    %4508 = vmatpush1.msra.mxu0 %v4483
    %4509 = vmatprep.subr.mxu0 0.0
    %4510 = vmatpush1.msra.mxu0 %v4484
    %4511 = vmatprep.subr.mxu0 0.0
    %4512 = vmatpush1.msra.mxu0 %v4485
    %4513 = vmatprep.subr.mxu0 0.0
    %4514 = vmatpush1.msra.mxu0 %v4486
    %4515 = vmatprep.subr.mxu0 0.0
    %4516 = vmatpush1.msra.mxu0 %v4487
    %4517 = vmatprep.subr.mxu0 0.0
    %4518 = vmatpush1.msra.mxu0 %v4488
    %4519 = vmatprep.subr.mxu0 0.0
    %4520 = vmatpush1.msra.mxu0 %v4489
    %4521 = vmatprep.subr.mxu0 0.0
    %4522 = vmatpush1.msra.mxu0 %v4490
    %4523 = vmatprep.subr.mxu0 0.0
    %4524 = vmatpush1.msra.mxu0 0.0
    %4525 = vmatprep.subr.mxu0 0.0
    %4526 = vmatpush1.msra.mxu0 0.0
    %4527 = vmatprep.subr.mxu0 0.0
    %4528 = vmatpush1.msra.mxu0 0.0
    %4529 = vmatprep.subr.mxu0 0.0
    %4530 = vmatpush1.msra.mxu0 0.0
    %4531 = vmatprep.subr.mxu0 0.0
    %4532 = vmatpush1.msra.mxu0 0.0
    %4533 = vmatprep.subr.mxu0 0.0
    %4534 = vmatpush1.msra.mxu0 0.0
    %4535 = vmatprep.subr.mxu0 0.0
    %4536 = vmatpush1.msra.mxu0 0.0
    %4537 = vmatprep.subr.mxu0 0.0
    %4538 = vmatpush1.msra.mxu0 0.0
    %4539 = vmatprep.subr.mxu0 0.0
    %4540 = vmatpush1.msra.mxu0 0.0
    %4541 = vmatprep.subr.mxu0 0.0
    %4542 = vmatpush1.msra.mxu0 0.0
    %4543 = vmatprep.subr.mxu0 0.0
    %4544 = vmatpush1.msra.mxu0 0.0
    %4545 = vmatprep.subr.mxu0 0.0
    %4546 = vmatpush1.msra.mxu0 0.0
    %4547 = vmatprep.subr.mxu0 0.0
    %4548 = vmatpush1.msra.mxu0 0.0
    %4549 = vmatprep.subr.mxu0 0.0
    %4550 = vmatpush1.msra.mxu0 0.0
    %4551 = vmatprep.subr.mxu0 0.0
    %4552 = vmatpush1.msra.mxu0 0.0
    %4553 = vmatprep.subr.mxu0 0.0
    %4554 = vmatpush1.msra.mxu0 0.0
    %4555 = vmatprep.mubr.f32.mxu0 0.0
    %4556 = vmatmul.mubr.f32.gmra.mrb[0].mxu0 %v4360
    %v4557 = vpop.f32.mrb[0].mxu0
    %v4558 = vadd.f32 0.0, %v4557
    %v4559 = vpop.f32.mrb[0].mxu0
    %4560 = vmatprep.mubr.f32.mxu0 0.0
    %4561 = vmatmul.mubr.f32.gmra.mrb[0].mxu0 %v4361
    %v4562 = vpop.f32.mrb[0].mxu0
    %v4563 = vadd.f32 0.0, %v4562
    %v4564 = vpop.f32.mrb[0].mxu0
    %4565 = vmatprep.mubr.f32.mxu0 0.0
    %4566 = vmatmul.mubr.f32.gmra.mrb[0].mxu0 %v4362
    %v4567 = vpop.f32.mrb[0].mxu0
    %v4568 = vadd.f32 0.0, %v4567
    %v4569 = vpop.f32.mrb[0].mxu0
    %4570 = vmatprep.mubr.f32.mxu0 0.0
    %4571 = vmatmul.mubr.f32.gmra.mrb[0].mxu0 %v4363
    %v4572 = vpop.f32.mrb[0].mxu0
    %v4573 = vadd.f32 0.0, %v4572
    %v4574 = vpop.f32.mrb[0].mxu0
    %4575 = vdwg.mxu0
    %v4577 = vsel %vm1239, %v4470, 0
    %v4580 = vsel %vm1239, %v4471, 0
    %v4583 = vsel %vm1239, %v4472, 0
    %v4586 = vsel %vm1239, %v4473, 0
    %4588 = vmatprep.subr.mxu0 0.0
    %4589 = vmatpush1.msra.mxu0 %v4558
    %4590 = vmatprep.subr.mxu0 0.0
    %4591 = vmatpush1.msra.mxu0 %v4563
    %4592 = vmatprep.subr.mxu0 0.0
    %4593 = vmatpush1.msra.mxu0 %v4568
    %4594 = vmatprep.subr.mxu0 0.0
    %4595 = vmatpush1.msra.mxu0 %v4573
    %4596 = vmatprep.subr.mxu0 0.0
    %4597 = vmatpush1.msra.mxu0 0.0
    %4598 = vmatprep.subr.mxu0 0.0
    %4599 = vmatpush1.msra.mxu0 0.0
    %4600 = vmatprep.subr.mxu0 0.0
    %4601 = vmatpush1.msra.mxu0 0.0
    %4602 = vmatprep.subr.mxu0 0.0
    %4603 = vmatpush1.msra.mxu0 0.0
    %4604 = vmatprep.subr.mxu0 0.0
    %4605 = vmatpush1.msra.mxu0 0.0
    %4606 = vmatprep.subr.mxu0 0.0
    %4607 = vmatpush1.msra.mxu0 0.0
    %4608 = vmatprep.subr.mxu0 0.0
    %4609 = vmatpush1.msra.mxu0 0.0
    %4610 = vmatprep.subr.mxu0 0.0
    %4611 = vmatpush1.msra.mxu0 0.0
    %4612 = vmatprep.subr.mxu0 0.0
    %4613 = vmatpush1.msra.mxu0 0.0
    %4614 = vmatprep.subr.mxu0 0.0
    %4615 = vmatpush1.msra.mxu0 0.0
    %4616 = vmatprep.subr.mxu0 0.0
    %4617 = vmatpush1.msra.mxu0 0.0
    %4618 = vmatprep.subr.mxu0 0.0
    %4619 = vmatpush1.msra.mxu0 0.0
    %4620 = vmatprep.subr.mxu0 0.0
    %4621 = vmatpush1.msra.mxu0 0.0
    %4622 = vmatprep.subr.mxu0 0.0
    %4623 = vmatpush1.msra.mxu0 0.0
    %4624 = vmatprep.subr.mxu0 0.0
    %4625 = vmatpush1.msra.mxu0 0.0
    %4626 = vmatprep.subr.mxu0 0.0
    %4627 = vmatpush1.msra.mxu0 0.0
    %4628 = vmatprep.subr.mxu0 0.0
    %4629 = vmatpush1.msra.mxu0 0.0
    %4630 = vmatprep.subr.mxu0 0.0
    %4631 = vmatpush1.msra.mxu0 0.0
    %4632 = vmatprep.subr.mxu0 0.0
    %4633 = vmatpush1.msra.mxu0 0.0
    %4634 = vmatprep.subr.mxu0 0.0
    %4635 = vmatpush1.msra.mxu0 0.0
    %4636 = vmatprep.subr.mxu0 0.0
    %4637 = vmatpush1.msra.mxu0 0.0
    %4638 = vmatprep.subr.mxu0 0.0
    %4639 = vmatpush1.msra.mxu0 0.0
    %4640 = vmatprep.subr.mxu0 0.0
    %4641 = vmatpush1.msra.mxu0 0.0
    %4642 = vmatprep.subr.mxu0 0.0
    %4643 = vmatpush1.msra.mxu0 0.0
    %4644 = vmatprep.subr.mxu0 0.0
    %4645 = vmatpush1.msra.mxu0 0.0
    %4646 = vmatprep.subr.mxu0 0.0
    %4647 = vmatpush1.msra.mxu0 0.0
    %4648 = vmatprep.subr.mxu0 0.0
    %4649 = vmatpush1.msra.mxu0 0.0
    %4650 = vmatprep.subr.mxu0 0.0
    %4651 = vmatpush1.msra.mxu0 0.0
    %4652 = vmatprep.mubr.f32.mxu0 0.0
    %4653 = vmatmul.mubr.f32.gmra.mrb[0].mxu0 %v4577
    %v4654 = vpop.f32.mrb[0].mxu0
    %v4655 = vadd.f32 0.0, %v4654
    %v4656 = vpop.f32.mrb[0].mxu0
    %4657 = vmatprep.mubr.f32.mxu0 0.0
    %4658 = vmatmul.mubr.f32.gmra.mrb[0].mxu0 %v4580
    %v4659 = vpop.f32.mrb[0].mxu0
    %v4660 = vadd.f32 0.0, %v4659
    %v4661 = vpop.f32.mrb[0].mxu0
    %4662 = vmatprep.mubr.f32.mxu0 0.0
    %4663 = vmatmul.mubr.f32.gmra.mrb[0].mxu0 %v4583
    %v4664 = vpop.f32.mrb[0].mxu0
    %v4665 = vadd.f32 0.0, %v4664
    %v4666 = vpop.f32.mrb[0].mxu0
    %4667 = vmatprep.mubr.f32.mxu0 0.0
    %4668 = vmatmul.mubr.f32.gmra.mrb[0].mxu0 %v4586
    %v4669 = vpop.f32.mrb[0].mxu0
    %v4670 = vadd.f32 0.0, %v4669
    %v4671 = vpop.f32.mrb[0].mxu0
    %4672 = vdwg.mxu0
    %v4674 = vsel %vm1239, %v4364, 0
    %v4677 = vsel %vm1239, %v4365, 0
    %v4680 = vsel %vm1239, %v4366, 0
    %v4683 = vsel %vm1239, %v4367, 0
    %4685 = vmatprep.subr.mxu0 0.0
    %4686 = vmatpush1.msra.mxu0 %v4451
    %4687 = vmatprep.subr.mxu0 0.0
    %4688 = vmatpush1.msra.mxu0 %v4456
    %4689 = vmatprep.subr.mxu0 0.0
    %4690 = vmatpush1.msra.mxu0 %v4461
    %4691 = vmatprep.subr.mxu0 0.0
    %4692 = vmatpush1.msra.mxu0 %v4466
    %4693 = vmatprep.subr.mxu0 0.0
    %4694 = vmatpush1.msra.mxu0 0.0
    %4695 = vmatprep.subr.mxu0 0.0
    %4696 = vmatpush1.msra.mxu0 0.0
    %4697 = vmatprep.subr.mxu0 0.0
    %4698 = vmatpush1.msra.mxu0 0.0
    %4699 = vmatprep.subr.mxu0 0.0
    %4700 = vmatpush1.msra.mxu0 0.0
    %4701 = vmatprep.subr.mxu0 0.0
    %4702 = vmatpush1.msra.mxu0 0.0
    %4703 = vmatprep.subr.mxu0 0.0
    %4704 = vmatpush1.msra.mxu0 0.0
    %4705 = vmatprep.subr.mxu0 0.0
    %4706 = vmatpush1.msra.mxu0 0.0
    %4707 = vmatprep.subr.mxu0 0.0
    %4708 = vmatpush1.msra.mxu0 0.0
    %4709 = vmatprep.subr.mxu0 0.0
    %4710 = vmatpush1.msra.mxu0 0.0
    %4711 = vmatprep.subr.mxu0 0.0
    %4712 = vmatpush1.msra.mxu0 0.0
    %4713 = vmatprep.subr.mxu0 0.0
    %4714 = vmatpush1.msra.mxu0 0.0
    %4715 = vmatprep.subr.mxu0 0.0
    %4716 = vmatpush1.msra.mxu0 0.0
    %4717 = vmatprep.subr.mxu0 0.0
    %4718 = vmatpush1.msra.mxu0 0.0
    %4719 = vmatprep.subr.mxu0 0.0
    %4720 = vmatpush1.msra.mxu0 0.0
    %4721 = vmatprep.subr.mxu0 0.0
    %4722 = vmatpush1.msra.mxu0 0.0
    %4723 = vmatprep.subr.mxu0 0.0
    %4724 = vmatpush1.msra.mxu0 0.0
    %4725 = vmatprep.subr.mxu0 0.0
    %4726 = vmatpush1.msra.mxu0 0.0
    %4727 = vmatprep.subr.mxu0 0.0
    %4728 = vmatpush1.msra.mxu0 0.0
    %4729 = vmatprep.subr.mxu0 0.0
    %4730 = vmatpush1.msra.mxu0 0.0
    %4731 = vmatprep.subr.mxu0 0.0
    %4732 = vmatpush1.msra.mxu0 0.0
    %4733 = vmatprep.subr.mxu0 0.0
    %4734 = vmatpush1.msra.mxu0 0.0
    %4735 = vmatprep.subr.mxu0 0.0
    %4736 = vmatpush1.msra.mxu0 0.0
    %4737 = vmatprep.subr.mxu0 0.0
    %4738 = vmatpush1.msra.mxu0 0.0
    %4739 = vmatprep.subr.mxu0 0.0
    %4740 = vmatpush1.msra.mxu0 0.0
    %4741 = vmatprep.subr.mxu0 0.0
    %4742 = vmatpush1.msra.mxu0 0.0
    %4743 = vmatprep.subr.mxu0 0.0
    %4744 = vmatpush1.msra.mxu0 0.0
    %4745 = vmatprep.subr.mxu0 0.0
    %4746 = vmatpush1.msra.mxu0 0.0
    %4747 = vmatprep.subr.mxu0 0.0
    %4748 = vmatpush1.msra.mxu0 0.0
    %4749 = vmatprep.mubr.f32.mxu0 0.0
    %4750 = vmatmul.mubr.f32.gmra.mrb[0].mxu0 %v4674
    %v4751 = vpop.f32.mrb[0].mxu0
    %v4752 = vadd.f32 %v4655, %v4751
    %v4753 = vpop.f32.mrb[0].mxu0
    %4754 = vmatprep.mubr.f32.mxu0 0.0
    %4755 = vmatmul.mubr.f32.gmra.mrb[0].mxu0 %v4677
    %v4756 = vpop.f32.mrb[0].mxu0
    %v4757 = vadd.f32 %v4660, %v4756
    %v4758 = vpop.f32.mrb[0].mxu0
    %4759 = vmatprep.mubr.f32.mxu0 0.0
    %4760 = vmatmul.mubr.f32.gmra.mrb[0].mxu0 %v4680
    %v4761 = vpop.f32.mrb[0].mxu0
    %v4762 = vadd.f32 %v4665, %v4761
    %v4763 = vpop.f32.mrb[0].mxu0
    %4764 = vmatprep.mubr.f32.mxu0 0.0
    %4765 = vmatmul.mubr.f32.gmra.mrb[0].mxu0 %v4683
    %v4766 = vpop.f32.mrb[0].mxu0
    %v4767 = vadd.f32 %v4670, %v4766
    %v4768 = vpop.f32.mrb[0].mxu0
    %4769 = vdwg.mxu0
    %s4770 = scalar_lea.vmem [#allocation35], 64
    %v4771 = vld [vmem:[%s4770] sm:$0xff]
    %v4772 = vld [vmem:[%s4770 + $0x8] sm:$0xff]
    %v4773 = vld [vmem:[%s4770 + $0x10] sm:$0xff]
    %v4774 = vld [vmem:[%s4770 + $0x18] sm:$0xff]
    %s4775 = scalar_lea.vmem %s67, 256
    %v4776 = vld [vmem:[%s4775] sm:$0xff]
    %v4777 = vld [vmem:[%s4775 + $0x8] sm:$0xff]
    %v4778 = vld [vmem:[%s4775 + $0x10] sm:$0xff]
    %v4779 = vld [vmem:[%s4775 + $0x18] sm:$0xff]
    %v4780 = vld [vmem:[%s4775 + $0x20] sm:$0xff]
    %v4781 = vld [vmem:[%s4775 + $0x28] sm:$0xff]
    %v4782 = vld [vmem:[%s4775 + $0x30] sm:$0xff]
    %v4783 = vld [vmem:[%s4775 + $0x38] sm:$0xff]
    %v4784 = vld [vmem:[%s4775 + $0x40] sm:$0xff]
    %v4785 = vld [vmem:[%s4775 + $0x48] sm:$0xff]
    %v4786 = vld [vmem:[%s4775 + $0x50] sm:$0xff]
    %v4787 = vld [vmem:[%s4775 + $0x58] sm:$0xff]
    %v4788 = vld [vmem:[%s4775 + $0x60] sm:$0xff]
    %v4789 = vld [vmem:[%s4775 + $0x68] sm:$0xff]
    %v4790 = vld [vmem:[%s4775 + $0x70] sm:$0xff]
    %v4791 = vld [vmem:[%s4775 + $0x78] sm:$0xff]
    %4792 = vmatprep.subr.mxu0 0.0
    %4793 = vmatpush1.msra.mxu0 %v4776
    %4794 = vmatprep.subr.mxu0 0.0
    %4795 = vmatpush1.msra.mxu0 %v4777
    %4796 = vmatprep.subr.mxu0 0.0
    %4797 = vmatpush1.msra.mxu0 %v4778
    %4798 = vmatprep.subr.mxu0 0.0
    %4799 = vmatpush1.msra.mxu0 %v4779
    %4800 = vmatprep.subr.mxu0 0.0
    %4801 = vmatpush1.msra.mxu0 %v4780
    %4802 = vmatprep.subr.mxu0 0.0
    %4803 = vmatpush1.msra.mxu0 %v4781
    %4804 = vmatprep.subr.mxu0 0.0
    %4805 = vmatpush1.msra.mxu0 %v4782
    %4806 = vmatprep.subr.mxu0 0.0
    %4807 = vmatpush1.msra.mxu0 %v4783
    %4808 = vmatprep.subr.mxu0 0.0
    %4809 = vmatpush1.msra.mxu0 %v4784
    %4810 = vmatprep.subr.mxu0 0.0
    %4811 = vmatpush1.msra.mxu0 %v4785
    %4812 = vmatprep.subr.mxu0 0.0
    %4813 = vmatpush1.msra.mxu0 %v4786
    %4814 = vmatprep.subr.mxu0 0.0
    %4815 = vmatpush1.msra.mxu0 %v4787
    %4816 = vmatprep.subr.mxu0 0.0
    %4817 = vmatpush1.msra.mxu0 %v4788
    %4818 = vmatprep.subr.mxu0 0.0
    %4819 = vmatpush1.msra.mxu0 %v4789
    %4820 = vmatprep.subr.mxu0 0.0
    %4821 = vmatpush1.msra.mxu0 %v4790
    %4822 = vmatprep.subr.mxu0 0.0
    %4823 = vmatpush1.msra.mxu0 %v4791
    %4824 = vmatprep.subr.mxu0 0.0
    %4825 = vmatpush1.msra.mxu0 0.0
    %4826 = vmatprep.subr.mxu0 0.0
    %4827 = vmatpush1.msra.mxu0 0.0
    %4828 = vmatprep.subr.mxu0 0.0
    %4829 = vmatpush1.msra.mxu0 0.0
    %4830 = vmatprep.subr.mxu0 0.0
    %4831 = vmatpush1.msra.mxu0 0.0
    %4832 = vmatprep.subr.mxu0 0.0
    %4833 = vmatpush1.msra.mxu0 0.0
    %4834 = vmatprep.subr.mxu0 0.0
    %4835 = vmatpush1.msra.mxu0 0.0
    %4836 = vmatprep.subr.mxu0 0.0
    %4837 = vmatpush1.msra.mxu0 0.0
    %4838 = vmatprep.subr.mxu0 0.0
    %4839 = vmatpush1.msra.mxu0 0.0
    %4840 = vmatprep.subr.mxu0 0.0
    %4841 = vmatpush1.msra.mxu0 0.0
    %4842 = vmatprep.subr.mxu0 0.0
    %4843 = vmatpush1.msra.mxu0 0.0
    %4844 = vmatprep.subr.mxu0 0.0
    %4845 = vmatpush1.msra.mxu0 0.0
    %4846 = vmatprep.subr.mxu0 0.0
    %4847 = vmatpush1.msra.mxu0 0.0
    %4848 = vmatprep.subr.mxu0 0.0
    %4849 = vmatpush1.msra.mxu0 0.0
    %4850 = vmatprep.subr.mxu0 0.0
    %4851 = vmatpush1.msra.mxu0 0.0
    %4852 = vmatprep.subr.mxu0 0.0
    %4853 = vmatpush1.msra.mxu0 0.0
    %4854 = vmatprep.subr.mxu0 0.0
    %4855 = vmatpush1.msra.mxu0 0.0
    %4856 = vmatprep.mubr.f32.mxu0 0.0
    %4857 = vmatmul.mubr.f32.gmra.mrb[0].mxu0 %v4360
    %v4858 = vpop.f32.mrb[0].mxu0
    %v4859 = vadd.f32 0.0, %v4858
    %v4860 = vpop.f32.mrb[0].mxu0
    %4861 = vmatprep.mubr.f32.mxu0 0.0
    %4862 = vmatmul.mubr.f32.gmra.mrb[0].mxu0 %v4361
    %v4863 = vpop.f32.mrb[0].mxu0
    %v4864 = vadd.f32 0.0, %v4863
    %v4865 = vpop.f32.mrb[0].mxu0
    %4866 = vmatprep.mubr.f32.mxu0 0.0
    %4867 = vmatmul.mubr.f32.gmra.mrb[0].mxu0 %v4362
    %v4868 = vpop.f32.mrb[0].mxu0
    %v4869 = vadd.f32 0.0, %v4868
    %v4870 = vpop.f32.mrb[0].mxu0
    %4871 = vmatprep.mubr.f32.mxu0 0.0
    %4872 = vmatmul.mubr.f32.gmra.mrb[0].mxu0 %v4363
    %v4873 = vpop.f32.mrb[0].mxu0
    %v4874 = vadd.f32 0.0, %v4873
    %v4875 = vpop.f32.mrb[0].mxu0
    %4876 = vdwg.mxu0
    %v4878 = vsel %vm1239, %v4771, 0
    %v4881 = vsel %vm1239, %v4772, 0
    %v4884 = vsel %vm1239, %v4773, 0
    %v4887 = vsel %vm1239, %v4774, 0
    %4889 = vmatprep.subr.mxu0 0.0
    %4890 = vmatpush1.msra.mxu0 %v4859
    %4891 = vmatprep.subr.mxu0 0.0
    %4892 = vmatpush1.msra.mxu0 %v4864
    %4893 = vmatprep.subr.mxu0 0.0
    %4894 = vmatpush1.msra.mxu0 %v4869
    %4895 = vmatprep.subr.mxu0 0.0
    %4896 = vmatpush1.msra.mxu0 %v4874
    %4897 = vmatprep.subr.mxu0 0.0
    %4898 = vmatpush1.msra.mxu0 0.0
    %4899 = vmatprep.subr.mxu0 0.0
    %4900 = vmatpush1.msra.mxu0 0.0
    %4901 = vmatprep.subr.mxu0 0.0
    %4902 = vmatpush1.msra.mxu0 0.0
    %4903 = vmatprep.subr.mxu0 0.0
    %4904 = vmatpush1.msra.mxu0 0.0
    %4905 = vmatprep.subr.mxu0 0.0
    %4906 = vmatpush1.msra.mxu0 0.0
    %4907 = vmatprep.subr.mxu0 0.0
    %4908 = vmatpush1.msra.mxu0 0.0
    %4909 = vmatprep.subr.mxu0 0.0
    %4910 = vmatpush1.msra.mxu0 0.0
    %4911 = vmatprep.subr.mxu0 0.0
    %4912 = vmatpush1.msra.mxu0 0.0
    %4913 = vmatprep.subr.mxu0 0.0
    %4914 = vmatpush1.msra.mxu0 0.0
    %4915 = vmatprep.subr.mxu0 0.0
    %4916 = vmatpush1.msra.mxu0 0.0
    %4917 = vmatprep.subr.mxu0 0.0
    %4918 = vmatpush1.msra.mxu0 0.0
    %4919 = vmatprep.subr.mxu0 0.0
    %4920 = vmatpush1.msra.mxu0 0.0
    %4921 = vmatprep.subr.mxu0 0.0
    %4922 = vmatpush1.msra.mxu0 0.0
    %4923 = vmatprep.subr.mxu0 0.0
    %4924 = vmatpush1.msra.mxu0 0.0
    %4925 = vmatprep.subr.mxu0 0.0
    %4926 = vmatpush1.msra.mxu0 0.0
    %4927 = vmatprep.subr.mxu0 0.0
    %4928 = vmatpush1.msra.mxu0 0.0
    %4929 = vmatprep.subr.mxu0 0.0
    %4930 = vmatpush1.msra.mxu0 0.0
    %4931 = vmatprep.subr.mxu0 0.0
    %4932 = vmatpush1.msra.mxu0 0.0
    %4933 = vmatprep.subr.mxu0 0.0
    %4934 = vmatpush1.msra.mxu0 0.0
    %4935 = vmatprep.subr.mxu0 0.0
    %4936 = vmatpush1.msra.mxu0 0.0
    %4937 = vmatprep.subr.mxu0 0.0
    %4938 = vmatpush1.msra.mxu0 0.0
    %4939 = vmatprep.subr.mxu0 0.0
    %4940 = vmatpush1.msra.mxu0 0.0
    %4941 = vmatprep.subr.mxu0 0.0
    %4942 = vmatpush1.msra.mxu0 0.0
    %4943 = vmatprep.subr.mxu0 0.0
    %4944 = vmatpush1.msra.mxu0 0.0
    %4945 = vmatprep.subr.mxu0 0.0
    %4946 = vmatpush1.msra.mxu0 0.0
    %4947 = vmatprep.subr.mxu0 0.0
    %4948 = vmatpush1.msra.mxu0 0.0
    %4949 = vmatprep.subr.mxu0 0.0
    %4950 = vmatpush1.msra.mxu0 0.0
    %4951 = vmatprep.subr.mxu0 0.0
    %4952 = vmatpush1.msra.mxu0 0.0
    %4953 = vmatprep.mubr.f32.mxu0 0.0
    %4954 = vmatmul.mubr.f32.gmra.mrb[0].mxu0 %v4878
    %v4955 = vpop.f32.mrb[0].mxu0
    %v4956 = vadd.f32 0.0, %v4955
    %v4957 = vpop.f32.mrb[0].mxu0
    %4958 = vmatprep.mubr.f32.mxu0 0.0
    %4959 = vmatmul.mubr.f32.gmra.mrb[0].mxu0 %v4881
    %v4960 = vpop.f32.mrb[0].mxu0
    %v4961 = vadd.f32 0.0, %v4960
    %v4962 = vpop.f32.mrb[0].mxu0
    %4963 = vmatprep.mubr.f32.mxu0 0.0
    %4964 = vmatmul.mubr.f32.gmra.mrb[0].mxu0 %v4884
    %v4965 = vpop.f32.mrb[0].mxu0
    %v4966 = vadd.f32 0.0, %v4965
    %v4967 = vpop.f32.mrb[0].mxu0
    %4968 = vmatprep.mubr.f32.mxu0 0.0
    %4969 = vmatmul.mubr.f32.gmra.mrb[0].mxu0 %v4887
    %v4970 = vpop.f32.mrb[0].mxu0
    %v4971 = vadd.f32 0.0, %v4970
    %v4972 = vpop.f32.mrb[0].mxu0
    %4973 = vdwg.mxu0
    %v4974 = vadd.f32 %v4752, %v4956
    %v4975 = vadd.f32 %v4757, %v4961
    %v4976 = vadd.f32 %v4762, %v4966
    %v4977 = vadd.f32 %v4767, %v4971
    %v4978 = vld [vmem:[#allocation37] sm:$0x1]
    %v4980 = vlaneseq
    %v4981 = vshrl.u32 %v4980, 7
    %v4982 = vsub.s32 0, %v4981
    %v4983 = vrot.slane %v4978, %v4982
    %v4985 = vadd.f32 %v4974, %v4983
    %v4986 = vadd.f32 %v4975, %v4983
    %v4987 = vadd.f32 %v4976, %v4983
    %v4988 = vadd.f32 %v4977, %v4983
    %v4989 = vld [vmem:[%s71] sm:$0xff]
    %v4990 = vld [vmem:[%s71 + $0x8] sm:$0xff]
    %v4991 = vld [vmem:[%s71 + $0x10] sm:$0xff]
    %v4992 = vld [vmem:[%s71 + $0x18] sm:$0xff]
    %v4993 = vld [vmem:[#allocation38] sm:$0xff]
    %v4994 = vld [vmem:[#allocation38 + $0x8] sm:$0xff]
    %v4995 = vld [vmem:[#allocation38 + $0x10] sm:$0xff]
    %v4996 = vld [vmem:[#allocation38 + $0x18] sm:$0xff]
    %v4997 = vld [vmem:[#allocation38 + $0x20] sm:$0xff]
    %v4998 = vld [vmem:[#allocation38 + $0x28] sm:$0xff]
    %v4999 = vld [vmem:[#allocation38 + $0x30] sm:$0xff]
    %v5000 = vld [vmem:[#allocation38 + $0x38] sm:$0xff]
    %v5002 = vsel %vm2068, %v3092, 0
    %v5005 = vsel %vm2068, %v3093, 0
    %5007 = vmatprep.subr.mxu0 0.0
    %5008 = vmatpush1.msra.mxu0 %v4993
    %5009 = vmatprep.subr.mxu0 0.0
    %5010 = vmatpush1.msra.mxu0 %v4994
    %5011 = vmatprep.subr.mxu0 0.0
    %5012 = vmatpush1.msra.mxu0 %v4995
    %5013 = vmatprep.subr.mxu0 0.0
    %5014 = vmatpush1.msra.mxu0 %v4996
    %5015 = vmatprep.subr.mxu0 0.0
    %5016 = vmatpush1.msra.mxu0 %v4997
    %5017 = vmatprep.subr.mxu0 0.0
    %5018 = vmatpush1.msra.mxu0 %v4998
    %5019 = vmatprep.subr.mxu0 0.0
    %5020 = vmatpush1.msra.mxu0 %v4999
    %5021 = vmatprep.subr.mxu0 0.0
    %5022 = vmatpush1.msra.mxu0 %v5000
    %5023 = vmatprep.subr.mxu0 0.0
    %5024 = vmatpush1.msra.mxu0 0.0
    %5025 = vmatprep.subr.mxu0 0.0
    %5026 = vmatpush1.msra.mxu0 0.0
    %5027 = vmatprep.subr.mxu0 0.0
    %5028 = vmatpush1.msra.mxu0 0.0
    %5029 = vmatprep.subr.mxu0 0.0
    %5030 = vmatpush1.msra.mxu0 0.0
    %5031 = vmatprep.subr.mxu0 0.0
    %5032 = vmatpush1.msra.mxu0 0.0
    %5033 = vmatprep.subr.mxu0 0.0
    %5034 = vmatpush1.msra.mxu0 0.0
    %5035 = vmatprep.subr.mxu0 0.0
    %5036 = vmatpush1.msra.mxu0 0.0
    %5037 = vmatprep.subr.mxu0 0.0
    %5038 = vmatpush1.msra.mxu0 0.0
    %5039 = vmatprep.subr.mxu0 0.0
    %5040 = vmatpush1.msra.mxu0 0.0
    %5041 = vmatprep.subr.mxu0 0.0
    %5042 = vmatpush1.msra.mxu0 0.0
    %5043 = vmatprep.subr.mxu0 0.0
    %5044 = vmatpush1.msra.mxu0 0.0
    %5045 = vmatprep.subr.mxu0 0.0
    %5046 = vmatpush1.msra.mxu0 0.0
    %5047 = vmatprep.subr.mxu0 0.0
    %5048 = vmatpush1.msra.mxu0 0.0
    %5049 = vmatprep.subr.mxu0 0.0
    %5050 = vmatpush1.msra.mxu0 0.0
    %5051 = vmatprep.subr.mxu0 0.0
    %5052 = vmatpush1.msra.mxu0 0.0
    %5053 = vmatprep.subr.mxu0 0.0
    %5054 = vmatpush1.msra.mxu0 0.0
    %5055 = vmatprep.subr.mxu0 0.0
    %5056 = vmatpush1.msra.mxu0 0.0
    %5057 = vmatprep.subr.mxu0 0.0
    %5058 = vmatpush1.msra.mxu0 0.0
    %5059 = vmatprep.subr.mxu0 0.0
    %5060 = vmatpush1.msra.mxu0 0.0
    %5061 = vmatprep.subr.mxu0 0.0
    %5062 = vmatpush1.msra.mxu0 0.0
    %5063 = vmatprep.subr.mxu0 0.0
    %5064 = vmatpush1.msra.mxu0 0.0
    %5065 = vmatprep.subr.mxu0 0.0
    %5066 = vmatpush1.msra.mxu0 0.0
    %5067 = vmatprep.subr.mxu0 0.0
    %5068 = vmatpush1.msra.mxu0 0.0
    %5069 = vmatprep.subr.mxu0 0.0
    %5070 = vmatpush1.msra.mxu0 0.0
    %5071 = vmatprep.mubr.f32.mxu0 0.0
    %5072 = vmatmul.mubr.f32.gmra.mrb[0].mxu0 %v5002
    %v5073 = vpop.f32.mrb[0].mxu0
    %v5074 = vadd.f32 0.0, %v5073
    %v5075 = vpop.f32.mrb[0].mxu0
    %5076 = vmatprep.mubr.f32.mxu0 0.0
    %5077 = vmatmul.mubr.f32.gmra.mrb[0].mxu0 %v5005
    %v5078 = vpop.f32.mrb[0].mxu0
    %v5079 = vadd.f32 0.0, %v5078
    %v5080 = vpop.f32.mrb[0].mxu0
    %5081 = vdwg.mxu0
    %v5082 = vld [vmem:[#allocation40] sm:$0x1]
    %v5084 = vlaneseq
    %v5085 = vshrl.u32 %v5084, 7
    %v5086 = vsub.s32 0, %v5085
    %v5087 = vrot.slane %v5082, %v5086
    %v5090 = vsel %vm625, %v4989, 0
    %v5093 = vsel %vm625, %v4990, 0
    %v5096 = vsel %vm625, %v4991, 0
    %v5099 = vsel %vm625, %v4992, 0
    %5101 = vmatprep.subr.mxu0 0.0
    %5102 = vmatpush1.msra.mxu0 %v5074
    %5103 = vmatprep.subr.mxu0 0.0
    %5104 = vmatpush1.msra.mxu0 %v5079
    %5105 = vmatprep.subr.mxu0 0.0
    %5106 = vmatpush1.msra.mxu0 0.0
    %5107 = vmatprep.subr.mxu0 0.0
    %5108 = vmatpush1.msra.mxu0 0.0
    %5109 = vmatprep.subr.mxu0 0.0
    %5110 = vmatpush1.msra.mxu0 0.0
    %5111 = vmatprep.subr.mxu0 0.0
    %5112 = vmatpush1.msra.mxu0 0.0
    %5113 = vmatprep.subr.mxu0 0.0
    %5114 = vmatpush1.msra.mxu0 0.0
    %5115 = vmatprep.subr.mxu0 0.0
    %5116 = vmatpush1.msra.mxu0 0.0
    %5117 = vmatprep.subr.mxu0 0.0
    %5118 = vmatpush1.msra.mxu0 0.0
    %5119 = vmatprep.subr.mxu0 0.0
    %5120 = vmatpush1.msra.mxu0 0.0
    %5121 = vmatprep.subr.mxu0 0.0
    %5122 = vmatpush1.msra.mxu0 0.0
    %5123 = vmatprep.subr.mxu0 0.0
    %5124 = vmatpush1.msra.mxu0 0.0
    %5125 = vmatprep.subr.mxu0 0.0
    %5126 = vmatpush1.msra.mxu0 0.0
    %5127 = vmatprep.subr.mxu0 0.0
    %5128 = vmatpush1.msra.mxu0 0.0
    %5129 = vmatprep.subr.mxu0 0.0
    %5130 = vmatpush1.msra.mxu0 0.0
    %5131 = vmatprep.subr.mxu0 0.0
    %5132 = vmatpush1.msra.mxu0 0.0
    %5133 = vmatprep.subr.mxu0 0.0
    %5134 = vmatpush1.msra.mxu0 0.0
    %5135 = vmatprep.subr.mxu0 0.0
    %5136 = vmatpush1.msra.mxu0 0.0
    %5137 = vmatprep.subr.mxu0 0.0
    %5138 = vmatpush1.msra.mxu0 0.0
    %5139 = vmatprep.subr.mxu0 0.0
    %5140 = vmatpush1.msra.mxu0 0.0
    %5141 = vmatprep.subr.mxu0 0.0
    %5142 = vmatpush1.msra.mxu0 0.0
    %5143 = vmatprep.subr.mxu0 0.0
    %5144 = vmatpush1.msra.mxu0 0.0
    %5145 = vmatprep.subr.mxu0 0.0
    %5146 = vmatpush1.msra.mxu0 0.0
    %5147 = vmatprep.subr.mxu0 0.0
    %5148 = vmatpush1.msra.mxu0 0.0
    %5149 = vmatprep.subr.mxu0 0.0
    %5150 = vmatpush1.msra.mxu0 0.0
    %5151 = vmatprep.subr.mxu0 0.0
    %5152 = vmatpush1.msra.mxu0 0.0
    %5153 = vmatprep.subr.mxu0 0.0
    %5154 = vmatpush1.msra.mxu0 0.0
    %5155 = vmatprep.subr.mxu0 0.0
    %5156 = vmatpush1.msra.mxu0 0.0
    %5157 = vmatprep.subr.mxu0 0.0
    %5158 = vmatpush1.msra.mxu0 0.0
    %5159 = vmatprep.subr.mxu0 0.0
    %5160 = vmatpush1.msra.mxu0 0.0
    %5161 = vmatprep.subr.mxu0 0.0
    %5162 = vmatpush1.msra.mxu0 0.0
    %5163 = vmatprep.subr.mxu0 0.0
    %5164 = vmatpush1.msra.mxu0 0.0
    %5165 = vmatprep.mubr.f32.mxu0 0.0
    %5166 = vmatmul.mubr.f32.gmra.mrb[0].mxu0 %v5090
    %v5167 = vpop.f32.mrb[0].mxu0
    %v5168 = vadd.f32 %v5087, %v5167
    %v5169 = vpop.f32.mrb[0].mxu0
    %5170 = vmatprep.mubr.f32.mxu0 0.0
    %5171 = vmatmul.mubr.f32.gmra.mrb[0].mxu0 %v5093
    %v5172 = vpop.f32.mrb[0].mxu0
    %v5173 = vadd.f32 %v5087, %v5172
    %v5174 = vpop.f32.mrb[0].mxu0
    %5175 = vmatprep.mubr.f32.mxu0 0.0
    %5176 = vmatmul.mubr.f32.gmra.mrb[0].mxu0 %v5096
    %v5177 = vpop.f32.mrb[0].mxu0
    %v5178 = vadd.f32 %v5087, %v5177
    %v5179 = vpop.f32.mrb[0].mxu0
    %5180 = vmatprep.mubr.f32.mxu0 0.0
    %5181 = vmatmul.mubr.f32.gmra.mrb[0].mxu0 %v5099
    %v5182 = vpop.f32.mrb[0].mxu0
    %v5183 = vadd.f32 %v5087, %v5182
    %v5184 = vpop.f32.mrb[0].mxu0
    %5185 = vdwg.mxu0
    %v5186 = vadd.f32 %v4985, %v5168
    %v5187 = vadd.f32 %v4986, %v5173
    %v5188 = vadd.f32 %v4987, %v5178
    %v5189 = vadd.f32 %v4988, %v5183
    %v5190 = vadd.f32 %v5186, %v5187
    %v5191 = vadd.f32 %v5190, %v5188
    %v5192 = vadd.f32 %v5191, %v5189
    %v5193 = vrot.slane %v5192, 4
    %v5194 = vadd.f32 %v5192, %v5193
    %v5195 = vrot.slane %v5194, 2
    %v5196 = vadd.f32 %v5194, %v5195
    %v5197 = vrot.slane %v5196, 1
    %v5198 = vadd.f32 %v5196, %v5197
    %v5199 = vmul.f32 %v5186, %v5186
    %v5200 = vmul.f32 %v5187, %v5187
    %v5201 = vmul.f32 %v5188, %v5188
    %v5202 = vmul.f32 %v5189, %v5189
    %v5203 = vadd.f32 %v5199, %v5200
    %v5204 = vadd.f32 %v5203, %v5201
    %v5205 = vadd.f32 %v5204, %v5202
    %v5206 = vrot.slane %v5205, 4
    %v5207 = vadd.f32 %v5205, %v5206
    %v5208 = vrot.slane %v5207, 2
    %v5209 = vadd.f32 %v5207, %v5208
    %v5210 = vrot.slane %v5209, 1
    %v5211 = vadd.f32 %v5209, %v5210
    %5212 = vmatprep.subr.mxu0 0.0
    %5213 = vmatpush1.msra.mxu0 %v4008
    %5214 = vmatprep.subr.mxu0 0.0
    %5215 = vmatpush1.msra.mxu0 %v4009
    %5216 = vmatprep.subr.mxu0 0.0
    %5217 = vmatpush1.msra.mxu0 %v4010
    %5218 = vmatprep.subr.mxu0 0.0
    %5219 = vmatpush1.msra.mxu0 %v4011
    %5220 = vmatprep.subr.mxu0 0.0
    %5221 = vmatpush1.msra.mxu0 %v4012
    %5222 = vmatprep.subr.mxu0 0.0
    %5223 = vmatpush1.msra.mxu0 %v4013
    %5224 = vmatprep.subr.mxu0 0.0
    %5225 = vmatpush1.msra.mxu0 %v4014
    %5226 = vmatprep.subr.mxu0 0.0
    %5227 = vmatpush1.msra.mxu0 %v4015
    %5228 = vmatprep.subr.mxu0 0.0
    %5229 = vmatpush1.msra.mxu0 %v4016
    %5230 = vmatprep.subr.mxu0 0.0
    %5231 = vmatpush1.msra.mxu0 %v4017
    %5232 = vmatprep.subr.mxu0 0.0
    %5233 = vmatpush1.msra.mxu0 %v4018
    %5234 = vmatprep.subr.mxu0 0.0
    %5235 = vmatpush1.msra.mxu0 %v4019
    %5236 = vmatprep.subr.mxu0 0.0
    %5237 = vmatpush1.msra.mxu0 %v4020
    %5238 = vmatprep.subr.mxu0 0.0
    %5239 = vmatpush1.msra.mxu0 %v4021
    %5240 = vmatprep.subr.mxu0 0.0
    %5241 = vmatpush1.msra.mxu0 %v4022
    %5242 = vmatprep.subr.mxu0 0.0
    %5243 = vmatpush1.msra.mxu0 %v4023
    %5244 = vmatprep.subr.mxu0 0.0
    %5245 = vmatpush1.msra.mxu0 0.0
    %5246 = vmatprep.subr.mxu0 0.0
    %5247 = vmatpush1.msra.mxu0 0.0
    %5248 = vmatprep.subr.mxu0 0.0
    %5249 = vmatpush1.msra.mxu0 0.0
    %5250 = vmatprep.subr.mxu0 0.0
    %5251 = vmatpush1.msra.mxu0 0.0
    %5252 = vmatprep.subr.mxu0 0.0
    %5253 = vmatpush1.msra.mxu0 0.0
    %5254 = vmatprep.subr.mxu0 0.0
    %5255 = vmatpush1.msra.mxu0 0.0
    %5256 = vmatprep.subr.mxu0 0.0
    %5257 = vmatpush1.msra.mxu0 0.0
    %5258 = vmatprep.subr.mxu0 0.0
    %5259 = vmatpush1.msra.mxu0 0.0
    %5260 = vmatprep.subr.mxu0 0.0
    %5261 = vmatpush1.msra.mxu0 0.0
    %5262 = vmatprep.subr.mxu0 0.0
    %5263 = vmatpush1.msra.mxu0 0.0
    %5264 = vmatprep.subr.mxu0 0.0
    %5265 = vmatpush1.msra.mxu0 0.0
    %5266 = vmatprep.subr.mxu0 0.0
    %5267 = vmatpush1.msra.mxu0 0.0
    %5268 = vmatprep.subr.mxu0 0.0
    %5269 = vmatpush1.msra.mxu0 0.0
    %5270 = vmatprep.subr.mxu0 0.0
    %5271 = vmatpush1.msra.mxu0 0.0
    %5272 = vmatprep.subr.mxu0 0.0
    %5273 = vmatpush1.msra.mxu0 0.0
    %5274 = vmatprep.subr.mxu0 0.0
    %5275 = vmatpush1.msra.mxu0 0.0
    %5276 = vmatprep.mubr.f32.mxu0 0.0
    %5277 = vmatmul.mubr.f32.gmra.mrb[0].mxu0 %v5198
    %v5278 = vpop.f32.mrb[0].mxu0
    %v5279 = vadd.f32 0.0, %v5278
    %v5280 = vpop.f32.mrb[0].mxu0
    %5281 = vdwg.mxu0
    %5282 = vmatprep.subr.mxu0 0.0
    %5283 = vmatpush1.msra.mxu0 %v4008
    %5284 = vmatprep.subr.mxu0 0.0
    %5285 = vmatpush1.msra.mxu0 %v4009
    %5286 = vmatprep.subr.mxu0 0.0
    %5287 = vmatpush1.msra.mxu0 %v4010
    %5288 = vmatprep.subr.mxu0 0.0
    %5289 = vmatpush1.msra.mxu0 %v4011
    %5290 = vmatprep.subr.mxu0 0.0
    %5291 = vmatpush1.msra.mxu0 %v4012
    %5292 = vmatprep.subr.mxu0 0.0
    %5293 = vmatpush1.msra.mxu0 %v4013
    %5294 = vmatprep.subr.mxu0 0.0
    %5295 = vmatpush1.msra.mxu0 %v4014
    %5296 = vmatprep.subr.mxu0 0.0
    %5297 = vmatpush1.msra.mxu0 %v4015
    %5298 = vmatprep.subr.mxu0 0.0
    %5299 = vmatpush1.msra.mxu0 %v4016
    %5300 = vmatprep.subr.mxu0 0.0
    %5301 = vmatpush1.msra.mxu0 %v4017
    %5302 = vmatprep.subr.mxu0 0.0
    %5303 = vmatpush1.msra.mxu0 %v4018
    %5304 = vmatprep.subr.mxu0 0.0
    %5305 = vmatpush1.msra.mxu0 %v4019
    %5306 = vmatprep.subr.mxu0 0.0
    %5307 = vmatpush1.msra.mxu0 %v4020
    %5308 = vmatprep.subr.mxu0 0.0
    %5309 = vmatpush1.msra.mxu0 %v4021
    %5310 = vmatprep.subr.mxu0 0.0
    %5311 = vmatpush1.msra.mxu0 %v4022
    %5312 = vmatprep.subr.mxu0 0.0
    %5313 = vmatpush1.msra.mxu0 %v4023
    %5314 = vmatprep.subr.mxu0 0.0
    %5315 = vmatpush1.msra.mxu0 0.0
    %5316 = vmatprep.subr.mxu0 0.0
    %5317 = vmatpush1.msra.mxu0 0.0
    %5318 = vmatprep.subr.mxu0 0.0
    %5319 = vmatpush1.msra.mxu0 0.0
    %5320 = vmatprep.subr.mxu0 0.0
    %5321 = vmatpush1.msra.mxu0 0.0
    %5322 = vmatprep.subr.mxu0 0.0
    %5323 = vmatpush1.msra.mxu0 0.0
    %5324 = vmatprep.subr.mxu0 0.0
    %5325 = vmatpush1.msra.mxu0 0.0
    %5326 = vmatprep.subr.mxu0 0.0
    %5327 = vmatpush1.msra.mxu0 0.0
    %5328 = vmatprep.subr.mxu0 0.0
    %5329 = vmatpush1.msra.mxu0 0.0
    %5330 = vmatprep.subr.mxu0 0.0
    %5331 = vmatpush1.msra.mxu0 0.0
    %5332 = vmatprep.subr.mxu0 0.0
    %5333 = vmatpush1.msra.mxu0 0.0
    %5334 = vmatprep.subr.mxu0 0.0
    %5335 = vmatpush1.msra.mxu0 0.0
    %5336 = vmatprep.subr.mxu0 0.0
    %5337 = vmatpush1.msra.mxu0 0.0
    %5338 = vmatprep.subr.mxu0 0.0
    %5339 = vmatpush1.msra.mxu0 0.0
    %5340 = vmatprep.subr.mxu0 0.0
    %5341 = vmatpush1.msra.mxu0 0.0
    %5342 = vmatprep.subr.mxu0 0.0
    %5343 = vmatpush1.msra.mxu0 0.0
    %5344 = vmatprep.subr.mxu0 0.0
    %5345 = vmatpush1.msra.mxu0 0.0
    %5346 = vmatprep.mubr.f32.mxu0 0.0
    %5347 = vmatmul.mubr.f32.gmra.mrb[0].mxu0 %v5211
    %v5348 = vpop.f32.mrb[0].mxu0
    %v5349 = vadd.f32 0.0, %v5348
    %v5350 = vpop.f32.mrb[0].mxu0
    %5351 = vdwg.mxu0
    %v5352 = vmul.f32 %v5279, 0.001953125
    %v5353 = vmul.f32 %v5349, 0.001953125
    %v5354 = vmul.f32 %v5352, %v5352
    %v5355 = vsub.f32 %v5353, %v5354
    %v5356 = vld [vmem:[#allocation41] sm:$0x1]
    %v5357 = vadd.f32 %v5355, 1e-05
    %v5358 = vrsqrt.pop %v5357
    %v5359 = vmul.f32 %v5356, %v5358
    %v5360 = vld [vmem:[#allocation43] sm:$0x1]
    %v5361 = vmul.f32 %v5352, %v5359
    %v5362 = vsub.f32 %v5360, %v5361
    %v5364 = vsel %vm1412, %v5359, 0
    %5366 = vmatprep.subr.mxu0 0.0
    %5367 = vmatpush1.msra.mxu0 %v4024
    %5368 = vmatprep.subr.mxu0 0.0
    %5369 = vmatpush1.msra.mxu0 0.0
    %5370 = vmatprep.subr.mxu0 0.0
    %5371 = vmatpush1.msra.mxu0 0.0
    %5372 = vmatprep.subr.mxu0 0.0
    %5373 = vmatpush1.msra.mxu0 0.0
    %5374 = vmatprep.subr.mxu0 0.0
    %5375 = vmatpush1.msra.mxu0 0.0
    %5376 = vmatprep.subr.mxu0 0.0
    %5377 = vmatpush1.msra.mxu0 0.0
    %5378 = vmatprep.subr.mxu0 0.0
    %5379 = vmatpush1.msra.mxu0 0.0
    %5380 = vmatprep.subr.mxu0 0.0
    %5381 = vmatpush1.msra.mxu0 0.0
    %5382 = vmatprep.subr.mxu0 0.0
    %5383 = vmatpush1.msra.mxu0 0.0
    %5384 = vmatprep.subr.mxu0 0.0
    %5385 = vmatpush1.msra.mxu0 0.0
    %5386 = vmatprep.subr.mxu0 0.0
    %5387 = vmatpush1.msra.mxu0 0.0
    %5388 = vmatprep.subr.mxu0 0.0
    %5389 = vmatpush1.msra.mxu0 0.0
    %5390 = vmatprep.subr.mxu0 0.0
    %5391 = vmatpush1.msra.mxu0 0.0
    %5392 = vmatprep.subr.mxu0 0.0
    %5393 = vmatpush1.msra.mxu0 0.0
    %5394 = vmatprep.subr.mxu0 0.0
    %5395 = vmatpush1.msra.mxu0 0.0
    %5396 = vmatprep.subr.mxu0 0.0
    %5397 = vmatpush1.msra.mxu0 0.0
    %5398 = vmatprep.subr.mxu0 0.0
    %5399 = vmatpush1.msra.mxu0 0.0
    %5400 = vmatprep.subr.mxu0 0.0
    %5401 = vmatpush1.msra.mxu0 0.0
    %5402 = vmatprep.subr.mxu0 0.0
    %5403 = vmatpush1.msra.mxu0 0.0
    %5404 = vmatprep.subr.mxu0 0.0
    %5405 = vmatpush1.msra.mxu0 0.0
    %5406 = vmatprep.subr.mxu0 0.0
    %5407 = vmatpush1.msra.mxu0 0.0
    %5408 = vmatprep.subr.mxu0 0.0
    %5409 = vmatpush1.msra.mxu0 0.0
    %5410 = vmatprep.subr.mxu0 0.0
    %5411 = vmatpush1.msra.mxu0 0.0
    %5412 = vmatprep.subr.mxu0 0.0
    %5413 = vmatpush1.msra.mxu0 0.0
    %5414 = vmatprep.subr.mxu0 0.0
    %5415 = vmatpush1.msra.mxu0 0.0
    %5416 = vmatprep.subr.mxu0 0.0
    %5417 = vmatpush1.msra.mxu0 0.0
    %5418 = vmatprep.subr.mxu0 0.0
    %5419 = vmatpush1.msra.mxu0 0.0
    %5420 = vmatprep.subr.mxu0 0.0
    %5421 = vmatpush1.msra.mxu0 0.0
    %5422 = vmatprep.subr.mxu0 0.0
    %5423 = vmatpush1.msra.mxu0 0.0
    %5424 = vmatprep.subr.mxu0 0.0
    %5425 = vmatpush1.msra.mxu0 0.0
    %5426 = vmatprep.subr.mxu0 0.0
    %5427 = vmatpush1.msra.mxu0 0.0
    %5428 = vmatprep.subr.mxu0 0.0
    %5429 = vmatpush1.msra.mxu0 0.0
    %5430 = vmatprep.mubr.f32.mxu0 0.0
    %5431 = vmatmul.mubr.f32.gmra.mrb[0].mxu0 %v5364
    %v5432 = vpop.f32.mrb[0].mxu0
    %v5433 = vadd.f32 0.0, %v5432
    %v5434 = vpop.f32.mrb[0].mxu0
    %5435 = vdwg.mxu0
    %v5437 = vsel %vm1412, %v5362, 0
    %5439 = vmatprep.subr.mxu0 0.0
    %5440 = vmatpush1.msra.mxu0 %v4024
    %5441 = vmatprep.subr.mxu0 0.0
    %5442 = vmatpush1.msra.mxu0 0.0
    %5443 = vmatprep.subr.mxu0 0.0
    %5444 = vmatpush1.msra.mxu0 0.0
    %5445 = vmatprep.subr.mxu0 0.0
    %5446 = vmatpush1.msra.mxu0 0.0
    %5447 = vmatprep.subr.mxu0 0.0
    %5448 = vmatpush1.msra.mxu0 0.0
    %5449 = vmatprep.subr.mxu0 0.0
    %5450 = vmatpush1.msra.mxu0 0.0
    %5451 = vmatprep.subr.mxu0 0.0
    %5452 = vmatpush1.msra.mxu0 0.0
    %5453 = vmatprep.subr.mxu0 0.0
    %5454 = vmatpush1.msra.mxu0 0.0
    %5455 = vmatprep.subr.mxu0 0.0
    %5456 = vmatpush1.msra.mxu0 0.0
    %5457 = vmatprep.subr.mxu0 0.0
    %5458 = vmatpush1.msra.mxu0 0.0
    %5459 = vmatprep.subr.mxu0 0.0
    %5460 = vmatpush1.msra.mxu0 0.0
    %5461 = vmatprep.subr.mxu0 0.0
    %5462 = vmatpush1.msra.mxu0 0.0
    %5463 = vmatprep.subr.mxu0 0.0
    %5464 = vmatpush1.msra.mxu0 0.0
    %5465 = vmatprep.subr.mxu0 0.0
    %5466 = vmatpush1.msra.mxu0 0.0
    %5467 = vmatprep.subr.mxu0 0.0
    %5468 = vmatpush1.msra.mxu0 0.0
    %5469 = vmatprep.subr.mxu0 0.0
    %5470 = vmatpush1.msra.mxu0 0.0
    %5471 = vmatprep.subr.mxu0 0.0
    %5472 = vmatpush1.msra.mxu0 0.0
    %5473 = vmatprep.subr.mxu0 0.0
    %5474 = vmatpush1.msra.mxu0 0.0
    %5475 = vmatprep.subr.mxu0 0.0
    %5476 = vmatpush1.msra.mxu0 0.0
    %5477 = vmatprep.subr.mxu0 0.0
    %5478 = vmatpush1.msra.mxu0 0.0
    %5479 = vmatprep.subr.mxu0 0.0
    %5480 = vmatpush1.msra.mxu0 0.0
    %5481 = vmatprep.subr.mxu0 0.0
    %5482 = vmatpush1.msra.mxu0 0.0
    %5483 = vmatprep.subr.mxu0 0.0
    %5484 = vmatpush1.msra.mxu0 0.0
    %5485 = vmatprep.subr.mxu0 0.0
    %5486 = vmatpush1.msra.mxu0 0.0
    %5487 = vmatprep.subr.mxu0 0.0
    %5488 = vmatpush1.msra.mxu0 0.0
    %5489 = vmatprep.subr.mxu0 0.0
    %5490 = vmatpush1.msra.mxu0 0.0
    %5491 = vmatprep.subr.mxu0 0.0
    %5492 = vmatpush1.msra.mxu0 0.0
    %5493 = vmatprep.subr.mxu0 0.0
    %5494 = vmatpush1.msra.mxu0 0.0
    %5495 = vmatprep.subr.mxu0 0.0
    %5496 = vmatpush1.msra.mxu0 0.0
    %5497 = vmatprep.subr.mxu0 0.0
    %5498 = vmatpush1.msra.mxu0 0.0
    %5499 = vmatprep.subr.mxu0 0.0
    %5500 = vmatpush1.msra.mxu0 0.0
    %5501 = vmatprep.subr.mxu0 0.0
    %5502 = vmatpush1.msra.mxu0 0.0
    %5503 = vmatprep.mubr.f32.mxu0 0.0
    %5504 = vmatmul.mubr.f32.gmra.mrb[0].mxu0 %v5437
    %v5505 = vpop.f32.mrb[0].mxu0
    %v5506 = vadd.f32 0.0, %v5505
    %v5507 = vpop.f32.mrb[0].mxu0
    %5508 = vdwg.mxu0
    %v5509 = vlaneseq
    %v5510 = vshrl.u32 %v5509, 7
    %v5511 = vsub.s32 0, %v5510
    %v5512 = vrot.slane %v5433, %v5511
    %v5513 = vmul.f32 %v5186, %v5512
    %v5514 = vmul.f32 %v5187, %v5512
    %v5515 = vmul.f32 %v5188, %v5512
    %v5516 = vmul.f32 %v5189, %v5512
    %v5517 = vlaneseq
    %v5518 = vshrl.u32 %v5517, 7
    %v5519 = vsub.s32 0, %v5518
    %v5520 = vrot.slane %v5506, %v5519
    %v5521 = vadd.f32 %v5513, %v5520
    %v5522 = vadd.f32 %v5514, %v5520
    %v5523 = vadd.f32 %v5515, %v5520
    %v5524 = vadd.f32 %v5516, %v5520
    %v5525 = vmax.f32 %v5521, 0.0
    %v5526 = vmax.f32 %v5522, 0.0
    %v5527 = vmax.f32 %v5523, 0.0
    %v5528 = vmax.f32 %v5524, 0.0
    %v5529 = vld [vmem:[%s81] sm:$0xff]
    %v5530 = vld [vmem:[%s81 + $0x8] sm:$0xff]
    %v5531 = vld [vmem:[%s81 + $0x10] sm:$0xff]
    %v5532 = vld [vmem:[%s81 + $0x18] sm:$0xff]
    %v5533 = vld [vmem:[%s81 + $0x20] sm:$0xff]
    %v5534 = vld [vmem:[%s81 + $0x28] sm:$0xff]
    %v5535 = vld [vmem:[%s81 + $0x30] sm:$0xff]
    %v5536 = vld [vmem:[%s81 + $0x38] sm:$0xff]
    %v5537 = vld [vmem:[%s83] sm:$0xff]
    %v5538 = vld [vmem:[%s83 + $0x8] sm:$0xff]
    %v5539 = vld [vmem:[%s83 + $0x10] sm:$0xff]
    %v5540 = vld [vmem:[%s83 + $0x18] sm:$0xff]
    %v5541 = vld [vmem:[%s83 + $0x20] sm:$0xff]
    %v5542 = vld [vmem:[%s83 + $0x28] sm:$0xff]
    %v5543 = vld [vmem:[%s83 + $0x30] sm:$0xff]
    %v5544 = vld [vmem:[%s83 + $0x38] sm:$0xff]
    %v5545 = vld [vmem:[%s83 + $0x40] sm:$0xff]
    %v5546 = vld [vmem:[%s83 + $0x48] sm:$0xff]
    %v5547 = vld [vmem:[%s83 + $0x50] sm:$0xff]
    %v5548 = vld [vmem:[%s83 + $0x58] sm:$0xff]
    %v5549 = vld [vmem:[%s83 + $0x60] sm:$0xff]
    %v5550 = vld [vmem:[%s83 + $0x68] sm:$0xff]
    %v5551 = vld [vmem:[%s83 + $0x70] sm:$0xff]
    %v5552 = vld [vmem:[%s83 + $0x78] sm:$0xff]
    %v5553 = vld [vmem:[%s83 + $0x80] sm:$0xff]
    %v5554 = vld [vmem:[%s83 + $0x88] sm:$0xff]
    %v5555 = vld [vmem:[%s83 + $0x90] sm:$0xff]
    %v5556 = vld [vmem:[%s83 + $0x98] sm:$0xff]
    %v5557 = vld [vmem:[%s83 + $0xa0] sm:$0xff]
    %v5558 = vld [vmem:[%s83 + $0xa8] sm:$0xff]
    %v5559 = vld [vmem:[%s83 + $0xb0] sm:$0xff]
    %v5560 = vld [vmem:[%s83 + $0xb8] sm:$0xff]
    %v5561 = vld [vmem:[%s83 + $0xc0] sm:$0xff]
    %v5562 = vld [vmem:[%s83 + $0xc8] sm:$0xff]
    %v5563 = vld [vmem:[%s83 + $0xd0] sm:$0xff]
    %v5564 = vld [vmem:[%s83 + $0xd8] sm:$0xff]
    %v5565 = vld [vmem:[%s83 + $0xe0] sm:$0xff]
    %v5566 = vld [vmem:[%s83 + $0xe8] sm:$0xff]
    %v5567 = vld [vmem:[%s83 + $0xf0] sm:$0xff]
    %v5568 = vld [vmem:[%s83 + $0xf8] sm:$0xff]
    %5569 = vmatprep.subr.mxu0 %v5538
    %5570 = vmatpush1.msra.mxu0 %v5537
    %5571 = vmatprep.subr.mxu0 %v5540
    %5572 = vmatpush1.msra.mxu0 %v5539
    %5573 = vmatprep.subr.mxu0 %v5542
    %5574 = vmatpush1.msra.mxu0 %v5541
    %5575 = vmatprep.subr.mxu0 %v5544
    %5576 = vmatpush1.msra.mxu0 %v5543
    %5577 = vmatprep.subr.mxu0 %v5546
    %5578 = vmatpush1.msra.mxu0 %v5545
    %5579 = vmatprep.subr.mxu0 %v5548
    %5580 = vmatpush1.msra.mxu0 %v5547
    %5581 = vmatprep.subr.mxu0 %v5550
    %5582 = vmatpush1.msra.mxu0 %v5549
    %5583 = vmatprep.subr.mxu0 %v5552
    %5584 = vmatpush1.msra.mxu0 %v5551
    %5585 = vmatprep.subr.mxu0 %v5554
    %5586 = vmatpush1.msra.mxu0 %v5553
    %5587 = vmatprep.subr.mxu0 %v5556
    %5588 = vmatpush1.msra.mxu0 %v5555
    %5589 = vmatprep.subr.mxu0 %v5558
    %5590 = vmatpush1.msra.mxu0 %v5557
    %5591 = vmatprep.subr.mxu0 %v5560
    %5592 = vmatpush1.msra.mxu0 %v5559
    %5593 = vmatprep.subr.mxu0 %v5562
    %5594 = vmatpush1.msra.mxu0 %v5561
    %5595 = vmatprep.subr.mxu0 %v5564
    %5596 = vmatpush1.msra.mxu0 %v5563
    %5597 = vmatprep.subr.mxu0 %v5566
    %5598 = vmatpush1.msra.mxu0 %v5565
    %5599 = vmatprep.subr.mxu0 %v5568
    %5600 = vmatpush1.msra.mxu0 %v5567
    %5601 = vmatprep.subr.mxu0 0.0
    %5602 = vmatpush1.msra.mxu0 0.0
    %5603 = vmatprep.subr.mxu0 0.0
    %5604 = vmatpush1.msra.mxu0 0.0
    %5605 = vmatprep.subr.mxu0 0.0
    %5606 = vmatpush1.msra.mxu0 0.0
    %5607 = vmatprep.subr.mxu0 0.0
    %5608 = vmatpush1.msra.mxu0 0.0
    %5609 = vmatprep.subr.mxu0 0.0
    %5610 = vmatpush1.msra.mxu0 0.0
    %5611 = vmatprep.subr.mxu0 0.0
    %5612 = vmatpush1.msra.mxu0 0.0
    %5613 = vmatprep.subr.mxu0 0.0
    %5614 = vmatpush1.msra.mxu0 0.0
    %5615 = vmatprep.subr.mxu0 0.0
    %5616 = vmatpush1.msra.mxu0 0.0
    %5617 = vmatprep.subr.mxu0 0.0
    %5618 = vmatpush1.msra.mxu0 0.0
    %5619 = vmatprep.subr.mxu0 0.0
    %5620 = vmatpush1.msra.mxu0 0.0
    %5621 = vmatprep.subr.mxu0 0.0
    %5622 = vmatpush1.msra.mxu0 0.0
    %5623 = vmatprep.subr.mxu0 0.0
    %5624 = vmatpush1.msra.mxu0 0.0
    %5625 = vmatprep.subr.mxu0 0.0
    %5626 = vmatpush1.msra.mxu0 0.0
    %5627 = vmatprep.subr.mxu0 0.0
    %5628 = vmatpush1.msra.mxu0 0.0
    %5629 = vmatprep.subr.mxu0 0.0
    %5630 = vmatpush1.msra.mxu0 0.0
    %5631 = vmatprep.subr.mxu0 0.0
    %5632 = vmatpush1.msra.mxu0 0.0
    %5633 = vmatprep.mubr.f32.mxu0 0.0
    %5634 = vmatmul.mubr.f32.gmra.mrb[0].mxu0 %v5525
    %v5635 = vpop.f32.mrb[0].mxu0
    %v5636 = vadd.f32 0.0, %v5635
    %v5637 = vpop.f32.mrb[0].mxu0
    %v5638 = vadd.f32 0.0, %v5637
    %5639 = vmatprep.mubr.f32.mxu0 0.0
    %5640 = vmatmul.mubr.f32.gmra.mrb[0].mxu0 %v5526
    %v5641 = vpop.f32.mrb[0].mxu0
    %v5642 = vadd.f32 0.0, %v5641
    %v5643 = vpop.f32.mrb[0].mxu0
    %v5644 = vadd.f32 0.0, %v5643
    %5645 = vmatprep.mubr.f32.mxu0 0.0
    %5646 = vmatmul.mubr.f32.gmra.mrb[0].mxu0 %v5527
    %v5647 = vpop.f32.mrb[0].mxu0
    %v5648 = vadd.f32 0.0, %v5647
    %v5649 = vpop.f32.mrb[0].mxu0
    %v5650 = vadd.f32 0.0, %v5649
    %5651 = vmatprep.mubr.f32.mxu0 0.0
    %5652 = vmatmul.mubr.f32.gmra.mrb[0].mxu0 %v5528
    %v5653 = vpop.f32.mrb[0].mxu0
    %v5654 = vadd.f32 0.0, %v5653
    %v5655 = vpop.f32.mrb[0].mxu0
    %v5656 = vadd.f32 0.0, %v5655
    %5657 = vdwg.mxu0
    %s5658 = scalar_lea.vmem %s81, 64
    %v5659 = vld [vmem:[%s5658] sm:$0xff]
    %v5660 = vld [vmem:[%s5658 + $0x8] sm:$0xff]
    %v5661 = vld [vmem:[%s5658 + $0x10] sm:$0xff]
    %v5662 = vld [vmem:[%s5658 + $0x18] sm:$0xff]
    %v5663 = vld [vmem:[%s5658 + $0x20] sm:$0xff]
    %v5664 = vld [vmem:[%s5658 + $0x28] sm:$0xff]
    %v5665 = vld [vmem:[%s5658 + $0x30] sm:$0xff]
    %v5666 = vld [vmem:[%s5658 + $0x38] sm:$0xff]
    %s5667 = scalar_lea.vmem %s83, 256
    %v5668 = vld [vmem:[%s5667] sm:$0xff]
    %v5669 = vld [vmem:[%s5667 + $0x8] sm:$0xff]
    %v5670 = vld [vmem:[%s5667 + $0x10] sm:$0xff]
    %v5671 = vld [vmem:[%s5667 + $0x18] sm:$0xff]
    %v5672 = vld [vmem:[%s5667 + $0x20] sm:$0xff]
    %v5673 = vld [vmem:[%s5667 + $0x28] sm:$0xff]
    %v5674 = vld [vmem:[%s5667 + $0x30] sm:$0xff]
    %v5675 = vld [vmem:[%s5667 + $0x38] sm:$0xff]
    %v5676 = vld [vmem:[%s5667 + $0x40] sm:$0xff]
    %v5677 = vld [vmem:[%s5667 + $0x48] sm:$0xff]
    %v5678 = vld [vmem:[%s5667 + $0x50] sm:$0xff]
    %v5679 = vld [vmem:[%s5667 + $0x58] sm:$0xff]
    %v5680 = vld [vmem:[%s5667 + $0x60] sm:$0xff]
    %v5681 = vld [vmem:[%s5667 + $0x68] sm:$0xff]
    %v5682 = vld [vmem:[%s5667 + $0x70] sm:$0xff]
    %v5683 = vld [vmem:[%s5667 + $0x78] sm:$0xff]
    %v5684 = vld [vmem:[%s5667 + $0x80] sm:$0xff]
    %v5685 = vld [vmem:[%s5667 + $0x88] sm:$0xff]
    %v5686 = vld [vmem:[%s5667 + $0x90] sm:$0xff]
    %v5687 = vld [vmem:[%s5667 + $0x98] sm:$0xff]
    %v5688 = vld [vmem:[%s5667 + $0xa0] sm:$0xff]
    %v5689 = vld [vmem:[%s5667 + $0xa8] sm:$0xff]
    %v5690 = vld [vmem:[%s5667 + $0xb0] sm:$0xff]
    %v5691 = vld [vmem:[%s5667 + $0xb8] sm:$0xff]
    %v5692 = vld [vmem:[%s5667 + $0xc0] sm:$0xff]
    %v5693 = vld [vmem:[%s5667 + $0xc8] sm:$0xff]
    %v5694 = vld [vmem:[%s5667 + $0xd0] sm:$0xff]
    %v5695 = vld [vmem:[%s5667 + $0xd8] sm:$0xff]
    %v5696 = vld [vmem:[%s5667 + $0xe0] sm:$0xff]
    %v5697 = vld [vmem:[%s5667 + $0xe8] sm:$0xff]
    %v5698 = vld [vmem:[%s5667 + $0xf0] sm:$0xff]
    %v5699 = vld [vmem:[%s5667 + $0xf8] sm:$0xff]
    %5700 = vmatprep.subr.mxu0 %v5669
    %5701 = vmatpush1.msra.mxu0 %v5668
    %5702 = vmatprep.subr.mxu0 %v5671
    %5703 = vmatpush1.msra.mxu0 %v5670
    %5704 = vmatprep.subr.mxu0 %v5673
    %5705 = vmatpush1.msra.mxu0 %v5672
    %5706 = vmatprep.subr.mxu0 %v5675
    %5707 = vmatpush1.msra.mxu0 %v5674
    %5708 = vmatprep.subr.mxu0 %v5677
    %5709 = vmatpush1.msra.mxu0 %v5676
    %5710 = vmatprep.subr.mxu0 %v5679
    %5711 = vmatpush1.msra.mxu0 %v5678
    %5712 = vmatprep.subr.mxu0 %v5681
    %5713 = vmatpush1.msra.mxu0 %v5680
    %5714 = vmatprep.subr.mxu0 %v5683
    %5715 = vmatpush1.msra.mxu0 %v5682
    %5716 = vmatprep.subr.mxu0 %v5685
    %5717 = vmatpush1.msra.mxu0 %v5684
    %5718 = vmatprep.subr.mxu0 %v5687
    %5719 = vmatpush1.msra.mxu0 %v5686
    %5720 = vmatprep.subr.mxu0 %v5689
    %5721 = vmatpush1.msra.mxu0 %v5688
    %5722 = vmatprep.subr.mxu0 %v5691
    %5723 = vmatpush1.msra.mxu0 %v5690
    %5724 = vmatprep.subr.mxu0 %v5693
    %5725 = vmatpush1.msra.mxu0 %v5692
    %5726 = vmatprep.subr.mxu0 %v5695
    %5727 = vmatpush1.msra.mxu0 %v5694
    %5728 = vmatprep.subr.mxu0 %v5697
    %5729 = vmatpush1.msra.mxu0 %v5696
    %5730 = vmatprep.subr.mxu0 %v5699
    %5731 = vmatpush1.msra.mxu0 %v5698
    %5732 = vmatprep.subr.mxu0 0.0
    %5733 = vmatpush1.msra.mxu0 0.0
    %5734 = vmatprep.subr.mxu0 0.0
    %5735 = vmatpush1.msra.mxu0 0.0
    %5736 = vmatprep.subr.mxu0 0.0
    %5737 = vmatpush1.msra.mxu0 0.0
    %5738 = vmatprep.subr.mxu0 0.0
    %5739 = vmatpush1.msra.mxu0 0.0
    %5740 = vmatprep.subr.mxu0 0.0
    %5741 = vmatpush1.msra.mxu0 0.0
    %5742 = vmatprep.subr.mxu0 0.0
    %5743 = vmatpush1.msra.mxu0 0.0
    %5744 = vmatprep.subr.mxu0 0.0
    %5745 = vmatpush1.msra.mxu0 0.0
    %5746 = vmatprep.subr.mxu0 0.0
    %5747 = vmatpush1.msra.mxu0 0.0
    %5748 = vmatprep.subr.mxu0 0.0
    %5749 = vmatpush1.msra.mxu0 0.0
    %5750 = vmatprep.subr.mxu0 0.0
    %5751 = vmatpush1.msra.mxu0 0.0
    %5752 = vmatprep.subr.mxu0 0.0
    %5753 = vmatpush1.msra.mxu0 0.0
    %5754 = vmatprep.subr.mxu0 0.0
    %5755 = vmatpush1.msra.mxu0 0.0
    %5756 = vmatprep.subr.mxu0 0.0
    %5757 = vmatpush1.msra.mxu0 0.0
    %5758 = vmatprep.subr.mxu0 0.0
    %5759 = vmatpush1.msra.mxu0 0.0
    %5760 = vmatprep.subr.mxu0 0.0
    %5761 = vmatpush1.msra.mxu0 0.0
    %5762 = vmatprep.subr.mxu0 0.0
    %5763 = vmatpush1.msra.mxu0 0.0
    %5764 = vmatprep.mubr.f32.mxu0 0.0
    %5765 = vmatmul.mubr.f32.gmra.mrb[0].mxu0 %v5525
    %v5766 = vpop.f32.mrb[0].mxu0
    %v5767 = vadd.f32 0.0, %v5766
    %v5768 = vpop.f32.mrb[0].mxu0
    %v5769 = vadd.f32 0.0, %v5768
    %5770 = vmatprep.mubr.f32.mxu0 0.0
    %5771 = vmatmul.mubr.f32.gmra.mrb[0].mxu0 %v5526
    %v5772 = vpop.f32.mrb[0].mxu0
    %v5773 = vadd.f32 0.0, %v5772
    %v5774 = vpop.f32.mrb[0].mxu0
    %v5775 = vadd.f32 0.0, %v5774
    %5776 = vmatprep.mubr.f32.mxu0 0.0
    %5777 = vmatmul.mubr.f32.gmra.mrb[0].mxu0 %v5527
    %v5778 = vpop.f32.mrb[0].mxu0
    %v5779 = vadd.f32 0.0, %v5778
    %v5780 = vpop.f32.mrb[0].mxu0
    %v5781 = vadd.f32 0.0, %v5780
    %5782 = vmatprep.mubr.f32.mxu0 0.0
    %5783 = vmatmul.mubr.f32.gmra.mrb[0].mxu0 %v5528
    %v5784 = vpop.f32.mrb[0].mxu0
    %v5785 = vadd.f32 0.0, %v5784
    %v5786 = vpop.f32.mrb[0].mxu0
    %v5787 = vadd.f32 0.0, %v5786
    %5788 = vdwg.mxu0
    %v5790 = vsel %vm1239, %v5659, 0
    %v5793 = vsel %vm1239, %v5660, 0
    %v5796 = vsel %vm1239, %v5661, 0
    %v5799 = vsel %vm1239, %v5662, 0
    %v5802 = vsel %vm1239, %v5663, 0
    %v5805 = vsel %vm1239, %v5664, 0
    %v5808 = vsel %vm1239, %v5665, 0
    %v5811 = vsel %vm1239, %v5666, 0
    %5813 = vmatprep.subr.mxu0 %v5769
    %5814 = vmatpush1.msra.mxu0 %v5767
    %5815 = vmatprep.subr.mxu0 %v5775
    %5816 = vmatpush1.msra.mxu0 %v5773
    %5817 = vmatprep.subr.mxu0 %v5781
    %5818 = vmatpush1.msra.mxu0 %v5779
    %5819 = vmatprep.subr.mxu0 %v5787
    %5820 = vmatpush1.msra.mxu0 %v5785
    %5821 = vmatprep.subr.mxu0 0.0
    %5822 = vmatpush1.msra.mxu0 0.0
    %5823 = vmatprep.subr.mxu0 0.0
    %5824 = vmatpush1.msra.mxu0 0.0
    %5825 = vmatprep.subr.mxu0 0.0
    %5826 = vmatpush1.msra.mxu0 0.0
    %5827 = vmatprep.subr.mxu0 0.0
    %5828 = vmatpush1.msra.mxu0 0.0
    %5829 = vmatprep.subr.mxu0 0.0
    %5830 = vmatpush1.msra.mxu0 0.0
    %5831 = vmatprep.subr.mxu0 0.0
    %5832 = vmatpush1.msra.mxu0 0.0
    %5833 = vmatprep.subr.mxu0 0.0
    %5834 = vmatpush1.msra.mxu0 0.0
    %5835 = vmatprep.subr.mxu0 0.0
    %5836 = vmatpush1.msra.mxu0 0.0
    %5837 = vmatprep.subr.mxu0 0.0
    %5838 = vmatpush1.msra.mxu0 0.0
    %5839 = vmatprep.subr.mxu0 0.0
    %5840 = vmatpush1.msra.mxu0 0.0
    %5841 = vmatprep.subr.mxu0 0.0
    %5842 = vmatpush1.msra.mxu0 0.0
    %5843 = vmatprep.subr.mxu0 0.0
    %5844 = vmatpush1.msra.mxu0 0.0
    %5845 = vmatprep.subr.mxu0 0.0
    %5846 = vmatpush1.msra.mxu0 0.0
    %5847 = vmatprep.subr.mxu0 0.0
    %5848 = vmatpush1.msra.mxu0 0.0
    %5849 = vmatprep.subr.mxu0 0.0
    %5850 = vmatpush1.msra.mxu0 0.0
    %5851 = vmatprep.subr.mxu0 0.0
    %5852 = vmatpush1.msra.mxu0 0.0
    %5853 = vmatprep.subr.mxu0 0.0
    %5854 = vmatpush1.msra.mxu0 0.0
    %5855 = vmatprep.subr.mxu0 0.0
    %5856 = vmatpush1.msra.mxu0 0.0
    %5857 = vmatprep.subr.mxu0 0.0
    %5858 = vmatpush1.msra.mxu0 0.0
    %5859 = vmatprep.subr.mxu0 0.0
    %5860 = vmatpush1.msra.mxu0 0.0
    %5861 = vmatprep.subr.mxu0 0.0
    %5862 = vmatpush1.msra.mxu0 0.0
    %5863 = vmatprep.subr.mxu0 0.0
    %5864 = vmatpush1.msra.mxu0 0.0
    %5865 = vmatprep.subr.mxu0 0.0
    %5866 = vmatpush1.msra.mxu0 0.0
    %5867 = vmatprep.subr.mxu0 0.0
    %5868 = vmatpush1.msra.mxu0 0.0
    %5869 = vmatprep.subr.mxu0 0.0
    %5870 = vmatpush1.msra.mxu0 0.0
    %5871 = vmatprep.subr.mxu0 0.0
    %5872 = vmatpush1.msra.mxu0 0.0
    %5873 = vmatprep.subr.mxu0 0.0
    %5874 = vmatpush1.msra.mxu0 0.0
    %5875 = vmatprep.subr.mxu0 0.0
    %5876 = vmatpush1.msra.mxu0 0.0
    %5877 = vmatprep.mubr.f32.mxu0 0.0
    %5878 = vmatmul.mubr.f32.gmra.mrb[0].mxu0 %v5790
    %v5879 = vpop.f32.mrb[0].mxu0
    %v5880 = vadd.f32 0.0, %v5879
    %v5881 = vpop.f32.mrb[0].mxu0
    %v5882 = vadd.f32 0.0, %v5881
    %5883 = vmatprep.mubr.f32.mxu0 0.0
    %5884 = vmatmul.mubr.f32.gmra.mrb[0].mxu0 %v5793
    %v5885 = vpop.f32.mrb[0].mxu0
    %v5886 = vadd.f32 0.0, %v5885
    %v5887 = vpop.f32.mrb[0].mxu0
    %v5888 = vadd.f32 0.0, %v5887
    %5889 = vmatprep.mubr.f32.mxu0 0.0
    %5890 = vmatmul.mubr.f32.gmra.mrb[0].mxu0 %v5796
    %v5891 = vpop.f32.mrb[0].mxu0
    %v5892 = vadd.f32 0.0, %v5891
    %v5893 = vpop.f32.mrb[0].mxu0
    %v5894 = vadd.f32 0.0, %v5893
    %5895 = vmatprep.mubr.f32.mxu0 0.0
    %5896 = vmatmul.mubr.f32.gmra.mrb[0].mxu0 %v5799
    %v5897 = vpop.f32.mrb[0].mxu0
    %v5898 = vadd.f32 0.0, %v5897
    %v5899 = vpop.f32.mrb[0].mxu0
    %v5900 = vadd.f32 0.0, %v5899
    %5901 = vmatprep.mubr.f32.mxu0 0.0
    %5902 = vmatmul.mubr.f32.gmra.mrb[0].mxu0 %v5802
    %v5903 = vpop.f32.mrb[0].mxu0
    %v5904 = vadd.f32 0.0, %v5903
    %v5905 = vpop.f32.mrb[0].mxu0
    %v5906 = vadd.f32 0.0, %v5905
    %5907 = vmatprep.mubr.f32.mxu0 0.0
    %5908 = vmatmul.mubr.f32.gmra.mrb[0].mxu0 %v5805
    %v5909 = vpop.f32.mrb[0].mxu0
    %v5910 = vadd.f32 0.0, %v5909
    %v5911 = vpop.f32.mrb[0].mxu0
    %v5912 = vadd.f32 0.0, %v5911
    %5913 = vmatprep.mubr.f32.mxu0 0.0
    %5914 = vmatmul.mubr.f32.gmra.mrb[0].mxu0 %v5808
    %v5915 = vpop.f32.mrb[0].mxu0
    %v5916 = vadd.f32 0.0, %v5915
    %v5917 = vpop.f32.mrb[0].mxu0
    %v5918 = vadd.f32 0.0, %v5917
    %5919 = vmatprep.mubr.f32.mxu0 0.0
    %5920 = vmatmul.mubr.f32.gmra.mrb[0].mxu0 %v5811
    %v5921 = vpop.f32.mrb[0].mxu0
    %v5922 = vadd.f32 0.0, %v5921
    %v5923 = vpop.f32.mrb[0].mxu0
    %v5924 = vadd.f32 0.0, %v5923
    %5925 = vdwg.mxu0
    %v5927 = vsel %vm1239, %v5529, 0
    %v5930 = vsel %vm1239, %v5530, 0
    %v5933 = vsel %vm1239, %v5531, 0
    %v5936 = vsel %vm1239, %v5532, 0
    %v5939 = vsel %vm1239, %v5533, 0
    %v5942 = vsel %vm1239, %v5534, 0
    %v5945 = vsel %vm1239, %v5535, 0
    %v5948 = vsel %vm1239, %v5536, 0
    %5950 = vmatprep.subr.mxu0 %v5638
    %5951 = vmatpush1.msra.mxu0 %v5636
    %5952 = vmatprep.subr.mxu0 %v5644
    %5953 = vmatpush1.msra.mxu0 %v5642
    %5954 = vmatprep.subr.mxu0 %v5650
    %5955 = vmatpush1.msra.mxu0 %v5648
    %5956 = vmatprep.subr.mxu0 %v5656
    %5957 = vmatpush1.msra.mxu0 %v5654
    %5958 = vmatprep.subr.mxu0 0.0
    %5959 = vmatpush1.msra.mxu0 0.0
    %5960 = vmatprep.subr.mxu0 0.0
    %5961 = vmatpush1.msra.mxu0 0.0
    %5962 = vmatprep.subr.mxu0 0.0
    %5963 = vmatpush1.msra.mxu0 0.0
    %5964 = vmatprep.subr.mxu0 0.0
    %5965 = vmatpush1.msra.mxu0 0.0
    %5966 = vmatprep.subr.mxu0 0.0
    %5967 = vmatpush1.msra.mxu0 0.0
    %5968 = vmatprep.subr.mxu0 0.0
    %5969 = vmatpush1.msra.mxu0 0.0
    %5970 = vmatprep.subr.mxu0 0.0
    %5971 = vmatpush1.msra.mxu0 0.0
    %5972 = vmatprep.subr.mxu0 0.0
    %5973 = vmatpush1.msra.mxu0 0.0
    %5974 = vmatprep.subr.mxu0 0.0
    %5975 = vmatpush1.msra.mxu0 0.0
    %5976 = vmatprep.subr.mxu0 0.0
    %5977 = vmatpush1.msra.mxu0 0.0
    %5978 = vmatprep.subr.mxu0 0.0
    %5979 = vmatpush1.msra.mxu0 0.0
    %5980 = vmatprep.subr.mxu0 0.0
    %5981 = vmatpush1.msra.mxu0 0.0
    %5982 = vmatprep.subr.mxu0 0.0
    %5983 = vmatpush1.msra.mxu0 0.0
    %5984 = vmatprep.subr.mxu0 0.0
    %5985 = vmatpush1.msra.mxu0 0.0
    %5986 = vmatprep.subr.mxu0 0.0
    %5987 = vmatpush1.msra.mxu0 0.0
    %5988 = vmatprep.subr.mxu0 0.0
    %5989 = vmatpush1.msra.mxu0 0.0
    %5990 = vmatprep.subr.mxu0 0.0
    %5991 = vmatpush1.msra.mxu0 0.0
    %5992 = vmatprep.subr.mxu0 0.0
    %5993 = vmatpush1.msra.mxu0 0.0
    %5994 = vmatprep.subr.mxu0 0.0
    %5995 = vmatpush1.msra.mxu0 0.0
    %5996 = vmatprep.subr.mxu0 0.0
    %5997 = vmatpush1.msra.mxu0 0.0
    %5998 = vmatprep.subr.mxu0 0.0
    %5999 = vmatpush1.msra.mxu0 0.0
    %6000 = vmatprep.subr.mxu0 0.0
    %6001 = vmatpush1.msra.mxu0 0.0
    %6002 = vmatprep.subr.mxu0 0.0
    %6003 = vmatpush1.msra.mxu0 0.0
    %6004 = vmatprep.subr.mxu0 0.0
    %6005 = vmatpush1.msra.mxu0 0.0
    %6006 = vmatprep.subr.mxu0 0.0
    %6007 = vmatpush1.msra.mxu0 0.0
    %6008 = vmatprep.subr.mxu0 0.0
    %6009 = vmatpush1.msra.mxu0 0.0
    %6010 = vmatprep.subr.mxu0 0.0
    %6011 = vmatpush1.msra.mxu0 0.0
    %6012 = vmatprep.subr.mxu0 0.0
    %6013 = vmatpush1.msra.mxu0 0.0
    %6014 = vmatprep.mubr.f32.mxu0 0.0
    %6015 = vmatmul.mubr.f32.gmra.mrb[0].mxu0 %v5927
    %v6016 = vpop.f32.mrb[0].mxu0
    %v6017 = vadd.f32 %v5880, %v6016
    %v6018 = vpop.f32.mrb[0].mxu0
    %v6019 = vadd.f32 %v5882, %v6018
    %6020 = vmatprep.mubr.f32.mxu0 0.0
    %6021 = vmatmul.mubr.f32.gmra.mrb[0].mxu0 %v5930
    %v6022 = vpop.f32.mrb[0].mxu0
    %v6023 = vadd.f32 %v5886, %v6022
    %v6024 = vpop.f32.mrb[0].mxu0
    %v6025 = vadd.f32 %v5888, %v6024
    %6026 = vmatprep.mubr.f32.mxu0 0.0
    %6027 = vmatmul.mubr.f32.gmra.mrb[0].mxu0 %v5933
    %v6028 = vpop.f32.mrb[0].mxu0
    %v6029 = vadd.f32 %v5892, %v6028
    %v6030 = vpop.f32.mrb[0].mxu0
    %v6031 = vadd.f32 %v5894, %v6030
    %6032 = vmatprep.mubr.f32.mxu0 0.0
    %6033 = vmatmul.mubr.f32.gmra.mrb[0].mxu0 %v5936
    %v6034 = vpop.f32.mrb[0].mxu0
    %v6035 = vadd.f32 %v5898, %v6034
    %v6036 = vpop.f32.mrb[0].mxu0
    %v6037 = vadd.f32 %v5900, %v6036
    %6038 = vmatprep.mubr.f32.mxu0 0.0
    %6039 = vmatmul.mubr.f32.gmra.mrb[0].mxu0 %v5939
    %v6040 = vpop.f32.mrb[0].mxu0
    %v6041 = vadd.f32 %v5904, %v6040
    %v6042 = vpop.f32.mrb[0].mxu0
    %v6043 = vadd.f32 %v5906, %v6042
    %6044 = vmatprep.mubr.f32.mxu0 0.0
    %6045 = vmatmul.mubr.f32.gmra.mrb[0].mxu0 %v5942
    %v6046 = vpop.f32.mrb[0].mxu0
    %v6047 = vadd.f32 %v5910, %v6046
    %v6048 = vpop.f32.mrb[0].mxu0
    %v6049 = vadd.f32 %v5912, %v6048
    %6050 = vmatprep.mubr.f32.mxu0 0.0
    %6051 = vmatmul.mubr.f32.gmra.mrb[0].mxu0 %v5945
    %v6052 = vpop.f32.mrb[0].mxu0
    %v6053 = vadd.f32 %v5916, %v6052
    %v6054 = vpop.f32.mrb[0].mxu0
    %v6055 = vadd.f32 %v5918, %v6054
    %6056 = vmatprep.mubr.f32.mxu0 0.0
    %6057 = vmatmul.mubr.f32.gmra.mrb[0].mxu0 %v5948
    %v6058 = vpop.f32.mrb[0].mxu0
    %v6059 = vadd.f32 %v5922, %v6058
    %v6060 = vpop.f32.mrb[0].mxu0
    %v6061 = vadd.f32 %v5924, %v6060
    %6062 = vdwg.mxu0
    %s6063 = scalar_lea.vmem %s81, 128
    %v6064 = vld [vmem:[%s6063] sm:$0xff]
    %v6065 = vld [vmem:[%s6063 + $0x8] sm:$0xff]
    %v6066 = vld [vmem:[%s6063 + $0x10] sm:$0xff]
    %v6067 = vld [vmem:[%s6063 + $0x18] sm:$0xff]
    %v6068 = vld [vmem:[%s6063 + $0x20] sm:$0xff]
    %v6069 = vld [vmem:[%s6063 + $0x28] sm:$0xff]
    %v6070 = vld [vmem:[%s6063 + $0x30] sm:$0xff]
    %v6071 = vld [vmem:[%s6063 + $0x38] sm:$0xff]
    %s6072 = scalar_lea.vmem %s83, 512
    %v6073 = vld [vmem:[%s6072] sm:$0xff]
    %v6074 = vld [vmem:[%s6072 + $0x8] sm:$0xff]
    %v6075 = vld [vmem:[%s6072 + $0x10] sm:$0xff]
    %v6076 = vld [vmem:[%s6072 + $0x18] sm:$0xff]
    %v6077 = vld [vmem:[%s6072 + $0x20] sm:$0xff]
    %v6078 = vld [vmem:[%s6072 + $0x28] sm:$0xff]
    %v6079 = vld [vmem:[%s6072 + $0x30] sm:$0xff]
    %v6080 = vld [vmem:[%s6072 + $0x38] sm:$0xff]
    %v6081 = vld [vmem:[%s6072 + $0x40] sm:$0xff]
    %v6082 = vld [vmem:[%s6072 + $0x48] sm:$0xff]
    %v6083 = vld [vmem:[%s6072 + $0x50] sm:$0xff]
    %v6084 = vld [vmem:[%s6072 + $0x58] sm:$0xff]
    %v6085 = vld [vmem:[%s6072 + $0x60] sm:$0xff]
    %v6086 = vld [vmem:[%s6072 + $0x68] sm:$0xff]
    %v6087 = vld [vmem:[%s6072 + $0x70] sm:$0xff]
    %v6088 = vld [vmem:[%s6072 + $0x78] sm:$0xff]
    %v6089 = vld [vmem:[%s6072 + $0x80] sm:$0xff]
    %v6090 = vld [vmem:[%s6072 + $0x88] sm:$0xff]
    %v6091 = vld [vmem:[%s6072 + $0x90] sm:$0xff]
    %v6092 = vld [vmem:[%s6072 + $0x98] sm:$0xff]
    %v6093 = vld [vmem:[%s6072 + $0xa0] sm:$0xff]
    %v6094 = vld [vmem:[%s6072 + $0xa8] sm:$0xff]
    %v6095 = vld [vmem:[%s6072 + $0xb0] sm:$0xff]
    %v6096 = vld [vmem:[%s6072 + $0xb8] sm:$0xff]
    %v6097 = vld [vmem:[%s6072 + $0xc0] sm:$0xff]
    %v6098 = vld [vmem:[%s6072 + $0xc8] sm:$0xff]
    %v6099 = vld [vmem:[%s6072 + $0xd0] sm:$0xff]
    %v6100 = vld [vmem:[%s6072 + $0xd8] sm:$0xff]
    %v6101 = vld [vmem:[%s6072 + $0xe0] sm:$0xff]
    %v6102 = vld [vmem:[%s6072 + $0xe8] sm:$0xff]
    %v6103 = vld [vmem:[%s6072 + $0xf0] sm:$0xff]
    %v6104 = vld [vmem:[%s6072 + $0xf8] sm:$0xff]
    %6105 = vmatprep.subr.mxu0 %v6074
    %6106 = vmatpush1.msra.mxu0 %v6073
    %6107 = vmatprep.subr.mxu0 %v6076
    %6108 = vmatpush1.msra.mxu0 %v6075
    %6109 = vmatprep.subr.mxu0 %v6078
    %6110 = vmatpush1.msra.mxu0 %v6077
    %6111 = vmatprep.subr.mxu0 %v6080
    %6112 = vmatpush1.msra.mxu0 %v6079
    %6113 = vmatprep.subr.mxu0 %v6082
    %6114 = vmatpush1.msra.mxu0 %v6081
    %6115 = vmatprep.subr.mxu0 %v6084
    %6116 = vmatpush1.msra.mxu0 %v6083
    %6117 = vmatprep.subr.mxu0 %v6086
    %6118 = vmatpush1.msra.mxu0 %v6085
    %6119 = vmatprep.subr.mxu0 %v6088
    %6120 = vmatpush1.msra.mxu0 %v6087
    %6121 = vmatprep.subr.mxu0 %v6090
    %6122 = vmatpush1.msra.mxu0 %v6089
    %6123 = vmatprep.subr.mxu0 %v6092
    %6124 = vmatpush1.msra.mxu0 %v6091
    %6125 = vmatprep.subr.mxu0 %v6094
    %6126 = vmatpush1.msra.mxu0 %v6093
    %6127 = vmatprep.subr.mxu0 %v6096
    %6128 = vmatpush1.msra.mxu0 %v6095
    %6129 = vmatprep.subr.mxu0 %v6098
    %6130 = vmatpush1.msra.mxu0 %v6097
    %6131 = vmatprep.subr.mxu0 %v6100
    %6132 = vmatpush1.msra.mxu0 %v6099
    %6133 = vmatprep.subr.mxu0 %v6102
    %6134 = vmatpush1.msra.mxu0 %v6101
    %6135 = vmatprep.subr.mxu0 %v6104
    %6136 = vmatpush1.msra.mxu0 %v6103
    %6137 = vmatprep.subr.mxu0 0.0
    %6138 = vmatpush1.msra.mxu0 0.0
    %6139 = vmatprep.subr.mxu0 0.0
    %6140 = vmatpush1.msra.mxu0 0.0
    %6141 = vmatprep.subr.mxu0 0.0
    %6142 = vmatpush1.msra.mxu0 0.0
    %6143 = vmatprep.subr.mxu0 0.0
    %6144 = vmatpush1.msra.mxu0 0.0
    %6145 = vmatprep.subr.mxu0 0.0
    %6146 = vmatpush1.msra.mxu0 0.0
    %6147 = vmatprep.subr.mxu0 0.0
    %6148 = vmatpush1.msra.mxu0 0.0
    %6149 = vmatprep.subr.mxu0 0.0
    %6150 = vmatpush1.msra.mxu0 0.0
    %6151 = vmatprep.subr.mxu0 0.0
    %6152 = vmatpush1.msra.mxu0 0.0
    %6153 = vmatprep.subr.mxu0 0.0
    %6154 = vmatpush1.msra.mxu0 0.0
    %6155 = vmatprep.subr.mxu0 0.0
    %6156 = vmatpush1.msra.mxu0 0.0
    %6157 = vmatprep.subr.mxu0 0.0
    %6158 = vmatpush1.msra.mxu0 0.0
    %6159 = vmatprep.subr.mxu0 0.0
    %6160 = vmatpush1.msra.mxu0 0.0
    %6161 = vmatprep.subr.mxu0 0.0
    %6162 = vmatpush1.msra.mxu0 0.0
    %6163 = vmatprep.subr.mxu0 0.0
    %6164 = vmatpush1.msra.mxu0 0.0
    %6165 = vmatprep.subr.mxu0 0.0
    %6166 = vmatpush1.msra.mxu0 0.0
    %6167 = vmatprep.subr.mxu0 0.0
    %6168 = vmatpush1.msra.mxu0 0.0
    %6169 = vmatprep.mubr.f32.mxu0 0.0
    %6170 = vmatmul.mubr.f32.gmra.mrb[0].mxu0 %v5525
    %v6171 = vpop.f32.mrb[0].mxu0
    %v6172 = vadd.f32 0.0, %v6171
    %v6173 = vpop.f32.mrb[0].mxu0
    %v6174 = vadd.f32 0.0, %v6173
    %6175 = vmatprep.mubr.f32.mxu0 0.0
    %6176 = vmatmul.mubr.f32.gmra.mrb[0].mxu0 %v5526
    %v6177 = vpop.f32.mrb[0].mxu0
    %v6178 = vadd.f32 0.0, %v6177
    %v6179 = vpop.f32.mrb[0].mxu0
    %v6180 = vadd.f32 0.0, %v6179
    %6181 = vmatprep.mubr.f32.mxu0 0.0
    %6182 = vmatmul.mubr.f32.gmra.mrb[0].mxu0 %v5527
    %v6183 = vpop.f32.mrb[0].mxu0
    %v6184 = vadd.f32 0.0, %v6183
    %v6185 = vpop.f32.mrb[0].mxu0
    %v6186 = vadd.f32 0.0, %v6185
    %6187 = vmatprep.mubr.f32.mxu0 0.0
    %6188 = vmatmul.mubr.f32.gmra.mrb[0].mxu0 %v5528
    %v6189 = vpop.f32.mrb[0].mxu0
    %v6190 = vadd.f32 0.0, %v6189
    %v6191 = vpop.f32.mrb[0].mxu0
    %v6192 = vadd.f32 0.0, %v6191
    %6193 = vdwg.mxu0
    %v6195 = vsel %vm1239, %v6064, 0
    %v6198 = vsel %vm1239, %v6065, 0
    %v6201 = vsel %vm1239, %v6066, 0
    %v6204 = vsel %vm1239, %v6067, 0
    %v6207 = vsel %vm1239, %v6068, 0
    %v6210 = vsel %vm1239, %v6069, 0
    %v6213 = vsel %vm1239, %v6070, 0
    %v6216 = vsel %vm1239, %v6071, 0
    %6218 = vmatprep.subr.mxu0 %v6174
    %6219 = vmatpush1.msra.mxu0 %v6172
    %6220 = vmatprep.subr.mxu0 %v6180
    %6221 = vmatpush1.msra.mxu0 %v6178
    %6222 = vmatprep.subr.mxu0 %v6186
    %6223 = vmatpush1.msra.mxu0 %v6184
    %6224 = vmatprep.subr.mxu0 %v6192
    %6225 = vmatpush1.msra.mxu0 %v6190
    %6226 = vmatprep.subr.mxu0 0.0
    %6227 = vmatpush1.msra.mxu0 0.0
    %6228 = vmatprep.subr.mxu0 0.0
    %6229 = vmatpush1.msra.mxu0 0.0
    %6230 = vmatprep.subr.mxu0 0.0
    %6231 = vmatpush1.msra.mxu0 0.0
    %6232 = vmatprep.subr.mxu0 0.0
    %6233 = vmatpush1.msra.mxu0 0.0
    %6234 = vmatprep.subr.mxu0 0.0
    %6235 = vmatpush1.msra.mxu0 0.0
    %6236 = vmatprep.subr.mxu0 0.0
    %6237 = vmatpush1.msra.mxu0 0.0
    %6238 = vmatprep.subr.mxu0 0.0
    %6239 = vmatpush1.msra.mxu0 0.0
    %6240 = vmatprep.subr.mxu0 0.0
    %6241 = vmatpush1.msra.mxu0 0.0
    %6242 = vmatprep.subr.mxu0 0.0
    %6243 = vmatpush1.msra.mxu0 0.0
    %6244 = vmatprep.subr.mxu0 0.0
    %6245 = vmatpush1.msra.mxu0 0.0
    %6246 = vmatprep.subr.mxu0 0.0
    %6247 = vmatpush1.msra.mxu0 0.0
    %6248 = vmatprep.subr.mxu0 0.0
    %6249 = vmatpush1.msra.mxu0 0.0
    %6250 = vmatprep.subr.mxu0 0.0
    %6251 = vmatpush1.msra.mxu0 0.0
    %6252 = vmatprep.subr.mxu0 0.0
    %6253 = vmatpush1.msra.mxu0 0.0
    %6254 = vmatprep.subr.mxu0 0.0
    %6255 = vmatpush1.msra.mxu0 0.0
    %6256 = vmatprep.subr.mxu0 0.0
    %6257 = vmatpush1.msra.mxu0 0.0
    %6258 = vmatprep.subr.mxu0 0.0
    %6259 = vmatpush1.msra.mxu0 0.0
    %6260 = vmatprep.subr.mxu0 0.0
    %6261 = vmatpush1.msra.mxu0 0.0
    %6262 = vmatprep.subr.mxu0 0.0
    %6263 = vmatpush1.msra.mxu0 0.0
    %6264 = vmatprep.subr.mxu0 0.0
    %6265 = vmatpush1.msra.mxu0 0.0
    %6266 = vmatprep.subr.mxu0 0.0
    %6267 = vmatpush1.msra.mxu0 0.0
    %6268 = vmatprep.subr.mxu0 0.0
    %6269 = vmatpush1.msra.mxu0 0.0
    %6270 = vmatprep.subr.mxu0 0.0
    %6271 = vmatpush1.msra.mxu0 0.0
    %6272 = vmatprep.subr.mxu0 0.0
    %6273 = vmatpush1.msra.mxu0 0.0
    %6274 = vmatprep.subr.mxu0 0.0
    %6275 = vmatpush1.msra.mxu0 0.0
    %6276 = vmatprep.subr.mxu0 0.0
    %6277 = vmatpush1.msra.mxu0 0.0
    %6278 = vmatprep.subr.mxu0 0.0
    %6279 = vmatpush1.msra.mxu0 0.0
    %6280 = vmatprep.subr.mxu0 0.0
    %6281 = vmatpush1.msra.mxu0 0.0
    %6282 = vmatprep.mubr.f32.mxu0 0.0
    %6283 = vmatmul.mubr.f32.gmra.mrb[0].mxu0 %v6195
    %v6284 = vpop.f32.mrb[0].mxu0
    %v6285 = vadd.f32 0.0, %v6284
    %v6286 = vpop.f32.mrb[0].mxu0
    %v6287 = vadd.f32 0.0, %v6286
    %6288 = vmatprep.mubr.f32.mxu0 0.0
    %6289 = vmatmul.mubr.f32.gmra.mrb[0].mxu0 %v6198
    %v6290 = vpop.f32.mrb[0].mxu0
    %v6291 = vadd.f32 0.0, %v6290
    %v6292 = vpop.f32.mrb[0].mxu0
    %v6293 = vadd.f32 0.0, %v6292
    %6294 = vmatprep.mubr.f32.mxu0 0.0
    %6295 = vmatmul.mubr.f32.gmra.mrb[0].mxu0 %v6201
    %v6296 = vpop.f32.mrb[0].mxu0
    %v6297 = vadd.f32 0.0, %v6296
    %v6298 = vpop.f32.mrb[0].mxu0
    %v6299 = vadd.f32 0.0, %v6298
    %6300 = vmatprep.mubr.f32.mxu0 0.0
    %6301 = vmatmul.mubr.f32.gmra.mrb[0].mxu0 %v6204
    %v6302 = vpop.f32.mrb[0].mxu0
    %v6303 = vadd.f32 0.0, %v6302
    %v6304 = vpop.f32.mrb[0].mxu0
    %v6305 = vadd.f32 0.0, %v6304
    %6306 = vmatprep.mubr.f32.mxu0 0.0
    %6307 = vmatmul.mubr.f32.gmra.mrb[0].mxu0 %v6207
    %v6308 = vpop.f32.mrb[0].mxu0
    %v6309 = vadd.f32 0.0, %v6308
    %v6310 = vpop.f32.mrb[0].mxu0
    %v6311 = vadd.f32 0.0, %v6310
    %6312 = vmatprep.mubr.f32.mxu0 0.0
    %6313 = vmatmul.mubr.f32.gmra.mrb[0].mxu0 %v6210
    %v6314 = vpop.f32.mrb[0].mxu0
    %v6315 = vadd.f32 0.0, %v6314
    %v6316 = vpop.f32.mrb[0].mxu0
    %v6317 = vadd.f32 0.0, %v6316
    %6318 = vmatprep.mubr.f32.mxu0 0.0
    %6319 = vmatmul.mubr.f32.gmra.mrb[0].mxu0 %v6213
    %v6320 = vpop.f32.mrb[0].mxu0
    %v6321 = vadd.f32 0.0, %v6320
    %v6322 = vpop.f32.mrb[0].mxu0
    %v6323 = vadd.f32 0.0, %v6322
    %6324 = vmatprep.mubr.f32.mxu0 0.0
    %6325 = vmatmul.mubr.f32.gmra.mrb[0].mxu0 %v6216
    %v6326 = vpop.f32.mrb[0].mxu0
    %v6327 = vadd.f32 0.0, %v6326
    %v6328 = vpop.f32.mrb[0].mxu0
    %v6329 = vadd.f32 0.0, %v6328
    %6330 = vdwg.mxu0
    %v6331 = vadd.f32 %v6017, %v6285
    %v6332 = vadd.f32 %v6019, %v6287
    %v6333 = vadd.f32 %v6023, %v6291
    %v6334 = vadd.f32 %v6025, %v6293
    %v6335 = vadd.f32 %v6029, %v6297
    %v6336 = vadd.f32 %v6031, %v6299
    %v6337 = vadd.f32 %v6035, %v6303
    %v6338 = vadd.f32 %v6037, %v6305
    %v6339 = vadd.f32 %v6041, %v6309
    %v6340 = vadd.f32 %v6043, %v6311
    %v6341 = vadd.f32 %v6047, %v6315
    %v6342 = vadd.f32 %v6049, %v6317
    %v6343 = vadd.f32 %v6053, %v6321
    %v6344 = vadd.f32 %v6055, %v6323
    %v6345 = vadd.f32 %v6059, %v6327
    %v6346 = vadd.f32 %v6061, %v6329
    %v6347 = vld [vmem:[%s85] sm:$0x3]
    %v6349 = vlaneseq
    %v6350 = vshrl.u32 %v6349, 7
    %v6351 = vsub.s32 0, %v6350
    %v6352 = vrot.slane %v6347, %v6351
    %v6353 = vlaneseq
    %v6354 = vshrl.u32 %v6353, 7
    %v6355 = vsub.s32 1, %v6354
    %v6356 = vrot.slane %v6347, %v6355
    %v6359 = vadd.f32 %v6331, %v6352
    %v6360 = vadd.f32 %v6332, %v6356
    %v6361 = vadd.f32 %v6333, %v6352
    %v6362 = vadd.f32 %v6334, %v6356
    %v6363 = vadd.f32 %v6335, %v6352
    %v6364 = vadd.f32 %v6336, %v6356
    %v6365 = vadd.f32 %v6337, %v6352
    %v6366 = vadd.f32 %v6338, %v6356
    %v6367 = vadd.f32 %v6339, %v6352
    %v6368 = vadd.f32 %v6340, %v6356
    %v6369 = vadd.f32 %v6341, %v6352
    %v6370 = vadd.f32 %v6342, %v6356
    %v6371 = vadd.f32 %v6343, %v6352
    %v6372 = vadd.f32 %v6344, %v6356
    %v6373 = vadd.f32 %v6345, %v6352
    %v6374 = vadd.f32 %v6346, %v6356
    %v6375 = vld [vmem:[%s21] sm:$0xff]
    %v6376 = vld [vmem:[%s21 + $0x8] sm:$0xff]
    %v6377 = vld [vmem:[%s21 + $0x10] sm:$0xff]
    %v6378 = vld [vmem:[%s21 + $0x18] sm:$0xff]
    %v6379 = vld [vmem:[%s21 + $0x20] sm:$0xff]
    %v6380 = vld [vmem:[%s21 + $0x28] sm:$0xff]
    %v6381 = vld [vmem:[%s21 + $0x30] sm:$0xff]
    %v6382 = vld [vmem:[%s21 + $0x38] sm:$0xff]
    %v6383 = vld [vmem:[%s21 + $0x40] sm:$0xff]
    %v6384 = vld [vmem:[%s21 + $0x48] sm:$0xff]
    %v6385 = vld [vmem:[%s21 + $0x50] sm:$0xff]
    %v6386 = vld [vmem:[%s21 + $0x58] sm:$0xff]
    %v6387 = vld [vmem:[%s21 + $0x60] sm:$0xff]
    %v6388 = vld [vmem:[%s21 + $0x68] sm:$0xff]
    %v6389 = vld [vmem:[%s21 + $0x70] sm:$0xff]
    %v6390 = vld [vmem:[%s21 + $0x78] sm:$0xff]
    %v6391 = vld [vmem:[%s21 + $0x80] sm:$0xff]
    %v6392 = vld [vmem:[%s21 + $0x88] sm:$0xff]
    %v6393 = vld [vmem:[%s21 + $0x90] sm:$0xff]
    %v6394 = vld [vmem:[%s21 + $0x98] sm:$0xff]
    %v6395 = vld [vmem:[%s21 + $0xa0] sm:$0xff]
    %v6396 = vld [vmem:[%s21 + $0xa8] sm:$0xff]
    %v6397 = vld [vmem:[%s21 + $0xb0] sm:$0xff]
    %v6398 = vld [vmem:[%s21 + $0xb8] sm:$0xff]
    %v6399 = vld [vmem:[%s21 + $0xc0] sm:$0xff]
    %v6400 = vld [vmem:[%s21 + $0xc8] sm:$0xff]
    %v6401 = vld [vmem:[%s21 + $0xd0] sm:$0xff]
    %v6402 = vld [vmem:[%s21 + $0xd8] sm:$0xff]
    %v6403 = vld [vmem:[%s21 + $0xe0] sm:$0xff]
    %v6404 = vld [vmem:[%s21 + $0xe8] sm:$0xff]
    %v6405 = vld [vmem:[%s21 + $0xf0] sm:$0xff]
    %v6406 = vld [vmem:[%s21 + $0xf8] sm:$0xff]
    %v6407 = vld [vmem:[#allocation10] sm:$0xff]
    %v6408 = vld [vmem:[#allocation10 + $0x8] sm:$0xff]
    %v6409 = vadd.f32 %v6359, %v6361
    %v6410 = vadd.f32 %v6409, %v6363
    %v6411 = vadd.f32 %v6410, %v6365
    %v6412 = vadd.f32 %v6411, %v6367
    %v6413 = vadd.f32 %v6412, %v6369
    %v6414 = vadd.f32 %v6413, %v6371
    %v6415 = vadd.f32 %v6414, %v6373
    %v6416 = vrot.slane %v6415, 4
    %v6417 = vadd.f32 %v6415, %v6416
    %v6418 = vrot.slane %v6417, 2
    %v6419 = vadd.f32 %v6417, %v6418
    %v6420 = vrot.slane %v6419, 1
    %v6421 = vadd.f32 %v6419, %v6420
    %v6422 = vadd.f32 %v6360, %v6362
    %v6423 = vadd.f32 %v6422, %v6364
    %v6424 = vadd.f32 %v6423, %v6366
    %v6425 = vadd.f32 %v6424, %v6368
    %v6426 = vadd.f32 %v6425, %v6370
    %v6427 = vadd.f32 %v6426, %v6372
    %v6428 = vadd.f32 %v6427, %v6374
    %v6429 = vrot.slane %v6428, 4
    %v6430 = vadd.f32 %v6428, %v6429
    %v6431 = vrot.slane %v6430, 2
    %v6432 = vadd.f32 %v6430, %v6431
    %v6433 = vrot.slane %v6432, 1
    %v6434 = vadd.f32 %v6432, %v6433
    %v6435 = vmul.f32 %v6359, %v6359
    %v6436 = vmul.f32 %v6360, %v6360
    %v6437 = vmul.f32 %v6361, %v6361
    %v6438 = vmul.f32 %v6362, %v6362
    %v6439 = vmul.f32 %v6363, %v6363
    %v6440 = vmul.f32 %v6364, %v6364
    %v6441 = vmul.f32 %v6365, %v6365
    %v6442 = vmul.f32 %v6366, %v6366
    %v6443 = vmul.f32 %v6367, %v6367
    %v6444 = vmul.f32 %v6368, %v6368
    %v6445 = vmul.f32 %v6369, %v6369
    %v6446 = vmul.f32 %v6370, %v6370
    %v6447 = vmul.f32 %v6371, %v6371
    %v6448 = vmul.f32 %v6372, %v6372
    %v6449 = vmul.f32 %v6373, %v6373
    %v6450 = vmul.f32 %v6374, %v6374
    %v6451 = vadd.f32 %v6435, %v6437
    %v6452 = vadd.f32 %v6451, %v6439
    %v6453 = vadd.f32 %v6452, %v6441
    %v6454 = vadd.f32 %v6453, %v6443
    %v6455 = vadd.f32 %v6454, %v6445
    %v6456 = vadd.f32 %v6455, %v6447
    %v6457 = vadd.f32 %v6456, %v6449
    %v6458 = vrot.slane %v6457, 4
    %v6459 = vadd.f32 %v6457, %v6458
    %v6460 = vrot.slane %v6459, 2
    %v6461 = vadd.f32 %v6459, %v6460
    %v6462 = vrot.slane %v6461, 1
    %v6463 = vadd.f32 %v6461, %v6462
    %v6464 = vadd.f32 %v6436, %v6438
    %v6465 = vadd.f32 %v6464, %v6440
    %v6466 = vadd.f32 %v6465, %v6442
    %v6467 = vadd.f32 %v6466, %v6444
    %v6468 = vadd.f32 %v6467, %v6446
    %v6469 = vadd.f32 %v6468, %v6448
    %v6470 = vadd.f32 %v6469, %v6450
    %v6471 = vrot.slane %v6470, 4
    %v6472 = vadd.f32 %v6470, %v6471
    %v6473 = vrot.slane %v6472, 2
    %v6474 = vadd.f32 %v6472, %v6473
    %v6475 = vrot.slane %v6474, 1
    %v6476 = vadd.f32 %v6474, %v6475
    %6477 = vmatprep.subr.mxu0 0.0
    %6478 = vmatpush1.msra.mxu0 %v6375
    %6479 = vmatprep.subr.mxu0 0.0
    %6480 = vmatpush1.msra.mxu0 %v6376
    %6481 = vmatprep.subr.mxu0 0.0
    %6482 = vmatpush1.msra.mxu0 %v6377
    %6483 = vmatprep.subr.mxu0 0.0
    %6484 = vmatpush1.msra.mxu0 %v6378
    %6485 = vmatprep.subr.mxu0 0.0
    %6486 = vmatpush1.msra.mxu0 %v6379
    %6487 = vmatprep.subr.mxu0 0.0
    %6488 = vmatpush1.msra.mxu0 %v6380
    %6489 = vmatprep.subr.mxu0 0.0
    %6490 = vmatpush1.msra.mxu0 %v6381
    %6491 = vmatprep.subr.mxu0 0.0
    %6492 = vmatpush1.msra.mxu0 %v6382
    %6493 = vmatprep.subr.mxu0 0.0
    %6494 = vmatpush1.msra.mxu0 %v6383
    %6495 = vmatprep.subr.mxu0 0.0
    %6496 = vmatpush1.msra.mxu0 %v6384
    %6497 = vmatprep.subr.mxu0 0.0
    %6498 = vmatpush1.msra.mxu0 %v6385
    %6499 = vmatprep.subr.mxu0 0.0
    %6500 = vmatpush1.msra.mxu0 %v6386
    %6501 = vmatprep.subr.mxu0 0.0
    %6502 = vmatpush1.msra.mxu0 %v6387
    %6503 = vmatprep.subr.mxu0 0.0
    %6504 = vmatpush1.msra.mxu0 %v6388
    %6505 = vmatprep.subr.mxu0 0.0
    %6506 = vmatpush1.msra.mxu0 %v6389
    %6507 = vmatprep.subr.mxu0 0.0
    %6508 = vmatpush1.msra.mxu0 %v6390
    %6509 = vmatprep.subr.mxu0 0.0
    %6510 = vmatpush1.msra.mxu0 %v6391
    %6511 = vmatprep.subr.mxu0 0.0
    %6512 = vmatpush1.msra.mxu0 %v6392
    %6513 = vmatprep.subr.mxu0 0.0
    %6514 = vmatpush1.msra.mxu0 %v6393
    %6515 = vmatprep.subr.mxu0 0.0
    %6516 = vmatpush1.msra.mxu0 %v6394
    %6517 = vmatprep.subr.mxu0 0.0
    %6518 = vmatpush1.msra.mxu0 %v6395
    %6519 = vmatprep.subr.mxu0 0.0
    %6520 = vmatpush1.msra.mxu0 %v6396
    %6521 = vmatprep.subr.mxu0 0.0
    %6522 = vmatpush1.msra.mxu0 %v6397
    %6523 = vmatprep.subr.mxu0 0.0
    %6524 = vmatpush1.msra.mxu0 %v6398
    %6525 = vmatprep.subr.mxu0 0.0
    %6526 = vmatpush1.msra.mxu0 %v6399
    %6527 = vmatprep.subr.mxu0 0.0
    %6528 = vmatpush1.msra.mxu0 %v6400
    %6529 = vmatprep.subr.mxu0 0.0
    %6530 = vmatpush1.msra.mxu0 %v6401
    %6531 = vmatprep.subr.mxu0 0.0
    %6532 = vmatpush1.msra.mxu0 %v6402
    %6533 = vmatprep.subr.mxu0 0.0
    %6534 = vmatpush1.msra.mxu0 %v6403
    %6535 = vmatprep.subr.mxu0 0.0
    %6536 = vmatpush1.msra.mxu0 %v6404
    %6537 = vmatprep.subr.mxu0 0.0
    %6538 = vmatpush1.msra.mxu0 %v6405
    %6539 = vmatprep.subr.mxu0 0.0
    %6540 = vmatpush1.msra.mxu0 %v6406
    %6541 = vmatprep.mubr.f32.mxu0 %v6434
    %6542 = vmatmul.mubr.f32.gmra.mrb[0].mxu0 %v6421
    %v6543 = vpop.f32.mrb[0].mxu0
    %v6544 = vadd.f32 0.0, %v6543
    %v6545 = vpop.f32.mrb[0].mxu0
    %6546 = vdwg.mxu0
    %6547 = vmatprep.subr.mxu0 0.0
    %6548 = vmatpush1.msra.mxu0 %v6375
    %6549 = vmatprep.subr.mxu0 0.0
    %6550 = vmatpush1.msra.mxu0 %v6376
    %6551 = vmatprep.subr.mxu0 0.0
    %6552 = vmatpush1.msra.mxu0 %v6377
    %6553 = vmatprep.subr.mxu0 0.0
    %6554 = vmatpush1.msra.mxu0 %v6378
    %6555 = vmatprep.subr.mxu0 0.0
    %6556 = vmatpush1.msra.mxu0 %v6379
    %6557 = vmatprep.subr.mxu0 0.0
    %6558 = vmatpush1.msra.mxu0 %v6380
    %6559 = vmatprep.subr.mxu0 0.0
    %6560 = vmatpush1.msra.mxu0 %v6381
    %6561 = vmatprep.subr.mxu0 0.0
    %6562 = vmatpush1.msra.mxu0 %v6382
    %6563 = vmatprep.subr.mxu0 0.0
    %6564 = vmatpush1.msra.mxu0 %v6383
    %6565 = vmatprep.subr.mxu0 0.0
    %6566 = vmatpush1.msra.mxu0 %v6384
    %6567 = vmatprep.subr.mxu0 0.0
    %6568 = vmatpush1.msra.mxu0 %v6385
    %6569 = vmatprep.subr.mxu0 0.0
    %6570 = vmatpush1.msra.mxu0 %v6386
    %6571 = vmatprep.subr.mxu0 0.0
    %6572 = vmatpush1.msra.mxu0 %v6387
    %6573 = vmatprep.subr.mxu0 0.0
    %6574 = vmatpush1.msra.mxu0 %v6388
    %6575 = vmatprep.subr.mxu0 0.0
    %6576 = vmatpush1.msra.mxu0 %v6389
    %6577 = vmatprep.subr.mxu0 0.0
    %6578 = vmatpush1.msra.mxu0 %v6390
    %6579 = vmatprep.subr.mxu0 0.0
    %6580 = vmatpush1.msra.mxu0 %v6391
    %6581 = vmatprep.subr.mxu0 0.0
    %6582 = vmatpush1.msra.mxu0 %v6392
    %6583 = vmatprep.subr.mxu0 0.0
    %6584 = vmatpush1.msra.mxu0 %v6393
    %6585 = vmatprep.subr.mxu0 0.0
    %6586 = vmatpush1.msra.mxu0 %v6394
    %6587 = vmatprep.subr.mxu0 0.0
    %6588 = vmatpush1.msra.mxu0 %v6395
    %6589 = vmatprep.subr.mxu0 0.0
    %6590 = vmatpush1.msra.mxu0 %v6396
    %6591 = vmatprep.subr.mxu0 0.0
    %6592 = vmatpush1.msra.mxu0 %v6397
    %6593 = vmatprep.subr.mxu0 0.0
    %6594 = vmatpush1.msra.mxu0 %v6398
    %6595 = vmatprep.subr.mxu0 0.0
    %6596 = vmatpush1.msra.mxu0 %v6399
    %6597 = vmatprep.subr.mxu0 0.0
    %6598 = vmatpush1.msra.mxu0 %v6400
    %6599 = vmatprep.subr.mxu0 0.0
    %6600 = vmatpush1.msra.mxu0 %v6401
    %6601 = vmatprep.subr.mxu0 0.0
    %6602 = vmatpush1.msra.mxu0 %v6402
    %6603 = vmatprep.subr.mxu0 0.0
    %6604 = vmatpush1.msra.mxu0 %v6403
    %6605 = vmatprep.subr.mxu0 0.0
    %6606 = vmatpush1.msra.mxu0 %v6404
    %6607 = vmatprep.subr.mxu0 0.0
    %6608 = vmatpush1.msra.mxu0 %v6405
    %6609 = vmatprep.subr.mxu0 0.0
    %6610 = vmatpush1.msra.mxu0 %v6406
    %6611 = vmatprep.mubr.f32.mxu0 %v6476
    %6612 = vmatmul.mubr.f32.gmra.mrb[0].mxu0 %v6463
    %v6613 = vpop.f32.mrb[0].mxu0
    %v6614 = vadd.f32 0.0, %v6613
    %v6615 = vpop.f32.mrb[0].mxu0
    %6616 = vdwg.mxu0
    %v6617 = vmul.f32 %v6544, 0.00048828125
    %v6618 = vmul.f32 %v6614, 0.00048828125
    %v6619 = vmul.f32 %v6617, %v6617
    %v6620 = vsub.f32 %v6618, %v6619
    %v6621 = vld [vmem:[#allocation44] sm:$0x1]
    %v6622 = vadd.f32 %v6620, 1e-05
    %v6623 = vrsqrt.pop %v6622
    %v6624 = vmul.f32 %v6621, %v6623
    %v6625 = vld [vmem:[#allocation46] sm:$0x1]
    %v6626 = vmul.f32 %v6617, %v6624
    %v6627 = vsub.f32 %v6625, %v6626
    %v6629 = vsel %vm1412, %v6624, 0
    %6631 = vmatprep.subr.mxu0 %v6408
    %6632 = vmatpush1.msra.mxu0 %v6407
    %6633 = vmatprep.subr.mxu0 0.0
    %6634 = vmatpush1.msra.mxu0 0.0
    %6635 = vmatprep.subr.mxu0 0.0
    %6636 = vmatpush1.msra.mxu0 0.0
    %6637 = vmatprep.subr.mxu0 0.0
    %6638 = vmatpush1.msra.mxu0 0.0
    %6639 = vmatprep.subr.mxu0 0.0
    %6640 = vmatpush1.msra.mxu0 0.0
    %6641 = vmatprep.subr.mxu0 0.0
    %6642 = vmatpush1.msra.mxu0 0.0
    %6643 = vmatprep.subr.mxu0 0.0
    %6644 = vmatpush1.msra.mxu0 0.0
    %6645 = vmatprep.subr.mxu0 0.0
    %6646 = vmatpush1.msra.mxu0 0.0
    %6647 = vmatprep.subr.mxu0 0.0
    %6648 = vmatpush1.msra.mxu0 0.0
    %6649 = vmatprep.subr.mxu0 0.0
    %6650 = vmatpush1.msra.mxu0 0.0
    %6651 = vmatprep.subr.mxu0 0.0
    %6652 = vmatpush1.msra.mxu0 0.0
    %6653 = vmatprep.subr.mxu0 0.0
    %6654 = vmatpush1.msra.mxu0 0.0
    %6655 = vmatprep.subr.mxu0 0.0
    %6656 = vmatpush1.msra.mxu0 0.0
    %6657 = vmatprep.subr.mxu0 0.0
    %6658 = vmatpush1.msra.mxu0 0.0
    %6659 = vmatprep.subr.mxu0 0.0
    %6660 = vmatpush1.msra.mxu0 0.0
    %6661 = vmatprep.subr.mxu0 0.0
    %6662 = vmatpush1.msra.mxu0 0.0
    %6663 = vmatprep.subr.mxu0 0.0
    %6664 = vmatpush1.msra.mxu0 0.0
    %6665 = vmatprep.subr.mxu0 0.0
    %6666 = vmatpush1.msra.mxu0 0.0
    %6667 = vmatprep.subr.mxu0 0.0
    %6668 = vmatpush1.msra.mxu0 0.0
    %6669 = vmatprep.subr.mxu0 0.0
    %6670 = vmatpush1.msra.mxu0 0.0
    %6671 = vmatprep.subr.mxu0 0.0
    %6672 = vmatpush1.msra.mxu0 0.0
    %6673 = vmatprep.subr.mxu0 0.0
    %6674 = vmatpush1.msra.mxu0 0.0
    %6675 = vmatprep.subr.mxu0 0.0
    %6676 = vmatpush1.msra.mxu0 0.0
    %6677 = vmatprep.subr.mxu0 0.0
    %6678 = vmatpush1.msra.mxu0 0.0
    %6679 = vmatprep.subr.mxu0 0.0
    %6680 = vmatpush1.msra.mxu0 0.0
    %6681 = vmatprep.subr.mxu0 0.0
    %6682 = vmatpush1.msra.mxu0 0.0
    %6683 = vmatprep.subr.mxu0 0.0
    %6684 = vmatpush1.msra.mxu0 0.0
    %6685 = vmatprep.subr.mxu0 0.0
    %6686 = vmatpush1.msra.mxu0 0.0
    %6687 = vmatprep.subr.mxu0 0.0
    %6688 = vmatpush1.msra.mxu0 0.0
    %6689 = vmatprep.subr.mxu0 0.0
    %6690 = vmatpush1.msra.mxu0 0.0
    %6691 = vmatprep.subr.mxu0 0.0
    %6692 = vmatpush1.msra.mxu0 0.0
    %6693 = vmatprep.subr.mxu0 0.0
    %6694 = vmatpush1.msra.mxu0 0.0
    %6695 = vmatprep.mubr.f32.mxu0 0.0
    %6696 = vmatmul.mubr.f32.gmra.mrb[0].mxu0 %v6629
    %v6697 = vpop.f32.mrb[0].mxu0
    %v6698 = vadd.f32 0.0, %v6697
    %v6699 = vpop.f32.mrb[0].mxu0
    %v6700 = vadd.f32 0.0, %v6699
    %6701 = vdwg.mxu0
    %v6703 = vsel %vm1412, %v6627, 0
    %6705 = vmatprep.subr.mxu0 %v6408
    %6706 = vmatpush1.msra.mxu0 %v6407
    %6707 = vmatprep.subr.mxu0 0.0
    %6708 = vmatpush1.msra.mxu0 0.0
    %6709 = vmatprep.subr.mxu0 0.0
    %6710 = vmatpush1.msra.mxu0 0.0
    %6711 = vmatprep.subr.mxu0 0.0
    %6712 = vmatpush1.msra.mxu0 0.0
    %6713 = vmatprep.subr.mxu0 0.0
    %6714 = vmatpush1.msra.mxu0 0.0
    %6715 = vmatprep.subr.mxu0 0.0
    %6716 = vmatpush1.msra.mxu0 0.0
    %6717 = vmatprep.subr.mxu0 0.0
    %6718 = vmatpush1.msra.mxu0 0.0
    %6719 = vmatprep.subr.mxu0 0.0
    %6720 = vmatpush1.msra.mxu0 0.0
    %6721 = vmatprep.subr.mxu0 0.0
    %6722 = vmatpush1.msra.mxu0 0.0
    %6723 = vmatprep.subr.mxu0 0.0
    %6724 = vmatpush1.msra.mxu0 0.0
    %6725 = vmatprep.subr.mxu0 0.0
    %6726 = vmatpush1.msra.mxu0 0.0
    %6727 = vmatprep.subr.mxu0 0.0
    %6728 = vmatpush1.msra.mxu0 0.0
    %6729 = vmatprep.subr.mxu0 0.0
    %6730 = vmatpush1.msra.mxu0 0.0
    %6731 = vmatprep.subr.mxu0 0.0
    %6732 = vmatpush1.msra.mxu0 0.0
    %6733 = vmatprep.subr.mxu0 0.0
    %6734 = vmatpush1.msra.mxu0 0.0
    %6735 = vmatprep.subr.mxu0 0.0
    %6736 = vmatpush1.msra.mxu0 0.0
    %6737 = vmatprep.subr.mxu0 0.0
    %6738 = vmatpush1.msra.mxu0 0.0
    %6739 = vmatprep.subr.mxu0 0.0
    %6740 = vmatpush1.msra.mxu0 0.0
    %6741 = vmatprep.subr.mxu0 0.0
    %6742 = vmatpush1.msra.mxu0 0.0
    %6743 = vmatprep.subr.mxu0 0.0
    %6744 = vmatpush1.msra.mxu0 0.0
    %6745 = vmatprep.subr.mxu0 0.0
    %6746 = vmatpush1.msra.mxu0 0.0
    %6747 = vmatprep.subr.mxu0 0.0
    %6748 = vmatpush1.msra.mxu0 0.0
    %6749 = vmatprep.subr.mxu0 0.0
    %6750 = vmatpush1.msra.mxu0 0.0
    %6751 = vmatprep.subr.mxu0 0.0
    %6752 = vmatpush1.msra.mxu0 0.0
    %6753 = vmatprep.subr.mxu0 0.0
    %6754 = vmatpush1.msra.mxu0 0.0
    %6755 = vmatprep.subr.mxu0 0.0
    %6756 = vmatpush1.msra.mxu0 0.0
    %6757 = vmatprep.subr.mxu0 0.0
    %6758 = vmatpush1.msra.mxu0 0.0
    %6759 = vmatprep.subr.mxu0 0.0
    %6760 = vmatpush1.msra.mxu0 0.0
    %6761 = vmatprep.subr.mxu0 0.0
    %6762 = vmatpush1.msra.mxu0 0.0
    %6763 = vmatprep.subr.mxu0 0.0
    %6764 = vmatpush1.msra.mxu0 0.0
    %6765 = vmatprep.subr.mxu0 0.0
    %6766 = vmatpush1.msra.mxu0 0.0
    %6767 = vmatprep.subr.mxu0 0.0
    %6768 = vmatpush1.msra.mxu0 0.0
    %6769 = vmatprep.mubr.f32.mxu0 0.0
    %6770 = vmatmul.mubr.f32.gmra.mrb[0].mxu0 %v6703
    %v6771 = vpop.f32.mrb[0].mxu0
    %v6772 = vadd.f32 0.0, %v6771
    %v6773 = vpop.f32.mrb[0].mxu0
    %v6774 = vadd.f32 0.0, %v6773
    %6775 = vdwg.mxu0
    %v6776 = vlaneseq
    %v6777 = vshrl.u32 %v6776, 7
    %v6778 = vsub.s32 0, %v6777
    %v6779 = vrot.slane %v6698, %v6778
    %v6780 = vlaneseq
    %v6781 = vshrl.u32 %v6780, 7
    %v6782 = vsub.s32 0, %v6781
    %v6783 = vrot.slane %v6700, %v6782
    %v6784 = vmul.f32 %v6359, %v6779
    %v6785 = vmul.f32 %v6360, %v6783
    %v6786 = vmul.f32 %v6361, %v6779
    %v6787 = vmul.f32 %v6362, %v6783
    %v6788 = vmul.f32 %v6363, %v6779
    %v6789 = vmul.f32 %v6364, %v6783
    %v6790 = vmul.f32 %v6365, %v6779
    %v6791 = vmul.f32 %v6366, %v6783
    %v6792 = vmul.f32 %v6367, %v6779
    %v6793 = vmul.f32 %v6368, %v6783
    %v6794 = vmul.f32 %v6369, %v6779
    %v6795 = vmul.f32 %v6370, %v6783
    %v6796 = vmul.f32 %v6371, %v6779
    %v6797 = vmul.f32 %v6372, %v6783
    %v6798 = vmul.f32 %v6373, %v6779
    %v6799 = vmul.f32 %v6374, %v6783
    %v6800 = vlaneseq
    %v6801 = vshrl.u32 %v6800, 7
    %v6802 = vsub.s32 0, %v6801
    %v6803 = vrot.slane %v6772, %v6802
    %v6804 = vlaneseq
    %v6805 = vshrl.u32 %v6804, 7
    %v6806 = vsub.s32 0, %v6805
    %v6807 = vrot.slane %v6774, %v6806
    %v6808 = vadd.f32 %v6784, %v6803
    %v6809 = vadd.f32 %v6785, %v6807
    %v6810 = vadd.f32 %v6786, %v6803
    %v6811 = vadd.f32 %v6787, %v6807
    %v6812 = vadd.f32 %v6788, %v6803
    %v6813 = vadd.f32 %v6789, %v6807
    %v6814 = vadd.f32 %v6790, %v6803
    %v6815 = vadd.f32 %v6791, %v6807
    %v6816 = vadd.f32 %v6792, %v6803
    %v6817 = vadd.f32 %v6793, %v6807
    %v6818 = vadd.f32 %v6794, %v6803
    %v6819 = vadd.f32 %v6795, %v6807
    %v6820 = vadd.f32 %v6796, %v6803
    %v6821 = vadd.f32 %v6797, %v6807
    %v6822 = vadd.f32 %v6798, %v6803
    %v6823 = vadd.f32 %v6799, %v6807
    %v6824 = vmax.f32 %v6808, 0.0
    %v6825 = vmax.f32 %v6809, 0.0
    %v6826 = vmax.f32 %v6810, 0.0
    %v6827 = vmax.f32 %v6811, 0.0
    %v6828 = vmax.f32 %v6812, 0.0
    %v6829 = vmax.f32 %v6813, 0.0
    %v6830 = vmax.f32 %v6814, 0.0
    %v6831 = vmax.f32 %v6815, 0.0
    %v6832 = vmax.f32 %v6816, 0.0
    %v6833 = vmax.f32 %v6817, 0.0
    %v6834 = vmax.f32 %v6818, 0.0
    %v6835 = vmax.f32 %v6819, 0.0
    %v6836 = vmax.f32 %v6820, 0.0
    %v6837 = vmax.f32 %v6821, 0.0
    %v6838 = vmax.f32 %v6822, 0.0
    %v6839 = vmax.f32 %v6823, 0.0
    %v6840 = vld [vmem:[#allocation47] sm:$0xff]
    %v6841 = vld [vmem:[#allocation47 + $0x8] sm:$0xff]
    %v6842 = vld [vmem:[#allocation47 + $0x10] sm:$0xff]
    %v6843 = vld [vmem:[#allocation47 + $0x18] sm:$0xff]
    %v6844 = vld [vmem:[#allocation47 + $0x20] sm:$0xff]
    %v6845 = vld [vmem:[#allocation47 + $0x28] sm:$0xff]
    %v6846 = vld [vmem:[#allocation47 + $0x30] sm:$0xff]
    %v6847 = vld [vmem:[#allocation47 + $0x38] sm:$0xff]
    %v6848 = vld [vmem:[%s93] sm:$0xff]
    %v6849 = vld [vmem:[%s93 + $0x8] sm:$0xff]
    %v6850 = vld [vmem:[%s93 + $0x10] sm:$0xff]
    %v6851 = vld [vmem:[%s93 + $0x18] sm:$0xff]
    %v6852 = vld [vmem:[%s93 + $0x20] sm:$0xff]
    %v6853 = vld [vmem:[%s93 + $0x28] sm:$0xff]
    %v6854 = vld [vmem:[%s93 + $0x30] sm:$0xff]
    %v6855 = vld [vmem:[%s93 + $0x38] sm:$0xff]
    %v6856 = vld [vmem:[%s93 + $0x40] sm:$0xff]
    %v6857 = vld [vmem:[%s93 + $0x48] sm:$0xff]
    %v6858 = vld [vmem:[%s93 + $0x50] sm:$0xff]
    %v6859 = vld [vmem:[%s93 + $0x58] sm:$0xff]
    %v6860 = vld [vmem:[%s93 + $0x60] sm:$0xff]
    %v6861 = vld [vmem:[%s93 + $0x68] sm:$0xff]
    %v6862 = vld [vmem:[%s93 + $0x70] sm:$0xff]
    %v6863 = vld [vmem:[%s93 + $0x78] sm:$0xff]
    %v6864 = vld [vmem:[%s93 + $0x80] sm:$0xff]
    %v6865 = vld [vmem:[%s93 + $0x88] sm:$0xff]
    %v6866 = vld [vmem:[%s93 + $0x90] sm:$0xff]
    %v6867 = vld [vmem:[%s93 + $0x98] sm:$0xff]
    %v6868 = vld [vmem:[%s93 + $0xa0] sm:$0xff]
    %v6869 = vld [vmem:[%s93 + $0xa8] sm:$0xff]
    %v6870 = vld [vmem:[%s93 + $0xb0] sm:$0xff]
    %v6871 = vld [vmem:[%s93 + $0xb8] sm:$0xff]
    %v6872 = vld [vmem:[%s93 + $0xc0] sm:$0xff]
    %v6873 = vld [vmem:[%s93 + $0xc8] sm:$0xff]
    %v6874 = vld [vmem:[%s93 + $0xd0] sm:$0xff]
    %v6875 = vld [vmem:[%s93 + $0xd8] sm:$0xff]
    %v6876 = vld [vmem:[%s93 + $0xe0] sm:$0xff]
    %v6877 = vld [vmem:[%s93 + $0xe8] sm:$0xff]
    %v6878 = vld [vmem:[%s93 + $0xf0] sm:$0xff]
    %v6879 = vld [vmem:[%s93 + $0xf8] sm:$0xff]
    %v6880 = vld [vmem:[%s93 + $0x100] sm:$0xff]
    %v6881 = vld [vmem:[%s93 + $0x108] sm:$0xff]
    %v6882 = vld [vmem:[%s93 + $0x110] sm:$0xff]
    %v6883 = vld [vmem:[%s93 + $0x118] sm:$0xff]
    %v6884 = vld [vmem:[%s93 + $0x120] sm:$0xff]
    %v6885 = vld [vmem:[%s93 + $0x128] sm:$0xff]
    %v6886 = vld [vmem:[%s93 + $0x130] sm:$0xff]
    %v6887 = vld [vmem:[%s93 + $0x138] sm:$0xff]
    %v6888 = vld [vmem:[%s93 + $0x140] sm:$0xff]
    %v6889 = vld [vmem:[%s93 + $0x148] sm:$0xff]
    %v6890 = vld [vmem:[%s93 + $0x150] sm:$0xff]
    %v6891 = vld [vmem:[%s93 + $0x158] sm:$0xff]
    %v6892 = vld [vmem:[%s93 + $0x160] sm:$0xff]
    %v6893 = vld [vmem:[%s93 + $0x168] sm:$0xff]
    %v6894 = vld [vmem:[%s93 + $0x170] sm:$0xff]
    %v6895 = vld [vmem:[%s93 + $0x178] sm:$0xff]
    %v6896 = vld [vmem:[%s93 + $0x180] sm:$0xff]
    %v6897 = vld [vmem:[%s93 + $0x188] sm:$0xff]
    %v6898 = vld [vmem:[%s93 + $0x190] sm:$0xff]
    %v6899 = vld [vmem:[%s93 + $0x198] sm:$0xff]
    %v6900 = vld [vmem:[%s93 + $0x1a0] sm:$0xff]
    %v6901 = vld [vmem:[%s93 + $0x1a8] sm:$0xff]
    %v6902 = vld [vmem:[%s93 + $0x1b0] sm:$0xff]
    %v6903 = vld [vmem:[%s93 + $0x1b8] sm:$0xff]
    %v6904 = vld [vmem:[%s93 + $0x1c0] sm:$0xff]
    %v6905 = vld [vmem:[%s93 + $0x1c8] sm:$0xff]
    %v6906 = vld [vmem:[%s93 + $0x1d0] sm:$0xff]
    %v6907 = vld [vmem:[%s93 + $0x1d8] sm:$0xff]
    %v6908 = vld [vmem:[%s93 + $0x1e0] sm:$0xff]
    %v6909 = vld [vmem:[%s93 + $0x1e8] sm:$0xff]
    %v6910 = vld [vmem:[%s93 + $0x1f0] sm:$0xff]
    %v6911 = vld [vmem:[%s93 + $0x1f8] sm:$0xff]
    %6912 = vmatprep.subr.mxu0 %v6849
    %6913 = vmatpush1.msra.mxu0 %v6848
    %6914 = vmatprep.subr.mxu0 %v6851
    %6915 = vmatpush1.msra.mxu0 %v6850
    %6916 = vmatprep.subr.mxu0 %v6853
    %6917 = vmatpush1.msra.mxu0 %v6852
    %6918 = vmatprep.subr.mxu0 %v6855
    %6919 = vmatpush1.msra.mxu0 %v6854
    %6920 = vmatprep.subr.mxu0 %v6857
    %6921 = vmatpush1.msra.mxu0 %v6856
    %6922 = vmatprep.subr.mxu0 %v6859
    %6923 = vmatpush1.msra.mxu0 %v6858
    %6924 = vmatprep.subr.mxu0 %v6861
    %6925 = vmatpush1.msra.mxu0 %v6860
    %6926 = vmatprep.subr.mxu0 %v6863
    %6927 = vmatpush1.msra.mxu0 %v6862
    %6928 = vmatprep.subr.mxu0 %v6865
    %6929 = vmatpush1.msra.mxu0 %v6864
    %6930 = vmatprep.subr.mxu0 %v6867
    %6931 = vmatpush1.msra.mxu0 %v6866
    %6932 = vmatprep.subr.mxu0 %v6869
    %6933 = vmatpush1.msra.mxu0 %v6868
    %6934 = vmatprep.subr.mxu0 %v6871
    %6935 = vmatpush1.msra.mxu0 %v6870
    %6936 = vmatprep.subr.mxu0 %v6873
    %6937 = vmatpush1.msra.mxu0 %v6872
    %6938 = vmatprep.subr.mxu0 %v6875
    %6939 = vmatpush1.msra.mxu0 %v6874
    %6940 = vmatprep.subr.mxu0 %v6877
    %6941 = vmatpush1.msra.mxu0 %v6876
    %6942 = vmatprep.subr.mxu0 %v6879
    %6943 = vmatpush1.msra.mxu0 %v6878
    %6944 = vmatprep.subr.mxu0 %v6881
    %6945 = vmatpush1.msra.mxu0 %v6880
    %6946 = vmatprep.subr.mxu0 %v6883
    %6947 = vmatpush1.msra.mxu0 %v6882
    %6948 = vmatprep.subr.mxu0 %v6885
    %6949 = vmatpush1.msra.mxu0 %v6884
    %6950 = vmatprep.subr.mxu0 %v6887
    %6951 = vmatpush1.msra.mxu0 %v6886
    %6952 = vmatprep.subr.mxu0 %v6889
    %6953 = vmatpush1.msra.mxu0 %v6888
    %6954 = vmatprep.subr.mxu0 %v6891
    %6955 = vmatpush1.msra.mxu0 %v6890
    %6956 = vmatprep.subr.mxu0 %v6893
    %6957 = vmatpush1.msra.mxu0 %v6892
    %6958 = vmatprep.subr.mxu0 %v6895
    %6959 = vmatpush1.msra.mxu0 %v6894
    %6960 = vmatprep.subr.mxu0 %v6897
    %6961 = vmatpush1.msra.mxu0 %v6896
    %6962 = vmatprep.subr.mxu0 %v6899
    %6963 = vmatpush1.msra.mxu0 %v6898
    %6964 = vmatprep.subr.mxu0 %v6901
    %6965 = vmatpush1.msra.mxu0 %v6900
    %6966 = vmatprep.subr.mxu0 %v6903
    %6967 = vmatpush1.msra.mxu0 %v6902
    %6968 = vmatprep.subr.mxu0 %v6905
    %6969 = vmatpush1.msra.mxu0 %v6904
    %6970 = vmatprep.subr.mxu0 %v6907
    %6971 = vmatpush1.msra.mxu0 %v6906
    %6972 = vmatprep.subr.mxu0 %v6909
    %6973 = vmatpush1.msra.mxu0 %v6908
    %6974 = vmatprep.subr.mxu0 %v6911
    %6975 = vmatpush1.msra.mxu0 %v6910
    %6976 = vmatprep.mubr.f32.mxu0 %v6825
    %6977 = vmatmul.mubr.f32.gmra.mrb[0].mxu0 %v6824
    %v6978 = vpop.f32.mrb[0].mxu0
    %v6979 = vadd.f32 0.0, %v6978
    %v6980 = vpop.f32.mrb[0].mxu0
    %v6981 = vadd.f32 0.0, %v6980
    %6982 = vmatprep.mubr.f32.mxu0 %v6827
    %6983 = vmatmul.mubr.f32.gmra.mrb[0].mxu0 %v6826
    %v6984 = vpop.f32.mrb[0].mxu0
    %v6985 = vadd.f32 0.0, %v6984
    %v6986 = vpop.f32.mrb[0].mxu0
    %v6987 = vadd.f32 0.0, %v6986
    %6988 = vmatprep.mubr.f32.mxu0 %v6829
    %6989 = vmatmul.mubr.f32.gmra.mrb[0].mxu0 %v6828
    %v6990 = vpop.f32.mrb[0].mxu0
    %v6991 = vadd.f32 0.0, %v6990
    %v6992 = vpop.f32.mrb[0].mxu0
    %v6993 = vadd.f32 0.0, %v6992
    %6994 = vmatprep.mubr.f32.mxu0 %v6831
    %6995 = vmatmul.mubr.f32.gmra.mrb[0].mxu0 %v6830
    %v6996 = vpop.f32.mrb[0].mxu0
    %v6997 = vadd.f32 0.0, %v6996
    %v6998 = vpop.f32.mrb[0].mxu0
    %v6999 = vadd.f32 0.0, %v6998
    %7000 = vmatprep.mubr.f32.mxu0 %v6833
    %7001 = vmatmul.mubr.f32.gmra.mrb[0].mxu0 %v6832
    %v7002 = vpop.f32.mrb[0].mxu0
    %v7003 = vadd.f32 0.0, %v7002
    %v7004 = vpop.f32.mrb[0].mxu0
    %v7005 = vadd.f32 0.0, %v7004
    %7006 = vmatprep.mubr.f32.mxu0 %v6835
    %7007 = vmatmul.mubr.f32.gmra.mrb[0].mxu0 %v6834
    %v7008 = vpop.f32.mrb[0].mxu0
    %v7009 = vadd.f32 0.0, %v7008
    %v7010 = vpop.f32.mrb[0].mxu0
    %v7011 = vadd.f32 0.0, %v7010
    %7012 = vmatprep.mubr.f32.mxu0 %v6837
    %7013 = vmatmul.mubr.f32.gmra.mrb[0].mxu0 %v6836
    %v7014 = vpop.f32.mrb[0].mxu0
    %v7015 = vadd.f32 0.0, %v7014
    %v7016 = vpop.f32.mrb[0].mxu0
    %v7017 = vadd.f32 0.0, %v7016
    %7018 = vmatprep.mubr.f32.mxu0 %v6839
    %7019 = vmatmul.mubr.f32.gmra.mrb[0].mxu0 %v6838
    %v7020 = vpop.f32.mrb[0].mxu0
    %v7021 = vadd.f32 0.0, %v7020
    %v7022 = vpop.f32.mrb[0].mxu0
    %v7023 = vadd.f32 0.0, %v7022
    %7024 = vdwg.mxu0
    %s7025 = scalar_lea.vmem [#allocation47], 64
    %v7026 = vld [vmem:[%s7025] sm:$0xff]
    %v7027 = vld [vmem:[%s7025 + $0x8] sm:$0xff]
    %v7028 = vld [vmem:[%s7025 + $0x10] sm:$0xff]
    %v7029 = vld [vmem:[%s7025 + $0x18] sm:$0xff]
    %v7030 = vld [vmem:[%s7025 + $0x20] sm:$0xff]
    %v7031 = vld [vmem:[%s7025 + $0x28] sm:$0xff]
    %v7032 = vld [vmem:[%s7025 + $0x30] sm:$0xff]
    %v7033 = vld [vmem:[%s7025 + $0x38] sm:$0xff]
    %s7034 = scalar_lea.vmem %s93, 512
    %v7035 = vld [vmem:[%s7034] sm:$0xff]
    %v7036 = vld [vmem:[%s7034 + $0x8] sm:$0xff]
    %v7037 = vld [vmem:[%s7034 + $0x10] sm:$0xff]
    %v7038 = vld [vmem:[%s7034 + $0x18] sm:$0xff]
    %v7039 = vld [vmem:[%s7034 + $0x20] sm:$0xff]
    %v7040 = vld [vmem:[%s7034 + $0x28] sm:$0xff]
    %v7041 = vld [vmem:[%s7034 + $0x30] sm:$0xff]
    %v7042 = vld [vmem:[%s7034 + $0x38] sm:$0xff]
    %v7043 = vld [vmem:[%s7034 + $0x40] sm:$0xff]
    %v7044 = vld [vmem:[%s7034 + $0x48] sm:$0xff]
    %v7045 = vld [vmem:[%s7034 + $0x50] sm:$0xff]
    %v7046 = vld [vmem:[%s7034 + $0x58] sm:$0xff]
    %v7047 = vld [vmem:[%s7034 + $0x60] sm:$0xff]
    %v7048 = vld [vmem:[%s7034 + $0x68] sm:$0xff]
    %v7049 = vld [vmem:[%s7034 + $0x70] sm:$0xff]
    %v7050 = vld [vmem:[%s7034 + $0x78] sm:$0xff]
    %v7051 = vld [vmem:[%s7034 + $0x80] sm:$0xff]
    %v7052 = vld [vmem:[%s7034 + $0x88] sm:$0xff]
    %v7053 = vld [vmem:[%s7034 + $0x90] sm:$0xff]
    %v7054 = vld [vmem:[%s7034 + $0x98] sm:$0xff]
    %v7055 = vld [vmem:[%s7034 + $0xa0] sm:$0xff]
    %v7056 = vld [vmem:[%s7034 + $0xa8] sm:$0xff]
    %v7057 = vld [vmem:[%s7034 + $0xb0] sm:$0xff]
    %v7058 = vld [vmem:[%s7034 + $0xb8] sm:$0xff]
    %v7059 = vld [vmem:[%s7034 + $0xc0] sm:$0xff]
    %v7060 = vld [vmem:[%s7034 + $0xc8] sm:$0xff]
    %v7061 = vld [vmem:[%s7034 + $0xd0] sm:$0xff]
    %v7062 = vld [vmem:[%s7034 + $0xd8] sm:$0xff]
    %v7063 = vld [vmem:[%s7034 + $0xe0] sm:$0xff]
    %v7064 = vld [vmem:[%s7034 + $0xe8] sm:$0xff]
    %v7065 = vld [vmem:[%s7034 + $0xf0] sm:$0xff]
    %v7066 = vld [vmem:[%s7034 + $0xf8] sm:$0xff]
    %v7067 = vld [vmem:[%s7034 + $0x100] sm:$0xff]
    %v7068 = vld [vmem:[%s7034 + $0x108] sm:$0xff]
    %v7069 = vld [vmem:[%s7034 + $0x110] sm:$0xff]
    %v7070 = vld [vmem:[%s7034 + $0x118] sm:$0xff]
    %v7071 = vld [vmem:[%s7034 + $0x120] sm:$0xff]
    %v7072 = vld [vmem:[%s7034 + $0x128] sm:$0xff]
    %v7073 = vld [vmem:[%s7034 + $0x130] sm:$0xff]
    %v7074 = vld [vmem:[%s7034 + $0x138] sm:$0xff]
    %v7075 = vld [vmem:[%s7034 + $0x140] sm:$0xff]
    %v7076 = vld [vmem:[%s7034 + $0x148] sm:$0xff]
    %v7077 = vld [vmem:[%s7034 + $0x150] sm:$0xff]
    %v7078 = vld [vmem:[%s7034 + $0x158] sm:$0xff]
    %v7079 = vld [vmem:[%s7034 + $0x160] sm:$0xff]
    %v7080 = vld [vmem:[%s7034 + $0x168] sm:$0xff]
    %v7081 = vld [vmem:[%s7034 + $0x170] sm:$0xff]
    %v7082 = vld [vmem:[%s7034 + $0x178] sm:$0xff]
    %v7083 = vld [vmem:[%s7034 + $0x180] sm:$0xff]
    %v7084 = vld [vmem:[%s7034 + $0x188] sm:$0xff]
    %v7085 = vld [vmem:[%s7034 + $0x190] sm:$0xff]
    %v7086 = vld [vmem:[%s7034 + $0x198] sm:$0xff]
    %v7087 = vld [vmem:[%s7034 + $0x1a0] sm:$0xff]
    %v7088 = vld [vmem:[%s7034 + $0x1a8] sm:$0xff]
    %v7089 = vld [vmem:[%s7034 + $0x1b0] sm:$0xff]
    %v7090 = vld [vmem:[%s7034 + $0x1b8] sm:$0xff]
    %v7091 = vld [vmem:[%s7034 + $0x1c0] sm:$0xff]
    %v7092 = vld [vmem:[%s7034 + $0x1c8] sm:$0xff]
    %v7093 = vld [vmem:[%s7034 + $0x1d0] sm:$0xff]
    %v7094 = vld [vmem:[%s7034 + $0x1d8] sm:$0xff]
    %v7095 = vld [vmem:[%s7034 + $0x1e0] sm:$0xff]
    %v7096 = vld [vmem:[%s7034 + $0x1e8] sm:$0xff]
    %v7097 = vld [vmem:[%s7034 + $0x1f0] sm:$0xff]
    %v7098 = vld [vmem:[%s7034 + $0x1f8] sm:$0xff]
    %7099 = vmatprep.subr.mxu0 %v7036
    %7100 = vmatpush1.msra.mxu0 %v7035
    %7101 = vmatprep.subr.mxu0 %v7038
    %7102 = vmatpush1.msra.mxu0 %v7037
    %7103 = vmatprep.subr.mxu0 %v7040
    %7104 = vmatpush1.msra.mxu0 %v7039
    %7105 = vmatprep.subr.mxu0 %v7042
    %7106 = vmatpush1.msra.mxu0 %v7041
    %7107 = vmatprep.subr.mxu0 %v7044
    %7108 = vmatpush1.msra.mxu0 %v7043
    %7109 = vmatprep.subr.mxu0 %v7046
    %7110 = vmatpush1.msra.mxu0 %v7045
    %7111 = vmatprep.subr.mxu0 %v7048
    %7112 = vmatpush1.msra.mxu0 %v7047
    %7113 = vmatprep.subr.mxu0 %v7050
    %7114 = vmatpush1.msra.mxu0 %v7049
    %7115 = vmatprep.subr.mxu0 %v7052
    %7116 = vmatpush1.msra.mxu0 %v7051
    %7117 = vmatprep.subr.mxu0 %v7054
    %7118 = vmatpush1.msra.mxu0 %v7053
    %7119 = vmatprep.subr.mxu0 %v7056
    %7120 = vmatpush1.msra.mxu0 %v7055
    %7121 = vmatprep.subr.mxu0 %v7058
    %7122 = vmatpush1.msra.mxu0 %v7057
    %7123 = vmatprep.subr.mxu0 %v7060
    %7124 = vmatpush1.msra.mxu0 %v7059
    %7125 = vmatprep.subr.mxu0 %v7062
    %7126 = vmatpush1.msra.mxu0 %v7061
    %7127 = vmatprep.subr.mxu0 %v7064
    %7128 = vmatpush1.msra.mxu0 %v7063
    %7129 = vmatprep.subr.mxu0 %v7066
    %7130 = vmatpush1.msra.mxu0 %v7065
    %7131 = vmatprep.subr.mxu0 %v7068
    %7132 = vmatpush1.msra.mxu0 %v7067
    %7133 = vmatprep.subr.mxu0 %v7070
    %7134 = vmatpush1.msra.mxu0 %v7069
    %7135 = vmatprep.subr.mxu0 %v7072
    %7136 = vmatpush1.msra.mxu0 %v7071
    %7137 = vmatprep.subr.mxu0 %v7074
    %7138 = vmatpush1.msra.mxu0 %v7073
    %7139 = vmatprep.subr.mxu0 %v7076
    %7140 = vmatpush1.msra.mxu0 %v7075
    %7141 = vmatprep.subr.mxu0 %v7078
    %7142 = vmatpush1.msra.mxu0 %v7077
    %7143 = vmatprep.subr.mxu0 %v7080
    %7144 = vmatpush1.msra.mxu0 %v7079
    %7145 = vmatprep.subr.mxu0 %v7082
    %7146 = vmatpush1.msra.mxu0 %v7081
    %7147 = vmatprep.subr.mxu0 %v7084
    %7148 = vmatpush1.msra.mxu0 %v7083
    %7149 = vmatprep.subr.mxu0 %v7086
    %7150 = vmatpush1.msra.mxu0 %v7085
    %7151 = vmatprep.subr.mxu0 %v7088
    %7152 = vmatpush1.msra.mxu0 %v7087
    %7153 = vmatprep.subr.mxu0 %v7090
    %7154 = vmatpush1.msra.mxu0 %v7089
    %7155 = vmatprep.subr.mxu0 %v7092
    %7156 = vmatpush1.msra.mxu0 %v7091
    %7157 = vmatprep.subr.mxu0 %v7094
    %7158 = vmatpush1.msra.mxu0 %v7093
    %7159 = vmatprep.subr.mxu0 %v7096
    %7160 = vmatpush1.msra.mxu0 %v7095
    %7161 = vmatprep.subr.mxu0 %v7098
    %7162 = vmatpush1.msra.mxu0 %v7097
    %7163 = vmatprep.mubr.f32.mxu0 %v6825
    %7164 = vmatmul.mubr.f32.gmra.mrb[0].mxu0 %v6824
    %v7165 = vpop.f32.mrb[0].mxu0
    %v7166 = vadd.f32 0.0, %v7165
    %v7167 = vpop.f32.mrb[0].mxu0
    %v7168 = vadd.f32 0.0, %v7167
    %7169 = vmatprep.mubr.f32.mxu0 %v6827
    %7170 = vmatmul.mubr.f32.gmra.mrb[0].mxu0 %v6826
    %v7171 = vpop.f32.mrb[0].mxu0
    %v7172 = vadd.f32 0.0, %v7171
    %v7173 = vpop.f32.mrb[0].mxu0
    %v7174 = vadd.f32 0.0, %v7173
    %7175 = vmatprep.mubr.f32.mxu0 %v6829
    %7176 = vmatmul.mubr.f32.gmra.mrb[0].mxu0 %v6828
    %v7177 = vpop.f32.mrb[0].mxu0
    %v7178 = vadd.f32 0.0, %v7177
    %v7179 = vpop.f32.mrb[0].mxu0
    %v7180 = vadd.f32 0.0, %v7179
    %7181 = vmatprep.mubr.f32.mxu0 %v6831
    %7182 = vmatmul.mubr.f32.gmra.mrb[0].mxu0 %v6830
    %v7183 = vpop.f32.mrb[0].mxu0
    %v7184 = vadd.f32 0.0, %v7183
    %v7185 = vpop.f32.mrb[0].mxu0
    %v7186 = vadd.f32 0.0, %v7185
    %7187 = vmatprep.mubr.f32.mxu0 %v6833
    %7188 = vmatmul.mubr.f32.gmra.mrb[0].mxu0 %v6832
    %v7189 = vpop.f32.mrb[0].mxu0
    %v7190 = vadd.f32 0.0, %v7189
    %v7191 = vpop.f32.mrb[0].mxu0
    %v7192 = vadd.f32 0.0, %v7191
    %7193 = vmatprep.mubr.f32.mxu0 %v6835
    %7194 = vmatmul.mubr.f32.gmra.mrb[0].mxu0 %v6834
    %v7195 = vpop.f32.mrb[0].mxu0
    %v7196 = vadd.f32 0.0, %v7195
    %v7197 = vpop.f32.mrb[0].mxu0
    %v7198 = vadd.f32 0.0, %v7197
    %7199 = vmatprep.mubr.f32.mxu0 %v6837
    %7200 = vmatmul.mubr.f32.gmra.mrb[0].mxu0 %v6836
    %v7201 = vpop.f32.mrb[0].mxu0
    %v7202 = vadd.f32 0.0, %v7201
    %v7203 = vpop.f32.mrb[0].mxu0
    %v7204 = vadd.f32 0.0, %v7203
    %7205 = vmatprep.mubr.f32.mxu0 %v6839
    %7206 = vmatmul.mubr.f32.gmra.mrb[0].mxu0 %v6838
    %v7207 = vpop.f32.mrb[0].mxu0
    %v7208 = vadd.f32 0.0, %v7207
    %v7209 = vpop.f32.mrb[0].mxu0
    %v7210 = vadd.f32 0.0, %v7209
    %7211 = vdwg.mxu0
    %v7213 = vsel %vm2068, %v7026, 0
    %v7216 = vsel %vm2068, %v7027, 0
    %v7219 = vsel %vm2068, %v7028, 0
    %v7222 = vsel %vm2068, %v7029, 0
    %v7225 = vsel %vm2068, %v7030, 0
    %v7228 = vsel %vm2068, %v7031, 0
    %v7231 = vsel %vm2068, %v7032, 0
    %v7234 = vsel %vm2068, %v7033, 0
    %7236 = vmatprep.subr.mxu0 %v7168
    %7237 = vmatpush1.msra.mxu0 %v7166
    %7238 = vmatprep.subr.mxu0 %v7174
    %7239 = vmatpush1.msra.mxu0 %v7172
    %7240 = vmatprep.subr.mxu0 %v7180
    %7241 = vmatpush1.msra.mxu0 %v7178
    %7242 = vmatprep.subr.mxu0 %v7186
    %7243 = vmatpush1.msra.mxu0 %v7184
    %7244 = vmatprep.subr.mxu0 %v7192
    %7245 = vmatpush1.msra.mxu0 %v7190
    %7246 = vmatprep.subr.mxu0 %v7198
    %7247 = vmatpush1.msra.mxu0 %v7196
    %7248 = vmatprep.subr.mxu0 %v7204
    %7249 = vmatpush1.msra.mxu0 %v7202
    %7250 = vmatprep.subr.mxu0 %v7210
    %7251 = vmatpush1.msra.mxu0 %v7208
    %7252 = vmatprep.subr.mxu0 0.0
    %7253 = vmatpush1.msra.mxu0 0.0
    %7254 = vmatprep.subr.mxu0 0.0
    %7255 = vmatpush1.msra.mxu0 0.0
    %7256 = vmatprep.subr.mxu0 0.0
    %7257 = vmatpush1.msra.mxu0 0.0
    %7258 = vmatprep.subr.mxu0 0.0
    %7259 = vmatpush1.msra.mxu0 0.0
    %7260 = vmatprep.subr.mxu0 0.0
    %7261 = vmatpush1.msra.mxu0 0.0
    %7262 = vmatprep.subr.mxu0 0.0
    %7263 = vmatpush1.msra.mxu0 0.0
    %7264 = vmatprep.subr.mxu0 0.0
    %7265 = vmatpush1.msra.mxu0 0.0
    %7266 = vmatprep.subr.mxu0 0.0
    %7267 = vmatpush1.msra.mxu0 0.0
    %7268 = vmatprep.subr.mxu0 0.0
    %7269 = vmatpush1.msra.mxu0 0.0
    %7270 = vmatprep.subr.mxu0 0.0
    %7271 = vmatpush1.msra.mxu0 0.0
    %7272 = vmatprep.subr.mxu0 0.0
    %7273 = vmatpush1.msra.mxu0 0.0
    %7274 = vmatprep.subr.mxu0 0.0
    %7275 = vmatpush1.msra.mxu0 0.0
    %7276 = vmatprep.subr.mxu0 0.0
    %7277 = vmatpush1.msra.mxu0 0.0
    %7278 = vmatprep.subr.mxu0 0.0
    %7279 = vmatpush1.msra.mxu0 0.0
    %7280 = vmatprep.subr.mxu0 0.0
    %7281 = vmatpush1.msra.mxu0 0.0
    %7282 = vmatprep.subr.mxu0 0.0
    %7283 = vmatpush1.msra.mxu0 0.0
    %7284 = vmatprep.subr.mxu0 0.0
    %7285 = vmatpush1.msra.mxu0 0.0
    %7286 = vmatprep.subr.mxu0 0.0
    %7287 = vmatpush1.msra.mxu0 0.0
    %7288 = vmatprep.subr.mxu0 0.0
    %7289 = vmatpush1.msra.mxu0 0.0
    %7290 = vmatprep.subr.mxu0 0.0
    %7291 = vmatpush1.msra.mxu0 0.0
    %7292 = vmatprep.subr.mxu0 0.0
    %7293 = vmatpush1.msra.mxu0 0.0
    %7294 = vmatprep.subr.mxu0 0.0
    %7295 = vmatpush1.msra.mxu0 0.0
    %7296 = vmatprep.subr.mxu0 0.0
    %7297 = vmatpush1.msra.mxu0 0.0
    %7298 = vmatprep.subr.mxu0 0.0
    %7299 = vmatpush1.msra.mxu0 0.0
    %7300 = vmatprep.mubr.f32.mxu0 0.0
    %7301 = vmatmul.mubr.f32.gmra.mrb[0].mxu0 %v7213
    %v7302 = vpop.f32.mrb[0].mxu0
    %v7303 = vadd.f32 0.0, %v7302
    %v7304 = vpop.f32.mrb[0].mxu0
    %v7305 = vadd.f32 0.0, %v7304
    %7306 = vmatprep.mubr.f32.mxu0 0.0
    %7307 = vmatmul.mubr.f32.gmra.mrb[0].mxu0 %v7216
    %v7308 = vpop.f32.mrb[0].mxu0
    %v7309 = vadd.f32 0.0, %v7308
    %v7310 = vpop.f32.mrb[0].mxu0
    %v7311 = vadd.f32 0.0, %v7310
    %7312 = vmatprep.mubr.f32.mxu0 0.0
    %7313 = vmatmul.mubr.f32.gmra.mrb[0].mxu0 %v7219
    %v7314 = vpop.f32.mrb[0].mxu0
    %v7315 = vadd.f32 0.0, %v7314
    %v7316 = vpop.f32.mrb[0].mxu0
    %v7317 = vadd.f32 0.0, %v7316
    %7318 = vmatprep.mubr.f32.mxu0 0.0
    %7319 = vmatmul.mubr.f32.gmra.mrb[0].mxu0 %v7222
    %v7320 = vpop.f32.mrb[0].mxu0
    %v7321 = vadd.f32 0.0, %v7320
    %v7322 = vpop.f32.mrb[0].mxu0
    %v7323 = vadd.f32 0.0, %v7322
    %7324 = vmatprep.mubr.f32.mxu0 0.0
    %7325 = vmatmul.mubr.f32.gmra.mrb[0].mxu0 %v7225
    %v7326 = vpop.f32.mrb[0].mxu0
    %v7327 = vadd.f32 0.0, %v7326
    %v7328 = vpop.f32.mrb[0].mxu0
    %v7329 = vadd.f32 0.0, %v7328
    %7330 = vmatprep.mubr.f32.mxu0 0.0
    %7331 = vmatmul.mubr.f32.gmra.mrb[0].mxu0 %v7228
    %v7332 = vpop.f32.mrb[0].mxu0
    %v7333 = vadd.f32 0.0, %v7332
    %v7334 = vpop.f32.mrb[0].mxu0
    %v7335 = vadd.f32 0.0, %v7334
    %7336 = vmatprep.mubr.f32.mxu0 0.0
    %7337 = vmatmul.mubr.f32.gmra.mrb[0].mxu0 %v7231
    %v7338 = vpop.f32.mrb[0].mxu0
    %v7339 = vadd.f32 0.0, %v7338
    %v7340 = vpop.f32.mrb[0].mxu0
    %v7341 = vadd.f32 0.0, %v7340
    %7342 = vmatprep.mubr.f32.mxu0 0.0
    %7343 = vmatmul.mubr.f32.gmra.mrb[0].mxu0 %v7234
    %v7344 = vpop.f32.mrb[0].mxu0
    %v7345 = vadd.f32 0.0, %v7344
    %v7346 = vpop.f32.mrb[0].mxu0
    %v7347 = vadd.f32 0.0, %v7346
    %7348 = vdwg.mxu0
    %v7350 = vsel %vm2068, %v6840, 0
    %v7353 = vsel %vm2068, %v6841, 0
    %v7356 = vsel %vm2068, %v6842, 0
    %v7359 = vsel %vm2068, %v6843, 0
    %v7362 = vsel %vm2068, %v6844, 0
    %v7365 = vsel %vm2068, %v6845, 0
    %v7368 = vsel %vm2068, %v6846, 0
    %v7371 = vsel %vm2068, %v6847, 0
    %7373 = vmatprep.subr.mxu0 %v6981
    %7374 = vmatpush1.msra.mxu0 %v6979
    %7375 = vmatprep.subr.mxu0 %v6987
    %7376 = vmatpush1.msra.mxu0 %v6985
    %7377 = vmatprep.subr.mxu0 %v6993
    %7378 = vmatpush1.msra.mxu0 %v6991
    %7379 = vmatprep.subr.mxu0 %v6999
    %7380 = vmatpush1.msra.mxu0 %v6997
    %7381 = vmatprep.subr.mxu0 %v7005
    %7382 = vmatpush1.msra.mxu0 %v7003
    %7383 = vmatprep.subr.mxu0 %v7011
    %7384 = vmatpush1.msra.mxu0 %v7009
    %7385 = vmatprep.subr.mxu0 %v7017
    %7386 = vmatpush1.msra.mxu0 %v7015
    %7387 = vmatprep.subr.mxu0 %v7023
    %7388 = vmatpush1.msra.mxu0 %v7021
    %7389 = vmatprep.subr.mxu0 0.0
    %7390 = vmatpush1.msra.mxu0 0.0
    %7391 = vmatprep.subr.mxu0 0.0
    %7392 = vmatpush1.msra.mxu0 0.0
    %7393 = vmatprep.subr.mxu0 0.0
    %7394 = vmatpush1.msra.mxu0 0.0
    %7395 = vmatprep.subr.mxu0 0.0
    %7396 = vmatpush1.msra.mxu0 0.0
    %7397 = vmatprep.subr.mxu0 0.0
    %7398 = vmatpush1.msra.mxu0 0.0
    %7399 = vmatprep.subr.mxu0 0.0
    %7400 = vmatpush1.msra.mxu0 0.0
    %7401 = vmatprep.subr.mxu0 0.0
    %7402 = vmatpush1.msra.mxu0 0.0
    %7403 = vmatprep.subr.mxu0 0.0
    %7404 = vmatpush1.msra.mxu0 0.0
    %7405 = vmatprep.subr.mxu0 0.0
    %7406 = vmatpush1.msra.mxu0 0.0
    %7407 = vmatprep.subr.mxu0 0.0
    %7408 = vmatpush1.msra.mxu0 0.0
    %7409 = vmatprep.subr.mxu0 0.0
    %7410 = vmatpush1.msra.mxu0 0.0
    %7411 = vmatprep.subr.mxu0 0.0
    %7412 = vmatpush1.msra.mxu0 0.0
    %7413 = vmatprep.subr.mxu0 0.0
    %7414 = vmatpush1.msra.mxu0 0.0
    %7415 = vmatprep.subr.mxu0 0.0
    %7416 = vmatpush1.msra.mxu0 0.0
    %7417 = vmatprep.subr.mxu0 0.0
    %7418 = vmatpush1.msra.mxu0 0.0
    %7419 = vmatprep.subr.mxu0 0.0
    %7420 = vmatpush1.msra.mxu0 0.0
    %7421 = vmatprep.subr.mxu0 0.0
    %7422 = vmatpush1.msra.mxu0 0.0
    %7423 = vmatprep.subr.mxu0 0.0
    %7424 = vmatpush1.msra.mxu0 0.0
    %7425 = vmatprep.subr.mxu0 0.0
    %7426 = vmatpush1.msra.mxu0 0.0
    %7427 = vmatprep.subr.mxu0 0.0
    %7428 = vmatpush1.msra.mxu0 0.0
    %7429 = vmatprep.subr.mxu0 0.0
    %7430 = vmatpush1.msra.mxu0 0.0
    %7431 = vmatprep.subr.mxu0 0.0
    %7432 = vmatpush1.msra.mxu0 0.0
    %7433 = vmatprep.subr.mxu0 0.0
    %7434 = vmatpush1.msra.mxu0 0.0
    %7435 = vmatprep.subr.mxu0 0.0
    %7436 = vmatpush1.msra.mxu0 0.0
    %7437 = vmatprep.mubr.f32.mxu0 0.0
    %7438 = vmatmul.mubr.f32.gmra.mrb[0].mxu0 %v7350
    %v7439 = vpop.f32.mrb[0].mxu0
    %v7440 = vadd.f32 %v7303, %v7439
    %v7441 = vpop.f32.mrb[0].mxu0
    %v7442 = vadd.f32 %v7305, %v7441
    %7443 = vmatprep.mubr.f32.mxu0 0.0
    %7444 = vmatmul.mubr.f32.gmra.mrb[0].mxu0 %v7353
    %v7445 = vpop.f32.mrb[0].mxu0
    %v7446 = vadd.f32 %v7309, %v7445
    %v7447 = vpop.f32.mrb[0].mxu0
    %v7448 = vadd.f32 %v7311, %v7447
    %7449 = vmatprep.mubr.f32.mxu0 0.0
    %7450 = vmatmul.mubr.f32.gmra.mrb[0].mxu0 %v7356
    %v7451 = vpop.f32.mrb[0].mxu0
    %v7452 = vadd.f32 %v7315, %v7451
    %v7453 = vpop.f32.mrb[0].mxu0
    %v7454 = vadd.f32 %v7317, %v7453
    %7455 = vmatprep.mubr.f32.mxu0 0.0
    %7456 = vmatmul.mubr.f32.gmra.mrb[0].mxu0 %v7359
    %v7457 = vpop.f32.mrb[0].mxu0
    %v7458 = vadd.f32 %v7321, %v7457
    %v7459 = vpop.f32.mrb[0].mxu0
    %v7460 = vadd.f32 %v7323, %v7459
    %7461 = vmatprep.mubr.f32.mxu0 0.0
    %7462 = vmatmul.mubr.f32.gmra.mrb[0].mxu0 %v7362
    %v7463 = vpop.f32.mrb[0].mxu0
    %v7464 = vadd.f32 %v7327, %v7463
    %v7465 = vpop.f32.mrb[0].mxu0
    %v7466 = vadd.f32 %v7329, %v7465
    %7467 = vmatprep.mubr.f32.mxu0 0.0
    %7468 = vmatmul.mubr.f32.gmra.mrb[0].mxu0 %v7365
    %v7469 = vpop.f32.mrb[0].mxu0
    %v7470 = vadd.f32 %v7333, %v7469
    %v7471 = vpop.f32.mrb[0].mxu0
    %v7472 = vadd.f32 %v7335, %v7471
    %7473 = vmatprep.mubr.f32.mxu0 0.0
    %7474 = vmatmul.mubr.f32.gmra.mrb[0].mxu0 %v7368
    %v7475 = vpop.f32.mrb[0].mxu0
    %v7476 = vadd.f32 %v7339, %v7475
    %v7477 = vpop.f32.mrb[0].mxu0
    %v7478 = vadd.f32 %v7341, %v7477
    %7479 = vmatprep.mubr.f32.mxu0 0.0
    %7480 = vmatmul.mubr.f32.gmra.mrb[0].mxu0 %v7371
    %v7481 = vpop.f32.mrb[0].mxu0
    %v7482 = vadd.f32 %v7345, %v7481
    %v7483 = vpop.f32.mrb[0].mxu0
    %v7484 = vadd.f32 %v7347, %v7483
    %7485 = vdwg.mxu0
    %s7486 = scalar_lea.vmem [#allocation47], 128
    %v7487 = vld [vmem:[%s7486] sm:$0xff]
    %v7488 = vld [vmem:[%s7486 + $0x8] sm:$0xff]
    %v7489 = vld [vmem:[%s7486 + $0x10] sm:$0xff]
    %v7490 = vld [vmem:[%s7486 + $0x18] sm:$0xff]
    %v7491 = vld [vmem:[%s7486 + $0x20] sm:$0xff]
    %v7492 = vld [vmem:[%s7486 + $0x28] sm:$0xff]
    %v7493 = vld [vmem:[%s7486 + $0x30] sm:$0xff]
    %v7494 = vld [vmem:[%s7486 + $0x38] sm:$0xff]
    %s7495 = scalar_lea.vmem %s93, 1024
    %v7496 = vld [vmem:[%s7495] sm:$0xff]
    %v7497 = vld [vmem:[%s7495 + $0x8] sm:$0xff]
    %v7498 = vld [vmem:[%s7495 + $0x10] sm:$0xff]
    %v7499 = vld [vmem:[%s7495 + $0x18] sm:$0xff]
    %v7500 = vld [vmem:[%s7495 + $0x20] sm:$0xff]
    %v7501 = vld [vmem:[%s7495 + $0x28] sm:$0xff]
    %v7502 = vld [vmem:[%s7495 + $0x30] sm:$0xff]
    %v7503 = vld [vmem:[%s7495 + $0x38] sm:$0xff]
    %v7504 = vld [vmem:[%s7495 + $0x40] sm:$0xff]
    %v7505 = vld [vmem:[%s7495 + $0x48] sm:$0xff]
    %v7506 = vld [vmem:[%s7495 + $0x50] sm:$0xff]
    %v7507 = vld [vmem:[%s7495 + $0x58] sm:$0xff]
    %v7508 = vld [vmem:[%s7495 + $0x60] sm:$0xff]
    %v7509 = vld [vmem:[%s7495 + $0x68] sm:$0xff]
    %v7510 = vld [vmem:[%s7495 + $0x70] sm:$0xff]
    %v7511 = vld [vmem:[%s7495 + $0x78] sm:$0xff]
    %v7512 = vld [vmem:[%s7495 + $0x80] sm:$0xff]
    %v7513 = vld [vmem:[%s7495 + $0x88] sm:$0xff]
    %v7514 = vld [vmem:[%s7495 + $0x90] sm:$0xff]
    %v7515 = vld [vmem:[%s7495 + $0x98] sm:$0xff]
    %v7516 = vld [vmem:[%s7495 + $0xa0] sm:$0xff]
    %v7517 = vld [vmem:[%s7495 + $0xa8] sm:$0xff]
    %v7518 = vld [vmem:[%s7495 + $0xb0] sm:$0xff]
    %v7519 = vld [vmem:[%s7495 + $0xb8] sm:$0xff]
    %v7520 = vld [vmem:[%s7495 + $0xc0] sm:$0xff]
    %v7521 = vld [vmem:[%s7495 + $0xc8] sm:$0xff]
    %v7522 = vld [vmem:[%s7495 + $0xd0] sm:$0xff]
    %v7523 = vld [vmem:[%s7495 + $0xd8] sm:$0xff]
    %v7524 = vld [vmem:[%s7495 + $0xe0] sm:$0xff]
    %v7525 = vld [vmem:[%s7495 + $0xe8] sm:$0xff]
    %v7526 = vld [vmem:[%s7495 + $0xf0] sm:$0xff]
    %v7527 = vld [vmem:[%s7495 + $0xf8] sm:$0xff]
    %v7528 = vld [vmem:[%s7495 + $0x100] sm:$0xff]
    %v7529 = vld [vmem:[%s7495 + $0x108] sm:$0xff]
    %v7530 = vld [vmem:[%s7495 + $0x110] sm:$0xff]
    %v7531 = vld [vmem:[%s7495 + $0x118] sm:$0xff]
    %v7532 = vld [vmem:[%s7495 + $0x120] sm:$0xff]
    %v7533 = vld [vmem:[%s7495 + $0x128] sm:$0xff]
    %v7534 = vld [vmem:[%s7495 + $0x130] sm:$0xff]
    %v7535 = vld [vmem:[%s7495 + $0x138] sm:$0xff]
    %v7536 = vld [vmem:[%s7495 + $0x140] sm:$0xff]
    %v7537 = vld [vmem:[%s7495 + $0x148] sm:$0xff]
    %v7538 = vld [vmem:[%s7495 + $0x150] sm:$0xff]
    %v7539 = vld [vmem:[%s7495 + $0x158] sm:$0xff]
    %v7540 = vld [vmem:[%s7495 + $0x160] sm:$0xff]
    %v7541 = vld [vmem:[%s7495 + $0x168] sm:$0xff]
    %v7542 = vld [vmem:[%s7495 + $0x170] sm:$0xff]
    %v7543 = vld [vmem:[%s7495 + $0x178] sm:$0xff]
    %v7544 = vld [vmem:[%s7495 + $0x180] sm:$0xff]
    %v7545 = vld [vmem:[%s7495 + $0x188] sm:$0xff]
    %v7546 = vld [vmem:[%s7495 + $0x190] sm:$0xff]
    %v7547 = vld [vmem:[%s7495 + $0x198] sm:$0xff]
    %v7548 = vld [vmem:[%s7495 + $0x1a0] sm:$0xff]
    %v7549 = vld [vmem:[%s7495 + $0x1a8] sm:$0xff]
    %v7550 = vld [vmem:[%s7495 + $0x1b0] sm:$0xff]
    %v7551 = vld [vmem:[%s7495 + $0x1b8] sm:$0xff]
    %v7552 = vld [vmem:[%s7495 + $0x1c0] sm:$0xff]
    %v7553 = vld [vmem:[%s7495 + $0x1c8] sm:$0xff]
    %v7554 = vld [vmem:[%s7495 + $0x1d0] sm:$0xff]
    %v7555 = vld [vmem:[%s7495 + $0x1d8] sm:$0xff]
    %v7556 = vld [vmem:[%s7495 + $0x1e0] sm:$0xff]
    %v7557 = vld [vmem:[%s7495 + $0x1e8] sm:$0xff]
    %v7558 = vld [vmem:[%s7495 + $0x1f0] sm:$0xff]
    %v7559 = vld [vmem:[%s7495 + $0x1f8] sm:$0xff]
    %7560 = vmatprep.subr.mxu0 %v7497
    %7561 = vmatpush1.msra.mxu0 %v7496
    %7562 = vmatprep.subr.mxu0 %v7499
    %7563 = vmatpush1.msra.mxu0 %v7498
    %7564 = vmatprep.subr.mxu0 %v7501
    %7565 = vmatpush1.msra.mxu0 %v7500
    %7566 = vmatprep.subr.mxu0 %v7503
    %7567 = vmatpush1.msra.mxu0 %v7502
    %7568 = vmatprep.subr.mxu0 %v7505
    %7569 = vmatpush1.msra.mxu0 %v7504
    %7570 = vmatprep.subr.mxu0 %v7507
    %7571 = vmatpush1.msra.mxu0 %v7506
    %7572 = vmatprep.subr.mxu0 %v7509
    %7573 = vmatpush1.msra.mxu0 %v7508
    %7574 = vmatprep.subr.mxu0 %v7511
    %7575 = vmatpush1.msra.mxu0 %v7510
    %7576 = vmatprep.subr.mxu0 %v7513
    %7577 = vmatpush1.msra.mxu0 %v7512
    %7578 = vmatprep.subr.mxu0 %v7515
    %7579 = vmatpush1.msra.mxu0 %v7514
    %7580 = vmatprep.subr.mxu0 %v7517
    %7581 = vmatpush1.msra.mxu0 %v7516
    %7582 = vmatprep.subr.mxu0 %v7519
    %7583 = vmatpush1.msra.mxu0 %v7518
    %7584 = vmatprep.subr.mxu0 %v7521
    %7585 = vmatpush1.msra.mxu0 %v7520
    %7586 = vmatprep.subr.mxu0 %v7523
    %7587 = vmatpush1.msra.mxu0 %v7522
    %7588 = vmatprep.subr.mxu0 %v7525
    %7589 = vmatpush1.msra.mxu0 %v7524
    %7590 = vmatprep.subr.mxu0 %v7527
    %7591 = vmatpush1.msra.mxu0 %v7526
    %7592 = vmatprep.subr.mxu0 %v7529
    %7593 = vmatpush1.msra.mxu0 %v7528
    %7594 = vmatprep.subr.mxu0 %v7531
    %7595 = vmatpush1.msra.mxu0 %v7530
    %7596 = vmatprep.subr.mxu0 %v7533
    %7597 = vmatpush1.msra.mxu0 %v7532
    %7598 = vmatprep.subr.mxu0 %v7535
    %7599 = vmatpush1.msra.mxu0 %v7534
    %7600 = vmatprep.subr.mxu0 %v7537
    %7601 = vmatpush1.msra.mxu0 %v7536
    %7602 = vmatprep.subr.mxu0 %v7539
    %7603 = vmatpush1.msra.mxu0 %v7538
    %7604 = vmatprep.subr.mxu0 %v7541
    %7605 = vmatpush1.msra.mxu0 %v7540
    %7606 = vmatprep.subr.mxu0 %v7543
    %7607 = vmatpush1.msra.mxu0 %v7542
    %7608 = vmatprep.subr.mxu0 %v7545
    %7609 = vmatpush1.msra.mxu0 %v7544
    %7610 = vmatprep.subr.mxu0 %v7547
    %7611 = vmatpush1.msra.mxu0 %v7546
    %7612 = vmatprep.subr.mxu0 %v7549
    %7613 = vmatpush1.msra.mxu0 %v7548
    %7614 = vmatprep.subr.mxu0 %v7551
    %7615 = vmatpush1.msra.mxu0 %v7550
    %7616 = vmatprep.subr.mxu0 %v7553
    %7617 = vmatpush1.msra.mxu0 %v7552
    %7618 = vmatprep.subr.mxu0 %v7555
    %7619 = vmatpush1.msra.mxu0 %v7554
    %7620 = vmatprep.subr.mxu0 %v7557
    %7621 = vmatpush1.msra.mxu0 %v7556
    %7622 = vmatprep.subr.mxu0 %v7559
    %7623 = vmatpush1.msra.mxu0 %v7558
    %7624 = vmatprep.mubr.f32.mxu0 %v6825
    %7625 = vmatmul.mubr.f32.gmra.mrb[0].mxu0 %v6824
    %v7626 = vpop.f32.mrb[0].mxu0
    %v7627 = vadd.f32 0.0, %v7626
    %v7628 = vpop.f32.mrb[0].mxu0
    %v7629 = vadd.f32 0.0, %v7628
    %7630 = vmatprep.mubr.f32.mxu0 %v6827
    %7631 = vmatmul.mubr.f32.gmra.mrb[0].mxu0 %v6826
    %v7632 = vpop.f32.mrb[0].mxu0
    %v7633 = vadd.f32 0.0, %v7632
    %v7634 = vpop.f32.mrb[0].mxu0
    %v7635 = vadd.f32 0.0, %v7634
    %7636 = vmatprep.mubr.f32.mxu0 %v6829
    %7637 = vmatmul.mubr.f32.gmra.mrb[0].mxu0 %v6828
    %v7638 = vpop.f32.mrb[0].mxu0
    %v7639 = vadd.f32 0.0, %v7638
    %v7640 = vpop.f32.mrb[0].mxu0
    %v7641 = vadd.f32 0.0, %v7640
    %7642 = vmatprep.mubr.f32.mxu0 %v6831
    %7643 = vmatmul.mubr.f32.gmra.mrb[0].mxu0 %v6830
    %v7644 = vpop.f32.mrb[0].mxu0
    %v7645 = vadd.f32 0.0, %v7644
    %v7646 = vpop.f32.mrb[0].mxu0
    %v7647 = vadd.f32 0.0, %v7646
    %7648 = vmatprep.mubr.f32.mxu0 %v6833
    %7649 = vmatmul.mubr.f32.gmra.mrb[0].mxu0 %v6832
    %v7650 = vpop.f32.mrb[0].mxu0
    %v7651 = vadd.f32 0.0, %v7650
    %v7652 = vpop.f32.mrb[0].mxu0
    %v7653 = vadd.f32 0.0, %v7652
    %7654 = vmatprep.mubr.f32.mxu0 %v6835
    %7655 = vmatmul.mubr.f32.gmra.mrb[0].mxu0 %v6834
    %v7656 = vpop.f32.mrb[0].mxu0
    %v7657 = vadd.f32 0.0, %v7656
    %v7658 = vpop.f32.mrb[0].mxu0
    %v7659 = vadd.f32 0.0, %v7658
    %7660 = vmatprep.mubr.f32.mxu0 %v6837
    %7661 = vmatmul.mubr.f32.gmra.mrb[0].mxu0 %v6836
    %v7662 = vpop.f32.mrb[0].mxu0
    %v7663 = vadd.f32 0.0, %v7662
    %v7664 = vpop.f32.mrb[0].mxu0
    %v7665 = vadd.f32 0.0, %v7664
    %7666 = vmatprep.mubr.f32.mxu0 %v6839
    %7667 = vmatmul.mubr.f32.gmra.mrb[0].mxu0 %v6838
    %v7668 = vpop.f32.mrb[0].mxu0
    %v7669 = vadd.f32 0.0, %v7668
    %v7670 = vpop.f32.mrb[0].mxu0
    %v7671 = vadd.f32 0.0, %v7670
    %7672 = vdwg.mxu0
    %v7674 = vsel %vm2068, %v7487, 0
    %v7677 = vsel %vm2068, %v7488, 0
    %v7680 = vsel %vm2068, %v7489, 0
    %v7683 = vsel %vm2068, %v7490, 0
    %v7686 = vsel %vm2068, %v7491, 0
    %v7689 = vsel %vm2068, %v7492, 0
    %v7692 = vsel %vm2068, %v7493, 0
    %v7695 = vsel %vm2068, %v7494, 0
    %7697 = vmatprep.subr.mxu0 %v7629
    %7698 = vmatpush1.msra.mxu0 %v7627
    %7699 = vmatprep.subr.mxu0 %v7635
    %7700 = vmatpush1.msra.mxu0 %v7633
    %7701 = vmatprep.subr.mxu0 %v7641
    %7702 = vmatpush1.msra.mxu0 %v7639
    %7703 = vmatprep.subr.mxu0 %v7647
    %7704 = vmatpush1.msra.mxu0 %v7645
    %7705 = vmatprep.subr.mxu0 %v7653
    %7706 = vmatpush1.msra.mxu0 %v7651
    %7707 = vmatprep.subr.mxu0 %v7659
    %7708 = vmatpush1.msra.mxu0 %v7657
    %7709 = vmatprep.subr.mxu0 %v7665
    %7710 = vmatpush1.msra.mxu0 %v7663
    %7711 = vmatprep.subr.mxu0 %v7671
    %7712 = vmatpush1.msra.mxu0 %v7669
    %7713 = vmatprep.subr.mxu0 0.0
    %7714 = vmatpush1.msra.mxu0 0.0
    %7715 = vmatprep.subr.mxu0 0.0
    %7716 = vmatpush1.msra.mxu0 0.0
    %7717 = vmatprep.subr.mxu0 0.0
    %7718 = vmatpush1.msra.mxu0 0.0
    %7719 = vmatprep.subr.mxu0 0.0
    %7720 = vmatpush1.msra.mxu0 0.0
    %7721 = vmatprep.subr.mxu0 0.0
    %7722 = vmatpush1.msra.mxu0 0.0
    %7723 = vmatprep.subr.mxu0 0.0
    %7724 = vmatpush1.msra.mxu0 0.0
    %7725 = vmatprep.subr.mxu0 0.0
    %7726 = vmatpush1.msra.mxu0 0.0
    %7727 = vmatprep.subr.mxu0 0.0
    %7728 = vmatpush1.msra.mxu0 0.0
    %7729 = vmatprep.subr.mxu0 0.0
    %7730 = vmatpush1.msra.mxu0 0.0
    %7731 = vmatprep.subr.mxu0 0.0
    %7732 = vmatpush1.msra.mxu0 0.0
    %7733 = vmatprep.subr.mxu0 0.0
    %7734 = vmatpush1.msra.mxu0 0.0
    %7735 = vmatprep.subr.mxu0 0.0
    %7736 = vmatpush1.msra.mxu0 0.0
    %7737 = vmatprep.subr.mxu0 0.0
    %7738 = vmatpush1.msra.mxu0 0.0
    %7739 = vmatprep.subr.mxu0 0.0
    %7740 = vmatpush1.msra.mxu0 0.0
    %7741 = vmatprep.subr.mxu0 0.0
    %7742 = vmatpush1.msra.mxu0 0.0
    %7743 = vmatprep.subr.mxu0 0.0
    %7744 = vmatpush1.msra.mxu0 0.0
    %7745 = vmatprep.subr.mxu0 0.0
    %7746 = vmatpush1.msra.mxu0 0.0
    %7747 = vmatprep.subr.mxu0 0.0
    %7748 = vmatpush1.msra.mxu0 0.0
    %7749 = vmatprep.subr.mxu0 0.0
    %7750 = vmatpush1.msra.mxu0 0.0
    %7751 = vmatprep.subr.mxu0 0.0
    %7752 = vmatpush1.msra.mxu0 0.0
    %7753 = vmatprep.subr.mxu0 0.0
    %7754 = vmatpush1.msra.mxu0 0.0
    %7755 = vmatprep.subr.mxu0 0.0
    %7756 = vmatpush1.msra.mxu0 0.0
    %7757 = vmatprep.subr.mxu0 0.0
    %7758 = vmatpush1.msra.mxu0 0.0
    %7759 = vmatprep.subr.mxu0 0.0
    %7760 = vmatpush1.msra.mxu0 0.0
    %7761 = vmatprep.mubr.f32.mxu0 0.0
    %7762 = vmatmul.mubr.f32.gmra.mrb[0].mxu0 %v7674
    %v7763 = vpop.f32.mrb[0].mxu0
    %v7764 = vadd.f32 0.0, %v7763
    %v7765 = vpop.f32.mrb[0].mxu0
    %v7766 = vadd.f32 0.0, %v7765
    %7767 = vmatprep.mubr.f32.mxu0 0.0
    %7768 = vmatmul.mubr.f32.gmra.mrb[0].mxu0 %v7677
    %v7769 = vpop.f32.mrb[0].mxu0
    %v7770 = vadd.f32 0.0, %v7769
    %v7771 = vpop.f32.mrb[0].mxu0
    %v7772 = vadd.f32 0.0, %v7771
    %7773 = vmatprep.mubr.f32.mxu0 0.0
    %7774 = vmatmul.mubr.f32.gmra.mrb[0].mxu0 %v7680
    %v7775 = vpop.f32.mrb[0].mxu0
    %v7776 = vadd.f32 0.0, %v7775
    %v7777 = vpop.f32.mrb[0].mxu0
    %v7778 = vadd.f32 0.0, %v7777
    %7779 = vmatprep.mubr.f32.mxu0 0.0
    %7780 = vmatmul.mubr.f32.gmra.mrb[0].mxu0 %v7683
    %v7781 = vpop.f32.mrb[0].mxu0
    %v7782 = vadd.f32 0.0, %v7781
    %v7783 = vpop.f32.mrb[0].mxu0
    %v7784 = vadd.f32 0.0, %v7783
    %7785 = vmatprep.mubr.f32.mxu0 0.0
    %7786 = vmatmul.mubr.f32.gmra.mrb[0].mxu0 %v7686
    %v7787 = vpop.f32.mrb[0].mxu0
    %v7788 = vadd.f32 0.0, %v7787
    %v7789 = vpop.f32.mrb[0].mxu0
    %v7790 = vadd.f32 0.0, %v7789
    %7791 = vmatprep.mubr.f32.mxu0 0.0
    %7792 = vmatmul.mubr.f32.gmra.mrb[0].mxu0 %v7689
    %v7793 = vpop.f32.mrb[0].mxu0
    %v7794 = vadd.f32 0.0, %v7793
    %v7795 = vpop.f32.mrb[0].mxu0
    %v7796 = vadd.f32 0.0, %v7795
    %7797 = vmatprep.mubr.f32.mxu0 0.0
    %7798 = vmatmul.mubr.f32.gmra.mrb[0].mxu0 %v7692
    %v7799 = vpop.f32.mrb[0].mxu0
    %v7800 = vadd.f32 0.0, %v7799
    %v7801 = vpop.f32.mrb[0].mxu0
    %v7802 = vadd.f32 0.0, %v7801
    %7803 = vmatprep.mubr.f32.mxu0 0.0
    %7804 = vmatmul.mubr.f32.gmra.mrb[0].mxu0 %v7695
    %v7805 = vpop.f32.mrb[0].mxu0
    %v7806 = vadd.f32 0.0, %v7805
    %v7807 = vpop.f32.mrb[0].mxu0
    %v7808 = vadd.f32 0.0, %v7807
    %7809 = vdwg.mxu0
    %v7810 = vadd.f32 %v7440, %v7764
    %v7811 = vadd.f32 %v7442, %v7766
    %v7812 = vadd.f32 %v7446, %v7770
    %v7813 = vadd.f32 %v7448, %v7772
    %v7814 = vadd.f32 %v7452, %v7776
    %v7815 = vadd.f32 %v7454, %v7778
    %v7816 = vadd.f32 %v7458, %v7782
    %v7817 = vadd.f32 %v7460, %v7784
    %v7818 = vadd.f32 %v7464, %v7788
    %v7819 = vadd.f32 %v7466, %v7790
    %v7820 = vadd.f32 %v7470, %v7794
    %v7821 = vadd.f32 %v7472, %v7796
    %v7822 = vadd.f32 %v7476, %v7800
    %v7823 = vadd.f32 %v7478, %v7802
    %v7824 = vadd.f32 %v7482, %v7806
    %v7825 = vadd.f32 %v7484, %v7808
    %v7826 = vld [vmem:[%s95] sm:$0x3]
    %v7828 = vlaneseq
    %v7829 = vshrl.u32 %v7828, 7
    %v7830 = vsub.s32 0, %v7829
    %v7831 = vrot.slane %v7826, %v7830
    %v7832 = vlaneseq
    %v7833 = vshrl.u32 %v7832, 7
    %v7834 = vsub.s32 1, %v7833
    %v7835 = vrot.slane %v7826, %v7834
    %v7838 = vadd.f32 %v7810, %v7831
    %v7839 = vadd.f32 %v7811, %v7835
    %v7840 = vadd.f32 %v7812, %v7831
    %v7841 = vadd.f32 %v7813, %v7835
    %v7842 = vadd.f32 %v7814, %v7831
    %v7843 = vadd.f32 %v7815, %v7835
    %v7844 = vadd.f32 %v7816, %v7831
    %v7845 = vadd.f32 %v7817, %v7835
    %v7846 = vadd.f32 %v7818, %v7831
    %v7847 = vadd.f32 %v7819, %v7835
    %v7848 = vadd.f32 %v7820, %v7831
    %v7849 = vadd.f32 %v7821, %v7835
    %v7850 = vadd.f32 %v7822, %v7831
    %v7851 = vadd.f32 %v7823, %v7835
    %v7852 = vadd.f32 %v7824, %v7831
    %v7853 = vadd.f32 %v7825, %v7835
    %v7854 = vld [vmem:[%s97] sm:$0xff]
    %v7855 = vld [vmem:[%s97 + $0x8] sm:$0xff]
    %v7856 = vld [vmem:[%s97 + $0x10] sm:$0xff]
    %v7857 = vld [vmem:[%s97 + $0x18] sm:$0xff]
    %v7858 = vld [vmem:[%s97 + $0x20] sm:$0xff]
    %v7859 = vld [vmem:[%s97 + $0x28] sm:$0xff]
    %v7860 = vld [vmem:[%s97 + $0x30] sm:$0xff]
    %v7861 = vld [vmem:[%s97 + $0x38] sm:$0xff]
    %v7862 = vld [vmem:[#allocation49] sm:$0xff]
    %v7863 = vld [vmem:[#allocation49 + $0x8] sm:$0xff]
    %v7864 = vld [vmem:[#allocation49 + $0x10] sm:$0xff]
    %v7865 = vld [vmem:[#allocation49 + $0x18] sm:$0xff]
    %v7866 = vld [vmem:[#allocation49 + $0x20] sm:$0xff]
    %v7867 = vld [vmem:[#allocation49 + $0x28] sm:$0xff]
    %v7868 = vld [vmem:[#allocation49 + $0x30] sm:$0xff]
    %v7869 = vld [vmem:[#allocation49 + $0x38] sm:$0xff]
    %v7870 = vld [vmem:[#allocation49 + $0x40] sm:$0xff]
    %v7871 = vld [vmem:[#allocation49 + $0x48] sm:$0xff]
    %v7872 = vld [vmem:[#allocation49 + $0x50] sm:$0xff]
    %v7873 = vld [vmem:[#allocation49 + $0x58] sm:$0xff]
    %v7874 = vld [vmem:[#allocation49 + $0x60] sm:$0xff]
    %v7875 = vld [vmem:[#allocation49 + $0x68] sm:$0xff]
    %v7876 = vld [vmem:[#allocation49 + $0x70] sm:$0xff]
    %v7877 = vld [vmem:[#allocation49 + $0x78] sm:$0xff]
    %v7878 = vld [vmem:[#allocation49 + $0x80] sm:$0xff]
    %v7879 = vld [vmem:[#allocation49 + $0x88] sm:$0xff]
    %v7880 = vld [vmem:[#allocation49 + $0x90] sm:$0xff]
    %v7881 = vld [vmem:[#allocation49 + $0x98] sm:$0xff]
    %v7882 = vld [vmem:[#allocation49 + $0xa0] sm:$0xff]
    %v7883 = vld [vmem:[#allocation49 + $0xa8] sm:$0xff]
    %v7884 = vld [vmem:[#allocation49 + $0xb0] sm:$0xff]
    %v7885 = vld [vmem:[#allocation49 + $0xb8] sm:$0xff]
    %v7886 = vld [vmem:[#allocation49 + $0xc0] sm:$0xff]
    %v7887 = vld [vmem:[#allocation49 + $0xc8] sm:$0xff]
    %v7888 = vld [vmem:[#allocation49 + $0xd0] sm:$0xff]
    %v7889 = vld [vmem:[#allocation49 + $0xd8] sm:$0xff]
    %v7890 = vld [vmem:[#allocation49 + $0xe0] sm:$0xff]
    %v7891 = vld [vmem:[#allocation49 + $0xe8] sm:$0xff]
    %v7892 = vld [vmem:[#allocation49 + $0xf0] sm:$0xff]
    %v7893 = vld [vmem:[#allocation49 + $0xf8] sm:$0xff]
    %7894 = vmatprep.subr.mxu0 %v7863
    %7895 = vmatpush1.msra.mxu0 %v7862
    %7896 = vmatprep.subr.mxu0 %v7865
    %7897 = vmatpush1.msra.mxu0 %v7864
    %7898 = vmatprep.subr.mxu0 %v7867
    %7899 = vmatpush1.msra.mxu0 %v7866
    %7900 = vmatprep.subr.mxu0 %v7869
    %7901 = vmatpush1.msra.mxu0 %v7868
    %7902 = vmatprep.subr.mxu0 %v7871
    %7903 = vmatpush1.msra.mxu0 %v7870
    %7904 = vmatprep.subr.mxu0 %v7873
    %7905 = vmatpush1.msra.mxu0 %v7872
    %7906 = vmatprep.subr.mxu0 %v7875
    %7907 = vmatpush1.msra.mxu0 %v7874
    %7908 = vmatprep.subr.mxu0 %v7877
    %7909 = vmatpush1.msra.mxu0 %v7876
    %7910 = vmatprep.subr.mxu0 %v7879
    %7911 = vmatpush1.msra.mxu0 %v7878
    %7912 = vmatprep.subr.mxu0 %v7881
    %7913 = vmatpush1.msra.mxu0 %v7880
    %7914 = vmatprep.subr.mxu0 %v7883
    %7915 = vmatpush1.msra.mxu0 %v7882
    %7916 = vmatprep.subr.mxu0 %v7885
    %7917 = vmatpush1.msra.mxu0 %v7884
    %7918 = vmatprep.subr.mxu0 %v7887
    %7919 = vmatpush1.msra.mxu0 %v7886
    %7920 = vmatprep.subr.mxu0 %v7889
    %7921 = vmatpush1.msra.mxu0 %v7888
    %7922 = vmatprep.subr.mxu0 %v7891
    %7923 = vmatpush1.msra.mxu0 %v7890
    %7924 = vmatprep.subr.mxu0 %v7893
    %7925 = vmatpush1.msra.mxu0 %v7892
    %7926 = vmatprep.subr.mxu0 0.0
    %7927 = vmatpush1.msra.mxu0 0.0
    %7928 = vmatprep.subr.mxu0 0.0
    %7929 = vmatpush1.msra.mxu0 0.0
    %7930 = vmatprep.subr.mxu0 0.0
    %7931 = vmatpush1.msra.mxu0 0.0
    %7932 = vmatprep.subr.mxu0 0.0
    %7933 = vmatpush1.msra.mxu0 0.0
    %7934 = vmatprep.subr.mxu0 0.0
    %7935 = vmatpush1.msra.mxu0 0.0
    %7936 = vmatprep.subr.mxu0 0.0
    %7937 = vmatpush1.msra.mxu0 0.0
    %7938 = vmatprep.subr.mxu0 0.0
    %7939 = vmatpush1.msra.mxu0 0.0
    %7940 = vmatprep.subr.mxu0 0.0
    %7941 = vmatpush1.msra.mxu0 0.0
    %7942 = vmatprep.subr.mxu0 0.0
    %7943 = vmatpush1.msra.mxu0 0.0
    %7944 = vmatprep.subr.mxu0 0.0
    %7945 = vmatpush1.msra.mxu0 0.0
    %7946 = vmatprep.subr.mxu0 0.0
    %7947 = vmatpush1.msra.mxu0 0.0
    %7948 = vmatprep.subr.mxu0 0.0
    %7949 = vmatpush1.msra.mxu0 0.0
    %7950 = vmatprep.subr.mxu0 0.0
    %7951 = vmatpush1.msra.mxu0 0.0
    %7952 = vmatprep.subr.mxu0 0.0
    %7953 = vmatpush1.msra.mxu0 0.0
    %7954 = vmatprep.subr.mxu0 0.0
    %7955 = vmatpush1.msra.mxu0 0.0
    %7956 = vmatprep.subr.mxu0 0.0
    %7957 = vmatpush1.msra.mxu0 0.0
    %7958 = vmatprep.mubr.f32.mxu0 0.0
    %7959 = vmatmul.mubr.f32.gmra.mrb[0].mxu0 %v5186
    %v7960 = vpop.f32.mrb[0].mxu0
    %v7961 = vadd.f32 0.0, %v7960
    %v7962 = vpop.f32.mrb[0].mxu0
    %v7963 = vadd.f32 0.0, %v7962
    %7964 = vmatprep.mubr.f32.mxu0 0.0
    %7965 = vmatmul.mubr.f32.gmra.mrb[0].mxu0 %v5187
    %v7966 = vpop.f32.mrb[0].mxu0
    %v7967 = vadd.f32 0.0, %v7966
    %v7968 = vpop.f32.mrb[0].mxu0
    %v7969 = vadd.f32 0.0, %v7968
    %7970 = vmatprep.mubr.f32.mxu0 0.0
    %7971 = vmatmul.mubr.f32.gmra.mrb[0].mxu0 %v5188
    %v7972 = vpop.f32.mrb[0].mxu0
    %v7973 = vadd.f32 0.0, %v7972
    %v7974 = vpop.f32.mrb[0].mxu0
    %v7975 = vadd.f32 0.0, %v7974
    %7976 = vmatprep.mubr.f32.mxu0 0.0
    %7977 = vmatmul.mubr.f32.gmra.mrb[0].mxu0 %v5189
    %v7978 = vpop.f32.mrb[0].mxu0
    %v7979 = vadd.f32 0.0, %v7978
    %v7980 = vpop.f32.mrb[0].mxu0
    %v7981 = vadd.f32 0.0, %v7980
    %7982 = vdwg.mxu0
    %v7983 = vld [vmem:[%s101] sm:$0x3]
    %v7985 = vlaneseq
    %v7986 = vshrl.u32 %v7985, 7
    %v7987 = vsub.s32 0, %v7986
    %v7988 = vrot.slane %v7983, %v7987
    %v7989 = vlaneseq
    %v7990 = vshrl.u32 %v7989, 7
    %v7991 = vsub.s32 1, %v7990
    %v7992 = vrot.slane %v7983, %v7991
    %v7996 = vsel %vm1239, %v7854, 0
    %v7999 = vsel %vm1239, %v7855, 0
    %v8002 = vsel %vm1239, %v7856, 0
    %v8005 = vsel %vm1239, %v7857, 0
    %v8008 = vsel %vm1239, %v7858, 0
    %v8011 = vsel %vm1239, %v7859, 0
    %v8014 = vsel %vm1239, %v7860, 0
    %v8017 = vsel %vm1239, %v7861, 0
    %8019 = vmatprep.subr.mxu0 %v7963
    %8020 = vmatpush1.msra.mxu0 %v7961
    %8021 = vmatprep.subr.mxu0 %v7969
    %8022 = vmatpush1.msra.mxu0 %v7967
    %8023 = vmatprep.subr.mxu0 %v7975
    %8024 = vmatpush1.msra.mxu0 %v7973
    %8025 = vmatprep.subr.mxu0 %v7981
    %8026 = vmatpush1.msra.mxu0 %v7979
    %8027 = vmatprep.subr.mxu0 0.0
    %8028 = vmatpush1.msra.mxu0 0.0
    %8029 = vmatprep.subr.mxu0 0.0
    %8030 = vmatpush1.msra.mxu0 0.0
    %8031 = vmatprep.subr.mxu0 0.0
    %8032 = vmatpush1.msra.mxu0 0.0
    %8033 = vmatprep.subr.mxu0 0.0
    %8034 = vmatpush1.msra.mxu0 0.0
    %8035 = vmatprep.subr.mxu0 0.0
    %8036 = vmatpush1.msra.mxu0 0.0
    %8037 = vmatprep.subr.mxu0 0.0
    %8038 = vmatpush1.msra.mxu0 0.0
    %8039 = vmatprep.subr.mxu0 0.0
    %8040 = vmatpush1.msra.mxu0 0.0
    %8041 = vmatprep.subr.mxu0 0.0
    %8042 = vmatpush1.msra.mxu0 0.0
    %8043 = vmatprep.subr.mxu0 0.0
    %8044 = vmatpush1.msra.mxu0 0.0
    %8045 = vmatprep.subr.mxu0 0.0
    %8046 = vmatpush1.msra.mxu0 0.0
    %8047 = vmatprep.subr.mxu0 0.0
    %8048 = vmatpush1.msra.mxu0 0.0
    %8049 = vmatprep.subr.mxu0 0.0
    %8050 = vmatpush1.msra.mxu0 0.0
    %8051 = vmatprep.subr.mxu0 0.0
    %8052 = vmatpush1.msra.mxu0 0.0
    %8053 = vmatprep.subr.mxu0 0.0
    %8054 = vmatpush1.msra.mxu0 0.0
    %8055 = vmatprep.subr.mxu0 0.0
    %8056 = vmatpush1.msra.mxu0 0.0
    %8057 = vmatprep.subr.mxu0 0.0
    %8058 = vmatpush1.msra.mxu0 0.0
    %8059 = vmatprep.subr.mxu0 0.0
    %8060 = vmatpush1.msra.mxu0 0.0
    %8061 = vmatprep.subr.mxu0 0.0
    %8062 = vmatpush1.msra.mxu0 0.0
    %8063 = vmatprep.subr.mxu0 0.0
    %8064 = vmatpush1.msra.mxu0 0.0
    %8065 = vmatprep.subr.mxu0 0.0
    %8066 = vmatpush1.msra.mxu0 0.0
    %8067 = vmatprep.subr.mxu0 0.0
    %8068 = vmatpush1.msra.mxu0 0.0
    %8069 = vmatprep.subr.mxu0 0.0
    %8070 = vmatpush1.msra.mxu0 0.0
    %8071 = vmatprep.subr.mxu0 0.0
    %8072 = vmatpush1.msra.mxu0 0.0
    %8073 = vmatprep.subr.mxu0 0.0
    %8074 = vmatpush1.msra.mxu0 0.0
    %8075 = vmatprep.subr.mxu0 0.0
    %8076 = vmatpush1.msra.mxu0 0.0
    %8077 = vmatprep.subr.mxu0 0.0
    %8078 = vmatpush1.msra.mxu0 0.0
    %8079 = vmatprep.subr.mxu0 0.0
    %8080 = vmatpush1.msra.mxu0 0.0
    %8081 = vmatprep.subr.mxu0 0.0
    %8082 = vmatpush1.msra.mxu0 0.0
    %8083 = vmatprep.mubr.f32.mxu0 0.0
    %8084 = vmatmul.mubr.f32.gmra.mrb[0].mxu0 %v7996
    %v8085 = vpop.f32.mrb[0].mxu0
    %v8086 = vadd.f32 %v7988, %v8085
    %v8087 = vpop.f32.mrb[0].mxu0
    %v8088 = vadd.f32 %v7992, %v8087
    %8089 = vmatprep.mubr.f32.mxu0 0.0
    %8090 = vmatmul.mubr.f32.gmra.mrb[0].mxu0 %v7999
    %v8091 = vpop.f32.mrb[0].mxu0
    %v8092 = vadd.f32 %v7988, %v8091
    %v8093 = vpop.f32.mrb[0].mxu0
    %v8094 = vadd.f32 %v7992, %v8093
    %8095 = vmatprep.mubr.f32.mxu0 0.0
    %8096 = vmatmul.mubr.f32.gmra.mrb[0].mxu0 %v8002
    %v8097 = vpop.f32.mrb[0].mxu0
    %v8098 = vadd.f32 %v7988, %v8097
    %v8099 = vpop.f32.mrb[0].mxu0
    %v8100 = vadd.f32 %v7992, %v8099
    %8101 = vmatprep.mubr.f32.mxu0 0.0
    %8102 = vmatmul.mubr.f32.gmra.mrb[0].mxu0 %v8005
    %v8103 = vpop.f32.mrb[0].mxu0
    %v8104 = vadd.f32 %v7988, %v8103
    %v8105 = vpop.f32.mrb[0].mxu0
    %v8106 = vadd.f32 %v7992, %v8105
    %8107 = vmatprep.mubr.f32.mxu0 0.0
    %8108 = vmatmul.mubr.f32.gmra.mrb[0].mxu0 %v8008
    %v8109 = vpop.f32.mrb[0].mxu0
    %v8110 = vadd.f32 %v7988, %v8109
    %v8111 = vpop.f32.mrb[0].mxu0
    %v8112 = vadd.f32 %v7992, %v8111
    %8113 = vmatprep.mubr.f32.mxu0 0.0
    %8114 = vmatmul.mubr.f32.gmra.mrb[0].mxu0 %v8011
    %v8115 = vpop.f32.mrb[0].mxu0
    %v8116 = vadd.f32 %v7988, %v8115
    %v8117 = vpop.f32.mrb[0].mxu0
    %v8118 = vadd.f32 %v7992, %v8117
    %8119 = vmatprep.mubr.f32.mxu0 0.0
    %8120 = vmatmul.mubr.f32.gmra.mrb[0].mxu0 %v8014
    %v8121 = vpop.f32.mrb[0].mxu0
    %v8122 = vadd.f32 %v7988, %v8121
    %v8123 = vpop.f32.mrb[0].mxu0
    %v8124 = vadd.f32 %v7992, %v8123
    %8125 = vmatprep.mubr.f32.mxu0 0.0
    %8126 = vmatmul.mubr.f32.gmra.mrb[0].mxu0 %v8017
    %v8127 = vpop.f32.mrb[0].mxu0
    %v8128 = vadd.f32 %v7988, %v8127
    %v8129 = vpop.f32.mrb[0].mxu0
    %v8130 = vadd.f32 %v7992, %v8129
    %8131 = vdwg.mxu0
    %v8132 = vadd.f32 %v7838, %v8086
    %v8133 = vadd.f32 %v7839, %v8088
    %v8134 = vadd.f32 %v7840, %v8092
    %v8135 = vadd.f32 %v7841, %v8094
    %v8136 = vadd.f32 %v7842, %v8098
    %v8137 = vadd.f32 %v7843, %v8100
    %v8138 = vadd.f32 %v7844, %v8104
    %v8139 = vadd.f32 %v7845, %v8106
    %v8140 = vadd.f32 %v7846, %v8110
    %v8141 = vadd.f32 %v7847, %v8112
    %v8142 = vadd.f32 %v7848, %v8116
    %v8143 = vadd.f32 %v7849, %v8118
    %v8144 = vadd.f32 %v7850, %v8122
    %v8145 = vadd.f32 %v7851, %v8124
    %v8146 = vadd.f32 %v7852, %v8128
    %v8147 = vadd.f32 %v7853, %v8130
    %v8148 = vadd.f32 %v8132, %v8134
    %v8149 = vadd.f32 %v8148, %v8136
    %v8150 = vadd.f32 %v8149, %v8138
    %v8151 = vadd.f32 %v8150, %v8140
    %v8152 = vadd.f32 %v8151, %v8142
    %v8153 = vadd.f32 %v8152, %v8144
    %v8154 = vadd.f32 %v8153, %v8146
    %v8155 = vrot.slane %v8154, 4
    %v8156 = vadd.f32 %v8154, %v8155
    %v8157 = vrot.slane %v8156, 2
    %v8158 = vadd.f32 %v8156, %v8157
    %v8159 = vrot.slane %v8158, 1
    %v8160 = vadd.f32 %v8158, %v8159
    %v8161 = vadd.f32 %v8133, %v8135
    %v8162 = vadd.f32 %v8161, %v8137
    %v8163 = vadd.f32 %v8162, %v8139
    %v8164 = vadd.f32 %v8163, %v8141
    %v8165 = vadd.f32 %v8164, %v8143
    %v8166 = vadd.f32 %v8165, %v8145
    %v8167 = vadd.f32 %v8166, %v8147
    %v8168 = vrot.slane %v8167, 4
    %v8169 = vadd.f32 %v8167, %v8168
    %v8170 = vrot.slane %v8169, 2
    %v8171 = vadd.f32 %v8169, %v8170
    %v8172 = vrot.slane %v8171, 1
    %v8173 = vadd.f32 %v8171, %v8172
    %v8174 = vmul.f32 %v8132, %v8132
    %v8175 = vmul.f32 %v8133, %v8133
    %v8176 = vmul.f32 %v8134, %v8134
    %v8177 = vmul.f32 %v8135, %v8135
    %v8178 = vmul.f32 %v8136, %v8136
    %v8179 = vmul.f32 %v8137, %v8137
    %v8180 = vmul.f32 %v8138, %v8138
    %v8181 = vmul.f32 %v8139, %v8139
    %v8182 = vmul.f32 %v8140, %v8140
    %v8183 = vmul.f32 %v8141, %v8141
    %v8184 = vmul.f32 %v8142, %v8142
    %v8185 = vmul.f32 %v8143, %v8143
    %v8186 = vmul.f32 %v8144, %v8144
    %v8187 = vmul.f32 %v8145, %v8145
    %v8188 = vmul.f32 %v8146, %v8146
    %v8189 = vmul.f32 %v8147, %v8147
    %v8190 = vadd.f32 %v8174, %v8176
    %v8191 = vadd.f32 %v8190, %v8178
    %v8192 = vadd.f32 %v8191, %v8180
    %v8193 = vadd.f32 %v8192, %v8182
    %v8194 = vadd.f32 %v8193, %v8184
    %v8195 = vadd.f32 %v8194, %v8186
    %v8196 = vadd.f32 %v8195, %v8188
    %v8197 = vrot.slane %v8196, 4
    %v8198 = vadd.f32 %v8196, %v8197
    %v8199 = vrot.slane %v8198, 2
    %v8200 = vadd.f32 %v8198, %v8199
    %v8201 = vrot.slane %v8200, 1
    %v8202 = vadd.f32 %v8200, %v8201
    %v8203 = vadd.f32 %v8175, %v8177
    %v8204 = vadd.f32 %v8203, %v8179
    %v8205 = vadd.f32 %v8204, %v8181
    %v8206 = vadd.f32 %v8205, %v8183
    %v8207 = vadd.f32 %v8206, %v8185
    %v8208 = vadd.f32 %v8207, %v8187
    %v8209 = vadd.f32 %v8208, %v8189
    %v8210 = vrot.slane %v8209, 4
    %v8211 = vadd.f32 %v8209, %v8210
    %v8212 = vrot.slane %v8211, 2
    %v8213 = vadd.f32 %v8211, %v8212
    %v8214 = vrot.slane %v8213, 1
    %v8215 = vadd.f32 %v8213, %v8214
    %8216 = vmatprep.subr.mxu0 0.0
    %8217 = vmatpush1.msra.mxu0 %v6375
    %8218 = vmatprep.subr.mxu0 0.0
    %8219 = vmatpush1.msra.mxu0 %v6376
    %8220 = vmatprep.subr.mxu0 0.0
    %8221 = vmatpush1.msra.mxu0 %v6377
    %8222 = vmatprep.subr.mxu0 0.0
    %8223 = vmatpush1.msra.mxu0 %v6378
    %8224 = vmatprep.subr.mxu0 0.0
    %8225 = vmatpush1.msra.mxu0 %v6379
    %8226 = vmatprep.subr.mxu0 0.0
    %8227 = vmatpush1.msra.mxu0 %v6380
    %8228 = vmatprep.subr.mxu0 0.0
    %8229 = vmatpush1.msra.mxu0 %v6381
    %8230 = vmatprep.subr.mxu0 0.0
    %8231 = vmatpush1.msra.mxu0 %v6382
    %8232 = vmatprep.subr.mxu0 0.0
    %8233 = vmatpush1.msra.mxu0 %v6383
    %8234 = vmatprep.subr.mxu0 0.0
    %8235 = vmatpush1.msra.mxu0 %v6384
    %8236 = vmatprep.subr.mxu0 0.0
    %8237 = vmatpush1.msra.mxu0 %v6385
    %8238 = vmatprep.subr.mxu0 0.0
    %8239 = vmatpush1.msra.mxu0 %v6386
    %8240 = vmatprep.subr.mxu0 0.0
    %8241 = vmatpush1.msra.mxu0 %v6387
    %8242 = vmatprep.subr.mxu0 0.0
    %8243 = vmatpush1.msra.mxu0 %v6388
    %8244 = vmatprep.subr.mxu0 0.0
    %8245 = vmatpush1.msra.mxu0 %v6389
    %8246 = vmatprep.subr.mxu0 0.0
    %8247 = vmatpush1.msra.mxu0 %v6390
    %8248 = vmatprep.subr.mxu0 0.0
    %8249 = vmatpush1.msra.mxu0 %v6391
    %8250 = vmatprep.subr.mxu0 0.0
    %8251 = vmatpush1.msra.mxu0 %v6392
    %8252 = vmatprep.subr.mxu0 0.0
    %8253 = vmatpush1.msra.mxu0 %v6393
    %8254 = vmatprep.subr.mxu0 0.0
    %8255 = vmatpush1.msra.mxu0 %v6394
    %8256 = vmatprep.subr.mxu0 0.0
    %8257 = vmatpush1.msra.mxu0 %v6395
    %8258 = vmatprep.subr.mxu0 0.0
    %8259 = vmatpush1.msra.mxu0 %v6396
    %8260 = vmatprep.subr.mxu0 0.0
    %8261 = vmatpush1.msra.mxu0 %v6397
    %8262 = vmatprep.subr.mxu0 0.0
    %8263 = vmatpush1.msra.mxu0 %v6398
    %8264 = vmatprep.subr.mxu0 0.0
    %8265 = vmatpush1.msra.mxu0 %v6399
    %8266 = vmatprep.subr.mxu0 0.0
    %8267 = vmatpush1.msra.mxu0 %v6400
    %8268 = vmatprep.subr.mxu0 0.0
    %8269 = vmatpush1.msra.mxu0 %v6401
    %8270 = vmatprep.subr.mxu0 0.0
    %8271 = vmatpush1.msra.mxu0 %v6402
    %8272 = vmatprep.subr.mxu0 0.0
    %8273 = vmatpush1.msra.mxu0 %v6403
    %8274 = vmatprep.subr.mxu0 0.0
    %8275 = vmatpush1.msra.mxu0 %v6404
    %8276 = vmatprep.subr.mxu0 0.0
    %8277 = vmatpush1.msra.mxu0 %v6405
    %8278 = vmatprep.subr.mxu0 0.0
    %8279 = vmatpush1.msra.mxu0 %v6406
    %8280 = vmatprep.mubr.f32.mxu0 %v8173
    %8281 = vmatmul.mubr.f32.gmra.mrb[0].mxu0 %v8160
    %v8282 = vpop.f32.mrb[0].mxu0
    %v8283 = vadd.f32 0.0, %v8282
    %v8284 = vpop.f32.mrb[0].mxu0
    %8285 = vdwg.mxu0
    %8286 = vmatprep.subr.mxu0 0.0
    %8287 = vmatpush1.msra.mxu0 %v6375
    %8288 = vmatprep.subr.mxu0 0.0
    %8289 = vmatpush1.msra.mxu0 %v6376
    %8290 = vmatprep.subr.mxu0 0.0
    %8291 = vmatpush1.msra.mxu0 %v6377
    %8292 = vmatprep.subr.mxu0 0.0
    %8293 = vmatpush1.msra.mxu0 %v6378
    %8294 = vmatprep.subr.mxu0 0.0
    %8295 = vmatpush1.msra.mxu0 %v6379
    %8296 = vmatprep.subr.mxu0 0.0
    %8297 = vmatpush1.msra.mxu0 %v6380
    %8298 = vmatprep.subr.mxu0 0.0
    %8299 = vmatpush1.msra.mxu0 %v6381
    %8300 = vmatprep.subr.mxu0 0.0
    %8301 = vmatpush1.msra.mxu0 %v6382
    %8302 = vmatprep.subr.mxu0 0.0
    %8303 = vmatpush1.msra.mxu0 %v6383
    %8304 = vmatprep.subr.mxu0 0.0
    %8305 = vmatpush1.msra.mxu0 %v6384
    %8306 = vmatprep.subr.mxu0 0.0
    %8307 = vmatpush1.msra.mxu0 %v6385
    %8308 = vmatprep.subr.mxu0 0.0
    %8309 = vmatpush1.msra.mxu0 %v6386
    %8310 = vmatprep.subr.mxu0 0.0
    %8311 = vmatpush1.msra.mxu0 %v6387
    %8312 = vmatprep.subr.mxu0 0.0
    %8313 = vmatpush1.msra.mxu0 %v6388
    %8314 = vmatprep.subr.mxu0 0.0
    %8315 = vmatpush1.msra.mxu0 %v6389
    %8316 = vmatprep.subr.mxu0 0.0
    %8317 = vmatpush1.msra.mxu0 %v6390
    %8318 = vmatprep.subr.mxu0 0.0
    %8319 = vmatpush1.msra.mxu0 %v6391
    %8320 = vmatprep.subr.mxu0 0.0
    %8321 = vmatpush1.msra.mxu0 %v6392
    %8322 = vmatprep.subr.mxu0 0.0
    %8323 = vmatpush1.msra.mxu0 %v6393
    %8324 = vmatprep.subr.mxu0 0.0
    %8325 = vmatpush1.msra.mxu0 %v6394
    %8326 = vmatprep.subr.mxu0 0.0
    %8327 = vmatpush1.msra.mxu0 %v6395
    %8328 = vmatprep.subr.mxu0 0.0
    %8329 = vmatpush1.msra.mxu0 %v6396
    %8330 = vmatprep.subr.mxu0 0.0
    %8331 = vmatpush1.msra.mxu0 %v6397
    %8332 = vmatprep.subr.mxu0 0.0
    %8333 = vmatpush1.msra.mxu0 %v6398
    %8334 = vmatprep.subr.mxu0 0.0
    %8335 = vmatpush1.msra.mxu0 %v6399
    %8336 = vmatprep.subr.mxu0 0.0
    %8337 = vmatpush1.msra.mxu0 %v6400
    %8338 = vmatprep.subr.mxu0 0.0
    %8339 = vmatpush1.msra.mxu0 %v6401
    %8340 = vmatprep.subr.mxu0 0.0
    %8341 = vmatpush1.msra.mxu0 %v6402
    %8342 = vmatprep.subr.mxu0 0.0
    %8343 = vmatpush1.msra.mxu0 %v6403
    %8344 = vmatprep.subr.mxu0 0.0
    %8345 = vmatpush1.msra.mxu0 %v6404
    %8346 = vmatprep.subr.mxu0 0.0
    %8347 = vmatpush1.msra.mxu0 %v6405
    %8348 = vmatprep.subr.mxu0 0.0
    %8349 = vmatpush1.msra.mxu0 %v6406
    %8350 = vmatprep.mubr.f32.mxu0 %v8215
    %8351 = vmatmul.mubr.f32.gmra.mrb[0].mxu0 %v8202
    %v8352 = vpop.f32.mrb[0].mxu0
    %v8353 = vadd.f32 0.0, %v8352
    %v8354 = vpop.f32.mrb[0].mxu0
    %8355 = vdwg.mxu0
    %v8356 = vmul.f32 %v8283, 0.00048828125
    %v8357 = vmul.f32 %v8353, 0.00048828125
    %v8358 = vmul.f32 %v8356, %v8356
    %v8359 = vsub.f32 %v8357, %v8358
    %v8360 = vld [vmem:[%s103] sm:$0x1]
    %v8361 = vadd.f32 %v8359, 1e-05
    %v8362 = vrsqrt.pop %v8361
    %v8363 = vmul.f32 %v8360, %v8362
    %v8364 = vld [vmem:[%s105] sm:$0x1]
    %v8365 = vmul.f32 %v8356, %v8363
    %v8366 = vsub.f32 %v8364, %v8365
    %v8368 = vsel %vm1412, %v8363, 0
    %8370 = vmatprep.subr.mxu0 %v6408
    %8371 = vmatpush1.msra.mxu0 %v6407
    %8372 = vmatprep.subr.mxu0 0.0
    %8373 = vmatpush1.msra.mxu0 0.0
    %8374 = vmatprep.subr.mxu0 0.0
    %8375 = vmatpush1.msra.mxu0 0.0
    %8376 = vmatprep.subr.mxu0 0.0
    %8377 = vmatpush1.msra.mxu0 0.0
    %8378 = vmatprep.subr.mxu0 0.0
    %8379 = vmatpush1.msra.mxu0 0.0
    %8380 = vmatprep.subr.mxu0 0.0
    %8381 = vmatpush1.msra.mxu0 0.0
    %8382 = vmatprep.subr.mxu0 0.0
    %8383 = vmatpush1.msra.mxu0 0.0
    %8384 = vmatprep.subr.mxu0 0.0
    %8385 = vmatpush1.msra.mxu0 0.0
    %8386 = vmatprep.subr.mxu0 0.0
    %8387 = vmatpush1.msra.mxu0 0.0
    %8388 = vmatprep.subr.mxu0 0.0
    %8389 = vmatpush1.msra.mxu0 0.0
    %8390 = vmatprep.subr.mxu0 0.0
    %8391 = vmatpush1.msra.mxu0 0.0
    %8392 = vmatprep.subr.mxu0 0.0
    %8393 = vmatpush1.msra.mxu0 0.0
    %8394 = vmatprep.subr.mxu0 0.0
    %8395 = vmatpush1.msra.mxu0 0.0
    %8396 = vmatprep.subr.mxu0 0.0
    %8397 = vmatpush1.msra.mxu0 0.0
    %8398 = vmatprep.subr.mxu0 0.0
    %8399 = vmatpush1.msra.mxu0 0.0
    %8400 = vmatprep.subr.mxu0 0.0
    %8401 = vmatpush1.msra.mxu0 0.0
    %8402 = vmatprep.subr.mxu0 0.0
    %8403 = vmatpush1.msra.mxu0 0.0
    %8404 = vmatprep.subr.mxu0 0.0
    %8405 = vmatpush1.msra.mxu0 0.0
    %8406 = vmatprep.subr.mxu0 0.0
    %8407 = vmatpush1.msra.mxu0 0.0
    %8408 = vmatprep.subr.mxu0 0.0
    %8409 = vmatpush1.msra.mxu0 0.0
    %8410 = vmatprep.subr.mxu0 0.0
    %8411 = vmatpush1.msra.mxu0 0.0
    %8412 = vmatprep.subr.mxu0 0.0
    %8413 = vmatpush1.msra.mxu0 0.0
    %8414 = vmatprep.subr.mxu0 0.0
    %8415 = vmatpush1.msra.mxu0 0.0
    %8416 = vmatprep.subr.mxu0 0.0
    %8417 = vmatpush1.msra.mxu0 0.0
    %8418 = vmatprep.subr.mxu0 0.0
    %8419 = vmatpush1.msra.mxu0 0.0
    %8420 = vmatprep.subr.mxu0 0.0
    %8421 = vmatpush1.msra.mxu0 0.0
    %8422 = vmatprep.subr.mxu0 0.0
    %8423 = vmatpush1.msra.mxu0 0.0
    %8424 = vmatprep.subr.mxu0 0.0
    %8425 = vmatpush1.msra.mxu0 0.0
    %8426 = vmatprep.subr.mxu0 0.0
    %8427 = vmatpush1.msra.mxu0 0.0
    %8428 = vmatprep.subr.mxu0 0.0
    %8429 = vmatpush1.msra.mxu0 0.0
    %8430 = vmatprep.subr.mxu0 0.0
    %8431 = vmatpush1.msra.mxu0 0.0
    %8432 = vmatprep.subr.mxu0 0.0
    %8433 = vmatpush1.msra.mxu0 0.0
    %8434 = vmatprep.mubr.f32.mxu0 0.0
    %8435 = vmatmul.mubr.f32.gmra.mrb[0].mxu0 %v8368
    %v8436 = vpop.f32.mrb[0].mxu0
    %v8437 = vadd.f32 0.0, %v8436
    %v8438 = vpop.f32.mrb[0].mxu0
    %v8439 = vadd.f32 0.0, %v8438
    %8440 = vdwg.mxu0
    %v8442 = vsel %vm1412, %v8366, 0
    %8444 = vmatprep.subr.mxu0 %v6408
    %8445 = vmatpush1.msra.mxu0 %v6407
    %8446 = vmatprep.subr.mxu0 0.0
    %8447 = vmatpush1.msra.mxu0 0.0
    %8448 = vmatprep.subr.mxu0 0.0
    %8449 = vmatpush1.msra.mxu0 0.0
    %8450 = vmatprep.subr.mxu0 0.0
    %8451 = vmatpush1.msra.mxu0 0.0
    %8452 = vmatprep.subr.mxu0 0.0
    %8453 = vmatpush1.msra.mxu0 0.0
    %8454 = vmatprep.subr.mxu0 0.0
    %8455 = vmatpush1.msra.mxu0 0.0
    %8456 = vmatprep.subr.mxu0 0.0
    %8457 = vmatpush1.msra.mxu0 0.0
    %8458 = vmatprep.subr.mxu0 0.0
    %8459 = vmatpush1.msra.mxu0 0.0
    %8460 = vmatprep.subr.mxu0 0.0
    %8461 = vmatpush1.msra.mxu0 0.0
    %8462 = vmatprep.subr.mxu0 0.0
    %8463 = vmatpush1.msra.mxu0 0.0
    %8464 = vmatprep.subr.mxu0 0.0
    %8465 = vmatpush1.msra.mxu0 0.0
    %8466 = vmatprep.subr.mxu0 0.0
    %8467 = vmatpush1.msra.mxu0 0.0
    %8468 = vmatprep.subr.mxu0 0.0
    %8469 = vmatpush1.msra.mxu0 0.0
    %8470 = vmatprep.subr.mxu0 0.0
    %8471 = vmatpush1.msra.mxu0 0.0
    %8472 = vmatprep.subr.mxu0 0.0
    %8473 = vmatpush1.msra.mxu0 0.0
    %8474 = vmatprep.subr.mxu0 0.0
    %8475 = vmatpush1.msra.mxu0 0.0
    %8476 = vmatprep.subr.mxu0 0.0
    %8477 = vmatpush1.msra.mxu0 0.0
    %8478 = vmatprep.subr.mxu0 0.0
    %8479 = vmatpush1.msra.mxu0 0.0
    %8480 = vmatprep.subr.mxu0 0.0
    %8481 = vmatpush1.msra.mxu0 0.0
    %8482 = vmatprep.subr.mxu0 0.0
    %8483 = vmatpush1.msra.mxu0 0.0
    %8484 = vmatprep.subr.mxu0 0.0
    %8485 = vmatpush1.msra.mxu0 0.0
    %8486 = vmatprep.subr.mxu0 0.0
    %8487 = vmatpush1.msra.mxu0 0.0
    %8488 = vmatprep.subr.mxu0 0.0
    %8489 = vmatpush1.msra.mxu0 0.0
    %8490 = vmatprep.subr.mxu0 0.0
    %8491 = vmatpush1.msra.mxu0 0.0
    %8492 = vmatprep.subr.mxu0 0.0
    %8493 = vmatpush1.msra.mxu0 0.0
    %8494 = vmatprep.subr.mxu0 0.0
    %8495 = vmatpush1.msra.mxu0 0.0
    %8496 = vmatprep.subr.mxu0 0.0
    %8497 = vmatpush1.msra.mxu0 0.0
    %8498 = vmatprep.subr.mxu0 0.0
    %8499 = vmatpush1.msra.mxu0 0.0
    %8500 = vmatprep.subr.mxu0 0.0
    %8501 = vmatpush1.msra.mxu0 0.0
    %8502 = vmatprep.subr.mxu0 0.0
    %8503 = vmatpush1.msra.mxu0 0.0
    %8504 = vmatprep.subr.mxu0 0.0
    %8505 = vmatpush1.msra.mxu0 0.0
    %8506 = vmatprep.subr.mxu0 0.0
    %8507 = vmatpush1.msra.mxu0 0.0
    %8508 = vmatprep.mubr.f32.mxu0 0.0
    %8509 = vmatmul.mubr.f32.gmra.mrb[0].mxu0 %v8442
    %v8510 = vpop.f32.mrb[0].mxu0
    %v8511 = vadd.f32 0.0, %v8510
    %v8512 = vpop.f32.mrb[0].mxu0
    %v8513 = vadd.f32 0.0, %v8512
    %8514 = vdwg.mxu0
    %v8515 = vlaneseq
    %v8516 = vshrl.u32 %v8515, 7
    %v8517 = vsub.s32 0, %v8516
    %v8518 = vrot.slane %v8437, %v8517
    %v8519 = vlaneseq
    %v8520 = vshrl.u32 %v8519, 7
    %v8521 = vsub.s32 0, %v8520
    %v8522 = vrot.slane %v8439, %v8521
    %v8523 = vmul.f32 %v8132, %v8518
    %v8524 = vmul.f32 %v8133, %v8522
    %v8525 = vmul.f32 %v8134, %v8518
    %v8526 = vmul.f32 %v8135, %v8522
    %v8527 = vmul.f32 %v8136, %v8518
    %v8528 = vmul.f32 %v8137, %v8522
    %v8529 = vmul.f32 %v8138, %v8518
    %v8530 = vmul.f32 %v8139, %v8522
    %v8531 = vmul.f32 %v8140, %v8518
    %v8532 = vmul.f32 %v8141, %v8522
    %v8533 = vmul.f32 %v8142, %v8518
    %v8534 = vmul.f32 %v8143, %v8522
    %v8535 = vmul.f32 %v8144, %v8518
    %v8536 = vmul.f32 %v8145, %v8522
    %v8537 = vmul.f32 %v8146, %v8518
    %v8538 = vmul.f32 %v8147, %v8522
    %v8539 = vlaneseq
    %v8540 = vshrl.u32 %v8539, 7
    %v8541 = vsub.s32 0, %v8540
    %v8542 = vrot.slane %v8511, %v8541
    %v8543 = vlaneseq
    %v8544 = vshrl.u32 %v8543, 7
    %v8545 = vsub.s32 0, %v8544
    %v8546 = vrot.slane %v8513, %v8545
    %v8547 = vadd.f32 %v8523, %v8542
    %v8548 = vadd.f32 %v8524, %v8546
    %v8549 = vadd.f32 %v8525, %v8542
    %v8550 = vadd.f32 %v8526, %v8546
    %v8551 = vadd.f32 %v8527, %v8542
    %v8552 = vadd.f32 %v8528, %v8546
    %v8553 = vadd.f32 %v8529, %v8542
    %v8554 = vadd.f32 %v8530, %v8546
    %v8555 = vadd.f32 %v8531, %v8542
    %v8556 = vadd.f32 %v8532, %v8546
    %v8557 = vadd.f32 %v8533, %v8542
    %v8558 = vadd.f32 %v8534, %v8546
    %v8559 = vadd.f32 %v8535, %v8542
    %v8560 = vadd.f32 %v8536, %v8546
    %v8561 = vadd.f32 %v8537, %v8542
    %v8562 = vadd.f32 %v8538, %v8546
    %v8563 = vmax.f32 %v8547, 0.0
    %v8564 = vmax.f32 %v8548, 0.0
    %v8565 = vmax.f32 %v8549, 0.0
    %v8566 = vmax.f32 %v8550, 0.0
    %v8567 = vmax.f32 %v8551, 0.0
    %v8568 = vmax.f32 %v8552, 0.0
    %v8569 = vmax.f32 %v8553, 0.0
    %v8570 = vmax.f32 %v8554, 0.0
    %v8571 = vmax.f32 %v8555, 0.0
    %v8572 = vmax.f32 %v8556, 0.0
    %v8573 = vmax.f32 %v8557, 0.0
    %v8574 = vmax.f32 %v8558, 0.0
    %v8575 = vmax.f32 %v8559, 0.0
    %v8576 = vmax.f32 %v8560, 0.0
    %v8577 = vmax.f32 %v8561, 0.0
    %v8578 = vmax.f32 %v8562, 0.0
    %v8579 = vld [vmem:[#allocation50] sm:$0xff]
    %v8580 = vld [vmem:[#allocation50 + $0x8] sm:$0xff]
    %v8581 = vld [vmem:[#allocation50 + $0x10] sm:$0xff]
    %v8582 = vld [vmem:[#allocation50 + $0x18] sm:$0xff]
    %v8583 = vld [vmem:[#allocation50 + $0x20] sm:$0xff]
    %v8584 = vld [vmem:[#allocation50 + $0x28] sm:$0xff]
    %v8585 = vld [vmem:[#allocation50 + $0x30] sm:$0xff]
    %v8586 = vld [vmem:[#allocation50 + $0x38] sm:$0xff]
    %v8587 = vld [vmem:[%s109] sm:$0xff]
    %v8588 = vld [vmem:[%s109 + $0x8] sm:$0xff]
    %v8589 = vld [vmem:[%s109 + $0x10] sm:$0xff]
    %v8590 = vld [vmem:[%s109 + $0x18] sm:$0xff]
    %v8591 = vld [vmem:[%s109 + $0x20] sm:$0xff]
    %v8592 = vld [vmem:[%s109 + $0x28] sm:$0xff]
    %v8593 = vld [vmem:[%s109 + $0x30] sm:$0xff]
    %v8594 = vld [vmem:[%s109 + $0x38] sm:$0xff]
    %v8595 = vld [vmem:[%s109 + $0x40] sm:$0xff]
    %v8596 = vld [vmem:[%s109 + $0x48] sm:$0xff]
    %v8597 = vld [vmem:[%s109 + $0x50] sm:$0xff]
    %v8598 = vld [vmem:[%s109 + $0x58] sm:$0xff]
    %v8599 = vld [vmem:[%s109 + $0x60] sm:$0xff]
    %v8600 = vld [vmem:[%s109 + $0x68] sm:$0xff]
    %v8601 = vld [vmem:[%s109 + $0x70] sm:$0xff]
    %v8602 = vld [vmem:[%s109 + $0x78] sm:$0xff]
    %v8603 = vld [vmem:[%s109 + $0x80] sm:$0xff]
    %v8604 = vld [vmem:[%s109 + $0x88] sm:$0xff]
    %v8605 = vld [vmem:[%s109 + $0x90] sm:$0xff]
    %v8606 = vld [vmem:[%s109 + $0x98] sm:$0xff]
    %v8607 = vld [vmem:[%s109 + $0xa0] sm:$0xff]
    %v8608 = vld [vmem:[%s109 + $0xa8] sm:$0xff]
    %v8609 = vld [vmem:[%s109 + $0xb0] sm:$0xff]
    %v8610 = vld [vmem:[%s109 + $0xb8] sm:$0xff]
    %v8611 = vld [vmem:[%s109 + $0xc0] sm:$0xff]
    %v8612 = vld [vmem:[%s109 + $0xc8] sm:$0xff]
    %v8613 = vld [vmem:[%s109 + $0xd0] sm:$0xff]
    %v8614 = vld [vmem:[%s109 + $0xd8] sm:$0xff]
    %v8615 = vld [vmem:[%s109 + $0xe0] sm:$0xff]
    %v8616 = vld [vmem:[%s109 + $0xe8] sm:$0xff]
    %v8617 = vld [vmem:[%s109 + $0xf0] sm:$0xff]
    %v8618 = vld [vmem:[%s109 + $0xf8] sm:$0xff]
    %8619 = vmatprep.subr.mxu0 0.0
    %8620 = vmatpush1.msra.mxu0 %v8587
    %8621 = vmatprep.subr.mxu0 0.0
    %8622 = vmatpush1.msra.mxu0 %v8588
    %8623 = vmatprep.subr.mxu0 0.0
    %8624 = vmatpush1.msra.mxu0 %v8589
    %8625 = vmatprep.subr.mxu0 0.0
    %8626 = vmatpush1.msra.mxu0 %v8590
    %8627 = vmatprep.subr.mxu0 0.0
    %8628 = vmatpush1.msra.mxu0 %v8591
    %8629 = vmatprep.subr.mxu0 0.0
    %8630 = vmatpush1.msra.mxu0 %v8592
    %8631 = vmatprep.subr.mxu0 0.0
    %8632 = vmatpush1.msra.mxu0 %v8593
    %8633 = vmatprep.subr.mxu0 0.0
    %8634 = vmatpush1.msra.mxu0 %v8594
    %8635 = vmatprep.subr.mxu0 0.0
    %8636 = vmatpush1.msra.mxu0 %v8595
    %8637 = vmatprep.subr.mxu0 0.0
    %8638 = vmatpush1.msra.mxu0 %v8596
    %8639 = vmatprep.subr.mxu0 0.0
    %8640 = vmatpush1.msra.mxu0 %v8597
    %8641 = vmatprep.subr.mxu0 0.0
    %8642 = vmatpush1.msra.mxu0 %v8598
    %8643 = vmatprep.subr.mxu0 0.0
    %8644 = vmatpush1.msra.mxu0 %v8599
    %8645 = vmatprep.subr.mxu0 0.0
    %8646 = vmatpush1.msra.mxu0 %v8600
    %8647 = vmatprep.subr.mxu0 0.0
    %8648 = vmatpush1.msra.mxu0 %v8601
    %8649 = vmatprep.subr.mxu0 0.0
    %8650 = vmatpush1.msra.mxu0 %v8602
    %8651 = vmatprep.subr.mxu0 0.0
    %8652 = vmatpush1.msra.mxu0 %v8603
    %8653 = vmatprep.subr.mxu0 0.0
    %8654 = vmatpush1.msra.mxu0 %v8604
    %8655 = vmatprep.subr.mxu0 0.0
    %8656 = vmatpush1.msra.mxu0 %v8605
    %8657 = vmatprep.subr.mxu0 0.0
    %8658 = vmatpush1.msra.mxu0 %v8606
    %8659 = vmatprep.subr.mxu0 0.0
    %8660 = vmatpush1.msra.mxu0 %v8607
    %8661 = vmatprep.subr.mxu0 0.0
    %8662 = vmatpush1.msra.mxu0 %v8608
    %8663 = vmatprep.subr.mxu0 0.0
    %8664 = vmatpush1.msra.mxu0 %v8609
    %8665 = vmatprep.subr.mxu0 0.0
    %8666 = vmatpush1.msra.mxu0 %v8610
    %8667 = vmatprep.subr.mxu0 0.0
    %8668 = vmatpush1.msra.mxu0 %v8611
    %8669 = vmatprep.subr.mxu0 0.0
    %8670 = vmatpush1.msra.mxu0 %v8612
    %8671 = vmatprep.subr.mxu0 0.0
    %8672 = vmatpush1.msra.mxu0 %v8613
    %8673 = vmatprep.subr.mxu0 0.0
    %8674 = vmatpush1.msra.mxu0 %v8614
    %8675 = vmatprep.subr.mxu0 0.0
    %8676 = vmatpush1.msra.mxu0 %v8615
    %8677 = vmatprep.subr.mxu0 0.0
    %8678 = vmatpush1.msra.mxu0 %v8616
    %8679 = vmatprep.subr.mxu0 0.0
    %8680 = vmatpush1.msra.mxu0 %v8617
    %8681 = vmatprep.subr.mxu0 0.0
    %8682 = vmatpush1.msra.mxu0 %v8618
    %8683 = vmatprep.mubr.f32.mxu0 %v8564
    %8684 = vmatmul.mubr.f32.gmra.mrb[0].mxu0 %v8563
    %v8685 = vpop.f32.mrb[0].mxu0
    %v8686 = vadd.f32 0.0, %v8685
    %v8687 = vpop.f32.mrb[0].mxu0
    %8688 = vmatprep.mubr.f32.mxu0 %v8566
    %8689 = vmatmul.mubr.f32.gmra.mrb[0].mxu0 %v8565
    %v8690 = vpop.f32.mrb[0].mxu0
    %v8691 = vadd.f32 0.0, %v8690
    %v8692 = vpop.f32.mrb[0].mxu0
    %8693 = vmatprep.mubr.f32.mxu0 %v8568
    %8694 = vmatmul.mubr.f32.gmra.mrb[0].mxu0 %v8567
    %v8695 = vpop.f32.mrb[0].mxu0
    %v8696 = vadd.f32 0.0, %v8695
    %v8697 = vpop.f32.mrb[0].mxu0
    %8698 = vmatprep.mubr.f32.mxu0 %v8570
    %8699 = vmatmul.mubr.f32.gmra.mrb[0].mxu0 %v8569
    %v8700 = vpop.f32.mrb[0].mxu0
    %v8701 = vadd.f32 0.0, %v8700
    %v8702 = vpop.f32.mrb[0].mxu0
    %8703 = vmatprep.mubr.f32.mxu0 %v8572
    %8704 = vmatmul.mubr.f32.gmra.mrb[0].mxu0 %v8571
    %v8705 = vpop.f32.mrb[0].mxu0
    %v8706 = vadd.f32 0.0, %v8705
    %v8707 = vpop.f32.mrb[0].mxu0
    %8708 = vmatprep.mubr.f32.mxu0 %v8574
    %8709 = vmatmul.mubr.f32.gmra.mrb[0].mxu0 %v8573
    %v8710 = vpop.f32.mrb[0].mxu0
    %v8711 = vadd.f32 0.0, %v8710
    %v8712 = vpop.f32.mrb[0].mxu0
    %8713 = vmatprep.mubr.f32.mxu0 %v8576
    %8714 = vmatmul.mubr.f32.gmra.mrb[0].mxu0 %v8575
    %v8715 = vpop.f32.mrb[0].mxu0
    %v8716 = vadd.f32 0.0, %v8715
    %v8717 = vpop.f32.mrb[0].mxu0
    %8718 = vmatprep.mubr.f32.mxu0 %v8578
    %8719 = vmatmul.mubr.f32.gmra.mrb[0].mxu0 %v8577
    %v8720 = vpop.f32.mrb[0].mxu0
    %v8721 = vadd.f32 0.0, %v8720
    %v8722 = vpop.f32.mrb[0].mxu0
    %8723 = vdwg.mxu0
    %s8724 = scalar_lea.vmem [#allocation50], 64
    %v8725 = vld [vmem:[%s8724] sm:$0xff]
    %v8726 = vld [vmem:[%s8724 + $0x8] sm:$0xff]
    %v8727 = vld [vmem:[%s8724 + $0x10] sm:$0xff]
    %v8728 = vld [vmem:[%s8724 + $0x18] sm:$0xff]
    %v8729 = vld [vmem:[%s8724 + $0x20] sm:$0xff]
    %v8730 = vld [vmem:[%s8724 + $0x28] sm:$0xff]
    %v8731 = vld [vmem:[%s8724 + $0x30] sm:$0xff]
    %v8732 = vld [vmem:[%s8724 + $0x38] sm:$0xff]
    %s8733 = scalar_lea.vmem %s109, 256
    %v8734 = vld [vmem:[%s8733] sm:$0xff]
    %v8735 = vld [vmem:[%s8733 + $0x8] sm:$0xff]
    %v8736 = vld [vmem:[%s8733 + $0x10] sm:$0xff]
    %v8737 = vld [vmem:[%s8733 + $0x18] sm:$0xff]
    %v8738 = vld [vmem:[%s8733 + $0x20] sm:$0xff]
    %v8739 = vld [vmem:[%s8733 + $0x28] sm:$0xff]
    %v8740 = vld [vmem:[%s8733 + $0x30] sm:$0xff]
    %v8741 = vld [vmem:[%s8733 + $0x38] sm:$0xff]
    %v8742 = vld [vmem:[%s8733 + $0x40] sm:$0xff]
    %v8743 = vld [vmem:[%s8733 + $0x48] sm:$0xff]
    %v8744 = vld [vmem:[%s8733 + $0x50] sm:$0xff]
    %v8745 = vld [vmem:[%s8733 + $0x58] sm:$0xff]
    %v8746 = vld [vmem:[%s8733 + $0x60] sm:$0xff]
    %v8747 = vld [vmem:[%s8733 + $0x68] sm:$0xff]
    %v8748 = vld [vmem:[%s8733 + $0x70] sm:$0xff]
    %v8749 = vld [vmem:[%s8733 + $0x78] sm:$0xff]
    %v8750 = vld [vmem:[%s8733 + $0x80] sm:$0xff]
    %v8751 = vld [vmem:[%s8733 + $0x88] sm:$0xff]
    %v8752 = vld [vmem:[%s8733 + $0x90] sm:$0xff]
    %v8753 = vld [vmem:[%s8733 + $0x98] sm:$0xff]
    %v8754 = vld [vmem:[%s8733 + $0xa0] sm:$0xff]
    %v8755 = vld [vmem:[%s8733 + $0xa8] sm:$0xff]
    %v8756 = vld [vmem:[%s8733 + $0xb0] sm:$0xff]
    %v8757 = vld [vmem:[%s8733 + $0xb8] sm:$0xff]
    %v8758 = vld [vmem:[%s8733 + $0xc0] sm:$0xff]
    %v8759 = vld [vmem:[%s8733 + $0xc8] sm:$0xff]
    %v8760 = vld [vmem:[%s8733 + $0xd0] sm:$0xff]
    %v8761 = vld [vmem:[%s8733 + $0xd8] sm:$0xff]
    %v8762 = vld [vmem:[%s8733 + $0xe0] sm:$0xff]
    %v8763 = vld [vmem:[%s8733 + $0xe8] sm:$0xff]
    %v8764 = vld [vmem:[%s8733 + $0xf0] sm:$0xff]
    %v8765 = vld [vmem:[%s8733 + $0xf8] sm:$0xff]
    %8766 = vmatprep.subr.mxu0 0.0
    %8767 = vmatpush1.msra.mxu0 %v8734
    %8768 = vmatprep.subr.mxu0 0.0
    %8769 = vmatpush1.msra.mxu0 %v8735
    %8770 = vmatprep.subr.mxu0 0.0
    %8771 = vmatpush1.msra.mxu0 %v8736
    %8772 = vmatprep.subr.mxu0 0.0
    %8773 = vmatpush1.msra.mxu0 %v8737
    %8774 = vmatprep.subr.mxu0 0.0
    %8775 = vmatpush1.msra.mxu0 %v8738
    %8776 = vmatprep.subr.mxu0 0.0
    %8777 = vmatpush1.msra.mxu0 %v8739
    %8778 = vmatprep.subr.mxu0 0.0
    %8779 = vmatpush1.msra.mxu0 %v8740
    %8780 = vmatprep.subr.mxu0 0.0
    %8781 = vmatpush1.msra.mxu0 %v8741
    %8782 = vmatprep.subr.mxu0 0.0
    %8783 = vmatpush1.msra.mxu0 %v8742
    %8784 = vmatprep.subr.mxu0 0.0
    %8785 = vmatpush1.msra.mxu0 %v8743
    %8786 = vmatprep.subr.mxu0 0.0
    %8787 = vmatpush1.msra.mxu0 %v8744
    %8788 = vmatprep.subr.mxu0 0.0
    %8789 = vmatpush1.msra.mxu0 %v8745
    %8790 = vmatprep.subr.mxu0 0.0
    %8791 = vmatpush1.msra.mxu0 %v8746
    %8792 = vmatprep.subr.mxu0 0.0
    %8793 = vmatpush1.msra.mxu0 %v8747
    %8794 = vmatprep.subr.mxu0 0.0
    %8795 = vmatpush1.msra.mxu0 %v8748
    %8796 = vmatprep.subr.mxu0 0.0
    %8797 = vmatpush1.msra.mxu0 %v8749
    %8798 = vmatprep.subr.mxu0 0.0
    %8799 = vmatpush1.msra.mxu0 %v8750
    %8800 = vmatprep.subr.mxu0 0.0
    %8801 = vmatpush1.msra.mxu0 %v8751
    %8802 = vmatprep.subr.mxu0 0.0
    %8803 = vmatpush1.msra.mxu0 %v8752
    %8804 = vmatprep.subr.mxu0 0.0
    %8805 = vmatpush1.msra.mxu0 %v8753
    %8806 = vmatprep.subr.mxu0 0.0
    %8807 = vmatpush1.msra.mxu0 %v8754
    %8808 = vmatprep.subr.mxu0 0.0
    %8809 = vmatpush1.msra.mxu0 %v8755
    %8810 = vmatprep.subr.mxu0 0.0
    %8811 = vmatpush1.msra.mxu0 %v8756
    %8812 = vmatprep.subr.mxu0 0.0
    %8813 = vmatpush1.msra.mxu0 %v8757
    %8814 = vmatprep.subr.mxu0 0.0
    %8815 = vmatpush1.msra.mxu0 %v8758
    %8816 = vmatprep.subr.mxu0 0.0
    %8817 = vmatpush1.msra.mxu0 %v8759
    %8818 = vmatprep.subr.mxu0 0.0
    %8819 = vmatpush1.msra.mxu0 %v8760
    %8820 = vmatprep.subr.mxu0 0.0
    %8821 = vmatpush1.msra.mxu0 %v8761
    %8822 = vmatprep.subr.mxu0 0.0
    %8823 = vmatpush1.msra.mxu0 %v8762
    %8824 = vmatprep.subr.mxu0 0.0
    %8825 = vmatpush1.msra.mxu0 %v8763
    %8826 = vmatprep.subr.mxu0 0.0
    %8827 = vmatpush1.msra.mxu0 %v8764
    %8828 = vmatprep.subr.mxu0 0.0
    %8829 = vmatpush1.msra.mxu0 %v8765
    %8830 = vmatprep.mubr.f32.mxu0 %v8564
    %8831 = vmatmul.mubr.f32.gmra.mrb[0].mxu0 %v8563
    %v8832 = vpop.f32.mrb[0].mxu0
    %v8833 = vadd.f32 0.0, %v8832
    %v8834 = vpop.f32.mrb[0].mxu0
    %8835 = vmatprep.mubr.f32.mxu0 %v8566
    %8836 = vmatmul.mubr.f32.gmra.mrb[0].mxu0 %v8565
    %v8837 = vpop.f32.mrb[0].mxu0
    %v8838 = vadd.f32 0.0, %v8837
    %v8839 = vpop.f32.mrb[0].mxu0
    %8840 = vmatprep.mubr.f32.mxu0 %v8568
    %8841 = vmatmul.mubr.f32.gmra.mrb[0].mxu0 %v8567
    %v8842 = vpop.f32.mrb[0].mxu0
    %v8843 = vadd.f32 0.0, %v8842
    %v8844 = vpop.f32.mrb[0].mxu0
    %8845 = vmatprep.mubr.f32.mxu0 %v8570
    %8846 = vmatmul.mubr.f32.gmra.mrb[0].mxu0 %v8569
    %v8847 = vpop.f32.mrb[0].mxu0
    %v8848 = vadd.f32 0.0, %v8847
    %v8849 = vpop.f32.mrb[0].mxu0
    %8850 = vmatprep.mubr.f32.mxu0 %v8572
    %8851 = vmatmul.mubr.f32.gmra.mrb[0].mxu0 %v8571
    %v8852 = vpop.f32.mrb[0].mxu0
    %v8853 = vadd.f32 0.0, %v8852
    %v8854 = vpop.f32.mrb[0].mxu0
    %8855 = vmatprep.mubr.f32.mxu0 %v8574
    %8856 = vmatmul.mubr.f32.gmra.mrb[0].mxu0 %v8573
    %v8857 = vpop.f32.mrb[0].mxu0
    %v8858 = vadd.f32 0.0, %v8857
    %v8859 = vpop.f32.mrb[0].mxu0
    %8860 = vmatprep.mubr.f32.mxu0 %v8576
    %8861 = vmatmul.mubr.f32.gmra.mrb[0].mxu0 %v8575
    %v8862 = vpop.f32.mrb[0].mxu0
    %v8863 = vadd.f32 0.0, %v8862
    %v8864 = vpop.f32.mrb[0].mxu0
    %8865 = vmatprep.mubr.f32.mxu0 %v8578
    %8866 = vmatmul.mubr.f32.gmra.mrb[0].mxu0 %v8577
    %v8867 = vpop.f32.mrb[0].mxu0
    %v8868 = vadd.f32 0.0, %v8867
    %v8869 = vpop.f32.mrb[0].mxu0
    %8870 = vdwg.mxu0
    %v8872 = vsel %vm2068, %v8725, 0
    %v8875 = vsel %vm2068, %v8726, 0
    %v8878 = vsel %vm2068, %v8727, 0
    %v8881 = vsel %vm2068, %v8728, 0
    %v8884 = vsel %vm2068, %v8729, 0
    %v8887 = vsel %vm2068, %v8730, 0
    %v8890 = vsel %vm2068, %v8731, 0
    %v8893 = vsel %vm2068, %v8732, 0
    %8895 = vmatprep.subr.mxu0 0.0
    %8896 = vmatpush1.msra.mxu0 %v8833
    %8897 = vmatprep.subr.mxu0 0.0
    %8898 = vmatpush1.msra.mxu0 %v8838
    %8899 = vmatprep.subr.mxu0 0.0
    %8900 = vmatpush1.msra.mxu0 %v8843
    %8901 = vmatprep.subr.mxu0 0.0
    %8902 = vmatpush1.msra.mxu0 %v8848
    %8903 = vmatprep.subr.mxu0 0.0
    %8904 = vmatpush1.msra.mxu0 %v8853
    %8905 = vmatprep.subr.mxu0 0.0
    %8906 = vmatpush1.msra.mxu0 %v8858
    %8907 = vmatprep.subr.mxu0 0.0
    %8908 = vmatpush1.msra.mxu0 %v8863
    %8909 = vmatprep.subr.mxu0 0.0
    %8910 = vmatpush1.msra.mxu0 %v8868
    %8911 = vmatprep.subr.mxu0 0.0
    %8912 = vmatpush1.msra.mxu0 0.0
    %8913 = vmatprep.subr.mxu0 0.0
    %8914 = vmatpush1.msra.mxu0 0.0
    %8915 = vmatprep.subr.mxu0 0.0
    %8916 = vmatpush1.msra.mxu0 0.0
    %8917 = vmatprep.subr.mxu0 0.0
    %8918 = vmatpush1.msra.mxu0 0.0
    %8919 = vmatprep.subr.mxu0 0.0
    %8920 = vmatpush1.msra.mxu0 0.0
    %8921 = vmatprep.subr.mxu0 0.0
    %8922 = vmatpush1.msra.mxu0 0.0
    %8923 = vmatprep.subr.mxu0 0.0
    %8924 = vmatpush1.msra.mxu0 0.0
    %8925 = vmatprep.subr.mxu0 0.0
    %8926 = vmatpush1.msra.mxu0 0.0
    %8927 = vmatprep.subr.mxu0 0.0
    %8928 = vmatpush1.msra.mxu0 0.0
    %8929 = vmatprep.subr.mxu0 0.0
    %8930 = vmatpush1.msra.mxu0 0.0
    %8931 = vmatprep.subr.mxu0 0.0
    %8932 = vmatpush1.msra.mxu0 0.0
    %8933 = vmatprep.subr.mxu0 0.0
    %8934 = vmatpush1.msra.mxu0 0.0
    %8935 = vmatprep.subr.mxu0 0.0
    %8936 = vmatpush1.msra.mxu0 0.0
    %8937 = vmatprep.subr.mxu0 0.0
    %8938 = vmatpush1.msra.mxu0 0.0
    %8939 = vmatprep.subr.mxu0 0.0
    %8940 = vmatpush1.msra.mxu0 0.0
    %8941 = vmatprep.subr.mxu0 0.0
    %8942 = vmatpush1.msra.mxu0 0.0
    %8943 = vmatprep.subr.mxu0 0.0
    %8944 = vmatpush1.msra.mxu0 0.0
    %8945 = vmatprep.subr.mxu0 0.0
    %8946 = vmatpush1.msra.mxu0 0.0
    %8947 = vmatprep.subr.mxu0 0.0
    %8948 = vmatpush1.msra.mxu0 0.0
    %8949 = vmatprep.subr.mxu0 0.0
    %8950 = vmatpush1.msra.mxu0 0.0
    %8951 = vmatprep.subr.mxu0 0.0
    %8952 = vmatpush1.msra.mxu0 0.0
    %8953 = vmatprep.subr.mxu0 0.0
    %8954 = vmatpush1.msra.mxu0 0.0
    %8955 = vmatprep.subr.mxu0 0.0
    %8956 = vmatpush1.msra.mxu0 0.0
    %8957 = vmatprep.subr.mxu0 0.0
    %8958 = vmatpush1.msra.mxu0 0.0
    %8959 = vmatprep.mubr.f32.mxu0 0.0
    %8960 = vmatmul.mubr.f32.gmra.mrb[0].mxu0 %v8872
    %v8961 = vpop.f32.mrb[0].mxu0
    %v8962 = vadd.f32 0.0, %v8961
    %v8963 = vpop.f32.mrb[0].mxu0
    %8964 = vmatprep.mubr.f32.mxu0 0.0
    %8965 = vmatmul.mubr.f32.gmra.mrb[0].mxu0 %v8875
    %v8966 = vpop.f32.mrb[0].mxu0
    %v8967 = vadd.f32 0.0, %v8966
    %v8968 = vpop.f32.mrb[0].mxu0
    %8969 = vmatprep.mubr.f32.mxu0 0.0
    %8970 = vmatmul.mubr.f32.gmra.mrb[0].mxu0 %v8878
    %v8971 = vpop.f32.mrb[0].mxu0
    %v8972 = vadd.f32 0.0, %v8971
    %v8973 = vpop.f32.mrb[0].mxu0
    %8974 = vmatprep.mubr.f32.mxu0 0.0
    %8975 = vmatmul.mubr.f32.gmra.mrb[0].mxu0 %v8881
    %v8976 = vpop.f32.mrb[0].mxu0
    %v8977 = vadd.f32 0.0, %v8976
    %v8978 = vpop.f32.mrb[0].mxu0
    %8979 = vmatprep.mubr.f32.mxu0 0.0
    %8980 = vmatmul.mubr.f32.gmra.mrb[0].mxu0 %v8884
    %v8981 = vpop.f32.mrb[0].mxu0
    %v8982 = vadd.f32 0.0, %v8981
    %v8983 = vpop.f32.mrb[0].mxu0
    %8984 = vmatprep.mubr.f32.mxu0 0.0
    %8985 = vmatmul.mubr.f32.gmra.mrb[0].mxu0 %v8887
    %v8986 = vpop.f32.mrb[0].mxu0
    %v8987 = vadd.f32 0.0, %v8986
    %v8988 = vpop.f32.mrb[0].mxu0
    %8989 = vmatprep.mubr.f32.mxu0 0.0
    %8990 = vmatmul.mubr.f32.gmra.mrb[0].mxu0 %v8890
    %v8991 = vpop.f32.mrb[0].mxu0
    %v8992 = vadd.f32 0.0, %v8991
    %v8993 = vpop.f32.mrb[0].mxu0
    %8994 = vmatprep.mubr.f32.mxu0 0.0
    %8995 = vmatmul.mubr.f32.gmra.mrb[0].mxu0 %v8893
    %v8996 = vpop.f32.mrb[0].mxu0
    %v8997 = vadd.f32 0.0, %v8996
    %v8998 = vpop.f32.mrb[0].mxu0
    %8999 = vdwg.mxu0
    %v9001 = vsel %vm2068, %v8579, 0
    %v9004 = vsel %vm2068, %v8580, 0
    %v9007 = vsel %vm2068, %v8581, 0
    %v9010 = vsel %vm2068, %v8582, 0
    %v9013 = vsel %vm2068, %v8583, 0
    %v9016 = vsel %vm2068, %v8584, 0
    %v9019 = vsel %vm2068, %v8585, 0
    %v9022 = vsel %vm2068, %v8586, 0
    %9024 = vmatprep.subr.mxu0 0.0
    %9025 = vmatpush1.msra.mxu0 %v8686
    %9026 = vmatprep.subr.mxu0 0.0
    %9027 = vmatpush1.msra.mxu0 %v8691
    %9028 = vmatprep.subr.mxu0 0.0
    %9029 = vmatpush1.msra.mxu0 %v8696
    %9030 = vmatprep.subr.mxu0 0.0
    %9031 = vmatpush1.msra.mxu0 %v8701
    %9032 = vmatprep.subr.mxu0 0.0
    %9033 = vmatpush1.msra.mxu0 %v8706
    %9034 = vmatprep.subr.mxu0 0.0
    %9035 = vmatpush1.msra.mxu0 %v8711
    %9036 = vmatprep.subr.mxu0 0.0
    %9037 = vmatpush1.msra.mxu0 %v8716
    %9038 = vmatprep.subr.mxu0 0.0
    %9039 = vmatpush1.msra.mxu0 %v8721
    %9040 = vmatprep.subr.mxu0 0.0
    %9041 = vmatpush1.msra.mxu0 0.0
    %9042 = vmatprep.subr.mxu0 0.0
    %9043 = vmatpush1.msra.mxu0 0.0
    %9044 = vmatprep.subr.mxu0 0.0
    %9045 = vmatpush1.msra.mxu0 0.0
    %9046 = vmatprep.subr.mxu0 0.0
    %9047 = vmatpush1.msra.mxu0 0.0
    %9048 = vmatprep.subr.mxu0 0.0
    %9049 = vmatpush1.msra.mxu0 0.0
    %9050 = vmatprep.subr.mxu0 0.0
    %9051 = vmatpush1.msra.mxu0 0.0
    %9052 = vmatprep.subr.mxu0 0.0
    %9053 = vmatpush1.msra.mxu0 0.0
    %9054 = vmatprep.subr.mxu0 0.0
    %9055 = vmatpush1.msra.mxu0 0.0
    %9056 = vmatprep.subr.mxu0 0.0
    %9057 = vmatpush1.msra.mxu0 0.0
    %9058 = vmatprep.subr.mxu0 0.0
    %9059 = vmatpush1.msra.mxu0 0.0
    %9060 = vmatprep.subr.mxu0 0.0
    %9061 = vmatpush1.msra.mxu0 0.0
    %9062 = vmatprep.subr.mxu0 0.0
    %9063 = vmatpush1.msra.mxu0 0.0
    %9064 = vmatprep.subr.mxu0 0.0
    %9065 = vmatpush1.msra.mxu0 0.0
    %9066 = vmatprep.subr.mxu0 0.0
    %9067 = vmatpush1.msra.mxu0 0.0
    %9068 = vmatprep.subr.mxu0 0.0
    %9069 = vmatpush1.msra.mxu0 0.0
    %9070 = vmatprep.subr.mxu0 0.0
    %9071 = vmatpush1.msra.mxu0 0.0
    %9072 = vmatprep.subr.mxu0 0.0
    %9073 = vmatpush1.msra.mxu0 0.0
    %9074 = vmatprep.subr.mxu0 0.0
    %9075 = vmatpush1.msra.mxu0 0.0
    %9076 = vmatprep.subr.mxu0 0.0
    %9077 = vmatpush1.msra.mxu0 0.0
    %9078 = vmatprep.subr.mxu0 0.0
    %9079 = vmatpush1.msra.mxu0 0.0
    %9080 = vmatprep.subr.mxu0 0.0
    %9081 = vmatpush1.msra.mxu0 0.0
    %9082 = vmatprep.subr.mxu0 0.0
    %9083 = vmatpush1.msra.mxu0 0.0
    %9084 = vmatprep.subr.mxu0 0.0
    %9085 = vmatpush1.msra.mxu0 0.0
    %9086 = vmatprep.subr.mxu0 0.0
    %9087 = vmatpush1.msra.mxu0 0.0
    %9088 = vmatprep.mubr.f32.mxu0 0.0
    %9089 = vmatmul.mubr.f32.gmra.mrb[0].mxu0 %v9001
    %v9090 = vpop.f32.mrb[0].mxu0
    %v9091 = vadd.f32 %v8962, %v9090
    %v9092 = vpop.f32.mrb[0].mxu0
    %9093 = vmatprep.mubr.f32.mxu0 0.0
    %9094 = vmatmul.mubr.f32.gmra.mrb[0].mxu0 %v9004
    %v9095 = vpop.f32.mrb[0].mxu0
    %v9096 = vadd.f32 %v8967, %v9095
    %v9097 = vpop.f32.mrb[0].mxu0
    %9098 = vmatprep.mubr.f32.mxu0 0.0
    %9099 = vmatmul.mubr.f32.gmra.mrb[0].mxu0 %v9007
    %v9100 = vpop.f32.mrb[0].mxu0
    %v9101 = vadd.f32 %v8972, %v9100
    %v9102 = vpop.f32.mrb[0].mxu0
    %9103 = vmatprep.mubr.f32.mxu0 0.0
    %9104 = vmatmul.mubr.f32.gmra.mrb[0].mxu0 %v9010
    %v9105 = vpop.f32.mrb[0].mxu0
    %v9106 = vadd.f32 %v8977, %v9105
    %v9107 = vpop.f32.mrb[0].mxu0
    %9108 = vmatprep.mubr.f32.mxu0 0.0
    %9109 = vmatmul.mubr.f32.gmra.mrb[0].mxu0 %v9013
    %v9110 = vpop.f32.mrb[0].mxu0
    %v9111 = vadd.f32 %v8982, %v9110
    %v9112 = vpop.f32.mrb[0].mxu0
    %9113 = vmatprep.mubr.f32.mxu0 0.0
    %9114 = vmatmul.mubr.f32.gmra.mrb[0].mxu0 %v9016
    %v9115 = vpop.f32.mrb[0].mxu0
    %v9116 = vadd.f32 %v8987, %v9115
    %v9117 = vpop.f32.mrb[0].mxu0
    %9118 = vmatprep.mubr.f32.mxu0 0.0
    %9119 = vmatmul.mubr.f32.gmra.mrb[0].mxu0 %v9019
    %v9120 = vpop.f32.mrb[0].mxu0
    %v9121 = vadd.f32 %v8992, %v9120
    %v9122 = vpop.f32.mrb[0].mxu0
    %9123 = vmatprep.mubr.f32.mxu0 0.0
    %9124 = vmatmul.mubr.f32.gmra.mrb[0].mxu0 %v9022
    %v9125 = vpop.f32.mrb[0].mxu0
    %v9126 = vadd.f32 %v8997, %v9125
    %v9127 = vpop.f32.mrb[0].mxu0
    %9128 = vdwg.mxu0
    %s9129 = scalar_lea.vmem [#allocation50], 128
    %v9130 = vld [vmem:[%s9129] sm:$0xff]
    %v9131 = vld [vmem:[%s9129 + $0x8] sm:$0xff]
    %v9132 = vld [vmem:[%s9129 + $0x10] sm:$0xff]
    %v9133 = vld [vmem:[%s9129 + $0x18] sm:$0xff]
    %v9134 = vld [vmem:[%s9129 + $0x20] sm:$0xff]
    %v9135 = vld [vmem:[%s9129 + $0x28] sm:$0xff]
    %v9136 = vld [vmem:[%s9129 + $0x30] sm:$0xff]
    %v9137 = vld [vmem:[%s9129 + $0x38] sm:$0xff]
    %s9138 = scalar_lea.vmem %s109, 512
    %v9139 = vld [vmem:[%s9138] sm:$0xff]
    %v9140 = vld [vmem:[%s9138 + $0x8] sm:$0xff]
    %v9141 = vld [vmem:[%s9138 + $0x10] sm:$0xff]
    %v9142 = vld [vmem:[%s9138 + $0x18] sm:$0xff]
    %v9143 = vld [vmem:[%s9138 + $0x20] sm:$0xff]
    %v9144 = vld [vmem:[%s9138 + $0x28] sm:$0xff]
    %v9145 = vld [vmem:[%s9138 + $0x30] sm:$0xff]
    %v9146 = vld [vmem:[%s9138 + $0x38] sm:$0xff]
    %v9147 = vld [vmem:[%s9138 + $0x40] sm:$0xff]
    %v9148 = vld [vmem:[%s9138 + $0x48] sm:$0xff]
    %v9149 = vld [vmem:[%s9138 + $0x50] sm:$0xff]
    %v9150 = vld [vmem:[%s9138 + $0x58] sm:$0xff]
    %v9151 = vld [vmem:[%s9138 + $0x60] sm:$0xff]
    %v9152 = vld [vmem:[%s9138 + $0x68] sm:$0xff]
    %v9153 = vld [vmem:[%s9138 + $0x70] sm:$0xff]
    %v9154 = vld [vmem:[%s9138 + $0x78] sm:$0xff]
    %v9155 = vld [vmem:[%s9138 + $0x80] sm:$0xff]
    %v9156 = vld [vmem:[%s9138 + $0x88] sm:$0xff]
    %v9157 = vld [vmem:[%s9138 + $0x90] sm:$0xff]
    %v9158 = vld [vmem:[%s9138 + $0x98] sm:$0xff]
    %v9159 = vld [vmem:[%s9138 + $0xa0] sm:$0xff]
    %v9160 = vld [vmem:[%s9138 + $0xa8] sm:$0xff]
    %v9161 = vld [vmem:[%s9138 + $0xb0] sm:$0xff]
    %v9162 = vld [vmem:[%s9138 + $0xb8] sm:$0xff]
    %v9163 = vld [vmem:[%s9138 + $0xc0] sm:$0xff]
    %v9164 = vld [vmem:[%s9138 + $0xc8] sm:$0xff]
    %v9165 = vld [vmem:[%s9138 + $0xd0] sm:$0xff]
    %v9166 = vld [vmem:[%s9138 + $0xd8] sm:$0xff]
    %v9167 = vld [vmem:[%s9138 + $0xe0] sm:$0xff]
    %v9168 = vld [vmem:[%s9138 + $0xe8] sm:$0xff]
    %v9169 = vld [vmem:[%s9138 + $0xf0] sm:$0xff]
    %v9170 = vld [vmem:[%s9138 + $0xf8] sm:$0xff]
    %9171 = vmatprep.subr.mxu0 0.0
    %9172 = vmatpush1.msra.mxu0 %v9139
    %9173 = vmatprep.subr.mxu0 0.0
    %9174 = vmatpush1.msra.mxu0 %v9140
    %9175 = vmatprep.subr.mxu0 0.0
    %9176 = vmatpush1.msra.mxu0 %v9141
    %9177 = vmatprep.subr.mxu0 0.0
    %9178 = vmatpush1.msra.mxu0 %v9142
    %9179 = vmatprep.subr.mxu0 0.0
    %9180 = vmatpush1.msra.mxu0 %v9143
    %9181 = vmatprep.subr.mxu0 0.0
    %9182 = vmatpush1.msra.mxu0 %v9144
    %9183 = vmatprep.subr.mxu0 0.0
    %9184 = vmatpush1.msra.mxu0 %v9145
    %9185 = vmatprep.subr.mxu0 0.0
    %9186 = vmatpush1.msra.mxu0 %v9146
    %9187 = vmatprep.subr.mxu0 0.0
    %9188 = vmatpush1.msra.mxu0 %v9147
    %9189 = vmatprep.subr.mxu0 0.0
    %9190 = vmatpush1.msra.mxu0 %v9148
    %9191 = vmatprep.subr.mxu0 0.0
    %9192 = vmatpush1.msra.mxu0 %v9149
    %9193 = vmatprep.subr.mxu0 0.0
    %9194 = vmatpush1.msra.mxu0 %v9150
    %9195 = vmatprep.subr.mxu0 0.0
    %9196 = vmatpush1.msra.mxu0 %v9151
    %9197 = vmatprep.subr.mxu0 0.0
    %9198 = vmatpush1.msra.mxu0 %v9152
    %9199 = vmatprep.subr.mxu0 0.0
    %9200 = vmatpush1.msra.mxu0 %v9153
    %9201 = vmatprep.subr.mxu0 0.0
    %9202 = vmatpush1.msra.mxu0 %v9154
    %9203 = vmatprep.subr.mxu0 0.0
    %9204 = vmatpush1.msra.mxu0 %v9155
    %9205 = vmatprep.subr.mxu0 0.0
    %9206 = vmatpush1.msra.mxu0 %v9156
    %9207 = vmatprep.subr.mxu0 0.0
    %9208 = vmatpush1.msra.mxu0 %v9157
    %9209 = vmatprep.subr.mxu0 0.0
    %9210 = vmatpush1.msra.mxu0 %v9158
    %9211 = vmatprep.subr.mxu0 0.0
    %9212 = vmatpush1.msra.mxu0 %v9159
    %9213 = vmatprep.subr.mxu0 0.0
    %9214 = vmatpush1.msra.mxu0 %v9160
    %9215 = vmatprep.subr.mxu0 0.0
    %9216 = vmatpush1.msra.mxu0 %v9161
    %9217 = vmatprep.subr.mxu0 0.0
    %9218 = vmatpush1.msra.mxu0 %v9162
    %9219 = vmatprep.subr.mxu0 0.0
    %9220 = vmatpush1.msra.mxu0 %v9163
    %9221 = vmatprep.subr.mxu0 0.0
    %9222 = vmatpush1.msra.mxu0 %v9164
    %9223 = vmatprep.subr.mxu0 0.0
    %9224 = vmatpush1.msra.mxu0 %v9165
    %9225 = vmatprep.subr.mxu0 0.0
    %9226 = vmatpush1.msra.mxu0 %v9166
    %9227 = vmatprep.subr.mxu0 0.0
    %9228 = vmatpush1.msra.mxu0 %v9167
    %9229 = vmatprep.subr.mxu0 0.0
    %9230 = vmatpush1.msra.mxu0 %v9168
    %9231 = vmatprep.subr.mxu0 0.0
    %9232 = vmatpush1.msra.mxu0 %v9169
    %9233 = vmatprep.subr.mxu0 0.0
    %9234 = vmatpush1.msra.mxu0 %v9170
    %9235 = vmatprep.mubr.f32.mxu0 %v8564
    %9236 = vmatmul.mubr.f32.gmra.mrb[0].mxu0 %v8563
    %v9237 = vpop.f32.mrb[0].mxu0
    %v9238 = vadd.f32 0.0, %v9237
    %v9239 = vpop.f32.mrb[0].mxu0
    %9240 = vmatprep.mubr.f32.mxu0 %v8566
    %9241 = vmatmul.mubr.f32.gmra.mrb[0].mxu0 %v8565
    %v9242 = vpop.f32.mrb[0].mxu0
    %v9243 = vadd.f32 0.0, %v9242
    %v9244 = vpop.f32.mrb[0].mxu0
    %9245 = vmatprep.mubr.f32.mxu0 %v8568
    %9246 = vmatmul.mubr.f32.gmra.mrb[0].mxu0 %v8567
    %v9247 = vpop.f32.mrb[0].mxu0
    %v9248 = vadd.f32 0.0, %v9247
    %v9249 = vpop.f32.mrb[0].mxu0
    %9250 = vmatprep.mubr.f32.mxu0 %v8570
    %9251 = vmatmul.mubr.f32.gmra.mrb[0].mxu0 %v8569
    %v9252 = vpop.f32.mrb[0].mxu0
    %v9253 = vadd.f32 0.0, %v9252
    %v9254 = vpop.f32.mrb[0].mxu0
    %9255 = vmatprep.mubr.f32.mxu0 %v8572
    %9256 = vmatmul.mubr.f32.gmra.mrb[0].mxu0 %v8571
    %v9257 = vpop.f32.mrb[0].mxu0
    %v9258 = vadd.f32 0.0, %v9257
    %v9259 = vpop.f32.mrb[0].mxu0
    %9260 = vmatprep.mubr.f32.mxu0 %v8574
    %9261 = vmatmul.mubr.f32.gmra.mrb[0].mxu0 %v8573
    %v9262 = vpop.f32.mrb[0].mxu0
    %v9263 = vadd.f32 0.0, %v9262
    %v9264 = vpop.f32.mrb[0].mxu0
    %9265 = vmatprep.mubr.f32.mxu0 %v8576
    %9266 = vmatmul.mubr.f32.gmra.mrb[0].mxu0 %v8575
    %v9267 = vpop.f32.mrb[0].mxu0
    %v9268 = vadd.f32 0.0, %v9267
    %v9269 = vpop.f32.mrb[0].mxu0
    %9270 = vmatprep.mubr.f32.mxu0 %v8578
    %9271 = vmatmul.mubr.f32.gmra.mrb[0].mxu0 %v8577
    %v9272 = vpop.f32.mrb[0].mxu0
    %v9273 = vadd.f32 0.0, %v9272
    %v9274 = vpop.f32.mrb[0].mxu0
    %9275 = vdwg.mxu0
    %v9277 = vsel %vm2068, %v9130, 0
    %v9280 = vsel %vm2068, %v9131, 0
    %v9283 = vsel %vm2068, %v9132, 0
    %v9286 = vsel %vm2068, %v9133, 0
    %v9289 = vsel %vm2068, %v9134, 0
    %v9292 = vsel %vm2068, %v9135, 0
    %v9295 = vsel %vm2068, %v9136, 0
    %v9298 = vsel %vm2068, %v9137, 0
    %9300 = vmatprep.subr.mxu0 0.0
    %9301 = vmatpush1.msra.mxu0 %v9238
    %9302 = vmatprep.subr.mxu0 0.0
    %9303 = vmatpush1.msra.mxu0 %v9243
    %9304 = vmatprep.subr.mxu0 0.0
    %9305 = vmatpush1.msra.mxu0 %v9248
    %9306 = vmatprep.subr.mxu0 0.0
    %9307 = vmatpush1.msra.mxu0 %v9253
    %9308 = vmatprep.subr.mxu0 0.0
    %9309 = vmatpush1.msra.mxu0 %v9258
    %9310 = vmatprep.subr.mxu0 0.0
    %9311 = vmatpush1.msra.mxu0 %v9263
    %9312 = vmatprep.subr.mxu0 0.0
    %9313 = vmatpush1.msra.mxu0 %v9268
    %9314 = vmatprep.subr.mxu0 0.0
    %9315 = vmatpush1.msra.mxu0 %v9273
    %9316 = vmatprep.subr.mxu0 0.0
    %9317 = vmatpush1.msra.mxu0 0.0
    %9318 = vmatprep.subr.mxu0 0.0
    %9319 = vmatpush1.msra.mxu0 0.0
    %9320 = vmatprep.subr.mxu0 0.0
    %9321 = vmatpush1.msra.mxu0 0.0
    %9322 = vmatprep.subr.mxu0 0.0
    %9323 = vmatpush1.msra.mxu0 0.0
    %9324 = vmatprep.subr.mxu0 0.0
    %9325 = vmatpush1.msra.mxu0 0.0
    %9326 = vmatprep.subr.mxu0 0.0
    %9327 = vmatpush1.msra.mxu0 0.0
    %9328 = vmatprep.subr.mxu0 0.0
    %9329 = vmatpush1.msra.mxu0 0.0
    %9330 = vmatprep.subr.mxu0 0.0
    %9331 = vmatpush1.msra.mxu0 0.0
    %9332 = vmatprep.subr.mxu0 0.0
    %9333 = vmatpush1.msra.mxu0 0.0
    %9334 = vmatprep.subr.mxu0 0.0
    %9335 = vmatpush1.msra.mxu0 0.0
    %9336 = vmatprep.subr.mxu0 0.0
    %9337 = vmatpush1.msra.mxu0 0.0
    %9338 = vmatprep.subr.mxu0 0.0
    %9339 = vmatpush1.msra.mxu0 0.0
    %9340 = vmatprep.subr.mxu0 0.0
    %9341 = vmatpush1.msra.mxu0 0.0
    %9342 = vmatprep.subr.mxu0 0.0
    %9343 = vmatpush1.msra.mxu0 0.0
    %9344 = vmatprep.subr.mxu0 0.0
    %9345 = vmatpush1.msra.mxu0 0.0
    %9346 = vmatprep.subr.mxu0 0.0
    %9347 = vmatpush1.msra.mxu0 0.0
    %9348 = vmatprep.subr.mxu0 0.0
    %9349 = vmatpush1.msra.mxu0 0.0
    %9350 = vmatprep.subr.mxu0 0.0
    %9351 = vmatpush1.msra.mxu0 0.0
    %9352 = vmatprep.subr.mxu0 0.0
    %9353 = vmatpush1.msra.mxu0 0.0
    %9354 = vmatprep.subr.mxu0 0.0
    %9355 = vmatpush1.msra.mxu0 0.0
    %9356 = vmatprep.subr.mxu0 0.0
    %9357 = vmatpush1.msra.mxu0 0.0
    %9358 = vmatprep.subr.mxu0 0.0
    %9359 = vmatpush1.msra.mxu0 0.0
    %9360 = vmatprep.subr.mxu0 0.0
    %9361 = vmatpush1.msra.mxu0 0.0
    %9362 = vmatprep.subr.mxu0 0.0
    %9363 = vmatpush1.msra.mxu0 0.0
    %9364 = vmatprep.mubr.f32.mxu0 0.0
    %9365 = vmatmul.mubr.f32.gmra.mrb[0].mxu0 %v9277
    %v9366 = vpop.f32.mrb[0].mxu0
    %v9367 = vadd.f32 0.0, %v9366
    %v9368 = vpop.f32.mrb[0].mxu0
    %9369 = vmatprep.mubr.f32.mxu0 0.0
    %9370 = vmatmul.mubr.f32.gmra.mrb[0].mxu0 %v9280
    %v9371 = vpop.f32.mrb[0].mxu0
    %v9372 = vadd.f32 0.0, %v9371
    %v9373 = vpop.f32.mrb[0].mxu0
    %9374 = vmatprep.mubr.f32.mxu0 0.0
    %9375 = vmatmul.mubr.f32.gmra.mrb[0].mxu0 %v9283
    %v9376 = vpop.f32.mrb[0].mxu0
    %v9377 = vadd.f32 0.0, %v9376
    %v9378 = vpop.f32.mrb[0].mxu0
    %9379 = vmatprep.mubr.f32.mxu0 0.0
    %9380 = vmatmul.mubr.f32.gmra.mrb[0].mxu0 %v9286
    %v9381 = vpop.f32.mrb[0].mxu0
    %v9382 = vadd.f32 0.0, %v9381
    %v9383 = vpop.f32.mrb[0].mxu0
    %9384 = vmatprep.mubr.f32.mxu0 0.0
    %9385 = vmatmul.mubr.f32.gmra.mrb[0].mxu0 %v9289
    %v9386 = vpop.f32.mrb[0].mxu0
    %v9387 = vadd.f32 0.0, %v9386
    %v9388 = vpop.f32.mrb[0].mxu0
    %9389 = vmatprep.mubr.f32.mxu0 0.0
    %9390 = vmatmul.mubr.f32.gmra.mrb[0].mxu0 %v9292
    %v9391 = vpop.f32.mrb[0].mxu0
    %v9392 = vadd.f32 0.0, %v9391
    %v9393 = vpop.f32.mrb[0].mxu0
    %9394 = vmatprep.mubr.f32.mxu0 0.0
    %9395 = vmatmul.mubr.f32.gmra.mrb[0].mxu0 %v9295
    %v9396 = vpop.f32.mrb[0].mxu0
    %v9397 = vadd.f32 0.0, %v9396
    %v9398 = vpop.f32.mrb[0].mxu0
    %9399 = vmatprep.mubr.f32.mxu0 0.0
    %9400 = vmatmul.mubr.f32.gmra.mrb[0].mxu0 %v9298
    %v9401 = vpop.f32.mrb[0].mxu0
    %v9402 = vadd.f32 0.0, %v9401
    %v9403 = vpop.f32.mrb[0].mxu0
    %9404 = vdwg.mxu0
    %v9405 = vadd.f32 %v9091, %v9367
    %v9406 = vadd.f32 %v9096, %v9372
    %v9407 = vadd.f32 %v9101, %v9377
    %v9408 = vadd.f32 %v9106, %v9382
    %v9409 = vadd.f32 %v9111, %v9387
    %v9410 = vadd.f32 %v9116, %v9392
    %v9411 = vadd.f32 %v9121, %v9397
    %v9412 = vadd.f32 %v9126, %v9402
    %v9413 = vld [vmem:[%s111] sm:$0x1]
    %v9415 = vlaneseq
    %v9416 = vshrl.u32 %v9415, 7
    %v9417 = vsub.s32 0, %v9416
    %v9418 = vrot.slane %v9413, %v9417
    %v9420 = vadd.f32 %v9405, %v9418
    %v9421 = vadd.f32 %v9406, %v9418
    %v9422 = vadd.f32 %v9407, %v9418
    %v9423 = vadd.f32 %v9408, %v9418
    %v9424 = vadd.f32 %v9409, %v9418
    %v9425 = vadd.f32 %v9410, %v9418
    %v9426 = vadd.f32 %v9411, %v9418
    %v9427 = vadd.f32 %v9412, %v9418
    %v9428 = vxor.u32 %v9420, 2147483648
    %v9429 = vxor.u32 %v9421, 2147483648
    %v9430 = vxor.u32 %v9422, 2147483648
    %v9431 = vxor.u32 %v9423, 2147483648
    %v9432 = vxor.u32 %v9424, 2147483648
    %v9433 = vxor.u32 %v9425, 2147483648
    %v9434 = vxor.u32 %v9426, 2147483648
    %v9435 = vxor.u32 %v9427, 2147483648
    %v9436 = vmul.f32 %v9428, 1.442695
    %v9437 = vpow.pop %v9436
    %v9438 = vmul.f32 %v9429, 1.442695
    %v9439 = vpow.pop %v9438
    %v9440 = vmul.f32 %v9430, 1.442695
    %v9441 = vpow.pop %v9440
    %v9442 = vmul.f32 %v9431, 1.442695
    %v9443 = vpow.pop %v9442
    %v9444 = vmul.f32 %v9432, 1.442695
    %v9445 = vpow.pop %v9444
    %v9446 = vmul.f32 %v9433, 1.442695
    %v9447 = vpow.pop %v9446
    %v9448 = vmul.f32 %v9434, 1.442695
    %v9449 = vpow.pop %v9448
    %v9450 = vmul.f32 %v9435, 1.442695
    %v9451 = vpow.pop %v9450
    %v9452 = vadd.f32 %v9437, 1.0
    %v9453 = vadd.f32 %v9439, 1.0
    %v9454 = vadd.f32 %v9441, 1.0
    %v9455 = vadd.f32 %v9443, 1.0
    %v9456 = vadd.f32 %v9445, 1.0
    %v9457 = vadd.f32 %v9447, 1.0
    %v9458 = vadd.f32 %v9449, 1.0
    %v9459 = vadd.f32 %v9451, 1.0
    %v9460 = vrcp.pop %v9452
    %v9461 = vmul.f32 1.0, %v9460
    %v9462 = vrcp.pop %v9453
    %v9463 = vmul.f32 1.0, %v9462
    %v9464 = vrcp.pop %v9454
    %v9465 = vmul.f32 1.0, %v9464
    %v9466 = vrcp.pop %v9455
    %v9467 = vmul.f32 1.0, %v9466
    %v9468 = vrcp.pop %v9456
    %v9469 = vmul.f32 1.0, %v9468
    %v9470 = vrcp.pop %v9457
    %v9471 = vmul.f32 1.0, %v9470
    %v9472 = vrcp.pop %v9458
    %v9473 = vmul.f32 1.0, %v9472
    %v9474 = vrcp.pop %v9459
    %v9475 = vmul.f32 1.0, %v9474
    %vm9476 = vcmask 785408
    %9477 = vst.msk [vmem:[#allocation52] sm:$0xff] %vm9476, %v9461
    %9478 = vst.msk [vmem:[#allocation52 + $0x8] sm:$0xff] %vm9476, %v9463
    %9479 = vst.msk [vmem:[#allocation52 + $0x10] sm:$0xff] %vm9476, %v9465
    %9480 = vst.msk [vmem:[#allocation52 + $0x18] sm:$0xff] %vm9476, %v9467
    %9481 = vst.msk [vmem:[#allocation52 + $0x20] sm:$0xff] %vm9476, %v9469
    %9482 = vst.msk [vmem:[#allocation52 + $0x28] sm:$0xff] %vm9476, %v9471
    %9483 = vst.msk [vmem:[#allocation52 + $0x30] sm:$0xff] %vm9476, %v9473
    %9484 = vst.msk [vmem:[#allocation52 + $0x38] sm:$0xff] %vm9476, %v9475
    // Predicated region
    $region354: #{tpu_custom_call.1} parent=1 // pred_check
      _
    $region355: #{tpu_custom_call.1} parent=1 // pred_check_branch
      %9486 = sbr.rel (0) target = $region357
    $region356: #{tpu_custom_call.1} parent=1 // pred_region
      %s9488 = ssub.s32 1024, 1024
      %9489 = vsyncadd [#allocation4], %s9488
      %s9490 = sshll.u32 [#allocation52], 4
      %s9491 = int_to_ptr.vmem [resolvable:$true] %s9490
      %9496 = dma.vmem_to_hbm [thread:$0]  %s9491, 1024, %s113, [#allocation4], 128, 128, 8
    $region357: #{tpu_custom_call.1} parent=1 // pred_fallthru
      _
    // Predicated region
    $region358: #{tpu_custom_call.1} parent=1 // pred_check
      _
    $region359: #{tpu_custom_call.1} parent=1 // pred_check_branch
      %9498 = sbr.rel (0) target = $region361
    $region360: #{tpu_custom_call.1} parent=1 // pred_region
      %9499 = dma.done [#allocation4], 1024
    $region361: #{tpu_custom_call.1} parent=1 // pred_fallthru
      _
    %9500 = vsyncpa [#allocation3], 1
    %9501 = vsyncpa [#allocation6], 1
    %9502 = vsyncpa [#allocation9], 1
    %9503 = vsyncpa [#allocation12], 1
    %9504 = vsyncpa [#allocation15], 1
    %9505 = vsyncpa [#allocation18], 1
    %9506 = vsyncpa [#allocation21], 1
    %9507 = vsyncpa [#allocation24], 1
    %9508 = vsyncpa [#allocation27], 1
    %9509 = vsyncpa [#allocation30], 1
    %9510 = vsyncpa [#allocation33], 1
    %9511 = vsyncpa [#allocation36], 1
    %9512 = vsyncpa [#allocation39], 1
    %9513 = vsyncpa [#allocation42], 1
    %9514 = vsyncpa [#allocation45], 1
    %9515 = vsyncpa [#allocation48], 1
    %9516 = vsyncpa [#allocation51], 1
    %9517 = vsyncpa [#allocation4], 1

</llo_original>
